<compile_context>
chip_gen: v7x
topology: tpu7x:2x2x1
jax: 0.10.0
libtpu: 0.0.40
codegen_flags: <defaults>
</compile_context>

<pallas_src>
import functools
import math

import jax
import jax.numpy as jnp
from jax.experimental import pallas as pl
from jax.experimental.pallas import tpu as pltpu


# ---------------------------------------------------------------------------
# Pallas kernel: one grid step == `batch_tile` batch elements, all in VMEM.
# ---------------------------------------------------------------------------
def _attention_kernel(x_ref, wqkv_ref, wo_ref, nkv_ref, g_in_ref, g_out_ref, o_ref,
                      *, heads, dim_head, scale, matmul_dtype, approx_recip):
    eps = 1e-5          # LayerNorm eps for fp32 inputs
    l2_eps_sq = 1e-24   # F.normalize eps (1e-12), squared for the rsqrt form

    bt, n_tok, dim = x_ref.shape
    inner = heads * dim_head

    # --- input LayerNorm (unbiased=False variance, gain only) on (Bt*N, DIM) ---
    x = x_ref[...].reshape(bt * n_tok, dim)              # leading-dim collapse: layout-free
    mean = jnp.mean(x, axis=-1, keepdims=True)
    var = jnp.mean((x - mean) ** 2, axis=-1, keepdims=True)
    xn = (x - mean) * jax.lax.rsqrt(var + eps) * g_in_ref[...]

    # --- fused Q|K|V projection: ONE MXU push ---------------------------------
    qkv = jax.lax.dot_general(
        xn.astype(matmul_dtype), wqkv_ref[...],
        (((1,), (1,)), ((), ())),
        preferred_element_type=jnp.float32)               # (Bt*N, INNER + 2*DH)

    q = qkv[:, :inner]                                    # (Bt*N, INNER)
    k = qkv[:, inner:inner + dim_head]                    # (Bt*N, DH)
    v = qkv[:, inner + dim_head:]                         # (Bt*N, DH)

    def l2norm(t):
        # t * rsqrt(max(sum(t^2), eps^2)) == t / max(||t||, eps); rsqrt -> EUP slot.
        ssq = jnp.sum(t * t, axis=-1, keepdims=True)
        return t * jax.lax.rsqrt(jnp.maximum(ssq, l2_eps_sq))

    # head-major reorder done ONCE: static per-head lane slices + leading-axis stack
    qh = jnp.stack(
        [q[:, h * dim_head:(h + 1) * dim_head].reshape(bt, n_tok, dim_head)
         for h in range(heads)], axis=1)                  # (Bt, H, N, DH)

    qn = l2norm(qh)                                       # (Bt, H, N, DH) fp32
    kn = l2norm(k).reshape(bt, n_tok, dim_head)           # (Bt, N, DH)
    vv = v.reshape(bt, n_tok, dim_head)                   # (Bt, N, DH)
    nk = l2norm(nkv_ref[0:1, :])                          # (1, DH) null key
    nv = nkv_ref[1:2, :]                                  # (1, DH) null value

    # --- cosine-sim scores (scale folded into one post-matmul multiply) -------
    # NOTE: the reference's `q * scale` before l2norm is a mathematical no-op (it only
    # differs for degenerate ||q|| < 1e-12 rows) and is dropped.
    s = jnp.einsum('bhnd,bmd->bhnm',
                   qn.astype(matmul_dtype), kn.astype(matmul_dtype),
                   preferred_element_type=jnp.float32) * scale    # (Bt, H, N, N)
    s0 = jnp.sum(qn * nk, axis=-1, keepdims=True) * scale          # (Bt, H, N, 1) null logit

    # --- fp32 softmax over [null | real] keys (null column folded analytically) ---
    m = jnp.maximum(jnp.max(s, axis=-1, keepdims=True), s0)
    p = jnp.exp(s - m)                                              # (Bt, H, N, N)
    p0 = jnp.exp(s0 - m)                                            # (Bt, H, N, 1)
    inv = pl.reciprocal(jnp.sum(p, axis=-1, keepdims=True) + p0,
                        approx=approx_recip)

    o = jnp.einsum('bhnm,bmd->bhnd',
                   p.astype(matmul_dtype), vv.astype(matmul_dtype),
                   preferred_element_type=jnp.float32)              # (Bt, H, N, DH)
    o = (o + p0 * nv) * inv

    # --- output projection: per-head matmul + head-sum ------------------------
    # (cheaper than the (H,N,DH) -> (N, H*DH) lane/sublane relayout at this size)
    po = jnp.einsum('bhne,hed->bhnd',
                    o.astype(matmul_dtype), wo_ref[...],
                    preferred_element_type=jnp.float32)             # (Bt, H, N, DIM)
    proj = jnp.sum(po, axis=1)                                      # (Bt, N, DIM)

    # --- output LayerNorm ------------------------------------------------------
    mean2 = jnp.mean(proj, axis=-1, keepdims=True)
    var2 = jnp.mean((proj - mean2) ** 2, axis=-1, keepdims=True)
    o_ref[...] = ((proj - mean2) * jax.lax.rsqrt(var2 + eps)
                  * g_out_ref[...]).astype(o_ref.dtype)


# ---------------------------------------------------------------------------
# Wrapper: parameter plumbing + pallas_call
# ---------------------------------------------------------------------------
def _default_batch_tile(b):
    """v7x has 2 TensorCores: keep >=2 'parallel' grid steps there so megacore can
    shard the batch.  Single-TC chips (v5e/v6e) fold the whole batch into one step
    to amortize the ~0.35us per-grid-step overhead that dominates at toy shapes."""
    try:
        kind = jax.devices()[0].device_kind.lower()
    except Exception:
        kind = ""
    if "v7" in kind and b >= 2 and b % 2 == 0:
        return b // 2
    return b


def attention_pallas(x, params, *, heads, dim_head, cosine_sim_scale=16.0,
                     matmul_dtype=jnp.float32, batch_tile=None,
                     approx_reciprocal=False):
    # matmul_dtype=jnp.bfloat16 (and approx_reciprocal=True) is recommended for any
    # non-toy size; fp32 accumulation and fp32 softmax/LayerNorm are kept either way.
    b, n, dim = x.shape
    inner = heads * dim_head

    if batch_tile is None:
        batch_tile = _default_batch_tile(b)
    if b % batch_tile != 0:
        batch_tile = b
    steps = b // batch_tile

    # Fused Q|K|V weight; weights pre-cast ONCE here (no per-step kernel casts,
    # and half the weight DMA bytes when matmul_dtype is bf16).
    wqkv = jnp.concatenate([params["wq"], params["wkv"]], axis=0).astype(matmul_dtype)  # (INNER+2DH, DIM)
    wo_r = params["wo"].T.reshape(heads, dim_head, dim).astype(matmul_dtype)            # (H, DH, DIM)
    null_kv = params["null_kv"]                                                         # (2, DH) fp32
    g_in = params["g_in"].reshape(1, dim)
    g_out = params["g_out"].reshape(1, dim)

    kernel = functools.partial(
        _attention_kernel, heads=heads, dim_head=dim_head,
        scale=float(cosine_sim_scale), matmul_dtype=matmul_dtype,
        approx_recip=approx_reciprocal)

    # TODO(synk): if this kernel is ever run at production sequence lengths (N >~ 1-2k)
    # the whole-sequence-in-VMEM design needs a KV-tile grid axis with online softmax,
    # single-buffered weight specs (pipeline_mode=pl.Buffered(1)) and a lane-dense
    # output slab — all irrelevant at these toy shapes.
    return pl.pallas_call(
        kernel,
        out_shape=jax.ShapeDtypeStruct((b, n, dim), x.dtype),
        grid_spec=pl.GridSpec(
            grid=(steps,),
            in_specs=[
                pl.BlockSpec((batch_tile, n, dim), lambda i: (i, 0, 0)),        # x
                pl.BlockSpec((inner + 2 * dim_head, dim), lambda i: (0, 0)),    # fused Wq|Wk|Wv
                pl.BlockSpec((heads, dim_head, dim), lambda i: (0, 0, 0)),      # Wo^T (head-major)
                pl.BlockSpec((2, dim_head), lambda i: (0, 0)),                  # null_kv
                pl.BlockSpec((1, dim), lambda i: (0, 0)),                       # g_in
                pl.BlockSpec((1, dim), lambda i: (0, 0)),                       # g_out
            ],
            out_specs=pl.BlockSpec((batch_tile, n, dim), lambda i: (i, 0, 0)),
        ),
        compiler_params=pltpu.CompilerParams(
            dimension_semantics=("parallel",)),   # batch steps are independent -> v7x megacore
    )(x, wqkv, wo_r, null_kv, g_in, g_out)


# ---------------------------------------------------------------------------
# Pure-JAX reference (mirrors the PyTorch forward exactly) for verification.
# ---------------------------------------------------------------------------
def attention_ref(x, params, *, heads, dim_head, cosine_sim_scale=16.0):
    b, n, dim = x.shape
    eps = 1e-5
    scale = float(cosine_sim_scale)

    def layernorm(t, g):
        mean = t.mean(-1, keepdims=True)
        var = ((t - mean) ** 2).mean(-1, keepdims=True)
        return (t - mean) * jax.lax.rsqrt(var + eps) * g

    def l2n(t):
        nrm = jnp.sqrt(jnp.sum(t * t, axis=-1, keepdims=True))
        return t / jnp.maximum(nrm, 1e-12)

    xn = layernorm(x, params["g_in"])
    q = xn @ params["wq"].T                                   # (b, n, inner)
    kv = xn @ params["wkv"].T
    k, v = kv[..., :dim_head], kv[..., dim_head:]

    q = q.reshape(b, n, heads, dim_head).transpose(0, 2, 1, 3) * scale
    nk = jnp.broadcast_to(params["null_kv"][0], (b, 1, dim_head))
    nv = jnp.broadcast_to(params["null_kv"][1], (b, 1, dim_head))
    k = jnp.concatenate([nk, k], axis=1)
    v = jnp.concatenate([nv, v], axis=1)

    q, k = l2n(q), l2n(k)
    q, k = q * math.sqrt(scale), k * math.sqrt(scale)
    sim = jnp.einsum("bhid,bjd->bhij", q, k)
    attn = jax.nn.softmax(sim.astype(jnp.float32), axis=-1)
    out = jnp.einsum("bhij,bjd->bhid", attn, v)
    out = out.transpose(0, 2, 1, 3).reshape(b, n, heads * dim_head)
    out = out @ params["wo"].T
    return layernorm(out, params["g_out"])


if __name__ == "__main__":
    # Small shapes consistent with the module
    B, N, DIM = 2, 8, 32
    HEADS, DIM_HEAD = 4, 16
    INNER = HEADS * DIM_HEAD

    key = jax.random.PRNGKey(0)
    kx, kq, kkv, ko, knull = jax.random.split(key, 5)

    x = jax.random.normal(kx, (B, N, DIM), dtype=jnp.float32)
    params = {
        "wq": jax.random.normal(kq, (INNER, DIM), dtype=jnp.float32) * 0.02,
        "wkv": jax.random.normal(kkv, (2 * DIM_HEAD, DIM), dtype=jnp.float32) * 0.02,
        "wo": jax.random.normal(ko, (DIM, INNER), dtype=jnp.float32) * 0.02,
        "null_kv": jax.random.normal(knull, (2, DIM_HEAD), dtype=jnp.float32),
        "g_in": jnp.ones((DIM,), dtype=jnp.float32),     # LayerNorm g init = ones
        "g_out": jnp.ones((DIM,), dtype=jnp.float32),
    }

    out = attention_pallas(x, params, heads=HEADS, dim_head=DIM_HEAD)
    out = jax.block_until_ready(out)

    ref = attention_ref(x, params, heads=HEADS, dim_head=DIM_HEAD)
    ref = jax.block_until_ready(ref)

    assert out.shape == (B, N, DIM)
    assert jnp.allclose(out, ref, rtol=1e-4, atol=1e-4), (
        float(jnp.max(jnp.abs(out - ref))))

    print("KERNEL_OK")
</pallas_src>

<mosaic_0001>
module attributes {stable_mosaic.version = 11 : i64} {
  func.func @_attention_kernel(%arg0: i32, %arg1: memref<2x8x32xf32, #tpu.memory_space<vmem>>, %arg2: memref<96x32xf32, #tpu.memory_space<vmem>>, %arg3: memref<4x16x32xf32, #tpu.memory_space<vmem>>, %arg4: memref<2x16xf32, #tpu.memory_space<vmem>>, %arg5: memref<1x32xf32, #tpu.memory_space<vmem>>, %arg6: memref<1x32xf32, #tpu.memory_space<vmem>>, %arg7: memref<2x8x32xf32, #tpu.memory_space<vmem>>) attributes {dimension_semantics = [#tpu.dimension_semantics<parallel>], iteration_bounds = array<i64: 1>, scalar_prefetch = 0 : i64, scratch_operands = 0 : i64, tpu.core_type = #tpu.core_type<tc>, window_params = [{transform_indices = @transform_0, window_bounds = array<i64: 2, 8, 32>}, {pipeline_mode = #tpu.pipeline_mode<synchronous>, transform_indices = @transform_1, window_bounds = array<i64: 96, 32>}, {pipeline_mode = #tpu.pipeline_mode<synchronous>, transform_indices = @transform_2, window_bounds = array<i64: 4, 16, 32>}, {pipeline_mode = #tpu.pipeline_mode<synchronous>, transform_indices = @transform_3, window_bounds = array<i64: 2, 16>}, {pipeline_mode = #tpu.pipeline_mode<synchronous>, transform_indices = @transform_4, window_bounds = array<i64: 1, 32>}, {pipeline_mode = #tpu.pipeline_mode<synchronous>, transform_indices = @transform_5, window_bounds = array<i64: 1, 32>}, {transform_indices = @transform_6, window_bounds = array<i64: 2, 8, 32>}]} {
    %c0 = arith.constant 0 : index
    %c0_0 = arith.constant 0 : index
    %c0_1 = arith.constant 0 : index
    %0 = vector.load %arg1[%c0, %c0_0, %c0_1] : memref<2x8x32xf32, #tpu.memory_space<vmem>>, vector<2x8x32xf32>
    %1 = vector.shape_cast %0 : vector<2x8x32xf32> to vector<16x32xf32>
    %cst = arith.constant dense<0.000000e+00> : vector<16xf32>
    %2 = vector.multi_reduction <add>, %1, %cst [1] : vector<16x32xf32> to vector<16xf32>
    %3 = vector.shape_cast %2 : vector<16xf32> to vector<16x1xf32>
    %cst_2 = arith.constant 3.200000e+01 : f32
    %4 = vector.broadcast %cst_2 : f32 to vector<16x1xf32>
    %5 = arith.divf %3, %4 : vector<16x1xf32>
    %6 = vector.broadcast %5 : vector<16x1xf32> to vector<16x32xf32>
    %7 = arith.subf %1, %6 : vector<16x32xf32>
    %8 = arith.mulf %7, %7 : vector<16x32xf32>
    %cst_3 = arith.constant dense<0.000000e+00> : vector<16xf32>
    %9 = vector.multi_reduction <add>, %8, %cst_3 [1] : vector<16x32xf32> to vector<16xf32>
    %10 = vector.shape_cast %9 : vector<16xf32> to vector<16x1xf32>
    %cst_4 = arith.constant 3.200000e+01 : f32
    %11 = vector.broadcast %cst_4 : f32 to vector<16x1xf32>
    %12 = arith.divf %10, %11 : vector<16x1xf32>
    %13 = vector.broadcast %5 : vector<16x1xf32> to vector<16x32xf32>
    %14 = arith.subf %1, %13 : vector<16x32xf32>
    %cst_5 = arith.constant 9.99999974E-6 : f32
    %15 = vector.broadcast %cst_5 : f32 to vector<16x1xf32>
    %16 = arith.addf %12, %15 : vector<16x1xf32>
    %17 = math.rsqrt %16 : vector<16x1xf32>
    %18 = vector.broadcast %17 : vector<16x1xf32> to vector<16x32xf32>
    %19 = arith.mulf %14, %18 : vector<16x32xf32>
    %c0_6 = arith.constant 0 : index
    %c0_7 = arith.constant 0 : index
    %20 = vector.load %arg5[%c0_6, %c0_7] : memref<1x32xf32, #tpu.memory_space<vmem>>, vector<1x32xf32>
    %21 = vector.broadcast %20 : vector<1x32xf32> to vector<16x32xf32>
    %22 = arith.mulf %19, %21 : vector<16x32xf32>
    %c0_8 = arith.constant 0 : index
    %c0_9 = arith.constant 0 : index
    %23 = vector.load %arg2[%c0_8, %c0_9] : memref<96x32xf32, #tpu.memory_space<vmem>>, vector<96x32xf32>
    %cst_10 = arith.constant dense<0.000000e+00> : vector<16x96xf32>
    %24 = tpu.matmul %22, %23, %cst_10 {dimension_numbers = #tpu.dot_dimension_numbers<[1], [1], [0], [0], [0, 0, 1, 0], [], []>} : vector<16x32xf32>, vector<96x32xf32>, vector<16x96xf32> -> vector<16x96xf32>
    %25 = vector.extract_strided_slice %24 {offsets = [0, 0], sizes = [16, 64], strides = [1, 1]} : vector<16x96xf32> to vector<16x64xf32>
    %26 = vector.extract_strided_slice %24 {offsets = [0, 64], sizes = [16, 16], strides = [1, 1]} : vector<16x96xf32> to vector<16x16xf32>
    %27 = vector.extract_strided_slice %24 {offsets = [0, 80], sizes = [16, 16], strides = [1, 1]} : vector<16x96xf32> to vector<16x16xf32>
    %28 = vector.extract_strided_slice %25 {offsets = [0, 0], sizes = [16, 16], strides = [1, 1]} : vector<16x64xf32> to vector<16x16xf32>
    %29 = vector.shape_cast %28 : vector<16x16xf32> to vector<2x8x16xf32>
    %30 = vector.extract_strided_slice %25 {offsets = [0, 16], sizes = [16, 16], strides = [1, 1]} : vector<16x64xf32> to vector<16x16xf32>
    %31 = vector.shape_cast %30 : vector<16x16xf32> to vector<2x8x16xf32>
    %32 = vector.extract_strided_slice %25 {offsets = [0, 32], sizes = [16, 16], strides = [1, 1]} : vector<16x64xf32> to vector<16x16xf32>
    %33 = vector.shape_cast %32 : vector<16x16xf32> to vector<2x8x16xf32>
    %34 = vector.extract_strided_slice %25 {offsets = [0, 48], sizes = [16, 16], strides = [1, 1]} : vector<16x64xf32> to vector<16x16xf32>
    %35 = vector.shape_cast %34 : vector<16x16xf32> to vector<2x8x16xf32>
    %36 = vector.shape_cast %29 : vector<2x8x16xf32> to vector<2x1x8x16xf32>
    %37 = vector.shape_cast %31 : vector<2x8x16xf32> to vector<2x1x8x16xf32>
    %38 = vector.shape_cast %33 : vector<2x8x16xf32> to vector<2x1x8x16xf32>
    %39 = vector.shape_cast %35 : vector<2x8x16xf32> to vector<2x1x8x16xf32>
    %40 = tpu.concatenate %36, %37, %38, %39 in 1 : vector<2x1x8x16xf32>, vector<2x1x8x16xf32>, vector<2x1x8x16xf32>, vector<2x1x8x16xf32> -> vector<2x4x8x16xf32>
    %41 = arith.mulf %40, %40 : vector<2x4x8x16xf32>
    %cst_11 = arith.constant dense<0.000000e+00> : vector<2x4x8xf32>
    %42 = vector.multi_reduction <add>, %41, %cst_11 [3] : vector<2x4x8x16xf32> to vector<2x4x8xf32>
    %43 = vector.shape_cast %42 : vector<2x4x8xf32> to vector<2x4x8x1xf32>
    %cst_12 = arith.constant 1.000000e-24 : f32
    %44 = vector.broadcast %cst_12 : f32 to vector<2x4x8x1xf32>
    %45 = arith.maximumf %43, %44 : vector<2x4x8x1xf32>
    %46 = math.rsqrt %45 : vector<2x4x8x1xf32>
    %47 = vector.broadcast %46 : vector<2x4x8x1xf32> to vector<2x4x8x16xf32>
    %48 = arith.mulf %40, %47 : vector<2x4x8x16xf32>
    %49 = arith.mulf %26, %26 : vector<16x16xf32>
    %cst_13 = arith.constant dense<0.000000e+00> : vector<16xf32>
    %50 = vector.multi_reduction <add>, %49, %cst_13 [1] : vector<16x16xf32> to vector<16xf32>
    %51 = vector.shape_cast %50 : vector<16xf32> to vector<16x1xf32>
    %cst_14 = arith.constant 1.000000e-24 : f32
    %52 = vector.broadcast %cst_14 : f32 to vector<16x1xf32>
    %53 = arith.maximumf %51, %52 : vector<16x1xf32>
    %54 = math.rsqrt %53 : vector<16x1xf32>
    %55 = vector.broadcast %54 : vector<16x1xf32> to vector<16x16xf32>
    %56 = arith.mulf %26, %55 : vector<16x16xf32>
    %57 = vector.shape_cast %56 : vector<16x16xf32> to vector<2x8x16xf32>
    %58 = vector.shape_cast %27 : vector<16x16xf32> to vector<2x8x16xf32>
    %c0_15 = arith.constant 0 : index
    %c0_16 = arith.constant 0 : index
    %59 = vector.load %arg4[%c0_15, %c0_16] : memref<2x16xf32, #tpu.memory_space<vmem>>, vector<1x16xf32>
    %60 = arith.mulf %59, %59 : vector<1x16xf32>
    %cst_17 = arith.constant dense<0.000000e+00> : vector<1xf32>
    %61 = vector.multi_reduction <add>, %60, %cst_17 [1] : vector<1x16xf32> to vector<1xf32>
    %62 = vector.shape_cast %61 : vector<1xf32> to vector<1x1xf32>
    %cst_18 = arith.constant 1.000000e-24 : f32
    %63 = vector.broadcast %cst_18 : f32 to vector<1x1xf32>
    %64 = arith.maximumf %62, %63 : vector<1x1xf32>
    %65 = math.rsqrt %64 : vector<1x1xf32>
    %66 = vector.broadcast %65 : vector<1x1xf32> to vector<1x16xf32>
    %67 = arith.mulf %59, %66 : vector<1x16xf32>
    %c1 = arith.constant 1 : index
    %c0_19 = arith.constant 0 : index
    %68 = vector.load %arg4[%c1, %c0_19] : memref<2x16xf32, #tpu.memory_space<vmem>>, vector<1x16xf32>
    "tpu.trace_start"() <{level = 10 : i32, message = "bhnd,bmd->bhnm"}> : () -> ()
    %cst_20 = arith.constant dense<0.000000e+00> : vector<2x4x8x8xf32>
    %69 = tpu.matmul %48, %57, %cst_20 {dimension_numbers = #tpu.dot_dimension_numbers<[3], [2], [1, 2], [1], [0, 0, 0, 1, 0, 2, 1, 1], [0], [0]>} : vector<2x4x8x16xf32>, vector<2x8x16xf32>, vector<2x4x8x8xf32> -> vector<2x4x8x8xf32>
    "tpu.trace_stop"() : () -> ()
    %cst_21 = arith.constant 1.600000e+01 : f32
    %70 = vector.broadcast %cst_21 : f32 to vector<2x4x8x8xf32>
    %71 = arith.mulf %69, %70 : vector<2x4x8x8xf32>
    %72 = vector.shape_cast %67 : vector<1x16xf32> to vector<1x1x1x16xf32>
    %73 = vector.broadcast %72 : vector<1x1x1x16xf32> to vector<2x4x8x16xf32>
    %74 = arith.mulf %48, %73 : vector<2x4x8x16xf32>
    %cst_22 = arith.constant dense<0.000000e+00> : vector<2x4x8xf32>
    %75 = vector.multi_reduction <add>, %74, %cst_22 [3] : vector<2x4x8x16xf32> to vector<2x4x8xf32>
    %76 = vector.shape_cast %75 : vector<2x4x8xf32> to vector<2x4x8x1xf32>
    %cst_23 = arith.constant 1.600000e+01 : f32
    %77 = vector.broadcast %cst_23 : f32 to vector<2x4x8x1xf32>
    %78 = arith.mulf %76, %77 : vector<2x4x8x1xf32>
    %cst_24 = arith.constant dense<0xFF800000> : vector<2x4x8xf32>
    %79 = vector.multi_reduction <maximumf>, %71, %cst_24 [3] : vector<2x4x8x8xf32> to vector<2x4x8xf32>
    %80 = vector.shape_cast %79 : vector<2x4x8xf32> to vector<2x4x8x1xf32>
    %81 = arith.maximumf %80, %78 : vector<2x4x8x1xf32>
    %82 = vector.broadcast %81 : vector<2x4x8x1xf32> to vector<2x4x8x8xf32>
    %83 = arith.subf %71, %82 : vector<2x4x8x8xf32>
    %84 = math.exp %83 : vector<2x4x8x8xf32>
    %85 = arith.subf %78, %81 : vector<2x4x8x1xf32>
    %86 = math.exp %85 : vector<2x4x8x1xf32>
    %cst_25 = arith.constant dense<0.000000e+00> : vector<2x4x8xf32>
    %87 = vector.multi_reduction <add>, %84, %cst_25 [3] : vector<2x4x8x8xf32> to vector<2x4x8xf32>
    %88 = vector.shape_cast %87 : vector<2x4x8xf32> to vector<2x4x8x1xf32>
    %89 = arith.addf %88, %86 : vector<2x4x8x1xf32>
    %90 = tpu.reciprocal %89 : vector<2x4x8x1xf32> -> vector<2x4x8x1xf32>
    "tpu.trace_start"() <{level = 10 : i32, message = "bhnm,bmd->bhnd"}> : () -> ()
    %cst_26 = arith.constant dense<0.000000e+00> : vector<2x4x8x16xf32>
    %91 = tpu.matmul %84, %58, %cst_26 {dimension_numbers = #tpu.dot_dimension_numbers<[3], [1], [1, 2], [2], [0, 0, 0, 1, 0, 2, 1, 2], [0], [0]>} : vector<2x4x8x8xf32>, vector<2x8x16xf32>, vector<2x4x8x16xf32> -> vector<2x4x8x16xf32>
    "tpu.trace_stop"() : () -> ()
    %92 = vector.shape_cast %68 : vector<1x16xf32> to vector<1x1x1x16xf32>
    %93 = vector.broadcast %86 : vector<2x4x8x1xf32> to vector<2x4x8x16xf32>
    %94 = vector.broadcast %92 : vector<1x1x1x16xf32> to vector<2x4x8x16xf32>
    %95 = arith.mulf %93, %94 : vector<2x4x8x16xf32>
    %96 = arith.addf %91, %95 : vector<2x4x8x16xf32>
    %97 = vector.broadcast %90 : vector<2x4x8x1xf32> to vector<2x4x8x16xf32>
    %98 = arith.mulf %96, %97 : vector<2x4x8x16xf32>
    %c0_27 = arith.constant 0 : index
    %c0_28 = arith.constant 0 : index
    %c0_29 = arith.constant 0 : index
    %99 = vector.load %arg3[%c0_27, %c0_28, %c0_29] : memref<4x16x32xf32, #tpu.memory_space<vmem>>, vector<4x16x32xf32>
    "tpu.trace_start"() <{level = 10 : i32, message = "bhne,hed->bhnd"}> : () -> ()
    %cst_30 = arith.constant dense<0.000000e+00> : vector<4x32x2x8xf32>
    %100 = tpu.matmul %99, %98, %cst_30 {dimension_numbers = #tpu.dot_dimension_numbers<[1], [3], [2], [0, 2], [0, 0, 0, 2, 1, 0, 1, 2], [0], [1]>} : vector<4x16x32xf32>, vector<2x4x8x16xf32>, vector<4x32x2x8xf32> -> vector<4x32x2x8xf32>
    %101 = tpu.transpose %100, [2, 0, 3, 1] : vector<4x32x2x8xf32> -> vector<2x4x8x32xf32>
    "tpu.trace_stop"() : () -> ()
    %cst_31 = arith.constant dense<0.000000e+00> : vector<2x8x32xf32>
    %102 = vector.multi_reduction <add>, %101, %cst_31 [1] : vector<2x4x8x32xf32> to vector<2x8x32xf32>
    %cst_32 = arith.constant dense<0.000000e+00> : vector<2x8xf32>
    %103 = vector.multi_reduction <add>, %102, %cst_32 [2] : vector<2x8x32xf32> to vector<2x8xf32>
    %104 = vector.shape_cast %103 : vector<2x8xf32> to vector<2x8x1xf32>
    %cst_33 = arith.constant 3.200000e+01 : f32
    %105 = vector.broadcast %cst_33 : f32 to vector<2x8x1xf32>
    %106 = arith.divf %104, %105 : vector<2x8x1xf32>
    %107 = vector.broadcast %106 : vector<2x8x1xf32> to vector<2x8x32xf32>
    %108 = arith.subf %102, %107 : vector<2x8x32xf32>
    %109 = arith.mulf %108, %108 : vector<2x8x32xf32>
    %cst_34 = arith.constant dense<0.000000e+00> : vector<2x8xf32>
    %110 = vector.multi_reduction <add>, %109, %cst_34 [2] : vector<2x8x32xf32> to vector<2x8xf32>
    %111 = vector.shape_cast %110 : vector<2x8xf32> to vector<2x8x1xf32>
    %cst_35 = arith.constant 3.200000e+01 : f32
    %112 = vector.broadcast %cst_35 : f32 to vector<2x8x1xf32>
    %113 = arith.divf %111, %112 : vector<2x8x1xf32>
    %114 = vector.broadcast %106 : vector<2x8x1xf32> to vector<2x8x32xf32>
    %115 = arith.subf %102, %114 : vector<2x8x32xf32>
    %cst_36 = arith.constant 9.99999974E-6 : f32
    %116 = vector.broadcast %cst_36 : f32 to vector<2x8x1xf32>
    %117 = arith.addf %113, %116 : vector<2x8x1xf32>
    %118 = math.rsqrt %117 : vector<2x8x1xf32>
    %119 = vector.broadcast %118 : vector<2x8x1xf32> to vector<2x8x32xf32>
    %120 = arith.mulf %115, %119 : vector<2x8x32xf32>
    %c0_37 = arith.constant 0 : index
    %c0_38 = arith.constant 0 : index
    %121 = vector.load %arg6[%c0_37, %c0_38] : memref<1x32xf32, #tpu.memory_space<vmem>>, vector<1x32xf32>
    %122 = vector.shape_cast %121 : vector<1x32xf32> to vector<1x1x32xf32>
    %123 = vector.broadcast %122 : vector<1x1x32xf32> to vector<2x8x32xf32>
    %124 = arith.mulf %120, %123 : vector<2x8x32xf32>
    %c0_39 = arith.constant 0 : index
    %c0_40 = arith.constant 0 : index
    %c0_41 = arith.constant 0 : index
    %125 = vector.load %arg7[%c0_39, %c0_40, %c0_41] : memref<2x8x32xf32, #tpu.memory_space<vmem>>, vector<2x8x32xf32>
    tpu.vector_store %arg7[%c0_39, %c0_40, %c0_41], %124 {strides = array<i32>} : memref<2x8x32xf32, #tpu.memory_space<vmem>>, vector<2x8x32xf32>,
    return
  }
  func.func @transform_0(%arg0: i32) -> (i32, i32, i32) {
    %c0_i32 = arith.constant 0 : i32
    %c0_i32_0 = arith.constant 0 : i32
    %c0_i32_1 = arith.constant 0 : i32
    return %arg0, %c0_i32, %c0_i32_0 : i32, i32, i32
  }
  func.func @transform_1(%arg0: i32) -> (i32, i32) {
    %c0_i32 = arith.constant 0 : i32
    %c0_i32_0 = arith.constant 0 : i32
    %c0_i32_1 = arith.constant 0 : i32
    return %c0_i32, %c0_i32_0 : i32, i32
  }
  func.func @transform_2(%arg0: i32) -> (i32, i32, i32) {
    %c0_i32 = arith.constant 0 : i32
    %c0_i32_0 = arith.constant 0 : i32
    %c0_i32_1 = arith.constant 0 : i32
    %c0_i32_2 = arith.constant 0 : i32
    return %c0_i32, %c0_i32_0, %c0_i32_1 : i32, i32, i32
  }
  func.func @transform_3(%arg0: i32) -> (i32, i32) {
    %c0_i32 = arith.constant 0 : i32
    %c0_i32_0 = arith.constant 0 : i32
    %c0_i32_1 = arith.constant 0 : i32
    return %c0_i32, %c0_i32_0 : i32, i32
  }
  func.func @transform_4(%arg0: i32) -> (i32, i32) {
    %c0_i32 = arith.constant 0 : i32
    %c0_i32_0 = arith.constant 0 : i32
    %c0_i32_1 = arith.constant 0 : i32
    return %c0_i32, %c0_i32_0 : i32, i32
  }
  func.func @transform_5(%arg0: i32) -> (i32, i32) {
    %c0_i32 = arith.constant 0 : i32
    %c0_i32_0 = arith.constant 0 : i32
    %c0_i32_1 = arith.constant 0 : i32
    return %c0_i32, %c0_i32_0 : i32, i32
  }
  func.func @transform_6(%arg0: i32) -> (i32, i32, i32) {
    %c0_i32 = arith.constant 0 : i32
    %c0_i32_0 = arith.constant 0 : i32
    %c0_i32_1 = arith.constant 0 : i32
    return %arg0, %c0_i32, %c0_i32_0 : i32, i32, i32
  }
}

</mosaic_0001>

<llo_original>
// kernel: tpu_custom_call.1
$region0: #{tpu_custom_call.1}
  #allocation0 [shape = 'u32[]', space=smem, size = 0x4, offset = 0x4, fixed_abs, tag = 'smem constant byte address 0x4 - core index']
  #allocation1 [shape = 'u32[144,128]{1,0:T(1,128)}', space=vmem, size = 0x12000, scoped, tag = 'internal scratch']
  %s0 = inlined_call_operand.vmem [shape: f32[2,8,32], index: 0, kind: input, shape index: {}]
  %s1 = inlined_call_operand.vmem [shape: f32[96,32], index: 1, kind: input, shape index: {}]
  %s2 = inlined_call_operand.vmem [shape: f32[4,16,32], index: 2, kind: input, shape index: {}]
  %s3 = inlined_call_operand.vmem [shape: f32[2,16], index: 3, kind: input, shape index: {}]
  %s4 = inlined_call_operand.vmem [shape: f32[1,32], index: 4, kind: input, shape index: {}]
  %s5 = inlined_call_operand.vmem [shape: f32[1,32], index: 5, kind: input, shape index: {}]
  %s6 = inlined_call_operand.hbm [shape: f32[2,8,32], index: 6, kind: output, shape index: {}]
  %s7 = sld [smem:[#allocation0]]
  $region34: #{tpu_custom_call.1} parent=0
    _
  %s9 = ssub.s32 1, %s7
  %s10 = scalar_select 0, %s9, %s7
  $region1: #{tpu_custom_call.1} parent=0
    #allocation2 [shape = 'u8[8192]{0}', space=vmem, size = 0x2000, scoped, tag = 'output window, operand 0, single buffered']
    #allocation3 [shape = 's32[1]{0}', space=sflag, size = 0x4, scoped, tag = 'scoped memory for tpu_custom_call.1']
    %11 = vsyncpa [#allocation3], 0
    // Predicated region
    $region2: #{tpu_custom_call.1} parent=1 // pred_check
      _
    $region3: #{tpu_custom_call.1} parent=1 // pred_check_branch
      %13 = sbr.rel (0) target = $region5
    $region4: #{tpu_custom_call.1} parent=1 // pred_region
      _
    $region5: #{tpu_custom_call.1} parent=1 // pred_fallthru
      _
    // Predicated region
    $region6: #{tpu_custom_call.1} parent=1 // pred_check
      _
    $region7: #{tpu_custom_call.1} parent=1 // pred_check_branch
      %15 = sbr.rel (0) target = $region9
    $region8: #{tpu_custom_call.1} parent=1 // pred_region
      _
    $region9: #{tpu_custom_call.1} parent=1 // pred_fallthru
      _
    // Predicated region
    $region10: #{tpu_custom_call.1} parent=1 // pred_check
      _
    $region11: #{tpu_custom_call.1} parent=1 // pred_check_branch
      %17 = sbr.rel (0) target = $region13
    $region12: #{tpu_custom_call.1} parent=1 // pred_region
      _
    $region13: #{tpu_custom_call.1} parent=1 // pred_fallthru
      _
    // Predicated region
    $region14: #{tpu_custom_call.1} parent=1 // pred_check
      _
    $region15: #{tpu_custom_call.1} parent=1 // pred_check_branch
      %19 = sbr.rel (0) target = $region17
    $region16: #{tpu_custom_call.1} parent=1 // pred_region
      _
    $region17: #{tpu_custom_call.1} parent=1 // pred_fallthru
      _
    // Predicated region
    $region18: #{tpu_custom_call.1} parent=1 // pred_check
      _
    $region19: #{tpu_custom_call.1} parent=1 // pred_check_branch
      %21 = sbr.rel (0) target = $region21
    $region20: #{tpu_custom_call.1} parent=1 // pred_region
      _
    $region21: #{tpu_custom_call.1} parent=1 // pred_fallthru
      _
    // Predicated region
    $region22: #{tpu_custom_call.1} parent=1 // pred_check
      _
    $region23: #{tpu_custom_call.1} parent=1 // pred_check_branch
      %23 = sbr.rel (0) target = $region25
    $region24: #{tpu_custom_call.1} parent=1 // pred_region
      _
    $region25: #{tpu_custom_call.1} parent=1 // pred_fallthru
      _
    %v24 = vld [vmem:[%s0] sm:$0xff]
    %v25 = vld [vmem:[%s0 + $0x8] sm:$0xff]
    %vm26 = vcmask 261120
    %v27 = vsel %vm26, %v24, 0.0
    %28 = vadd.xlane.f32.xlu0 %v27
    %v29 = vpop.xlane.xlu0 %28
    %v30 = vsel %vm26, %v25, 0.0
    %31 = vadd.xlane.f32.xlu0 %v30
    %v32 = vpop.xlane.xlu0 %31
    %v33 = vrcp.pop 32.0
    %v34 = vmul.f32 %v29, %v33
    %v35 = vmul.f32 %v32, %v33
    %v36 = vsub.f32 %v24, %v34
    %v37 = vsub.f32 %v25, %v35
    %v38 = vmul.f32 %v36, %v36
    %v39 = vmul.f32 %v37, %v37
    %v40 = vsel %vm26, %v38, 0.0
    %41 = vadd.xlane.f32.xlu0 %v40
    %v42 = vpop.xlane.xlu0 %41
    %v43 = vsel %vm26, %v39, 0.0
    %44 = vadd.xlane.f32.xlu0 %v43
    %v45 = vpop.xlane.xlu0 %44
    %v46 = vmul.f32 %v42, %v33
    %v47 = vmul.f32 %v45, %v33
    %v48 = vadd.f32 %v46, 1e-05
    %v49 = vadd.f32 %v47, 1e-05
    %v50 = vrsqrt.pop %v48
    %v51 = vrsqrt.pop %v49
    %v52 = vmul.f32 %v36, %v50
    %v53 = vmul.f32 %v37, %v51
    %v54 = vld [vmem:[%s4] sm:$0x1]
    %v56 = vlaneseq
    %v57 = vshrl.u32 %v56, 7
    %v58 = vsub.s32 0, %v57
    %v59 = vrot.slane %v54, %v58
    %v61 = vmul.f32 %v52, %v59
    %v62 = vmul.f32 %v53, %v59
    %v63 = vld [vmem:[%s1] sm:$0xff]
    %v64 = vld [vmem:[%s1 + $0x8] sm:$0xff]
    %v65 = vld [vmem:[%s1 + $0x10] sm:$0xff]
    %v66 = vld [vmem:[%s1 + $0x18] sm:$0xff]
    %v67 = vld [vmem:[%s1 + $0x20] sm:$0xff]
    %v68 = vld [vmem:[%s1 + $0x28] sm:$0xff]
    %v69 = vld [vmem:[%s1 + $0x30] sm:$0xff]
    %v70 = vld [vmem:[%s1 + $0x38] sm:$0xff]
    %v71 = vld [vmem:[%s1 + $0x40] sm:$0xff]
    %v72 = vld [vmem:[%s1 + $0x48] sm:$0xff]
    %v73 = vld [vmem:[%s1 + $0x50] sm:$0xff]
    %v74 = vld [vmem:[%s1 + $0x58] sm:$0xff]
    %v76 = vsel %vm26, %v61, 0
    %v79 = vsel %vm26, %v62, 0
    %v82 = vsel %vm26, %v63, 0
    %v85 = vsel %vm26, %v64, 0
    %v88 = vsel %vm26, %v65, 0
    %v91 = vsel %vm26, %v66, 0
    %v94 = vsel %vm26, %v67, 0
    %v97 = vsel %vm26, %v68, 0
    %v100 = vsel %vm26, %v69, 0
    %v103 = vsel %vm26, %v70, 0
    %v106 = vsel %vm26, %v71, 0
    %v109 = vsel %vm26, %v72, 0
    %v112 = vsel %vm26, %v73, 0
    %v115 = vsel %vm26, %v74, 0
    %117 = vmatprep.subr.mxu0 0.0
    %118 = vmatpush1.xpose.msra.mxu0 %v82
    %119 = vmatprep.subr.mxu0 0.0
    %120 = vmatpush1.xpose.msra.mxu0 %v85
    %121 = vmatprep.subr.mxu0 0.0
    %122 = vmatpush1.xpose.msra.mxu0 %v88
    %123 = vmatprep.subr.mxu0 0.0
    %124 = vmatpush1.xpose.msra.mxu0 %v91
    %125 = vmatprep.subr.mxu0 0.0
    %126 = vmatpush1.xpose.msra.mxu0 %v94
    %127 = vmatprep.subr.mxu0 0.0
    %128 = vmatpush1.xpose.msra.mxu0 %v97
    %129 = vmatprep.subr.mxu0 0.0
    %130 = vmatpush1.xpose.msra.mxu0 %v100
    %131 = vmatprep.subr.mxu0 0.0
    %132 = vmatpush1.xpose.msra.mxu0 %v103
    %133 = vmatprep.subr.mxu0 0.0
    %134 = vmatpush1.xpose.msra.mxu0 %v106
    %135 = vmatprep.subr.mxu0 0.0
    %136 = vmatpush1.xpose.msra.mxu0 %v109
    %137 = vmatprep.subr.mxu0 0.0
    %138 = vmatpush1.xpose.msra.mxu0 %v112
    %139 = vmatprep.subr.mxu0 0.0
    %140 = vmatpush1.xpose.msra.mxu0 %v115
    %141 = vmatprep.subr.mxu0 0.0
    %142 = vmatpush1.xpose.msra.mxu0 0.0
    %143 = vmatprep.subr.mxu0 0.0
    %144 = vmatpush1.xpose.msra.mxu0 0.0
    %145 = vmatprep.subr.mxu0 0.0
    %146 = vmatpush1.xpose.msra.mxu0 0.0
    %147 = vmatprep.subr.mxu0 0.0
    %148 = vmatpush1.xpose.msra.mxu0 0.0
    %149 = vmatprep.subr.mxu0 0.0
    %150 = vmatpush1.xpose.msra.mxu0 0.0
    %151 = vmatprep.subr.mxu0 0.0
    %152 = vmatpush1.xpose.msra.mxu0 0.0
    %153 = vmatprep.subr.mxu0 0.0
    %154 = vmatpush1.xpose.msra.mxu0 0.0
    %155 = vmatprep.subr.mxu0 0.0
    %156 = vmatpush1.xpose.msra.mxu0 0.0
    %157 = vmatprep.subr.mxu0 0.0
    %158 = vmatpush1.xpose.msra.mxu0 0.0
    %159 = vmatprep.subr.mxu0 0.0
    %160 = vmatpush1.xpose.msra.mxu0 0.0
    %161 = vmatprep.subr.mxu0 0.0
    %162 = vmatpush1.xpose.msra.mxu0 0.0
    %163 = vmatprep.subr.mxu0 0.0
    %164 = vmatpush1.xpose.msra.mxu0 0.0
    %165 = vmatprep.subr.mxu0 0.0
    %166 = vmatpush1.xpose.msra.mxu0 0.0
    %167 = vmatprep.subr.mxu0 0.0
    %168 = vmatpush1.xpose.msra.mxu0 0.0
    %169 = vmatprep.subr.mxu0 0.0
    %170 = vmatpush1.xpose.msra.mxu0 0.0
    %171 = vmatprep.subr.mxu0 0.0
    %172 = vmatpush1.xpose.msra.mxu0 0.0
    %173 = vmatprep.subr.mxu0 0.0
    %174 = vmatpush1.xpose.msra.mxu0 0.0
    %175 = vmatprep.subr.mxu0 0.0
    %176 = vmatpush1.xpose.msra.mxu0 0.0
    %177 = vmatprep.subr.mxu0 0.0
    %178 = vmatpush1.xpose.msra.mxu0 0.0
    %179 = vmatprep.subr.mxu0 0.0
    %180 = vmatpush1.xpose.msra.mxu0 0.0
    %181 = vmatprep.mubr.f32.mxu0 0.0
    %182 = vmatmul.mubr.f32.gmra.mrb[0].mxu0 %v76
    %v183 = vpop.f32.mrb[0].mxu0
    %v184 = vadd.f32 0.0, %v183
    %v185 = vpop.f32.mrb[0].mxu0
    %186 = vmatprep.mubr.f32.mxu0 0.0
    %187 = vmatmul.mubr.f32.gmra.mrb[0].mxu0 %v79
    %v188 = vpop.f32.mrb[0].mxu0
    %v189 = vadd.f32 0.0, %v188
    %v190 = vpop.f32.mrb[0].mxu0
    %191 = vdwg.mxu0
    %194 = vrot.lane.b32.xlu0 %v184, 112
    %v195 = vpop.permute.xlu0 %194
    %196 = vrot.lane.b32.xlu0 %v189, 112
    %v197 = vpop.permute.xlu0 %196
    %200 = vrot.lane.b32.xlu0 %v184, 96
    %v201 = vpop.permute.xlu0 %200
    %202 = vrot.lane.b32.xlu0 %v189, 96
    %v203 = vpop.permute.xlu0 %202
    %206 = vrot.lane.b32.xlu0 %v184, 80
    %v207 = vpop.permute.xlu0 %206
    %208 = vrot.lane.b32.xlu0 %v189, 80
    %v209 = vpop.permute.xlu0 %208
    %v212 = vmul.f32 %v184, %v184
    %v213 = vmul.f32 %v195, %v195
    %v214 = vmul.f32 %v201, %v201
    %v215 = vmul.f32 %v207, %v207
    %v216 = vmul.f32 %v189, %v189
    %v217 = vmul.f32 %v197, %v197
    %v218 = vmul.f32 %v203, %v203
    %v219 = vmul.f32 %v209, %v209
    %vm220 = vcmask 130048
    %v221 = vsel %vm220, %v212, 0.0
    %222 = vadd.xlane.f32.xlu0 %v221
    %v223 = vpop.xlane.xlu0 %222
    %v224 = vsel %vm220, %v213, 0.0
    %225 = vadd.xlane.f32.xlu0 %v224
    %v226 = vpop.xlane.xlu0 %225
    %v227 = vsel %vm220, %v214, 0.0
    %228 = vadd.xlane.f32.xlu0 %v227
    %v229 = vpop.xlane.xlu0 %228
    %v230 = vsel %vm220, %v215, 0.0
    %231 = vadd.xlane.f32.xlu0 %v230
    %v232 = vpop.xlane.xlu0 %231
    %v233 = vsel %vm220, %v216, 0.0
    %234 = vadd.xlane.f32.xlu0 %v233
    %v235 = vpop.xlane.xlu0 %234
    %v236 = vsel %vm220, %v217, 0.0
    %237 = vadd.xlane.f32.xlu0 %v236
    %v238 = vpop.xlane.xlu0 %237
    %v239 = vsel %vm220, %v218, 0.0
    %240 = vadd.xlane.f32.xlu0 %v239
    %v241 = vpop.xlane.xlu0 %240
    %v242 = vsel %vm220, %v219, 0.0
    %243 = vadd.xlane.f32.xlu0 %v242
    %v244 = vpop.xlane.xlu0 %243
    %v245 = vmax.f32 %v223, 1e-24
    %v246 = vmax.f32 %v226, 1e-24
    %v247 = vmax.f32 %v229, 1e-24
    %v248 = vmax.f32 %v232, 1e-24
    %v249 = vmax.f32 %v235, 1e-24
    %v250 = vmax.f32 %v238, 1e-24
    %v251 = vmax.f32 %v241, 1e-24
    %v252 = vmax.f32 %v244, 1e-24
    %v253 = vrsqrt.pop %v245
    %v254 = vrsqrt.pop %v246
    %v255 = vrsqrt.pop %v247
    %v256 = vrsqrt.pop %v248
    %v257 = vrsqrt.pop %v249
    %v258 = vrsqrt.pop %v250
    %v259 = vrsqrt.pop %v251
    %v260 = vrsqrt.pop %v252
    %v261 = vmul.f32 %v184, %v253
    %v262 = vmul.f32 %v195, %v254
    %v263 = vmul.f32 %v201, %v255
    %v264 = vmul.f32 %v207, %v256
    %v265 = vmul.f32 %v189, %v257
    %v266 = vmul.f32 %v197, %v258
    %v267 = vmul.f32 %v203, %v259
    %v268 = vmul.f32 %v209, %v260
    %271 = vrot.lane.b32.xlu0 %v212, 64
    %v272 = vpop.permute.xlu0 %271
    %273 = vrot.lane.b32.xlu0 %v216, 64
    %v274 = vpop.permute.xlu0 %273
    %v277 = vsel %vm220, %v272, 0.0
    %278 = vadd.xlane.f32.xlu0 %v277
    %v279 = vpop.xlane.xlu0 %278
    %v280 = vsel %vm220, %v274, 0.0
    %281 = vadd.xlane.f32.xlu0 %v280
    %v282 = vpop.xlane.xlu0 %281
    %v283 = vmax.f32 %v279, 1e-24
    %v284 = vmax.f32 %v282, 1e-24
    %v285 = vrsqrt.pop %v283
    %v286 = vrsqrt.pop %v284
    %v287 = vmul.f32 %v184, %v285
    %v288 = vmul.f32 %v189, %v286
    %v289 = vld [vmem:[%s3] sm:$0x1]
    %v290 = vmul.f32 %v289, %v289
    %vm291 = vcmask 122880
    %v292 = vsel %vm291, %v290, 0.0
    %293 = vadd.xlane.f32.xlu0 %v292
    %v294 = vpop.xlane.xlu0 %293
    %v295 = vmax.f32 %v294, 1e-24
    %v296 = vrsqrt.pop %v295
    %v297 = vmul.f32 %v289, %v296
    %v298 = vld [vmem:[%s3 + $0x1] sm:$0x1]
    %300 = vrot.lane.b32.xlu0 %v287, 64
    %v301 = vpop.permute.xlu0 %300
    %v303 = vsel %vm220, %v261, 0
    %v306 = vsel %vm220, %v262, 0
    %v309 = vsel %vm220, %v263, 0
    %v312 = vsel %vm220, %v264, 0
    %v314 = vsel %vm220, %v301, 0
    %316 = vmatprep.subr.mxu0 0.0
    %317 = vmatpush1.xpose.msra.mxu0 %v314
    %318 = vmatprep.subr.mxu0 0.0
    %319 = vmatpush1.xpose.msra.mxu0 0.0
    %320 = vmatprep.subr.mxu0 0.0
    %321 = vmatpush1.xpose.msra.mxu0 0.0
    %322 = vmatprep.subr.mxu0 0.0
    %323 = vmatpush1.xpose.msra.mxu0 0.0
    %324 = vmatprep.subr.mxu0 0.0
    %325 = vmatpush1.xpose.msra.mxu0 0.0
    %326 = vmatprep.subr.mxu0 0.0
    %327 = vmatpush1.xpose.msra.mxu0 0.0
    %328 = vmatprep.subr.mxu0 0.0
    %329 = vmatpush1.xpose.msra.mxu0 0.0
    %330 = vmatprep.subr.mxu0 0.0
    %331 = vmatpush1.xpose.msra.mxu0 0.0
    %332 = vmatprep.subr.mxu0 0.0
    %333 = vmatpush1.xpose.msra.mxu0 0.0
    %334 = vmatprep.subr.mxu0 0.0
    %335 = vmatpush1.xpose.msra.mxu0 0.0
    %336 = vmatprep.subr.mxu0 0.0
    %337 = vmatpush1.xpose.msra.mxu0 0.0
    %338 = vmatprep.subr.mxu0 0.0
    %339 = vmatpush1.xpose.msra.mxu0 0.0
    %340 = vmatprep.subr.mxu0 0.0
    %341 = vmatpush1.xpose.msra.mxu0 0.0
    %342 = vmatprep.subr.mxu0 0.0
    %343 = vmatpush1.xpose.msra.mxu0 0.0
    %344 = vmatprep.subr.mxu0 0.0
    %345 = vmatpush1.xpose.msra.mxu0 0.0
    %346 = vmatprep.subr.mxu0 0.0
    %347 = vmatpush1.xpose.msra.mxu0 0.0
    %348 = vmatprep.subr.mxu0 0.0
    %349 = vmatpush1.xpose.msra.mxu0 0.0
    %350 = vmatprep.subr.mxu0 0.0
    %351 = vmatpush1.xpose.msra.mxu0 0.0
    %352 = vmatprep.subr.mxu0 0.0
    %353 = vmatpush1.xpose.msra.mxu0 0.0
    %354 = vmatprep.subr.mxu0 0.0
    %355 = vmatpush1.xpose.msra.mxu0 0.0
    %356 = vmatprep.subr.mxu0 0.0
    %357 = vmatpush1.xpose.msra.mxu0 0.0
    %358 = vmatprep.subr.mxu0 0.0
    %359 = vmatpush1.xpose.msra.mxu0 0.0
    %360 = vmatprep.subr.mxu0 0.0
    %361 = vmatpush1.xpose.msra.mxu0 0.0
    %362 = vmatprep.subr.mxu0 0.0
    %363 = vmatpush1.xpose.msra.mxu0 0.0
    %364 = vmatprep.subr.mxu0 0.0
    %365 = vmatpush1.xpose.msra.mxu0 0.0
    %366 = vmatprep.subr.mxu0 0.0
    %367 = vmatpush1.xpose.msra.mxu0 0.0
    %368 = vmatprep.subr.mxu0 0.0
    %369 = vmatpush1.xpose.msra.mxu0 0.0
    %370 = vmatprep.subr.mxu0 0.0
    %371 = vmatpush1.xpose.msra.mxu0 0.0
    %372 = vmatprep.subr.mxu0 0.0
    %373 = vmatpush1.xpose.msra.mxu0 0.0
    %374 = vmatprep.subr.mxu0 0.0
    %375 = vmatpush1.xpose.msra.mxu0 0.0
    %376 = vmatprep.subr.mxu0 0.0
    %377 = vmatpush1.xpose.msra.mxu0 0.0
    %378 = vmatprep.subr.mxu0 0.0
    %379 = vmatpush1.xpose.msra.mxu0 0.0
    %380 = vmatprep.mubr.f32.mxu0 0.0
    %381 = vmatmul.mubr.f32.gmra.mrb[0].mxu0 %v303
    %v382 = vpop.f32.mrb[0].mxu0
    %v383 = vadd.f32 0.0, %v382
    %v384 = vpop.f32.mrb[0].mxu0
    %385 = vmatprep.mubr.f32.mxu0 0.0
    %386 = vmatmul.mubr.f32.gmra.mrb[0].mxu0 %v306
    %v387 = vpop.f32.mrb[0].mxu0
    %v388 = vadd.f32 0.0, %v387
    %v389 = vpop.f32.mrb[0].mxu0
    %390 = vmatprep.mubr.f32.mxu0 0.0
    %391 = vmatmul.mubr.f32.gmra.mrb[0].mxu0 %v309
    %v392 = vpop.f32.mrb[0].mxu0
    %v393 = vadd.f32 0.0, %v392
    %v394 = vpop.f32.mrb[0].mxu0
    %395 = vmatprep.mubr.f32.mxu0 0.0
    %396 = vmatmul.mubr.f32.gmra.mrb[0].mxu0 %v312
    %v397 = vpop.f32.mrb[0].mxu0
    %v398 = vadd.f32 0.0, %v397
    %v399 = vpop.f32.mrb[0].mxu0
    %400 = vdwg.mxu0
    %402 = vrot.lane.b32.xlu0 %v288, 64
    %v403 = vpop.permute.xlu0 %402
    %v405 = vsel %vm220, %v265, 0
    %v408 = vsel %vm220, %v266, 0
    %v411 = vsel %vm220, %v267, 0
    %v414 = vsel %vm220, %v268, 0
    %v416 = vsel %vm220, %v403, 0
    %418 = vmatprep.subr.mxu0 0.0
    %419 = vmatpush1.xpose.msra.mxu0 %v416
    %420 = vmatprep.subr.mxu0 0.0
    %421 = vmatpush1.xpose.msra.mxu0 0.0
    %422 = vmatprep.subr.mxu0 0.0
    %423 = vmatpush1.xpose.msra.mxu0 0.0
    %424 = vmatprep.subr.mxu0 0.0
    %425 = vmatpush1.xpose.msra.mxu0 0.0
    %426 = vmatprep.subr.mxu0 0.0
    %427 = vmatpush1.xpose.msra.mxu0 0.0
    %428 = vmatprep.subr.mxu0 0.0
    %429 = vmatpush1.xpose.msra.mxu0 0.0
    %430 = vmatprep.subr.mxu0 0.0
    %431 = vmatpush1.xpose.msra.mxu0 0.0
    %432 = vmatprep.subr.mxu0 0.0
    %433 = vmatpush1.xpose.msra.mxu0 0.0
    %434 = vmatprep.subr.mxu0 0.0
    %435 = vmatpush1.xpose.msra.mxu0 0.0
    %436 = vmatprep.subr.mxu0 0.0
    %437 = vmatpush1.xpose.msra.mxu0 0.0
    %438 = vmatprep.subr.mxu0 0.0
    %439 = vmatpush1.xpose.msra.mxu0 0.0
    %440 = vmatprep.subr.mxu0 0.0
    %441 = vmatpush1.xpose.msra.mxu0 0.0
    %442 = vmatprep.subr.mxu0 0.0
    %443 = vmatpush1.xpose.msra.mxu0 0.0
    %444 = vmatprep.subr.mxu0 0.0
    %445 = vmatpush1.xpose.msra.mxu0 0.0
    %446 = vmatprep.subr.mxu0 0.0
    %447 = vmatpush1.xpose.msra.mxu0 0.0
    %448 = vmatprep.subr.mxu0 0.0
    %449 = vmatpush1.xpose.msra.mxu0 0.0
    %450 = vmatprep.subr.mxu0 0.0
    %451 = vmatpush1.xpose.msra.mxu0 0.0
    %452 = vmatprep.subr.mxu0 0.0
    %453 = vmatpush1.xpose.msra.mxu0 0.0
    %454 = vmatprep.subr.mxu0 0.0
    %455 = vmatpush1.xpose.msra.mxu0 0.0
    %456 = vmatprep.subr.mxu0 0.0
    %457 = vmatpush1.xpose.msra.mxu0 0.0
    %458 = vmatprep.subr.mxu0 0.0
    %459 = vmatpush1.xpose.msra.mxu0 0.0
    %460 = vmatprep.subr.mxu0 0.0
    %461 = vmatpush1.xpose.msra.mxu0 0.0
    %462 = vmatprep.subr.mxu0 0.0
    %463 = vmatpush1.xpose.msra.mxu0 0.0
    %464 = vmatprep.subr.mxu0 0.0
    %465 = vmatpush1.xpose.msra.mxu0 0.0
    %466 = vmatprep.subr.mxu0 0.0
    %467 = vmatpush1.xpose.msra.mxu0 0.0
    %468 = vmatprep.subr.mxu0 0.0
    %469 = vmatpush1.xpose.msra.mxu0 0.0
    %470 = vmatprep.subr.mxu0 0.0
    %471 = vmatpush1.xpose.msra.mxu0 0.0
    %472 = vmatprep.subr.mxu0 0.0
    %473 = vmatpush1.xpose.msra.mxu0 0.0
    %474 = vmatprep.subr.mxu0 0.0
    %475 = vmatpush1.xpose.msra.mxu0 0.0
    %476 = vmatprep.subr.mxu0 0.0
    %477 = vmatpush1.xpose.msra.mxu0 0.0
    %478 = vmatprep.subr.mxu0 0.0
    %479 = vmatpush1.xpose.msra.mxu0 0.0
    %480 = vmatprep.subr.mxu0 0.0
    %481 = vmatpush1.xpose.msra.mxu0 0.0
    %482 = vmatprep.mubr.f32.mxu0 0.0
    %483 = vmatmul.mubr.f32.gmra.mrb[0].mxu0 %v405
    %v484 = vpop.f32.mrb[0].mxu0
    %v485 = vadd.f32 0.0, %v484
    %v486 = vpop.f32.mrb[0].mxu0
    %487 = vmatprep.mubr.f32.mxu0 0.0
    %488 = vmatmul.mubr.f32.gmra.mrb[0].mxu0 %v408
    %v489 = vpop.f32.mrb[0].mxu0
    %v490 = vadd.f32 0.0, %v489
    %v491 = vpop.f32.mrb[0].mxu0
    %492 = vmatprep.mubr.f32.mxu0 0.0
    %493 = vmatmul.mubr.f32.gmra.mrb[0].mxu0 %v411
    %v494 = vpop.f32.mrb[0].mxu0
    %v495 = vadd.f32 0.0, %v494
    %v496 = vpop.f32.mrb[0].mxu0
    %497 = vmatprep.mubr.f32.mxu0 0.0
    %498 = vmatmul.mubr.f32.gmra.mrb[0].mxu0 %v414
    %v499 = vpop.f32.mrb[0].mxu0
    %v500 = vadd.f32 0.0, %v499
    %v501 = vpop.f32.mrb[0].mxu0
    %502 = vdwg.mxu0
    %v503 = vmul.f32 %v383, 16.0
    %v504 = vmul.f32 %v388, 16.0
    %v505 = vmul.f32 %v393, 16.0
    %v506 = vmul.f32 %v398, 16.0
    %v507 = vmul.f32 %v485, 16.0
    %v508 = vmul.f32 %v490, 16.0
    %v509 = vmul.f32 %v495, 16.0
    %v510 = vmul.f32 %v500, 16.0
    %v511 = vlaneseq
    %v512 = vshrl.u32 %v511, 7
    %v513 = vsub.s32 0, %v512
    %v514 = vrot.slane %v297, %v513
    %v515 = vmul.f32 %v261, %v514
    %v516 = vmul.f32 %v262, %v514
    %v517 = vmul.f32 %v263, %v514
    %v518 = vmul.f32 %v264, %v514
    %v519 = vmul.f32 %v265, %v514
    %v520 = vmul.f32 %v266, %v514
    %v521 = vmul.f32 %v267, %v514
    %v522 = vmul.f32 %v268, %v514
    %v523 = vsel %vm220, %v515, 0.0
    %524 = vadd.xlane.f32.xlu0 %v523
    %v525 = vpop.xlane.xlu0 %524
    %v526 = vsel %vm220, %v516, 0.0
    %527 = vadd.xlane.f32.xlu0 %v526
    %v528 = vpop.xlane.xlu0 %527
    %v529 = vsel %vm220, %v517, 0.0
    %530 = vadd.xlane.f32.xlu0 %v529
    %v531 = vpop.xlane.xlu0 %530
    %v532 = vsel %vm220, %v518, 0.0
    %533 = vadd.xlane.f32.xlu0 %v532
    %v534 = vpop.xlane.xlu0 %533
    %v535 = vsel %vm220, %v519, 0.0
    %536 = vadd.xlane.f32.xlu0 %v535
    %v537 = vpop.xlane.xlu0 %536
    %v538 = vsel %vm220, %v520, 0.0
    %539 = vadd.xlane.f32.xlu0 %v538
    %v540 = vpop.xlane.xlu0 %539
    %v541 = vsel %vm220, %v521, 0.0
    %542 = vadd.xlane.f32.xlu0 %v541
    %v543 = vpop.xlane.xlu0 %542
    %v544 = vsel %vm220, %v522, 0.0
    %545 = vadd.xlane.f32.xlu0 %v544
    %v546 = vpop.xlane.xlu0 %545
    %v547 = vmul.f32 %v525, 16.0
    %v548 = vmul.f32 %v528, 16.0
    %v549 = vmul.f32 %v531, 16.0
    %v550 = vmul.f32 %v534, 16.0
    %v551 = vmul.f32 %v537, 16.0
    %v552 = vmul.f32 %v540, 16.0
    %v553 = vmul.f32 %v543, 16.0
    %v554 = vmul.f32 %v546, 16.0
    %vm555 = vcmask 64512
    %v556 = vsel %vm555, %v503, -inf
    %557 = vmax.xlane.f32.xlu0 %v556
    %v558 = vpop.xlane.xlu0 %557
    %v559 = vsel %vm555, %v504, -inf
    %560 = vmax.xlane.f32.xlu0 %v559
    %v561 = vpop.xlane.xlu0 %560
    %v562 = vsel %vm555, %v505, -inf
    %563 = vmax.xlane.f32.xlu0 %v562
    %v564 = vpop.xlane.xlu0 %563
    %v565 = vsel %vm555, %v506, -inf
    %566 = vmax.xlane.f32.xlu0 %v565
    %v567 = vpop.xlane.xlu0 %566
    %v568 = vsel %vm555, %v507, -inf
    %569 = vmax.xlane.f32.xlu0 %v568
    %v570 = vpop.xlane.xlu0 %569
    %v571 = vsel %vm555, %v508, -inf
    %572 = vmax.xlane.f32.xlu0 %v571
    %v573 = vpop.xlane.xlu0 %572
    %v574 = vsel %vm555, %v509, -inf
    %575 = vmax.xlane.f32.xlu0 %v574
    %v576 = vpop.xlane.xlu0 %575
    %v577 = vsel %vm555, %v510, -inf
    %578 = vmax.xlane.f32.xlu0 %v577
    %v579 = vpop.xlane.xlu0 %578
    %v580 = vmax.f32 %v558, %v547
    %v581 = vmax.f32 %v561, %v548
    %v582 = vmax.f32 %v564, %v549
    %v583 = vmax.f32 %v567, %v550
    %v584 = vmax.f32 %v570, %v551
    %v585 = vmax.f32 %v573, %v552
    %v586 = vmax.f32 %v576, %v553
    %v587 = vmax.f32 %v579, %v554
    %v588 = vsub.f32 %v503, %v580
    %v589 = vsub.f32 %v504, %v581
    %v590 = vsub.f32 %v505, %v582
    %v591 = vsub.f32 %v506, %v583
    %v592 = vsub.f32 %v507, %v584
    %v593 = vsub.f32 %v508, %v585
    %v594 = vsub.f32 %v509, %v586
    %v595 = vsub.f32 %v510, %v587
    %v596 = vmul.f32 %v588, 1.442695
    %v597 = vpow.pop %v596
    %v598 = vmul.f32 %v589, 1.442695
    %v599 = vpow.pop %v598
    %v600 = vmul.f32 %v590, 1.442695
    %v601 = vpow.pop %v600
    %v602 = vmul.f32 %v591, 1.442695
    %v603 = vpow.pop %v602
    %v604 = vmul.f32 %v592, 1.442695
    %v605 = vpow.pop %v604
    %v606 = vmul.f32 %v593, 1.442695
    %v607 = vpow.pop %v606
    %v608 = vmul.f32 %v594, 1.442695
    %v609 = vpow.pop %v608
    %v610 = vmul.f32 %v595, 1.442695
    %v611 = vpow.pop %v610
    %v612 = vsub.f32 %v547, %v580
    %v613 = vsub.f32 %v548, %v581
    %v614 = vsub.f32 %v549, %v582
    %v615 = vsub.f32 %v550, %v583
    %v616 = vsub.f32 %v551, %v584
    %v617 = vsub.f32 %v552, %v585
    %v618 = vsub.f32 %v553, %v586
    %v619 = vsub.f32 %v554, %v587
    %v620 = vmul.f32 %v612, 1.442695
    %v621 = vpow.pop %v620
    %v622 = vmul.f32 %v613, 1.442695
    %v623 = vpow.pop %v622
    %v624 = vmul.f32 %v614, 1.442695
    %v625 = vpow.pop %v624
    %v626 = vmul.f32 %v615, 1.442695
    %v627 = vpow.pop %v626
    %v628 = vmul.f32 %v616, 1.442695
    %v629 = vpow.pop %v628
    %v630 = vmul.f32 %v617, 1.442695
    %v631 = vpow.pop %v630
    %v632 = vmul.f32 %v618, 1.442695
    %v633 = vpow.pop %v632
    %v634 = vmul.f32 %v619, 1.442695
    %v635 = vpow.pop %v634
    %v636 = vsel %vm555, %v597, 0.0
    %637 = vadd.xlane.f32.xlu0 %v636
    %v638 = vpop.xlane.xlu0 %637
    %v639 = vsel %vm555, %v599, 0.0
    %640 = vadd.xlane.f32.xlu0 %v639
    %v641 = vpop.xlane.xlu0 %640
    %v642 = vsel %vm555, %v601, 0.0
    %643 = vadd.xlane.f32.xlu0 %v642
    %v644 = vpop.xlane.xlu0 %643
    %v645 = vsel %vm555, %v603, 0.0
    %646 = vadd.xlane.f32.xlu0 %v645
    %v647 = vpop.xlane.xlu0 %646
    %v648 = vsel %vm555, %v605, 0.0
    %649 = vadd.xlane.f32.xlu0 %v648
    %v650 = vpop.xlane.xlu0 %649
    %v651 = vsel %vm555, %v607, 0.0
    %652 = vadd.xlane.f32.xlu0 %v651
    %v653 = vpop.xlane.xlu0 %652
    %v654 = vsel %vm555, %v609, 0.0
    %655 = vadd.xlane.f32.xlu0 %v654
    %v656 = vpop.xlane.xlu0 %655
    %v657 = vsel %vm555, %v611, 0.0
    %658 = vadd.xlane.f32.xlu0 %v657
    %v659 = vpop.xlane.xlu0 %658
    %v660 = vadd.f32 %v638, %v621
    %v661 = vadd.f32 %v641, %v623
    %v662 = vadd.f32 %v644, %v625
    %v663 = vadd.f32 %v647, %v627
    %v664 = vadd.f32 %v650, %v629
    %v665 = vadd.f32 %v653, %v631
    %v666 = vadd.f32 %v656, %v633
    %v667 = vadd.f32 %v659, %v635
    %v668 = vrcp.pop %v660
    %v669 = vrcp.pop %v661
    %v670 = vrcp.pop %v662
    %v671 = vrcp.pop %v663
    %v672 = vrcp.pop %v664
    %v673 = vrcp.pop %v665
    %v674 = vrcp.pop %v666
    %v675 = vrcp.pop %v667
    %v676 = vlaneseq
    %v677 = vshrl.u32 %v676, 7
    %v678 = vsub.s32 0, %v677
    %v679 = vrot.slane %v298, %v678
    %v680 = vmul.f32 %v621, %v679
    %v681 = vmul.f32 %v623, %v679
    %v682 = vmul.f32 %v625, %v679
    %v683 = vmul.f32 %v627, %v679
    %v684 = vmul.f32 %v629, %v679
    %v685 = vmul.f32 %v631, %v679
    %v686 = vmul.f32 %v633, %v679
    %v687 = vmul.f32 %v635, %v679
    %688 = vrot.lane.b32.xlu0 %v184, 48
    %v689 = vpop.permute.xlu0 %688
    %v692 = vsel %vm555, %v597, 0
    %v695 = vsel %vm555, %v599, 0
    %v698 = vsel %vm555, %v601, 0
    %v701 = vsel %vm555, %v603, 0
    %703 = vmatprep.subr.mxu0 0.0
    %704 = vmatpush1.msra.mxu0 %v689
    %705 = vmatprep.subr.mxu0 0.0
    %706 = vmatpush1.msra.mxu0 0.0
    %707 = vmatprep.subr.mxu0 0.0
    %708 = vmatpush1.msra.mxu0 0.0
    %709 = vmatprep.subr.mxu0 0.0
    %710 = vmatpush1.msra.mxu0 0.0
    %711 = vmatprep.subr.mxu0 0.0
    %712 = vmatpush1.msra.mxu0 0.0
    %713 = vmatprep.subr.mxu0 0.0
    %714 = vmatpush1.msra.mxu0 0.0
    %715 = vmatprep.subr.mxu0 0.0
    %716 = vmatpush1.msra.mxu0 0.0
    %717 = vmatprep.subr.mxu0 0.0
    %718 = vmatpush1.msra.mxu0 0.0
    %719 = vmatprep.subr.mxu0 0.0
    %720 = vmatpush1.msra.mxu0 0.0
    %721 = vmatprep.subr.mxu0 0.0
    %722 = vmatpush1.msra.mxu0 0.0
    %723 = vmatprep.subr.mxu0 0.0
    %724 = vmatpush1.msra.mxu0 0.0
    %725 = vmatprep.subr.mxu0 0.0
    %726 = vmatpush1.msra.mxu0 0.0
    %727 = vmatprep.subr.mxu0 0.0
    %728 = vmatpush1.msra.mxu0 0.0
    %729 = vmatprep.subr.mxu0 0.0
    %730 = vmatpush1.msra.mxu0 0.0
    %731 = vmatprep.subr.mxu0 0.0
    %732 = vmatpush1.msra.mxu0 0.0
    %733 = vmatprep.subr.mxu0 0.0
    %734 = vmatpush1.msra.mxu0 0.0
    %735 = vmatprep.subr.mxu0 0.0
    %736 = vmatpush1.msra.mxu0 0.0
    %737 = vmatprep.subr.mxu0 0.0
    %738 = vmatpush1.msra.mxu0 0.0
    %739 = vmatprep.subr.mxu0 0.0
    %740 = vmatpush1.msra.mxu0 0.0
    %741 = vmatprep.subr.mxu0 0.0
    %742 = vmatpush1.msra.mxu0 0.0
    %743 = vmatprep.subr.mxu0 0.0
    %744 = vmatpush1.msra.mxu0 0.0
    %745 = vmatprep.subr.mxu0 0.0
    %746 = vmatpush1.msra.mxu0 0.0
    %747 = vmatprep.subr.mxu0 0.0
    %748 = vmatpush1.msra.mxu0 0.0
    %749 = vmatprep.subr.mxu0 0.0
    %750 = vmatpush1.msra.mxu0 0.0
    %751 = vmatprep.subr.mxu0 0.0
    %752 = vmatpush1.msra.mxu0 0.0
    %753 = vmatprep.subr.mxu0 0.0
    %754 = vmatpush1.msra.mxu0 0.0
    %755 = vmatprep.subr.mxu0 0.0
    %756 = vmatpush1.msra.mxu0 0.0
    %757 = vmatprep.subr.mxu0 0.0
    %758 = vmatpush1.msra.mxu0 0.0
    %759 = vmatprep.subr.mxu0 0.0
    %760 = vmatpush1.msra.mxu0 0.0
    %761 = vmatprep.subr.mxu0 0.0
    %762 = vmatpush1.msra.mxu0 0.0
    %763 = vmatprep.subr.mxu0 0.0
    %764 = vmatpush1.msra.mxu0 0.0
    %765 = vmatprep.subr.mxu0 0.0
    %766 = vmatpush1.msra.mxu0 0.0
    %767 = vmatprep.mubr.f32.mxu0 0.0
    %768 = vmatmul.mubr.f32.gmra.mrb[0].mxu0 %v692
    %v769 = vpop.f32.mrb[0].mxu0
    %v770 = vadd.f32 %v680, %v769
    %v771 = vpop.f32.mrb[0].mxu0
    %772 = vmatprep.mubr.f32.mxu0 0.0
    %773 = vmatmul.mubr.f32.gmra.mrb[0].mxu0 %v695
    %v774 = vpop.f32.mrb[0].mxu0
    %v775 = vadd.f32 %v681, %v774
    %v776 = vpop.f32.mrb[0].mxu0
    %777 = vmatprep.mubr.f32.mxu0 0.0
    %778 = vmatmul.mubr.f32.gmra.mrb[0].mxu0 %v698
    %v779 = vpop.f32.mrb[0].mxu0
    %v780 = vadd.f32 %v682, %v779
    %v781 = vpop.f32.mrb[0].mxu0
    %782 = vmatprep.mubr.f32.mxu0 0.0
    %783 = vmatmul.mubr.f32.gmra.mrb[0].mxu0 %v701
    %v784 = vpop.f32.mrb[0].mxu0
    %v785 = vadd.f32 %v683, %v784
    %v786 = vpop.f32.mrb[0].mxu0
    %787 = vdwg.mxu0
    %788 = vrot.lane.b32.xlu0 %v189, 48
    %v789 = vpop.permute.xlu0 %788
    %v792 = vsel %vm555, %v605, 0
    %v795 = vsel %vm555, %v607, 0
    %v798 = vsel %vm555, %v609, 0
    %v801 = vsel %vm555, %v611, 0
    %803 = vmatprep.subr.mxu0 0.0
    %804 = vmatpush1.msra.mxu0 %v789
    %805 = vmatprep.subr.mxu0 0.0
    %806 = vmatpush1.msra.mxu0 0.0
    %807 = vmatprep.subr.mxu0 0.0
    %808 = vmatpush1.msra.mxu0 0.0
    %809 = vmatprep.subr.mxu0 0.0
    %810 = vmatpush1.msra.mxu0 0.0
    %811 = vmatprep.subr.mxu0 0.0
    %812 = vmatpush1.msra.mxu0 0.0
    %813 = vmatprep.subr.mxu0 0.0
    %814 = vmatpush1.msra.mxu0 0.0
    %815 = vmatprep.subr.mxu0 0.0
    %816 = vmatpush1.msra.mxu0 0.0
    %817 = vmatprep.subr.mxu0 0.0
    %818 = vmatpush1.msra.mxu0 0.0
    %819 = vmatprep.subr.mxu0 0.0
    %820 = vmatpush1.msra.mxu0 0.0
    %821 = vmatprep.subr.mxu0 0.0
    %822 = vmatpush1.msra.mxu0 0.0
    %823 = vmatprep.subr.mxu0 0.0
    %824 = vmatpush1.msra.mxu0 0.0
    %825 = vmatprep.subr.mxu0 0.0
    %826 = vmatpush1.msra.mxu0 0.0
    %827 = vmatprep.subr.mxu0 0.0
    %828 = vmatpush1.msra.mxu0 0.0
    %829 = vmatprep.subr.mxu0 0.0
    %830 = vmatpush1.msra.mxu0 0.0
    %831 = vmatprep.subr.mxu0 0.0
    %832 = vmatpush1.msra.mxu0 0.0
    %833 = vmatprep.subr.mxu0 0.0
    %834 = vmatpush1.msra.mxu0 0.0
    %835 = vmatprep.subr.mxu0 0.0
    %836 = vmatpush1.msra.mxu0 0.0
    %837 = vmatprep.subr.mxu0 0.0
    %838 = vmatpush1.msra.mxu0 0.0
    %839 = vmatprep.subr.mxu0 0.0
    %840 = vmatpush1.msra.mxu0 0.0
    %841 = vmatprep.subr.mxu0 0.0
    %842 = vmatpush1.msra.mxu0 0.0
    %843 = vmatprep.subr.mxu0 0.0
    %844 = vmatpush1.msra.mxu0 0.0
    %845 = vmatprep.subr.mxu0 0.0
    %846 = vmatpush1.msra.mxu0 0.0
    %847 = vmatprep.subr.mxu0 0.0
    %848 = vmatpush1.msra.mxu0 0.0
    %849 = vmatprep.subr.mxu0 0.0
    %850 = vmatpush1.msra.mxu0 0.0
    %851 = vmatprep.subr.mxu0 0.0
    %852 = vmatpush1.msra.mxu0 0.0
    %853 = vmatprep.subr.mxu0 0.0
    %854 = vmatpush1.msra.mxu0 0.0
    %855 = vmatprep.subr.mxu0 0.0
    %856 = vmatpush1.msra.mxu0 0.0
    %857 = vmatprep.subr.mxu0 0.0
    %858 = vmatpush1.msra.mxu0 0.0
    %859 = vmatprep.subr.mxu0 0.0
    %860 = vmatpush1.msra.mxu0 0.0
    %861 = vmatprep.subr.mxu0 0.0
    %862 = vmatpush1.msra.mxu0 0.0
    %863 = vmatprep.subr.mxu0 0.0
    %864 = vmatpush1.msra.mxu0 0.0
    %865 = vmatprep.subr.mxu0 0.0
    %866 = vmatpush1.msra.mxu0 0.0
    %867 = vmatprep.mubr.f32.mxu0 0.0
    %868 = vmatmul.mubr.f32.gmra.mrb[0].mxu0 %v792
    %v869 = vpop.f32.mrb[0].mxu0
    %v870 = vadd.f32 %v684, %v869
    %v871 = vpop.f32.mrb[0].mxu0
    %872 = vmatprep.mubr.f32.mxu0 0.0
    %873 = vmatmul.mubr.f32.gmra.mrb[0].mxu0 %v795
    %v874 = vpop.f32.mrb[0].mxu0
    %v875 = vadd.f32 %v685, %v874
    %v876 = vpop.f32.mrb[0].mxu0
    %877 = vmatprep.mubr.f32.mxu0 0.0
    %878 = vmatmul.mubr.f32.gmra.mrb[0].mxu0 %v798
    %v879 = vpop.f32.mrb[0].mxu0
    %v880 = vadd.f32 %v686, %v879
    %v881 = vpop.f32.mrb[0].mxu0
    %882 = vmatprep.mubr.f32.mxu0 0.0
    %883 = vmatmul.mubr.f32.gmra.mrb[0].mxu0 %v801
    %v884 = vpop.f32.mrb[0].mxu0
    %v885 = vadd.f32 %v687, %v884
    %v886 = vpop.f32.mrb[0].mxu0
    %887 = vdwg.mxu0
    %v888 = vmul.f32 %v770, %v668
    %v889 = vmul.f32 %v775, %v669
    %v890 = vmul.f32 %v780, %v670
    %v891 = vmul.f32 %v785, %v671
    %v892 = vmul.f32 %v870, %v672
    %v893 = vmul.f32 %v875, %v673
    %v894 = vmul.f32 %v880, %v674
    %v895 = vmul.f32 %v885, %v675
    %v896 = vld [vmem:[%s2] sm:$0xff]
    %v897 = vld [vmem:[%s2 + $0x8] sm:$0xff]
    %v898 = vld [vmem:[%s2 + $0x10] sm:$0xff]
    %v899 = vld [vmem:[%s2 + $0x18] sm:$0xff]
    %v900 = vld [vmem:[%s2 + $0x20] sm:$0xff]
    %v901 = vld [vmem:[%s2 + $0x28] sm:$0xff]
    %v902 = vld [vmem:[%s2 + $0x30] sm:$0xff]
    %v903 = vld [vmem:[%s2 + $0x38] sm:$0xff]
    %904 = vxpose.xlu0.b32.start [1/16] %v888, 128
    %905 = vxpose.xlu0.b32.cont [2/16] 0.0, 128
    %906 = vxpose.xlu0.b32.cont [3/16] 0.0, 128
    %907 = vxpose.xlu0.b32.cont [4/16] 0.0, 128
    %908 = vxpose.xlu0.b32.cont [5/16] 0.0, 128
    %909 = vxpose.xlu0.b32.cont [6/16] 0.0, 128
    %910 = vxpose.xlu0.b32.cont [7/16] 0.0, 128
    %911 = vxpose.xlu0.b32.cont [8/16] 0.0, 128
    %912 = vxpose.xlu0.b32.cont [9/16] 0.0, 128
    %913 = vxpose.xlu0.b32.cont [10/16] 0.0, 128
    %914 = vxpose.xlu0.b32.cont [11/16] 0.0, 128
    %915 = vxpose.xlu0.b32.cont [12/16] 0.0, 128
    %916 = vxpose.xlu0.b32.cont [13/16] 0.0, 128
    %917 = vxpose.xlu0.b32.cont [14/16] 0.0, 128
    %918 = vxpose.xlu0.b32.cont [15/16] 0.0, 128
    %919 = vxpose.xlu0.b32.end [16/16] 0.0, 128
    %v920 = vpop.trf.xlu0
    %v921 = vpop.trf.xlu0
    %v922 = vpop.trf.xlu0
    %v923 = vpop.trf.xlu0
    %v924 = vpop.trf.xlu0
    %v925 = vpop.trf.xlu0
    %v926 = vpop.trf.xlu0
    %v927 = vpop.trf.xlu0
    %v928 = vpop.trf.xlu0
    %v929 = vpop.trf.xlu0
    %v930 = vpop.trf.xlu0
    %v931 = vpop.trf.xlu0
    %v932 = vpop.trf.xlu0
    %v933 = vpop.trf.xlu0
    %v934 = vpop.trf.xlu0
    %v935 = vpop.trf.xlu0
    %936 = vxpose.xlu0.b32.start [1/16] %v889, 128
    %937 = vxpose.xlu0.b32.cont [2/16] 0.0, 128
    %938 = vxpose.xlu0.b32.cont [3/16] 0.0, 128
    %939 = vxpose.xlu0.b32.cont [4/16] 0.0, 128
    %940 = vxpose.xlu0.b32.cont [5/16] 0.0, 128
    %941 = vxpose.xlu0.b32.cont [6/16] 0.0, 128
    %942 = vxpose.xlu0.b32.cont [7/16] 0.0, 128
    %943 = vxpose.xlu0.b32.cont [8/16] 0.0, 128
    %944 = vxpose.xlu0.b32.cont [9/16] 0.0, 128
    %945 = vxpose.xlu0.b32.cont [10/16] 0.0, 128
    %946 = vxpose.xlu0.b32.cont [11/16] 0.0, 128
    %947 = vxpose.xlu0.b32.cont [12/16] 0.0, 128
    %948 = vxpose.xlu0.b32.cont [13/16] 0.0, 128
    %949 = vxpose.xlu0.b32.cont [14/16] 0.0, 128
    %950 = vxpose.xlu0.b32.cont [15/16] 0.0, 128
    %951 = vxpose.xlu0.b32.end [16/16] 0.0, 128
    %v952 = vpop.trf.xlu0
    %v953 = vpop.trf.xlu0
    %v954 = vpop.trf.xlu0
    %v955 = vpop.trf.xlu0
    %v956 = vpop.trf.xlu0
    %v957 = vpop.trf.xlu0
    %v958 = vpop.trf.xlu0
    %v959 = vpop.trf.xlu0
    %v960 = vpop.trf.xlu0
    %v961 = vpop.trf.xlu0
    %v962 = vpop.trf.xlu0
    %v963 = vpop.trf.xlu0
    %v964 = vpop.trf.xlu0
    %v965 = vpop.trf.xlu0
    %v966 = vpop.trf.xlu0
    %v967 = vpop.trf.xlu0
    %968 = vxpose.xlu0.b32.start [1/16] %v890, 128
    %969 = vxpose.xlu0.b32.cont [2/16] 0.0, 128
    %970 = vxpose.xlu0.b32.cont [3/16] 0.0, 128
    %971 = vxpose.xlu0.b32.cont [4/16] 0.0, 128
    %972 = vxpose.xlu0.b32.cont [5/16] 0.0, 128
    %973 = vxpose.xlu0.b32.cont [6/16] 0.0, 128
    %974 = vxpose.xlu0.b32.cont [7/16] 0.0, 128
    %975 = vxpose.xlu0.b32.cont [8/16] 0.0, 128
    %976 = vxpose.xlu0.b32.cont [9/16] 0.0, 128
    %977 = vxpose.xlu0.b32.cont [10/16] 0.0, 128
    %978 = vxpose.xlu0.b32.cont [11/16] 0.0, 128
    %979 = vxpose.xlu0.b32.cont [12/16] 0.0, 128
    %980 = vxpose.xlu0.b32.cont [13/16] 0.0, 128
    %981 = vxpose.xlu0.b32.cont [14/16] 0.0, 128
    %982 = vxpose.xlu0.b32.cont [15/16] 0.0, 128
    %983 = vxpose.xlu0.b32.end [16/16] 0.0, 128
    %v984 = vpop.trf.xlu0
    %v985 = vpop.trf.xlu0
    %v986 = vpop.trf.xlu0
    %v987 = vpop.trf.xlu0
    %v988 = vpop.trf.xlu0
    %v989 = vpop.trf.xlu0
    %v990 = vpop.trf.xlu0
    %v991 = vpop.trf.xlu0
    %v992 = vpop.trf.xlu0
    %v993 = vpop.trf.xlu0
    %v994 = vpop.trf.xlu0
    %v995 = vpop.trf.xlu0
    %v996 = vpop.trf.xlu0
    %v997 = vpop.trf.xlu0
    %v998 = vpop.trf.xlu0
    %v999 = vpop.trf.xlu0
    %1000 = vxpose.xlu0.b32.start [1/16] %v891, 128
    %1001 = vxpose.xlu0.b32.cont [2/16] 0.0, 128
    %1002 = vxpose.xlu0.b32.cont [3/16] 0.0, 128
    %1003 = vxpose.xlu0.b32.cont [4/16] 0.0, 128
    %1004 = vxpose.xlu0.b32.cont [5/16] 0.0, 128
    %1005 = vxpose.xlu0.b32.cont [6/16] 0.0, 128
    %1006 = vxpose.xlu0.b32.cont [7/16] 0.0, 128
    %1007 = vxpose.xlu0.b32.cont [8/16] 0.0, 128
    %1008 = vxpose.xlu0.b32.cont [9/16] 0.0, 128
    %1009 = vxpose.xlu0.b32.cont [10/16] 0.0, 128
    %1010 = vxpose.xlu0.b32.cont [11/16] 0.0, 128
    %1011 = vxpose.xlu0.b32.cont [12/16] 0.0, 128
    %1012 = vxpose.xlu0.b32.cont [13/16] 0.0, 128
    %1013 = vxpose.xlu0.b32.cont [14/16] 0.0, 128
    %1014 = vxpose.xlu0.b32.cont [15/16] 0.0, 128
    %1015 = vxpose.xlu0.b32.end [16/16] 0.0, 128
    %v1016 = vpop.trf.xlu0
    %v1017 = vpop.trf.xlu0
    %v1018 = vpop.trf.xlu0
    %v1019 = vpop.trf.xlu0
    %v1020 = vpop.trf.xlu0
    %v1021 = vpop.trf.xlu0
    %v1022 = vpop.trf.xlu0
    %v1023 = vpop.trf.xlu0
    %v1024 = vpop.trf.xlu0
    %v1025 = vpop.trf.xlu0
    %v1026 = vpop.trf.xlu0
    %v1027 = vpop.trf.xlu0
    %v1028 = vpop.trf.xlu0
    %v1029 = vpop.trf.xlu0
    %v1030 = vpop.trf.xlu0
    %v1031 = vpop.trf.xlu0
    %1032 = vxpose.xlu0.b32.start [1/16] %v892, 128
    %1033 = vxpose.xlu0.b32.cont [2/16] 0.0, 128
    %1034 = vxpose.xlu0.b32.cont [3/16] 0.0, 128
    %1035 = vxpose.xlu0.b32.cont [4/16] 0.0, 128
    %1036 = vxpose.xlu0.b32.cont [5/16] 0.0, 128
    %1037 = vxpose.xlu0.b32.cont [6/16] 0.0, 128
    %1038 = vxpose.xlu0.b32.cont [7/16] 0.0, 128
    %1039 = vxpose.xlu0.b32.cont [8/16] 0.0, 128
    %1040 = vxpose.xlu0.b32.cont [9/16] 0.0, 128
    %1041 = vxpose.xlu0.b32.cont [10/16] 0.0, 128
    %1042 = vxpose.xlu0.b32.cont [11/16] 0.0, 128
    %1043 = vxpose.xlu0.b32.cont [12/16] 0.0, 128
    %1044 = vxpose.xlu0.b32.cont [13/16] 0.0, 128
    %1045 = vxpose.xlu0.b32.cont [14/16] 0.0, 128
    %1046 = vxpose.xlu0.b32.cont [15/16] 0.0, 128
    %1047 = vxpose.xlu0.b32.end [16/16] 0.0, 128
    %v1048 = vpop.trf.xlu0
    %v1049 = vpop.trf.xlu0
    %v1050 = vpop.trf.xlu0
    %v1051 = vpop.trf.xlu0
    %v1052 = vpop.trf.xlu0
    %v1053 = vpop.trf.xlu0
    %v1054 = vpop.trf.xlu0
    %v1055 = vpop.trf.xlu0
    %v1056 = vpop.trf.xlu0
    %v1057 = vpop.trf.xlu0
    %v1058 = vpop.trf.xlu0
    %v1059 = vpop.trf.xlu0
    %v1060 = vpop.trf.xlu0
    %v1061 = vpop.trf.xlu0
    %v1062 = vpop.trf.xlu0
    %v1063 = vpop.trf.xlu0
    %1064 = vxpose.xlu0.b32.start [1/16] %v893, 128
    %1065 = vxpose.xlu0.b32.cont [2/16] 0.0, 128
    %1066 = vxpose.xlu0.b32.cont [3/16] 0.0, 128
    %1067 = vxpose.xlu0.b32.cont [4/16] 0.0, 128
    %1068 = vxpose.xlu0.b32.cont [5/16] 0.0, 128
    %1069 = vxpose.xlu0.b32.cont [6/16] 0.0, 128
    %1070 = vxpose.xlu0.b32.cont [7/16] 0.0, 128
    %1071 = vxpose.xlu0.b32.cont [8/16] 0.0, 128
    %1072 = vxpose.xlu0.b32.cont [9/16] 0.0, 128
    %1073 = vxpose.xlu0.b32.cont [10/16] 0.0, 128
    %1074 = vxpose.xlu0.b32.cont [11/16] 0.0, 128
    %1075 = vxpose.xlu0.b32.cont [12/16] 0.0, 128
    %1076 = vxpose.xlu0.b32.cont [13/16] 0.0, 128
    %1077 = vxpose.xlu0.b32.cont [14/16] 0.0, 128
    %1078 = vxpose.xlu0.b32.cont [15/16] 0.0, 128
    %1079 = vxpose.xlu0.b32.end [16/16] 0.0, 128
    %v1080 = vpop.trf.xlu0
    %v1081 = vpop.trf.xlu0
    %v1082 = vpop.trf.xlu0
    %v1083 = vpop.trf.xlu0
    %v1084 = vpop.trf.xlu0
    %v1085 = vpop.trf.xlu0
    %v1086 = vpop.trf.xlu0
    %v1087 = vpop.trf.xlu0
    %v1088 = vpop.trf.xlu0
    %v1089 = vpop.trf.xlu0
    %v1090 = vpop.trf.xlu0
    %v1091 = vpop.trf.xlu0
    %v1092 = vpop.trf.xlu0
    %v1093 = vpop.trf.xlu0
    %v1094 = vpop.trf.xlu0
    %v1095 = vpop.trf.xlu0
    %1096 = vxpose.xlu0.b32.start [1/16] %v894, 128
    %1097 = vxpose.xlu0.b32.cont [2/16] 0.0, 128
    %1098 = vxpose.xlu0.b32.cont [3/16] 0.0, 128
    %1099 = vxpose.xlu0.b32.cont [4/16] 0.0, 128
    %1100 = vxpose.xlu0.b32.cont [5/16] 0.0, 128
    %1101 = vxpose.xlu0.b32.cont [6/16] 0.0, 128
    %1102 = vxpose.xlu0.b32.cont [7/16] 0.0, 128
    %1103 = vxpose.xlu0.b32.cont [8/16] 0.0, 128
    %1104 = vxpose.xlu0.b32.cont [9/16] 0.0, 128
    %1105 = vxpose.xlu0.b32.cont [10/16] 0.0, 128
    %1106 = vxpose.xlu0.b32.cont [11/16] 0.0, 128
    %1107 = vxpose.xlu0.b32.cont [12/16] 0.0, 128
    %1108 = vxpose.xlu0.b32.cont [13/16] 0.0, 128
    %1109 = vxpose.xlu0.b32.cont [14/16] 0.0, 128
    %1110 = vxpose.xlu0.b32.cont [15/16] 0.0, 128
    %1111 = vxpose.xlu0.b32.end [16/16] 0.0, 128
    %v1112 = vpop.trf.xlu0
    %v1113 = vpop.trf.xlu0
    %v1114 = vpop.trf.xlu0
    %v1115 = vpop.trf.xlu0
    %v1116 = vpop.trf.xlu0
    %v1117 = vpop.trf.xlu0
    %v1118 = vpop.trf.xlu0
    %v1119 = vpop.trf.xlu0
    %v1120 = vpop.trf.xlu0
    %v1121 = vpop.trf.xlu0
    %v1122 = vpop.trf.xlu0
    %v1123 = vpop.trf.xlu0
    %v1124 = vpop.trf.xlu0
    %v1125 = vpop.trf.xlu0
    %v1126 = vpop.trf.xlu0
    %v1127 = vpop.trf.xlu0
    %1128 = vxpose.xlu0.b32.start [1/16] %v895, 128
    %1129 = vxpose.xlu0.b32.cont [2/16] 0.0, 128
    %1130 = vxpose.xlu0.b32.cont [3/16] 0.0, 128
    %1131 = vxpose.xlu0.b32.cont [4/16] 0.0, 128
    %1132 = vxpose.xlu0.b32.cont [5/16] 0.0, 128
    %1133 = vxpose.xlu0.b32.cont [6/16] 0.0, 128
    %1134 = vxpose.xlu0.b32.cont [7/16] 0.0, 128
    %1135 = vxpose.xlu0.b32.cont [8/16] 0.0, 128
    %1136 = vxpose.xlu0.b32.cont [9/16] 0.0, 128
    %1137 = vxpose.xlu0.b32.cont [10/16] 0.0, 128
    %1138 = vxpose.xlu0.b32.cont [11/16] 0.0, 128
    %1139 = vxpose.xlu0.b32.cont [12/16] 0.0, 128
    %1140 = vxpose.xlu0.b32.cont [13/16] 0.0, 128
    %1141 = vxpose.xlu0.b32.cont [14/16] 0.0, 128
    %1142 = vxpose.xlu0.b32.cont [15/16] 0.0, 128
    %1143 = vxpose.xlu0.b32.end [16/16] 0.0, 128
    %v1144 = vpop.trf.xlu0
    %v1145 = vpop.trf.xlu0
    %v1146 = vpop.trf.xlu0
    %v1147 = vpop.trf.xlu0
    %v1148 = vpop.trf.xlu0
    %v1149 = vpop.trf.xlu0
    %v1150 = vpop.trf.xlu0
    %v1151 = vpop.trf.xlu0
    %v1152 = vpop.trf.xlu0
    %v1153 = vpop.trf.xlu0
    %v1154 = vpop.trf.xlu0
    %v1155 = vpop.trf.xlu0
    %v1156 = vpop.trf.xlu0
    %v1157 = vpop.trf.xlu0
    %v1158 = vpop.trf.xlu0
    %v1159 = vpop.trf.xlu0
    %v1160 = vcombine.high %v920, 0.0
    %v1162 = vunpack.c.l.s4 1983009808
    %v1163 = vunpack.c.0.s8 %v1162
    %v1164 = vlaneseq
    %v1165 = vshrl.u32 %v1164, 7
    %v1166 = vsub.s32 %v1163, %v1165
    %v1167 = vrot.slane %v920, %v1166
    %v1169 = vunpack.c.l.s4 1983009808
    %v1170 = vunpack.c.0.s8 %v1169
    %v1171 = vlaneseq
    %v1172 = vshrl.u32 %v1171, 7
    %v1173 = vsub.s32 %v1170, %v1172
    %v1174 = vrot.slane %v1160, %v1173
    %v1175 = vcombine.high %v1048, 0.0
    %v1177 = vunpack.c.l.s4 1983009808
    %v1178 = vunpack.c.0.s8 %v1177
    %v1179 = vlaneseq
    %v1180 = vshrl.u32 %v1179, 7
    %v1181 = vsub.s32 %v1178, %v1180
    %v1182 = vrot.slane %v1048, %v1181
    %v1184 = vunpack.c.l.s4 1983009808
    %v1185 = vunpack.c.0.s8 %v1184
    %v1186 = vlaneseq
    %v1187 = vshrl.u32 %v1186, 7
    %v1188 = vsub.s32 %v1185, %v1187
    %v1189 = vrot.slane %v1175, %v1188
    %v1190 = vcombine.low %v1167, %v1182
    %v1191 = vcombine.high %v1167, %v1182
    %v1193 = vunpack.c.l.s4 1934713408
    %v1194 = vunpack.c.0.s8 %v1193
    %v1195 = vlaneseq
    %v1196 = vshrl.u32 %v1195, 7
    %v1197 = vsub.s32 %v1194, %v1196
    %v1198 = vrot.slane %v1190, %v1197
    %v1200 = vunpack.c.l.s4 1934713408
    %v1201 = vunpack.c.0.s8 %v1200
    %v1202 = vlaneseq
    %v1203 = vshrl.u32 %v1202, 7
    %v1204 = vsub.s32 %v1201, %v1203
    %v1205 = vrot.slane %v1191, %v1204
    %v1206 = vcombine.low %v1174, %v1189
    %v1207 = vcombine.high %v1174, %v1189
    %v1209 = vunpack.c.l.s4 1934713408
    %v1210 = vunpack.c.0.s8 %v1209
    %v1211 = vlaneseq
    %v1212 = vshrl.u32 %v1211, 7
    %v1213 = vsub.s32 %v1210, %v1212
    %v1214 = vrot.slane %v1206, %v1213
    %v1216 = vunpack.c.l.s4 1934713408
    %v1217 = vunpack.c.0.s8 %v1216
    %v1218 = vlaneseq
    %v1219 = vshrl.u32 %v1218, 7
    %v1220 = vsub.s32 %v1217, %v1219
    %v1221 = vrot.slane %v1207, %v1220
    %v1222 = vcombine.high %v1198, 0.0
    %v1223 = vcombine.high %v1205, 0.0
    %v1224 = vcombine.high %v1214, 0.0
    %v1225 = vcombine.high %v1221, 0.0
    %v1226 = vcombine.high %v921, 0.0
    %v1228 = vunpack.c.l.s4 1983009808
    %v1229 = vunpack.c.0.s8 %v1228
    %v1230 = vlaneseq
    %v1231 = vshrl.u32 %v1230, 7
    %v1232 = vsub.s32 %v1229, %v1231
    %v1233 = vrot.slane %v921, %v1232
    %v1235 = vunpack.c.l.s4 1983009808
    %v1236 = vunpack.c.0.s8 %v1235
    %v1237 = vlaneseq
    %v1238 = vshrl.u32 %v1237, 7
    %v1239 = vsub.s32 %v1236, %v1238
    %v1240 = vrot.slane %v1226, %v1239
    %v1241 = vcombine.high %v1049, 0.0
    %v1243 = vunpack.c.l.s4 1983009808
    %v1244 = vunpack.c.0.s8 %v1243
    %v1245 = vlaneseq
    %v1246 = vshrl.u32 %v1245, 7
    %v1247 = vsub.s32 %v1244, %v1246
    %v1248 = vrot.slane %v1049, %v1247
    %v1250 = vunpack.c.l.s4 1983009808
    %v1251 = vunpack.c.0.s8 %v1250
    %v1252 = vlaneseq
    %v1253 = vshrl.u32 %v1252, 7
    %v1254 = vsub.s32 %v1251, %v1253
    %v1255 = vrot.slane %v1241, %v1254
    %v1256 = vcombine.low %v1233, %v1248
    %v1257 = vcombine.high %v1233, %v1248
    %v1259 = vunpack.c.l.s4 1934713408
    %v1260 = vunpack.c.0.s8 %v1259
    %v1261 = vlaneseq
    %v1262 = vshrl.u32 %v1261, 7
    %v1263 = vsub.s32 %v1260, %v1262
    %v1264 = vrot.slane %v1256, %v1263
    %v1266 = vunpack.c.l.s4 1934713408
    %v1267 = vunpack.c.0.s8 %v1266
    %v1268 = vlaneseq
    %v1269 = vshrl.u32 %v1268, 7
    %v1270 = vsub.s32 %v1267, %v1269
    %v1271 = vrot.slane %v1257, %v1270
    %v1272 = vcombine.low %v1240, %v1255
    %v1273 = vcombine.high %v1240, %v1255
    %v1275 = vunpack.c.l.s4 1934713408
    %v1276 = vunpack.c.0.s8 %v1275
    %v1277 = vlaneseq
    %v1278 = vshrl.u32 %v1277, 7
    %v1279 = vsub.s32 %v1276, %v1278
    %v1280 = vrot.slane %v1272, %v1279
    %v1282 = vunpack.c.l.s4 1934713408
    %v1283 = vunpack.c.0.s8 %v1282
    %v1284 = vlaneseq
    %v1285 = vshrl.u32 %v1284, 7
    %v1286 = vsub.s32 %v1283, %v1285
    %v1287 = vrot.slane %v1273, %v1286
    %v1288 = vcombine.high %v1264, 0.0
    %v1289 = vcombine.high %v1271, 0.0
    %v1290 = vcombine.high %v1280, 0.0
    %v1291 = vcombine.high %v1287, 0.0
    %v1292 = vcombine.high %v952, 0.0
    %v1294 = vunpack.c.l.s4 1983009808
    %v1295 = vunpack.c.0.s8 %v1294
    %v1296 = vlaneseq
    %v1297 = vshrl.u32 %v1296, 7
    %v1298 = vsub.s32 %v1295, %v1297
    %v1299 = vrot.slane %v952, %v1298
    %v1301 = vunpack.c.l.s4 1983009808
    %v1302 = vunpack.c.0.s8 %v1301
    %v1303 = vlaneseq
    %v1304 = vshrl.u32 %v1303, 7
    %v1305 = vsub.s32 %v1302, %v1304
    %v1306 = vrot.slane %v1292, %v1305
    %v1307 = vcombine.high %v1080, 0.0
    %v1309 = vunpack.c.l.s4 1983009808
    %v1310 = vunpack.c.0.s8 %v1309
    %v1311 = vlaneseq
    %v1312 = vshrl.u32 %v1311, 7
    %v1313 = vsub.s32 %v1310, %v1312
    %v1314 = vrot.slane %v1080, %v1313
    %v1316 = vunpack.c.l.s4 1983009808
    %v1317 = vunpack.c.0.s8 %v1316
    %v1318 = vlaneseq
    %v1319 = vshrl.u32 %v1318, 7
    %v1320 = vsub.s32 %v1317, %v1319
    %v1321 = vrot.slane %v1307, %v1320
    %v1322 = vcombine.low %v1299, %v1314
    %v1323 = vcombine.high %v1299, %v1314
    %v1325 = vunpack.c.l.s4 1934713408
    %v1326 = vunpack.c.0.s8 %v1325
    %v1327 = vlaneseq
    %v1328 = vshrl.u32 %v1327, 7
    %v1329 = vsub.s32 %v1326, %v1328
    %v1330 = vrot.slane %v1322, %v1329
    %v1332 = vunpack.c.l.s4 1934713408
    %v1333 = vunpack.c.0.s8 %v1332
    %v1334 = vlaneseq
    %v1335 = vshrl.u32 %v1334, 7
    %v1336 = vsub.s32 %v1333, %v1335
    %v1337 = vrot.slane %v1323, %v1336
    %v1338 = vcombine.low %v1306, %v1321
    %v1339 = vcombine.high %v1306, %v1321
    %v1341 = vunpack.c.l.s4 1934713408
    %v1342 = vunpack.c.0.s8 %v1341
    %v1343 = vlaneseq
    %v1344 = vshrl.u32 %v1343, 7
    %v1345 = vsub.s32 %v1342, %v1344
    %v1346 = vrot.slane %v1338, %v1345
    %v1348 = vunpack.c.l.s4 1934713408
    %v1349 = vunpack.c.0.s8 %v1348
    %v1350 = vlaneseq
    %v1351 = vshrl.u32 %v1350, 7
    %v1352 = vsub.s32 %v1349, %v1351
    %v1353 = vrot.slane %v1339, %v1352
    %v1354 = vcombine.high %v1330, 0.0
    %v1355 = vcombine.high %v1337, 0.0
    %v1356 = vcombine.high %v1346, 0.0
    %v1357 = vcombine.high %v1353, 0.0
    %v1358 = vcombine.high %v953, 0.0
    %v1360 = vunpack.c.l.s4 1983009808
    %v1361 = vunpack.c.0.s8 %v1360
    %v1362 = vlaneseq
    %v1363 = vshrl.u32 %v1362, 7
    %v1364 = vsub.s32 %v1361, %v1363
    %v1365 = vrot.slane %v953, %v1364
    %v1367 = vunpack.c.l.s4 1983009808
    %v1368 = vunpack.c.0.s8 %v1367
    %v1369 = vlaneseq
    %v1370 = vshrl.u32 %v1369, 7
    %v1371 = vsub.s32 %v1368, %v1370
    %v1372 = vrot.slane %v1358, %v1371
    %v1373 = vcombine.high %v1081, 0.0
    %v1375 = vunpack.c.l.s4 1983009808
    %v1376 = vunpack.c.0.s8 %v1375
    %v1377 = vlaneseq
    %v1378 = vshrl.u32 %v1377, 7
    %v1379 = vsub.s32 %v1376, %v1378
    %v1380 = vrot.slane %v1081, %v1379
    %v1382 = vunpack.c.l.s4 1983009808
    %v1383 = vunpack.c.0.s8 %v1382
    %v1384 = vlaneseq
    %v1385 = vshrl.u32 %v1384, 7
    %v1386 = vsub.s32 %v1383, %v1385
    %v1387 = vrot.slane %v1373, %v1386
    %v1388 = vcombine.low %v1365, %v1380
    %v1389 = vcombine.high %v1365, %v1380
    %v1391 = vunpack.c.l.s4 1934713408
    %v1392 = vunpack.c.0.s8 %v1391
    %v1393 = vlaneseq
    %v1394 = vshrl.u32 %v1393, 7
    %v1395 = vsub.s32 %v1392, %v1394
    %v1396 = vrot.slane %v1388, %v1395
    %v1398 = vunpack.c.l.s4 1934713408
    %v1399 = vunpack.c.0.s8 %v1398
    %v1400 = vlaneseq
    %v1401 = vshrl.u32 %v1400, 7
    %v1402 = vsub.s32 %v1399, %v1401
    %v1403 = vrot.slane %v1389, %v1402
    %v1404 = vcombine.low %v1372, %v1387
    %v1405 = vcombine.high %v1372, %v1387
    %v1407 = vunpack.c.l.s4 1934713408
    %v1408 = vunpack.c.0.s8 %v1407
    %v1409 = vlaneseq
    %v1410 = vshrl.u32 %v1409, 7
    %v1411 = vsub.s32 %v1408, %v1410
    %v1412 = vrot.slane %v1404, %v1411
    %v1414 = vunpack.c.l.s4 1934713408
    %v1415 = vunpack.c.0.s8 %v1414
    %v1416 = vlaneseq
    %v1417 = vshrl.u32 %v1416, 7
    %v1418 = vsub.s32 %v1415, %v1417
    %v1419 = vrot.slane %v1405, %v1418
    %v1420 = vcombine.high %v1396, 0.0
    %v1421 = vcombine.high %v1403, 0.0
    %v1422 = vcombine.high %v1412, 0.0
    %v1423 = vcombine.high %v1419, 0.0
    %v1424 = vcombine.high %v984, 0.0
    %v1426 = vunpack.c.l.s4 1983009808
    %v1427 = vunpack.c.0.s8 %v1426
    %v1428 = vlaneseq
    %v1429 = vshrl.u32 %v1428, 7
    %v1430 = vsub.s32 %v1427, %v1429
    %v1431 = vrot.slane %v984, %v1430
    %v1433 = vunpack.c.l.s4 1983009808
    %v1434 = vunpack.c.0.s8 %v1433
    %v1435 = vlaneseq
    %v1436 = vshrl.u32 %v1435, 7
    %v1437 = vsub.s32 %v1434, %v1436
    %v1438 = vrot.slane %v1424, %v1437
    %v1439 = vcombine.high %v1112, 0.0
    %v1441 = vunpack.c.l.s4 1983009808
    %v1442 = vunpack.c.0.s8 %v1441
    %v1443 = vlaneseq
    %v1444 = vshrl.u32 %v1443, 7
    %v1445 = vsub.s32 %v1442, %v1444
    %v1446 = vrot.slane %v1112, %v1445
    %v1448 = vunpack.c.l.s4 1983009808
    %v1449 = vunpack.c.0.s8 %v1448
    %v1450 = vlaneseq
    %v1451 = vshrl.u32 %v1450, 7
    %v1452 = vsub.s32 %v1449, %v1451
    %v1453 = vrot.slane %v1439, %v1452
    %v1454 = vcombine.low %v1431, %v1446
    %v1455 = vcombine.high %v1431, %v1446
    %v1457 = vunpack.c.l.s4 1934713408
    %v1458 = vunpack.c.0.s8 %v1457
    %v1459 = vlaneseq
    %v1460 = vshrl.u32 %v1459, 7
    %v1461 = vsub.s32 %v1458, %v1460
    %v1462 = vrot.slane %v1454, %v1461
    %v1464 = vunpack.c.l.s4 1934713408
    %v1465 = vunpack.c.0.s8 %v1464
    %v1466 = vlaneseq
    %v1467 = vshrl.u32 %v1466, 7
    %v1468 = vsub.s32 %v1465, %v1467
    %v1469 = vrot.slane %v1455, %v1468
    %v1470 = vcombine.low %v1438, %v1453
    %v1471 = vcombine.high %v1438, %v1453
    %v1473 = vunpack.c.l.s4 1934713408
    %v1474 = vunpack.c.0.s8 %v1473
    %v1475 = vlaneseq
    %v1476 = vshrl.u32 %v1475, 7
    %v1477 = vsub.s32 %v1474, %v1476
    %v1478 = vrot.slane %v1470, %v1477
    %v1480 = vunpack.c.l.s4 1934713408
    %v1481 = vunpack.c.0.s8 %v1480
    %v1482 = vlaneseq
    %v1483 = vshrl.u32 %v1482, 7
    %v1484 = vsub.s32 %v1481, %v1483
    %v1485 = vrot.slane %v1471, %v1484
    %v1486 = vcombine.high %v1462, 0.0
    %v1487 = vcombine.high %v1469, 0.0
    %v1488 = vcombine.high %v1478, 0.0
    %v1489 = vcombine.high %v1485, 0.0
    %v1490 = vcombine.high %v985, 0.0
    %v1492 = vunpack.c.l.s4 1983009808
    %v1493 = vunpack.c.0.s8 %v1492
    %v1494 = vlaneseq
    %v1495 = vshrl.u32 %v1494, 7
    %v1496 = vsub.s32 %v1493, %v1495
    %v1497 = vrot.slane %v985, %v1496
    %v1499 = vunpack.c.l.s4 1983009808
    %v1500 = vunpack.c.0.s8 %v1499
    %v1501 = vlaneseq
    %v1502 = vshrl.u32 %v1501, 7
    %v1503 = vsub.s32 %v1500, %v1502
    %v1504 = vrot.slane %v1490, %v1503
    %v1505 = vcombine.high %v1113, 0.0
    %v1507 = vunpack.c.l.s4 1983009808
    %v1508 = vunpack.c.0.s8 %v1507
    %v1509 = vlaneseq
    %v1510 = vshrl.u32 %v1509, 7
    %v1511 = vsub.s32 %v1508, %v1510
    %v1512 = vrot.slane %v1113, %v1511
    %v1514 = vunpack.c.l.s4 1983009808
    %v1515 = vunpack.c.0.s8 %v1514
    %v1516 = vlaneseq
    %v1517 = vshrl.u32 %v1516, 7
    %v1518 = vsub.s32 %v1515, %v1517
    %v1519 = vrot.slane %v1505, %v1518
    %v1520 = vcombine.low %v1497, %v1512
    %v1521 = vcombine.high %v1497, %v1512
    %v1523 = vunpack.c.l.s4 1934713408
    %v1524 = vunpack.c.0.s8 %v1523
    %v1525 = vlaneseq
    %v1526 = vshrl.u32 %v1525, 7
    %v1527 = vsub.s32 %v1524, %v1526
    %v1528 = vrot.slane %v1520, %v1527
    %v1530 = vunpack.c.l.s4 1934713408
    %v1531 = vunpack.c.0.s8 %v1530
    %v1532 = vlaneseq
    %v1533 = vshrl.u32 %v1532, 7
    %v1534 = vsub.s32 %v1531, %v1533
    %v1535 = vrot.slane %v1521, %v1534
    %v1536 = vcombine.low %v1504, %v1519
    %v1537 = vcombine.high %v1504, %v1519
    %v1539 = vunpack.c.l.s4 1934713408
    %v1540 = vunpack.c.0.s8 %v1539
    %v1541 = vlaneseq
    %v1542 = vshrl.u32 %v1541, 7
    %v1543 = vsub.s32 %v1540, %v1542
    %v1544 = vrot.slane %v1536, %v1543
    %v1546 = vunpack.c.l.s4 1934713408
    %v1547 = vunpack.c.0.s8 %v1546
    %v1548 = vlaneseq
    %v1549 = vshrl.u32 %v1548, 7
    %v1550 = vsub.s32 %v1547, %v1549
    %v1551 = vrot.slane %v1537, %v1550
    %v1552 = vcombine.high %v1528, 0.0
    %v1553 = vcombine.high %v1535, 0.0
    %v1554 = vcombine.high %v1544, 0.0
    %v1555 = vcombine.high %v1551, 0.0
    %v1556 = vcombine.high %v1016, 0.0
    %v1558 = vunpack.c.l.s4 1983009808
    %v1559 = vunpack.c.0.s8 %v1558
    %v1560 = vlaneseq
    %v1561 = vshrl.u32 %v1560, 7
    %v1562 = vsub.s32 %v1559, %v1561
    %v1563 = vrot.slane %v1016, %v1562
    %v1565 = vunpack.c.l.s4 1983009808
    %v1566 = vunpack.c.0.s8 %v1565
    %v1567 = vlaneseq
    %v1568 = vshrl.u32 %v1567, 7
    %v1569 = vsub.s32 %v1566, %v1568
    %v1570 = vrot.slane %v1556, %v1569
    %v1571 = vcombine.high %v1144, 0.0
    %v1573 = vunpack.c.l.s4 1983009808
    %v1574 = vunpack.c.0.s8 %v1573
    %v1575 = vlaneseq
    %v1576 = vshrl.u32 %v1575, 7
    %v1577 = vsub.s32 %v1574, %v1576
    %v1578 = vrot.slane %v1144, %v1577
    %v1580 = vunpack.c.l.s4 1983009808
    %v1581 = vunpack.c.0.s8 %v1580
    %v1582 = vlaneseq
    %v1583 = vshrl.u32 %v1582, 7
    %v1584 = vsub.s32 %v1581, %v1583
    %v1585 = vrot.slane %v1571, %v1584
    %v1586 = vcombine.low %v1563, %v1578
    %v1587 = vcombine.high %v1563, %v1578
    %v1589 = vunpack.c.l.s4 1934713408
    %v1590 = vunpack.c.0.s8 %v1589
    %v1591 = vlaneseq
    %v1592 = vshrl.u32 %v1591, 7
    %v1593 = vsub.s32 %v1590, %v1592
    %v1594 = vrot.slane %v1586, %v1593
    %v1596 = vunpack.c.l.s4 1934713408
    %v1597 = vunpack.c.0.s8 %v1596
    %v1598 = vlaneseq
    %v1599 = vshrl.u32 %v1598, 7
    %v1600 = vsub.s32 %v1597, %v1599
    %v1601 = vrot.slane %v1587, %v1600
    %v1602 = vcombine.low %v1570, %v1585
    %v1603 = vcombine.high %v1570, %v1585
    %v1605 = vunpack.c.l.s4 1934713408
    %v1606 = vunpack.c.0.s8 %v1605
    %v1607 = vlaneseq
    %v1608 = vshrl.u32 %v1607, 7
    %v1609 = vsub.s32 %v1606, %v1608
    %v1610 = vrot.slane %v1602, %v1609
    %v1612 = vunpack.c.l.s4 1934713408
    %v1613 = vunpack.c.0.s8 %v1612
    %v1614 = vlaneseq
    %v1615 = vshrl.u32 %v1614, 7
    %v1616 = vsub.s32 %v1613, %v1615
    %v1617 = vrot.slane %v1603, %v1616
    %v1618 = vcombine.high %v1594, 0.0
    %v1619 = vcombine.high %v1601, 0.0
    %v1620 = vcombine.high %v1610, 0.0
    %v1621 = vcombine.high %v1617, 0.0
    %v1622 = vcombine.high %v1017, 0.0
    %v1624 = vunpack.c.l.s4 1983009808
    %v1625 = vunpack.c.0.s8 %v1624
    %v1626 = vlaneseq
    %v1627 = vshrl.u32 %v1626, 7
    %v1628 = vsub.s32 %v1625, %v1627
    %v1629 = vrot.slane %v1017, %v1628
    %v1631 = vunpack.c.l.s4 1983009808
    %v1632 = vunpack.c.0.s8 %v1631
    %v1633 = vlaneseq
    %v1634 = vshrl.u32 %v1633, 7
    %v1635 = vsub.s32 %v1632, %v1634
    %v1636 = vrot.slane %v1622, %v1635
    %v1637 = vcombine.high %v1145, 0.0
    %v1639 = vunpack.c.l.s4 1983009808
    %v1640 = vunpack.c.0.s8 %v1639
    %v1641 = vlaneseq
    %v1642 = vshrl.u32 %v1641, 7
    %v1643 = vsub.s32 %v1640, %v1642
    %v1644 = vrot.slane %v1145, %v1643
    %v1646 = vunpack.c.l.s4 1983009808
    %v1647 = vunpack.c.0.s8 %v1646
    %v1648 = vlaneseq
    %v1649 = vshrl.u32 %v1648, 7
    %v1650 = vsub.s32 %v1647, %v1649
    %v1651 = vrot.slane %v1637, %v1650
    %v1652 = vcombine.low %v1629, %v1644
    %v1653 = vcombine.high %v1629, %v1644
    %v1655 = vunpack.c.l.s4 1934713408
    %v1656 = vunpack.c.0.s8 %v1655
    %v1657 = vlaneseq
    %v1658 = vshrl.u32 %v1657, 7
    %v1659 = vsub.s32 %v1656, %v1658
    %v1660 = vrot.slane %v1652, %v1659
    %v1662 = vunpack.c.l.s4 1934713408
    %v1663 = vunpack.c.0.s8 %v1662
    %v1664 = vlaneseq
    %v1665 = vshrl.u32 %v1664, 7
    %v1666 = vsub.s32 %v1663, %v1665
    %v1667 = vrot.slane %v1653, %v1666
    %v1668 = vcombine.low %v1636, %v1651
    %v1669 = vcombine.high %v1636, %v1651
    %v1671 = vunpack.c.l.s4 1934713408
    %v1672 = vunpack.c.0.s8 %v1671
    %v1673 = vlaneseq
    %v1674 = vshrl.u32 %v1673, 7
    %v1675 = vsub.s32 %v1672, %v1674
    %v1676 = vrot.slane %v1668, %v1675
    %v1678 = vunpack.c.l.s4 1934713408
    %v1679 = vunpack.c.0.s8 %v1678
    %v1680 = vlaneseq
    %v1681 = vshrl.u32 %v1680, 7
    %v1682 = vsub.s32 %v1679, %v1681
    %v1683 = vrot.slane %v1669, %v1682
    %v1684 = vcombine.high %v1660, 0.0
    %v1685 = vcombine.high %v1667, 0.0
    %v1686 = vcombine.high %v1676, 0.0
    %v1687 = vcombine.high %v1683, 0.0
    %v1688 = vcombine.low %v1198, %v1205
    %v1690 = vunpack.c.l.s4 1983009808
    %v1691 = vunpack.c.0.s8 %v1690
    %v1692 = vlaneseq
    %v1693 = vshrl.u32 %v1692, 7
    %v1694 = vsub.s32 %v1691, %v1693
    %v1695 = vrot.slane %v1688, %v1694
    %v1696 = vcombine.low %v1222, %v1223
    %v1698 = vunpack.c.l.s4 1983009808
    %v1699 = vunpack.c.0.s8 %v1698
    %v1700 = vlaneseq
    %v1701 = vshrl.u32 %v1700, 7
    %v1702 = vsub.s32 %v1699, %v1701
    %v1703 = vrot.slane %v1696, %v1702
    %v1704 = vcombine.low %v1214, %v1221
    %v1706 = vunpack.c.l.s4 1983009808
    %v1707 = vunpack.c.0.s8 %v1706
    %v1708 = vlaneseq
    %v1709 = vshrl.u32 %v1708, 7
    %v1710 = vsub.s32 %v1707, %v1709
    %v1711 = vrot.slane %v1704, %v1710
    %v1712 = vcombine.low %v1224, %v1225
    %v1714 = vunpack.c.l.s4 1983009808
    %v1715 = vunpack.c.0.s8 %v1714
    %v1716 = vlaneseq
    %v1717 = vshrl.u32 %v1716, 7
    %v1718 = vsub.s32 %v1715, %v1717
    %v1719 = vrot.slane %v1712, %v1718
    %v1720 = vcombine.low %v1695, %v1703
    %v1722 = vunpack.c.l.s4 1934713408
    %v1723 = vunpack.c.0.s8 %v1722
    %v1724 = vlaneseq
    %v1725 = vshrl.u32 %v1724, 7
    %v1726 = vsub.s32 %v1723, %v1725
    %v1727 = vrot.slane %v1720, %v1726
    %v1728 = vcombine.low %v1711, %v1719
    %v1730 = vunpack.c.l.s4 1934713408
    %v1731 = vunpack.c.0.s8 %v1730
    %v1732 = vlaneseq
    %v1733 = vshrl.u32 %v1732, 7
    %v1734 = vsub.s32 %v1731, %v1733
    %v1735 = vrot.slane %v1728, %v1734
    %v1736 = vcombine.low %v1727, %v1735
    %v1737 = vcombine.high %v1727, %v1735
    %v1738 = vcombine.low %v1264, %v1271
    %v1740 = vunpack.c.l.s4 1983009808
    %v1741 = vunpack.c.0.s8 %v1740
    %v1742 = vlaneseq
    %v1743 = vshrl.u32 %v1742, 7
    %v1744 = vsub.s32 %v1741, %v1743
    %v1745 = vrot.slane %v1738, %v1744
    %v1746 = vcombine.low %v1288, %v1289
    %v1748 = vunpack.c.l.s4 1983009808
    %v1749 = vunpack.c.0.s8 %v1748
    %v1750 = vlaneseq
    %v1751 = vshrl.u32 %v1750, 7
    %v1752 = vsub.s32 %v1749, %v1751
    %v1753 = vrot.slane %v1746, %v1752
    %v1754 = vcombine.low %v1280, %v1287
    %v1756 = vunpack.c.l.s4 1983009808
    %v1757 = vunpack.c.0.s8 %v1756
    %v1758 = vlaneseq
    %v1759 = vshrl.u32 %v1758, 7
    %v1760 = vsub.s32 %v1757, %v1759
    %v1761 = vrot.slane %v1754, %v1760
    %v1762 = vcombine.low %v1290, %v1291
    %v1764 = vunpack.c.l.s4 1983009808
    %v1765 = vunpack.c.0.s8 %v1764
    %v1766 = vlaneseq
    %v1767 = vshrl.u32 %v1766, 7
    %v1768 = vsub.s32 %v1765, %v1767
    %v1769 = vrot.slane %v1762, %v1768
    %v1770 = vcombine.low %v1745, %v1753
    %v1772 = vunpack.c.l.s4 1934713408
    %v1773 = vunpack.c.0.s8 %v1772
    %v1774 = vlaneseq
    %v1775 = vshrl.u32 %v1774, 7
    %v1776 = vsub.s32 %v1773, %v1775
    %v1777 = vrot.slane %v1770, %v1776
    %v1778 = vcombine.low %v1761, %v1769
    %v1780 = vunpack.c.l.s4 1934713408
    %v1781 = vunpack.c.0.s8 %v1780
    %v1782 = vlaneseq
    %v1783 = vshrl.u32 %v1782, 7
    %v1784 = vsub.s32 %v1781, %v1783
    %v1785 = vrot.slane %v1778, %v1784
    %v1786 = vcombine.low %v1777, %v1785
    %v1787 = vcombine.high %v1777, %v1785
    %v1788 = vcombine.low %v1330, %v1337
    %v1790 = vunpack.c.l.s4 1983009808
    %v1791 = vunpack.c.0.s8 %v1790
    %v1792 = vlaneseq
    %v1793 = vshrl.u32 %v1792, 7
    %v1794 = vsub.s32 %v1791, %v1793
    %v1795 = vrot.slane %v1788, %v1794
    %v1796 = vcombine.low %v1354, %v1355
    %v1798 = vunpack.c.l.s4 1983009808
    %v1799 = vunpack.c.0.s8 %v1798
    %v1800 = vlaneseq
    %v1801 = vshrl.u32 %v1800, 7
    %v1802 = vsub.s32 %v1799, %v1801
    %v1803 = vrot.slane %v1796, %v1802
    %v1804 = vcombine.low %v1346, %v1353
    %v1806 = vunpack.c.l.s4 1983009808
    %v1807 = vunpack.c.0.s8 %v1806
    %v1808 = vlaneseq
    %v1809 = vshrl.u32 %v1808, 7
    %v1810 = vsub.s32 %v1807, %v1809
    %v1811 = vrot.slane %v1804, %v1810
    %v1812 = vcombine.low %v1356, %v1357
    %v1814 = vunpack.c.l.s4 1983009808
    %v1815 = vunpack.c.0.s8 %v1814
    %v1816 = vlaneseq
    %v1817 = vshrl.u32 %v1816, 7
    %v1818 = vsub.s32 %v1815, %v1817
    %v1819 = vrot.slane %v1812, %v1818
    %v1820 = vcombine.low %v1795, %v1803
    %v1822 = vunpack.c.l.s4 1934713408
    %v1823 = vunpack.c.0.s8 %v1822
    %v1824 = vlaneseq
    %v1825 = vshrl.u32 %v1824, 7
    %v1826 = vsub.s32 %v1823, %v1825
    %v1827 = vrot.slane %v1820, %v1826
    %v1828 = vcombine.low %v1811, %v1819
    %v1830 = vunpack.c.l.s4 1934713408
    %v1831 = vunpack.c.0.s8 %v1830
    %v1832 = vlaneseq
    %v1833 = vshrl.u32 %v1832, 7
    %v1834 = vsub.s32 %v1831, %v1833
    %v1835 = vrot.slane %v1828, %v1834
    %v1836 = vcombine.low %v1827, %v1835
    %v1837 = vcombine.high %v1827, %v1835
    %v1838 = vcombine.low %v1396, %v1403
    %v1840 = vunpack.c.l.s4 1983009808
    %v1841 = vunpack.c.0.s8 %v1840
    %v1842 = vlaneseq
    %v1843 = vshrl.u32 %v1842, 7
    %v1844 = vsub.s32 %v1841, %v1843
    %v1845 = vrot.slane %v1838, %v1844
    %v1846 = vcombine.low %v1420, %v1421
    %v1848 = vunpack.c.l.s4 1983009808
    %v1849 = vunpack.c.0.s8 %v1848
    %v1850 = vlaneseq
    %v1851 = vshrl.u32 %v1850, 7
    %v1852 = vsub.s32 %v1849, %v1851
    %v1853 = vrot.slane %v1846, %v1852
    %v1854 = vcombine.low %v1412, %v1419
    %v1856 = vunpack.c.l.s4 1983009808
    %v1857 = vunpack.c.0.s8 %v1856
    %v1858 = vlaneseq
    %v1859 = vshrl.u32 %v1858, 7
    %v1860 = vsub.s32 %v1857, %v1859
    %v1861 = vrot.slane %v1854, %v1860
    %v1862 = vcombine.low %v1422, %v1423
    %v1864 = vunpack.c.l.s4 1983009808
    %v1865 = vunpack.c.0.s8 %v1864
    %v1866 = vlaneseq
    %v1867 = vshrl.u32 %v1866, 7
    %v1868 = vsub.s32 %v1865, %v1867
    %v1869 = vrot.slane %v1862, %v1868
    %v1870 = vcombine.low %v1845, %v1853
    %v1872 = vunpack.c.l.s4 1934713408
    %v1873 = vunpack.c.0.s8 %v1872
    %v1874 = vlaneseq
    %v1875 = vshrl.u32 %v1874, 7
    %v1876 = vsub.s32 %v1873, %v1875
    %v1877 = vrot.slane %v1870, %v1876
    %v1878 = vcombine.low %v1861, %v1869
    %v1880 = vunpack.c.l.s4 1934713408
    %v1881 = vunpack.c.0.s8 %v1880
    %v1882 = vlaneseq
    %v1883 = vshrl.u32 %v1882, 7
    %v1884 = vsub.s32 %v1881, %v1883
    %v1885 = vrot.slane %v1878, %v1884
    %v1886 = vcombine.low %v1877, %v1885
    %v1887 = vcombine.high %v1877, %v1885
    %v1888 = vcombine.low %v1462, %v1469
    %v1890 = vunpack.c.l.s4 1983009808
    %v1891 = vunpack.c.0.s8 %v1890
    %v1892 = vlaneseq
    %v1893 = vshrl.u32 %v1892, 7
    %v1894 = vsub.s32 %v1891, %v1893
    %v1895 = vrot.slane %v1888, %v1894
    %v1896 = vcombine.low %v1486, %v1487
    %v1898 = vunpack.c.l.s4 1983009808
    %v1899 = vunpack.c.0.s8 %v1898
    %v1900 = vlaneseq
    %v1901 = vshrl.u32 %v1900, 7
    %v1902 = vsub.s32 %v1899, %v1901
    %v1903 = vrot.slane %v1896, %v1902
    %v1904 = vcombine.low %v1478, %v1485
    %v1906 = vunpack.c.l.s4 1983009808
    %v1907 = vunpack.c.0.s8 %v1906
    %v1908 = vlaneseq
    %v1909 = vshrl.u32 %v1908, 7
    %v1910 = vsub.s32 %v1907, %v1909
    %v1911 = vrot.slane %v1904, %v1910
    %v1912 = vcombine.low %v1488, %v1489
    %v1914 = vunpack.c.l.s4 1983009808
    %v1915 = vunpack.c.0.s8 %v1914
    %v1916 = vlaneseq
    %v1917 = vshrl.u32 %v1916, 7
    %v1918 = vsub.s32 %v1915, %v1917
    %v1919 = vrot.slane %v1912, %v1918
    %v1920 = vcombine.low %v1895, %v1903
    %v1922 = vunpack.c.l.s4 1934713408
    %v1923 = vunpack.c.0.s8 %v1922
    %v1924 = vlaneseq
    %v1925 = vshrl.u32 %v1924, 7
    %v1926 = vsub.s32 %v1923, %v1925
    %v1927 = vrot.slane %v1920, %v1926
    %v1928 = vcombine.low %v1911, %v1919
    %v1930 = vunpack.c.l.s4 1934713408
    %v1931 = vunpack.c.0.s8 %v1930
    %v1932 = vlaneseq
    %v1933 = vshrl.u32 %v1932, 7
    %v1934 = vsub.s32 %v1931, %v1933
    %v1935 = vrot.slane %v1928, %v1934
    %v1936 = vcombine.low %v1927, %v1935
    %v1937 = vcombine.high %v1927, %v1935
    %v1938 = vcombine.low %v1528, %v1535
    %v1940 = vunpack.c.l.s4 1983009808
    %v1941 = vunpack.c.0.s8 %v1940
    %v1942 = vlaneseq
    %v1943 = vshrl.u32 %v1942, 7
    %v1944 = vsub.s32 %v1941, %v1943
    %v1945 = vrot.slane %v1938, %v1944
    %v1946 = vcombine.low %v1552, %v1553
    %v1948 = vunpack.c.l.s4 1983009808
    %v1949 = vunpack.c.0.s8 %v1948
    %v1950 = vlaneseq
    %v1951 = vshrl.u32 %v1950, 7
    %v1952 = vsub.s32 %v1949, %v1951
    %v1953 = vrot.slane %v1946, %v1952
    %v1954 = vcombine.low %v1544, %v1551
    %v1956 = vunpack.c.l.s4 1983009808
    %v1957 = vunpack.c.0.s8 %v1956
    %v1958 = vlaneseq
    %v1959 = vshrl.u32 %v1958, 7
    %v1960 = vsub.s32 %v1957, %v1959
    %v1961 = vrot.slane %v1954, %v1960
    %v1962 = vcombine.low %v1554, %v1555
    %v1964 = vunpack.c.l.s4 1983009808
    %v1965 = vunpack.c.0.s8 %v1964
    %v1966 = vlaneseq
    %v1967 = vshrl.u32 %v1966, 7
    %v1968 = vsub.s32 %v1965, %v1967
    %v1969 = vrot.slane %v1962, %v1968
    %v1970 = vcombine.low %v1945, %v1953
    %v1972 = vunpack.c.l.s4 1934713408
    %v1973 = vunpack.c.0.s8 %v1972
    %v1974 = vlaneseq
    %v1975 = vshrl.u32 %v1974, 7
    %v1976 = vsub.s32 %v1973, %v1975
    %v1977 = vrot.slane %v1970, %v1976
    %v1978 = vcombine.low %v1961, %v1969
    %v1980 = vunpack.c.l.s4 1934713408
    %v1981 = vunpack.c.0.s8 %v1980
    %v1982 = vlaneseq
    %v1983 = vshrl.u32 %v1982, 7
    %v1984 = vsub.s32 %v1981, %v1983
    %v1985 = vrot.slane %v1978, %v1984
    %v1986 = vcombine.low %v1977, %v1985
    %v1987 = vcombine.high %v1977, %v1985
    %v1988 = vcombine.low %v1594, %v1601
    %v1990 = vunpack.c.l.s4 1983009808
    %v1991 = vunpack.c.0.s8 %v1990
    %v1992 = vlaneseq
    %v1993 = vshrl.u32 %v1992, 7
    %v1994 = vsub.s32 %v1991, %v1993
    %v1995 = vrot.slane %v1988, %v1994
    %v1996 = vcombine.low %v1618, %v1619
    %v1998 = vunpack.c.l.s4 1983009808
    %v1999 = vunpack.c.0.s8 %v1998
    %v2000 = vlaneseq
    %v2001 = vshrl.u32 %v2000, 7
    %v2002 = vsub.s32 %v1999, %v2001
    %v2003 = vrot.slane %v1996, %v2002
    %v2004 = vcombine.low %v1610, %v1617
    %v2006 = vunpack.c.l.s4 1983009808
    %v2007 = vunpack.c.0.s8 %v2006
    %v2008 = vlaneseq
    %v2009 = vshrl.u32 %v2008, 7
    %v2010 = vsub.s32 %v2007, %v2009
    %v2011 = vrot.slane %v2004, %v2010
    %v2012 = vcombine.low %v1620, %v1621
    %v2014 = vunpack.c.l.s4 1983009808
    %v2015 = vunpack.c.0.s8 %v2014
    %v2016 = vlaneseq
    %v2017 = vshrl.u32 %v2016, 7
    %v2018 = vsub.s32 %v2015, %v2017
    %v2019 = vrot.slane %v2012, %v2018
    %v2020 = vcombine.low %v1995, %v2003
    %v2022 = vunpack.c.l.s4 1934713408
    %v2023 = vunpack.c.0.s8 %v2022
    %v2024 = vlaneseq
    %v2025 = vshrl.u32 %v2024, 7
    %v2026 = vsub.s32 %v2023, %v2025
    %v2027 = vrot.slane %v2020, %v2026
    %v2028 = vcombine.low %v2011, %v2019
    %v2030 = vunpack.c.l.s4 1934713408
    %v2031 = vunpack.c.0.s8 %v2030
    %v2032 = vlaneseq
    %v2033 = vshrl.u32 %v2032, 7
    %v2034 = vsub.s32 %v2031, %v2033
    %v2035 = vrot.slane %v2028, %v2034
    %v2036 = vcombine.low %v2027, %v2035
    %v2037 = vcombine.high %v2027, %v2035
    %v2038 = vcombine.low %v1660, %v1667
    %v2040 = vunpack.c.l.s4 1983009808
    %v2041 = vunpack.c.0.s8 %v2040
    %v2042 = vlaneseq
    %v2043 = vshrl.u32 %v2042, 7
    %v2044 = vsub.s32 %v2041, %v2043
    %v2045 = vrot.slane %v2038, %v2044
    %v2046 = vcombine.low %v1684, %v1685
    %v2048 = vunpack.c.l.s4 1983009808
    %v2049 = vunpack.c.0.s8 %v2048
    %v2050 = vlaneseq
    %v2051 = vshrl.u32 %v2050, 7
    %v2052 = vsub.s32 %v2049, %v2051
    %v2053 = vrot.slane %v2046, %v2052
    %v2054 = vcombine.low %v1676, %v1683
    %v2056 = vunpack.c.l.s4 1983009808
    %v2057 = vunpack.c.0.s8 %v2056
    %v2058 = vlaneseq
    %v2059 = vshrl.u32 %v2058, 7
    %v2060 = vsub.s32 %v2057, %v2059
    %v2061 = vrot.slane %v2054, %v2060
    %v2062 = vcombine.low %v1686, %v1687
    %v2064 = vunpack.c.l.s4 1983009808
    %v2065 = vunpack.c.0.s8 %v2064
    %v2066 = vlaneseq
    %v2067 = vshrl.u32 %v2066, 7
    %v2068 = vsub.s32 %v2065, %v2067
    %v2069 = vrot.slane %v2062, %v2068
    %v2070 = vcombine.low %v2045, %v2053
    %v2072 = vunpack.c.l.s4 1934713408
    %v2073 = vunpack.c.0.s8 %v2072
    %v2074 = vlaneseq
    %v2075 = vshrl.u32 %v2074, 7
    %v2076 = vsub.s32 %v2073, %v2075
    %v2077 = vrot.slane %v2070, %v2076
    %v2078 = vcombine.low %v2061, %v2069
    %v2080 = vunpack.c.l.s4 1934713408
    %v2081 = vunpack.c.0.s8 %v2080
    %v2082 = vlaneseq
    %v2083 = vshrl.u32 %v2082, 7
    %v2084 = vsub.s32 %v2081, %v2083
    %v2085 = vrot.slane %v2078, %v2084
    %v2086 = vcombine.low %v2077, %v2085
    %v2087 = vcombine.high %v2077, %v2085
    %2096 = vrot.lane.b32.xlu0 %v1737, 8
    %v2097 = vpop.permute.xlu0 %2096
    %2098 = vrot.lane.b32.xlu0 %v1787, 8
    %v2099 = vpop.permute.xlu0 %2098
    %2100 = vrot.lane.b32.xlu0 %v1837, 8
    %v2101 = vpop.permute.xlu0 %2100
    %2102 = vrot.lane.b32.xlu0 %v1887, 8
    %v2103 = vpop.permute.xlu0 %2102
    %2104 = vrot.lane.b32.xlu0 %v1937, 8
    %v2105 = vpop.permute.xlu0 %2104
    %2106 = vrot.lane.b32.xlu0 %v1987, 8
    %v2107 = vpop.permute.xlu0 %2106
    %2108 = vrot.lane.b32.xlu0 %v2037, 8
    %v2109 = vpop.permute.xlu0 %2108
    %2110 = vrot.lane.b32.xlu0 %v2087, 8
    %v2111 = vpop.permute.xlu0 %2110
    %v2120 = vsel %vm555, %v1736, %v2097
    %v2121 = vsel %vm555, %v1786, %v2099
    %v2122 = vsel %vm555, %v1836, %v2101
    %v2123 = vsel %vm555, %v1886, %v2103
    %v2124 = vsel %vm555, %v1936, %v2105
    %v2125 = vsel %vm555, %v1986, %v2107
    %v2126 = vsel %vm555, %v2036, %v2109
    %v2127 = vsel %vm555, %v2086, %v2111
    %v2128 = vcombine.low 0.0, 0.0
    %v2130 = vunpack.c.l.s4 1983009808
    %v2131 = vunpack.c.0.s8 %v2130
    %v2132 = vlaneseq
    %v2133 = vshrl.u32 %v2132, 7
    %v2134 = vsub.s32 %v2131, %v2133
    %v2135 = vrot.slane %v2128, %v2134
    %v2136 = vcombine.low %v2135, %v2135
    %v2138 = vunpack.c.l.s4 1934713408
    %v2139 = vunpack.c.0.s8 %v2138
    %v2140 = vlaneseq
    %v2141 = vshrl.u32 %v2140, 7
    %v2142 = vsub.s32 %v2139, %v2141
    %v2143 = vrot.slane %v2136, %v2142
    %v2144 = vcombine.low %v2143, %v2143
    %v2145 = vcombine.high %v2143, %v2143
    %2147 = vrot.lane.b32.xlu0 %v2145, 8
    %v2148 = vpop.permute.xlu0 %2147
    %v2150 = vsel %vm555, %v2144, %v2148
    %2151 = vxpose.xlu0.b32.start [1/16] %v896, 128
    %2152 = vxpose.xlu0.b32.cont [2/16] %v897, 128
    %2153 = vxpose.xlu0.b32.cont [3/16] 0.0, 128
    %2154 = vxpose.xlu0.b32.cont [4/16] 0.0, 128
    %2155 = vxpose.xlu0.b32.cont [5/16] 0.0, 128
    %2156 = vxpose.xlu0.b32.cont [6/16] 0.0, 128
    %2157 = vxpose.xlu0.b32.cont [7/16] 0.0, 128
    %2158 = vxpose.xlu0.b32.cont [8/16] 0.0, 128
    %2159 = vxpose.xlu0.b32.cont [9/16] 0.0, 128
    %2160 = vxpose.xlu0.b32.cont [10/16] 0.0, 128
    %2161 = vxpose.xlu0.b32.cont [11/16] 0.0, 128
    %2162 = vxpose.xlu0.b32.cont [12/16] 0.0, 128
    %2163 = vxpose.xlu0.b32.cont [13/16] 0.0, 128
    %2164 = vxpose.xlu0.b32.cont [14/16] 0.0, 128
    %2165 = vxpose.xlu0.b32.cont [15/16] 0.0, 128
    %2166 = vxpose.xlu0.b32.end [16/16] 0.0, 128
    %v2167 = vpop.trf.xlu0
    %v2168 = vpop.trf.xlu0
    %v2169 = vpop.trf.xlu0
    %v2170 = vpop.trf.xlu0
    %v2171 = vpop.trf.xlu0
    %v2172 = vpop.trf.xlu0
    %v2173 = vpop.trf.xlu0
    %v2174 = vpop.trf.xlu0
    %v2175 = vpop.trf.xlu0
    %v2176 = vpop.trf.xlu0
    %v2177 = vpop.trf.xlu0
    %v2178 = vpop.trf.xlu0
    %v2179 = vpop.trf.xlu0
    %v2180 = vpop.trf.xlu0
    %v2181 = vpop.trf.xlu0
    %v2182 = vpop.trf.xlu0
    %v2184 = vsel %vm220, %v2167, 0
    %v2187 = vsel %vm220, %v2168, 0
    %v2190 = vsel %vm220, %v2169, 0
    %v2193 = vsel %vm220, %v2170, 0
    %2195 = vmatprep.subr.mxu0 0.0
    %2196 = vmatpush1.msra.mxu0 %v2120
    %2197 = vmatprep.subr.mxu0 0.0
    %2198 = vmatpush1.msra.mxu0 %v2121
    %2199 = vmatprep.subr.mxu0 0.0
    %2200 = vmatpush1.msra.mxu0 0.0
    %2201 = vmatprep.subr.mxu0 0.0
    %2202 = vmatpush1.msra.mxu0 0.0
    %2203 = vmatprep.subr.mxu0 0.0
    %2204 = vmatpush1.msra.mxu0 0.0
    %2205 = vmatprep.subr.mxu0 0.0
    %2206 = vmatpush1.msra.mxu0 0.0
    %2207 = vmatprep.subr.mxu0 0.0
    %2208 = vmatpush1.msra.mxu0 0.0
    %2209 = vmatprep.subr.mxu0 0.0
    %2210 = vmatpush1.msra.mxu0 0.0
    %2211 = vmatprep.subr.mxu0 0.0
    %2212 = vmatpush1.msra.mxu0 0.0
    %2213 = vmatprep.subr.mxu0 0.0
    %2214 = vmatpush1.msra.mxu0 0.0
    %2215 = vmatprep.subr.mxu0 0.0
    %2216 = vmatpush1.msra.mxu0 0.0
    %2217 = vmatprep.subr.mxu0 0.0
    %2218 = vmatpush1.msra.mxu0 0.0
    %2219 = vmatprep.subr.mxu0 0.0
    %2220 = vmatpush1.msra.mxu0 0.0
    %2221 = vmatprep.subr.mxu0 0.0
    %2222 = vmatpush1.msra.mxu0 0.0
    %2223 = vmatprep.subr.mxu0 0.0
    %2224 = vmatpush1.msra.mxu0 0.0
    %2225 = vmatprep.subr.mxu0 0.0
    %2226 = vmatpush1.msra.mxu0 0.0
    %2227 = vmatprep.subr.mxu0 0.0
    %2228 = vmatpush1.msra.mxu0 0.0
    %2229 = vmatprep.subr.mxu0 0.0
    %2230 = vmatpush1.msra.mxu0 0.0
    %2231 = vmatprep.subr.mxu0 0.0
    %2232 = vmatpush1.msra.mxu0 0.0
    %2233 = vmatprep.subr.mxu0 0.0
    %2234 = vmatpush1.msra.mxu0 0.0
    %2235 = vmatprep.subr.mxu0 0.0
    %2236 = vmatpush1.msra.mxu0 0.0
    %2237 = vmatprep.subr.mxu0 0.0
    %2238 = vmatpush1.msra.mxu0 0.0
    %2239 = vmatprep.subr.mxu0 0.0
    %2240 = vmatpush1.msra.mxu0 0.0
    %2241 = vmatprep.subr.mxu0 0.0
    %2242 = vmatpush1.msra.mxu0 0.0
    %2243 = vmatprep.subr.mxu0 0.0
    %2244 = vmatpush1.msra.mxu0 0.0
    %2245 = vmatprep.subr.mxu0 0.0
    %2246 = vmatpush1.msra.mxu0 0.0
    %2247 = vmatprep.subr.mxu0 0.0
    %2248 = vmatpush1.msra.mxu0 0.0
    %2249 = vmatprep.subr.mxu0 0.0
    %2250 = vmatpush1.msra.mxu0 0.0
    %2251 = vmatprep.subr.mxu0 0.0
    %2252 = vmatpush1.msra.mxu0 0.0
    %2253 = vmatprep.subr.mxu0 0.0
    %2254 = vmatpush1.msra.mxu0 0.0
    %2255 = vmatprep.subr.mxu0 0.0
    %2256 = vmatpush1.msra.mxu0 0.0
    %2257 = vmatprep.subr.mxu0 0.0
    %2258 = vmatpush1.msra.mxu0 0.0
    %2259 = vmatprep.mubr.f32.mxu0 0.0
    %2260 = vmatmul.mubr.f32.gmra.mrb[0].mxu0 %v2184
    %v2261 = vpop.f32.mrb[0].mxu0
    %v2262 = vadd.f32 %v2150, %v2261
    %v2263 = vpop.f32.mrb[0].mxu0
    %2264 = vmatprep.mubr.f32.mxu0 0.0
    %2265 = vmatmul.mubr.f32.gmra.mrb[0].mxu0 %v2187
    %v2266 = vpop.f32.mrb[0].mxu0
    %v2267 = vadd.f32 %v2150, %v2266
    %v2268 = vpop.f32.mrb[0].mxu0
    %2269 = vmatprep.mubr.f32.mxu0 0.0
    %2270 = vmatmul.mubr.f32.gmra.mrb[0].mxu0 %v2190
    %v2271 = vpop.f32.mrb[0].mxu0
    %v2272 = vadd.f32 %v2150, %v2271
    %v2273 = vpop.f32.mrb[0].mxu0
    %2274 = vmatprep.mubr.f32.mxu0 0.0
    %2275 = vmatmul.mubr.f32.gmra.mrb[0].mxu0 %v2193
    %v2276 = vpop.f32.mrb[0].mxu0
    %v2277 = vadd.f32 %v2150, %v2276
    %v2278 = vpop.f32.mrb[0].mxu0
    %2279 = vdwg.mxu0
    %2280 = vxpose.xlu0.b32.start [1/16] %v898, 128
    %2281 = vxpose.xlu0.b32.cont [2/16] %v899, 128
    %2282 = vxpose.xlu0.b32.cont [3/16] 0.0, 128
    %2283 = vxpose.xlu0.b32.cont [4/16] 0.0, 128
    %2284 = vxpose.xlu0.b32.cont [5/16] 0.0, 128
    %2285 = vxpose.xlu0.b32.cont [6/16] 0.0, 128
    %2286 = vxpose.xlu0.b32.cont [7/16] 0.0, 128
    %2287 = vxpose.xlu0.b32.cont [8/16] 0.0, 128
    %2288 = vxpose.xlu0.b32.cont [9/16] 0.0, 128
    %2289 = vxpose.xlu0.b32.cont [10/16] 0.0, 128
    %2290 = vxpose.xlu0.b32.cont [11/16] 0.0, 128
    %2291 = vxpose.xlu0.b32.cont [12/16] 0.0, 128
    %2292 = vxpose.xlu0.b32.cont [13/16] 0.0, 128
    %2293 = vxpose.xlu0.b32.cont [14/16] 0.0, 128
    %2294 = vxpose.xlu0.b32.cont [15/16] 0.0, 128
    %2295 = vxpose.xlu0.b32.end [16/16] 0.0, 128
    %v2296 = vpop.trf.xlu0
    %v2297 = vpop.trf.xlu0
    %v2298 = vpop.trf.xlu0
    %v2299 = vpop.trf.xlu0
    %v2300 = vpop.trf.xlu0
    %v2301 = vpop.trf.xlu0
    %v2302 = vpop.trf.xlu0
    %v2303 = vpop.trf.xlu0
    %v2304 = vpop.trf.xlu0
    %v2305 = vpop.trf.xlu0
    %v2306 = vpop.trf.xlu0
    %v2307 = vpop.trf.xlu0
    %v2308 = vpop.trf.xlu0
    %v2309 = vpop.trf.xlu0
    %v2310 = vpop.trf.xlu0
    %v2311 = vpop.trf.xlu0
    %v2313 = vsel %vm220, %v2296, 0
    %v2316 = vsel %vm220, %v2297, 0
    %v2319 = vsel %vm220, %v2298, 0
    %v2322 = vsel %vm220, %v2299, 0
    %2324 = vmatprep.subr.mxu0 0.0
    %2325 = vmatpush1.msra.mxu0 %v2122
    %2326 = vmatprep.subr.mxu0 0.0
    %2327 = vmatpush1.msra.mxu0 %v2123
    %2328 = vmatprep.subr.mxu0 0.0
    %2329 = vmatpush1.msra.mxu0 0.0
    %2330 = vmatprep.subr.mxu0 0.0
    %2331 = vmatpush1.msra.mxu0 0.0
    %2332 = vmatprep.subr.mxu0 0.0
    %2333 = vmatpush1.msra.mxu0 0.0
    %2334 = vmatprep.subr.mxu0 0.0
    %2335 = vmatpush1.msra.mxu0 0.0
    %2336 = vmatprep.subr.mxu0 0.0
    %2337 = vmatpush1.msra.mxu0 0.0
    %2338 = vmatprep.subr.mxu0 0.0
    %2339 = vmatpush1.msra.mxu0 0.0
    %2340 = vmatprep.subr.mxu0 0.0
    %2341 = vmatpush1.msra.mxu0 0.0
    %2342 = vmatprep.subr.mxu0 0.0
    %2343 = vmatpush1.msra.mxu0 0.0
    %2344 = vmatprep.subr.mxu0 0.0
    %2345 = vmatpush1.msra.mxu0 0.0
    %2346 = vmatprep.subr.mxu0 0.0
    %2347 = vmatpush1.msra.mxu0 0.0
    %2348 = vmatprep.subr.mxu0 0.0
    %2349 = vmatpush1.msra.mxu0 0.0
    %2350 = vmatprep.subr.mxu0 0.0
    %2351 = vmatpush1.msra.mxu0 0.0
    %2352 = vmatprep.subr.mxu0 0.0
    %2353 = vmatpush1.msra.mxu0 0.0
    %2354 = vmatprep.subr.mxu0 0.0
    %2355 = vmatpush1.msra.mxu0 0.0
    %2356 = vmatprep.subr.mxu0 0.0
    %2357 = vmatpush1.msra.mxu0 0.0
    %2358 = vmatprep.subr.mxu0 0.0
    %2359 = vmatpush1.msra.mxu0 0.0
    %2360 = vmatprep.subr.mxu0 0.0
    %2361 = vmatpush1.msra.mxu0 0.0
    %2362 = vmatprep.subr.mxu0 0.0
    %2363 = vmatpush1.msra.mxu0 0.0
    %2364 = vmatprep.subr.mxu0 0.0
    %2365 = vmatpush1.msra.mxu0 0.0
    %2366 = vmatprep.subr.mxu0 0.0
    %2367 = vmatpush1.msra.mxu0 0.0
    %2368 = vmatprep.subr.mxu0 0.0
    %2369 = vmatpush1.msra.mxu0 0.0
    %2370 = vmatprep.subr.mxu0 0.0
    %2371 = vmatpush1.msra.mxu0 0.0
    %2372 = vmatprep.subr.mxu0 0.0
    %2373 = vmatpush1.msra.mxu0 0.0
    %2374 = vmatprep.subr.mxu0 0.0
    %2375 = vmatpush1.msra.mxu0 0.0
    %2376 = vmatprep.subr.mxu0 0.0
    %2377 = vmatpush1.msra.mxu0 0.0
    %2378 = vmatprep.subr.mxu0 0.0
    %2379 = vmatpush1.msra.mxu0 0.0
    %2380 = vmatprep.subr.mxu0 0.0
    %2381 = vmatpush1.msra.mxu0 0.0
    %2382 = vmatprep.subr.mxu0 0.0
    %2383 = vmatpush1.msra.mxu0 0.0
    %2384 = vmatprep.subr.mxu0 0.0
    %2385 = vmatpush1.msra.mxu0 0.0
    %2386 = vmatprep.subr.mxu0 0.0
    %2387 = vmatpush1.msra.mxu0 0.0
    %2388 = vmatprep.mubr.f32.mxu0 0.0
    %2389 = vmatmul.mubr.f32.gmra.mrb[0].mxu0 %v2313
    %v2390 = vpop.f32.mrb[0].mxu0
    %v2391 = vadd.f32 %v2150, %v2390
    %v2392 = vpop.f32.mrb[0].mxu0
    %2393 = vmatprep.mubr.f32.mxu0 0.0
    %2394 = vmatmul.mubr.f32.gmra.mrb[0].mxu0 %v2316
    %v2395 = vpop.f32.mrb[0].mxu0
    %v2396 = vadd.f32 %v2150, %v2395
    %v2397 = vpop.f32.mrb[0].mxu0
    %2398 = vmatprep.mubr.f32.mxu0 0.0
    %2399 = vmatmul.mubr.f32.gmra.mrb[0].mxu0 %v2319
    %v2400 = vpop.f32.mrb[0].mxu0
    %v2401 = vadd.f32 %v2150, %v2400
    %v2402 = vpop.f32.mrb[0].mxu0
    %2403 = vmatprep.mubr.f32.mxu0 0.0
    %2404 = vmatmul.mubr.f32.gmra.mrb[0].mxu0 %v2322
    %v2405 = vpop.f32.mrb[0].mxu0
    %v2406 = vadd.f32 %v2150, %v2405
    %v2407 = vpop.f32.mrb[0].mxu0
    %2408 = vdwg.mxu0
    %2409 = vxpose.xlu0.b32.start [1/16] %v900, 128
    %2410 = vxpose.xlu0.b32.cont [2/16] %v901, 128
    %2411 = vxpose.xlu0.b32.cont [3/16] 0.0, 128
    %2412 = vxpose.xlu0.b32.cont [4/16] 0.0, 128
    %2413 = vxpose.xlu0.b32.cont [5/16] 0.0, 128
    %2414 = vxpose.xlu0.b32.cont [6/16] 0.0, 128
    %2415 = vxpose.xlu0.b32.cont [7/16] 0.0, 128
    %2416 = vxpose.xlu0.b32.cont [8/16] 0.0, 128
    %2417 = vxpose.xlu0.b32.cont [9/16] 0.0, 128
    %2418 = vxpose.xlu0.b32.cont [10/16] 0.0, 128
    %2419 = vxpose.xlu0.b32.cont [11/16] 0.0, 128
    %2420 = vxpose.xlu0.b32.cont [12/16] 0.0, 128
    %2421 = vxpose.xlu0.b32.cont [13/16] 0.0, 128
    %2422 = vxpose.xlu0.b32.cont [14/16] 0.0, 128
    %2423 = vxpose.xlu0.b32.cont [15/16] 0.0, 128
    %2424 = vxpose.xlu0.b32.end [16/16] 0.0, 128
    %v2425 = vpop.trf.xlu0
    %v2426 = vpop.trf.xlu0
    %v2427 = vpop.trf.xlu0
    %v2428 = vpop.trf.xlu0
    %v2429 = vpop.trf.xlu0
    %v2430 = vpop.trf.xlu0
    %v2431 = vpop.trf.xlu0
    %v2432 = vpop.trf.xlu0
    %v2433 = vpop.trf.xlu0
    %v2434 = vpop.trf.xlu0
    %v2435 = vpop.trf.xlu0
    %v2436 = vpop.trf.xlu0
    %v2437 = vpop.trf.xlu0
    %v2438 = vpop.trf.xlu0
    %v2439 = vpop.trf.xlu0
    %v2440 = vpop.trf.xlu0
    %v2442 = vsel %vm220, %v2425, 0
    %v2445 = vsel %vm220, %v2426, 0
    %v2448 = vsel %vm220, %v2427, 0
    %v2451 = vsel %vm220, %v2428, 0
    %2453 = vmatprep.subr.mxu0 0.0
    %2454 = vmatpush1.msra.mxu0 %v2124
    %2455 = vmatprep.subr.mxu0 0.0
    %2456 = vmatpush1.msra.mxu0 %v2125
    %2457 = vmatprep.subr.mxu0 0.0
    %2458 = vmatpush1.msra.mxu0 0.0
    %2459 = vmatprep.subr.mxu0 0.0
    %2460 = vmatpush1.msra.mxu0 0.0
    %2461 = vmatprep.subr.mxu0 0.0
    %2462 = vmatpush1.msra.mxu0 0.0
    %2463 = vmatprep.subr.mxu0 0.0
    %2464 = vmatpush1.msra.mxu0 0.0
    %2465 = vmatprep.subr.mxu0 0.0
    %2466 = vmatpush1.msra.mxu0 0.0
    %2467 = vmatprep.subr.mxu0 0.0
    %2468 = vmatpush1.msra.mxu0 0.0
    %2469 = vmatprep.subr.mxu0 0.0
    %2470 = vmatpush1.msra.mxu0 0.0
    %2471 = vmatprep.subr.mxu0 0.0
    %2472 = vmatpush1.msra.mxu0 0.0
    %2473 = vmatprep.subr.mxu0 0.0
    %2474 = vmatpush1.msra.mxu0 0.0
    %2475 = vmatprep.subr.mxu0 0.0
    %2476 = vmatpush1.msra.mxu0 0.0
    %2477 = vmatprep.subr.mxu0 0.0
    %2478 = vmatpush1.msra.mxu0 0.0
    %2479 = vmatprep.subr.mxu0 0.0
    %2480 = vmatpush1.msra.mxu0 0.0
    %2481 = vmatprep.subr.mxu0 0.0
    %2482 = vmatpush1.msra.mxu0 0.0
    %2483 = vmatprep.subr.mxu0 0.0
    %2484 = vmatpush1.msra.mxu0 0.0
    %2485 = vmatprep.subr.mxu0 0.0
    %2486 = vmatpush1.msra.mxu0 0.0
    %2487 = vmatprep.subr.mxu0 0.0
    %2488 = vmatpush1.msra.mxu0 0.0
    %2489 = vmatprep.subr.mxu0 0.0
    %2490 = vmatpush1.msra.mxu0 0.0
    %2491 = vmatprep.subr.mxu0 0.0
    %2492 = vmatpush1.msra.mxu0 0.0
    %2493 = vmatprep.subr.mxu0 0.0
    %2494 = vmatpush1.msra.mxu0 0.0
    %2495 = vmatprep.subr.mxu0 0.0
    %2496 = vmatpush1.msra.mxu0 0.0
    %2497 = vmatprep.subr.mxu0 0.0
    %2498 = vmatpush1.msra.mxu0 0.0
    %2499 = vmatprep.subr.mxu0 0.0
    %2500 = vmatpush1.msra.mxu0 0.0
    %2501 = vmatprep.subr.mxu0 0.0
    %2502 = vmatpush1.msra.mxu0 0.0
    %2503 = vmatprep.subr.mxu0 0.0
    %2504 = vmatpush1.msra.mxu0 0.0
    %2505 = vmatprep.subr.mxu0 0.0
    %2506 = vmatpush1.msra.mxu0 0.0
    %2507 = vmatprep.subr.mxu0 0.0
    %2508 = vmatpush1.msra.mxu0 0.0
    %2509 = vmatprep.subr.mxu0 0.0
    %2510 = vmatpush1.msra.mxu0 0.0
    %2511 = vmatprep.subr.mxu0 0.0
    %2512 = vmatpush1.msra.mxu0 0.0
    %2513 = vmatprep.subr.mxu0 0.0
    %2514 = vmatpush1.msra.mxu0 0.0
    %2515 = vmatprep.subr.mxu0 0.0
    %2516 = vmatpush1.msra.mxu0 0.0
    %2517 = vmatprep.mubr.f32.mxu0 0.0
    %2518 = vmatmul.mubr.f32.gmra.mrb[0].mxu0 %v2442
    %v2519 = vpop.f32.mrb[0].mxu0
    %v2520 = vadd.f32 %v2150, %v2519
    %v2521 = vpop.f32.mrb[0].mxu0
    %2522 = vmatprep.mubr.f32.mxu0 0.0
    %2523 = vmatmul.mubr.f32.gmra.mrb[0].mxu0 %v2445
    %v2524 = vpop.f32.mrb[0].mxu0
    %v2525 = vadd.f32 %v2150, %v2524
    %v2526 = vpop.f32.mrb[0].mxu0
    %2527 = vmatprep.mubr.f32.mxu0 0.0
    %2528 = vmatmul.mubr.f32.gmra.mrb[0].mxu0 %v2448
    %v2529 = vpop.f32.mrb[0].mxu0
    %v2530 = vadd.f32 %v2150, %v2529
    %v2531 = vpop.f32.mrb[0].mxu0
    %2532 = vmatprep.mubr.f32.mxu0 0.0
    %2533 = vmatmul.mubr.f32.gmra.mrb[0].mxu0 %v2451
    %v2534 = vpop.f32.mrb[0].mxu0
    %v2535 = vadd.f32 %v2150, %v2534
    %v2536 = vpop.f32.mrb[0].mxu0
    %2537 = vdwg.mxu0
    %2538 = vxpose.xlu0.b32.start [1/16] %v902, 128
    %2539 = vxpose.xlu0.b32.cont [2/16] %v903, 128
    %2540 = vxpose.xlu0.b32.cont [3/16] 0.0, 128
    %2541 = vxpose.xlu0.b32.cont [4/16] 0.0, 128
    %2542 = vxpose.xlu0.b32.cont [5/16] 0.0, 128
    %2543 = vxpose.xlu0.b32.cont [6/16] 0.0, 128
    %2544 = vxpose.xlu0.b32.cont [7/16] 0.0, 128
    %2545 = vxpose.xlu0.b32.cont [8/16] 0.0, 128
    %2546 = vxpose.xlu0.b32.cont [9/16] 0.0, 128
    %2547 = vxpose.xlu0.b32.cont [10/16] 0.0, 128
    %2548 = vxpose.xlu0.b32.cont [11/16] 0.0, 128
    %2549 = vxpose.xlu0.b32.cont [12/16] 0.0, 128
    %2550 = vxpose.xlu0.b32.cont [13/16] 0.0, 128
    %2551 = vxpose.xlu0.b32.cont [14/16] 0.0, 128
    %2552 = vxpose.xlu0.b32.cont [15/16] 0.0, 128
    %2553 = vxpose.xlu0.b32.end [16/16] 0.0, 128
    %v2554 = vpop.trf.xlu0
    %v2555 = vpop.trf.xlu0
    %v2556 = vpop.trf.xlu0
    %v2557 = vpop.trf.xlu0
    %v2558 = vpop.trf.xlu0
    %v2559 = vpop.trf.xlu0
    %v2560 = vpop.trf.xlu0
    %v2561 = vpop.trf.xlu0
    %v2562 = vpop.trf.xlu0
    %v2563 = vpop.trf.xlu0
    %v2564 = vpop.trf.xlu0
    %v2565 = vpop.trf.xlu0
    %v2566 = vpop.trf.xlu0
    %v2567 = vpop.trf.xlu0
    %v2568 = vpop.trf.xlu0
    %v2569 = vpop.trf.xlu0
    %v2571 = vsel %vm220, %v2554, 0
    %v2574 = vsel %vm220, %v2555, 0
    %v2577 = vsel %vm220, %v2556, 0
    %v2580 = vsel %vm220, %v2557, 0
    %2582 = vmatprep.subr.mxu0 0.0
    %2583 = vmatpush1.msra.mxu0 %v2126
    %2584 = vmatprep.subr.mxu0 0.0
    %2585 = vmatpush1.msra.mxu0 %v2127
    %2586 = vmatprep.subr.mxu0 0.0
    %2587 = vmatpush1.msra.mxu0 0.0
    %2588 = vmatprep.subr.mxu0 0.0
    %2589 = vmatpush1.msra.mxu0 0.0
    %2590 = vmatprep.subr.mxu0 0.0
    %2591 = vmatpush1.msra.mxu0 0.0
    %2592 = vmatprep.subr.mxu0 0.0
    %2593 = vmatpush1.msra.mxu0 0.0
    %2594 = vmatprep.subr.mxu0 0.0
    %2595 = vmatpush1.msra.mxu0 0.0
    %2596 = vmatprep.subr.mxu0 0.0
    %2597 = vmatpush1.msra.mxu0 0.0
    %2598 = vmatprep.subr.mxu0 0.0
    %2599 = vmatpush1.msra.mxu0 0.0
    %2600 = vmatprep.subr.mxu0 0.0
    %2601 = vmatpush1.msra.mxu0 0.0
    %2602 = vmatprep.subr.mxu0 0.0
    %2603 = vmatpush1.msra.mxu0 0.0
    %2604 = vmatprep.subr.mxu0 0.0
    %2605 = vmatpush1.msra.mxu0 0.0
    %2606 = vmatprep.subr.mxu0 0.0
    %2607 = vmatpush1.msra.mxu0 0.0
    %2608 = vmatprep.subr.mxu0 0.0
    %2609 = vmatpush1.msra.mxu0 0.0
    %2610 = vmatprep.subr.mxu0 0.0
    %2611 = vmatpush1.msra.mxu0 0.0
    %2612 = vmatprep.subr.mxu0 0.0
    %2613 = vmatpush1.msra.mxu0 0.0
    %2614 = vmatprep.subr.mxu0 0.0
    %2615 = vmatpush1.msra.mxu0 0.0
    %2616 = vmatprep.subr.mxu0 0.0
    %2617 = vmatpush1.msra.mxu0 0.0
    %2618 = vmatprep.subr.mxu0 0.0
    %2619 = vmatpush1.msra.mxu0 0.0
    %2620 = vmatprep.subr.mxu0 0.0
    %2621 = vmatpush1.msra.mxu0 0.0
    %2622 = vmatprep.subr.mxu0 0.0
    %2623 = vmatpush1.msra.mxu0 0.0
    %2624 = vmatprep.subr.mxu0 0.0
    %2625 = vmatpush1.msra.mxu0 0.0
    %2626 = vmatprep.subr.mxu0 0.0
    %2627 = vmatpush1.msra.mxu0 0.0
    %2628 = vmatprep.subr.mxu0 0.0
    %2629 = vmatpush1.msra.mxu0 0.0
    %2630 = vmatprep.subr.mxu0 0.0
    %2631 = vmatpush1.msra.mxu0 0.0
    %2632 = vmatprep.subr.mxu0 0.0
    %2633 = vmatpush1.msra.mxu0 0.0
    %2634 = vmatprep.subr.mxu0 0.0
    %2635 = vmatpush1.msra.mxu0 0.0
    %2636 = vmatprep.subr.mxu0 0.0
    %2637 = vmatpush1.msra.mxu0 0.0
    %2638 = vmatprep.subr.mxu0 0.0
    %2639 = vmatpush1.msra.mxu0 0.0
    %2640 = vmatprep.subr.mxu0 0.0
    %2641 = vmatpush1.msra.mxu0 0.0
    %2642 = vmatprep.subr.mxu0 0.0
    %2643 = vmatpush1.msra.mxu0 0.0
    %2644 = vmatprep.subr.mxu0 0.0
    %2645 = vmatpush1.msra.mxu0 0.0
    %2646 = vmatprep.mubr.f32.mxu0 0.0
    %2647 = vmatmul.mubr.f32.gmra.mrb[0].mxu0 %v2571
    %v2648 = vpop.f32.mrb[0].mxu0
    %v2649 = vadd.f32 %v2150, %v2648
    %v2650 = vpop.f32.mrb[0].mxu0
    %2651 = vmatprep.mubr.f32.mxu0 0.0
    %2652 = vmatmul.mubr.f32.gmra.mrb[0].mxu0 %v2574
    %v2653 = vpop.f32.mrb[0].mxu0
    %v2654 = vadd.f32 %v2150, %v2653
    %v2655 = vpop.f32.mrb[0].mxu0
    %2656 = vmatprep.mubr.f32.mxu0 0.0
    %2657 = vmatmul.mubr.f32.gmra.mrb[0].mxu0 %v2577
    %v2658 = vpop.f32.mrb[0].mxu0
    %v2659 = vadd.f32 %v2150, %v2658
    %v2660 = vpop.f32.mrb[0].mxu0
    %2661 = vmatprep.mubr.f32.mxu0 0.0
    %2662 = vmatmul.mubr.f32.gmra.mrb[0].mxu0 %v2580
    %v2663 = vpop.f32.mrb[0].mxu0
    %v2664 = vadd.f32 %v2150, %v2663
    %v2665 = vpop.f32.mrb[0].mxu0
    %2666 = vdwg.mxu0
    %2683 = vrot.lane.b32.xlu0 %v2262, 120
    %v2684 = vpop.permute.xlu0 %2683
    %2685 = vrot.lane.b32.xlu0 %v2267, 120
    %v2686 = vpop.permute.xlu0 %2685
    %2687 = vrot.lane.b32.xlu0 %v2272, 120
    %v2688 = vpop.permute.xlu0 %2687
    %2689 = vrot.lane.b32.xlu0 %v2277, 120
    %v2690 = vpop.permute.xlu0 %2689
    %2691 = vrot.lane.b32.xlu0 %v2391, 120
    %v2692 = vpop.permute.xlu0 %2691
    %2693 = vrot.lane.b32.xlu0 %v2396, 120
    %v2694 = vpop.permute.xlu0 %2693
    %2695 = vrot.lane.b32.xlu0 %v2401, 120
    %v2696 = vpop.permute.xlu0 %2695
    %2697 = vrot.lane.b32.xlu0 %v2406, 120
    %v2698 = vpop.permute.xlu0 %2697
    %2699 = vrot.lane.b32.xlu0 %v2520, 120
    %v2700 = vpop.permute.xlu0 %2699
    %2701 = vrot.lane.b32.xlu0 %v2525, 120
    %v2702 = vpop.permute.xlu0 %2701
    %2703 = vrot.lane.b32.xlu0 %v2530, 120
    %v2704 = vpop.permute.xlu0 %2703
    %2705 = vrot.lane.b32.xlu0 %v2535, 120
    %v2706 = vpop.permute.xlu0 %2705
    %2707 = vrot.lane.b32.xlu0 %v2649, 120
    %v2708 = vpop.permute.xlu0 %2707
    %2709 = vrot.lane.b32.xlu0 %v2654, 120
    %v2710 = vpop.permute.xlu0 %2709
    %2711 = vrot.lane.b32.xlu0 %v2659, 120
    %v2712 = vpop.permute.xlu0 %2711
    %2713 = vrot.lane.b32.xlu0 %v2664, 120
    %v2714 = vpop.permute.xlu0 %2713
    %v2731 = vcombine.high %v2262, 0.0
    %v2733 = vunpack.c.l.s4 1983009808
    %v2734 = vunpack.c.0.s8 %v2733
    %v2735 = vlaneseq
    %v2736 = vshrl.u32 %v2735, 7
    %v2737 = vsub.s32 %v2734, %v2736
    %v2738 = vrot.slane %v2262, %v2737
    %v2740 = vunpack.c.l.s4 1983009808
    %v2741 = vunpack.c.0.s8 %v2740
    %v2742 = vlaneseq
    %v2743 = vshrl.u32 %v2742, 7
    %v2744 = vsub.s32 %v2741, %v2743
    %v2745 = vrot.slane %v2731, %v2744
    %v2746 = vcombine.high %v2684, 0.0
    %v2748 = vunpack.c.l.s4 1983009808
    %v2749 = vunpack.c.0.s8 %v2748
    %v2750 = vlaneseq
    %v2751 = vshrl.u32 %v2750, 7
    %v2752 = vsub.s32 %v2749, %v2751
    %v2753 = vrot.slane %v2684, %v2752
    %v2755 = vunpack.c.l.s4 1983009808
    %v2756 = vunpack.c.0.s8 %v2755
    %v2757 = vlaneseq
    %v2758 = vshrl.u32 %v2757, 7
    %v2759 = vsub.s32 %v2756, %v2758
    %v2760 = vrot.slane %v2746, %v2759
    %v2761 = vcombine.low %v2738, %v2753
    %v2762 = vcombine.high %v2738, %v2753
    %v2764 = vunpack.c.l.s4 1934713408
    %v2765 = vunpack.c.0.s8 %v2764
    %v2766 = vlaneseq
    %v2767 = vshrl.u32 %v2766, 7
    %v2768 = vsub.s32 %v2765, %v2767
    %v2769 = vrot.slane %v2761, %v2768
    %v2771 = vunpack.c.l.s4 1934713408
    %v2772 = vunpack.c.0.s8 %v2771
    %v2773 = vlaneseq
    %v2774 = vshrl.u32 %v2773, 7
    %v2775 = vsub.s32 %v2772, %v2774
    %v2776 = vrot.slane %v2762, %v2775
    %v2777 = vcombine.low %v2745, %v2760
    %v2778 = vcombine.high %v2745, %v2760
    %v2780 = vunpack.c.l.s4 1934713408
    %v2781 = vunpack.c.0.s8 %v2780
    %v2782 = vlaneseq
    %v2783 = vshrl.u32 %v2782, 7
    %v2784 = vsub.s32 %v2781, %v2783
    %v2785 = vrot.slane %v2777, %v2784
    %v2787 = vunpack.c.l.s4 1934713408
    %v2788 = vunpack.c.0.s8 %v2787
    %v2789 = vlaneseq
    %v2790 = vshrl.u32 %v2789, 7
    %v2791 = vsub.s32 %v2788, %v2790
    %v2792 = vrot.slane %v2778, %v2791
    %v2793 = vcombine.high %v2769, 0.0
    %v2794 = vcombine.high %v2776, 0.0
    %v2795 = vcombine.high %v2785, 0.0
    %v2796 = vcombine.high %v2792, 0.0
    %v2797 = vcombine.high %v2267, 0.0
    %v2799 = vunpack.c.l.s4 1983009808
    %v2800 = vunpack.c.0.s8 %v2799
    %v2801 = vlaneseq
    %v2802 = vshrl.u32 %v2801, 7
    %v2803 = vsub.s32 %v2800, %v2802
    %v2804 = vrot.slane %v2267, %v2803
    %v2806 = vunpack.c.l.s4 1983009808
    %v2807 = vunpack.c.0.s8 %v2806
    %v2808 = vlaneseq
    %v2809 = vshrl.u32 %v2808, 7
    %v2810 = vsub.s32 %v2807, %v2809
    %v2811 = vrot.slane %v2797, %v2810
    %v2812 = vcombine.high %v2686, 0.0
    %v2814 = vunpack.c.l.s4 1983009808
    %v2815 = vunpack.c.0.s8 %v2814
    %v2816 = vlaneseq
    %v2817 = vshrl.u32 %v2816, 7
    %v2818 = vsub.s32 %v2815, %v2817
    %v2819 = vrot.slane %v2686, %v2818
    %v2821 = vunpack.c.l.s4 1983009808
    %v2822 = vunpack.c.0.s8 %v2821
    %v2823 = vlaneseq
    %v2824 = vshrl.u32 %v2823, 7
    %v2825 = vsub.s32 %v2822, %v2824
    %v2826 = vrot.slane %v2812, %v2825
    %v2827 = vcombine.low %v2804, %v2819
    %v2828 = vcombine.high %v2804, %v2819
    %v2830 = vunpack.c.l.s4 1934713408
    %v2831 = vunpack.c.0.s8 %v2830
    %v2832 = vlaneseq
    %v2833 = vshrl.u32 %v2832, 7
    %v2834 = vsub.s32 %v2831, %v2833
    %v2835 = vrot.slane %v2827, %v2834
    %v2837 = vunpack.c.l.s4 1934713408
    %v2838 = vunpack.c.0.s8 %v2837
    %v2839 = vlaneseq
    %v2840 = vshrl.u32 %v2839, 7
    %v2841 = vsub.s32 %v2838, %v2840
    %v2842 = vrot.slane %v2828, %v2841
    %v2843 = vcombine.low %v2811, %v2826
    %v2844 = vcombine.high %v2811, %v2826
    %v2846 = vunpack.c.l.s4 1934713408
    %v2847 = vunpack.c.0.s8 %v2846
    %v2848 = vlaneseq
    %v2849 = vshrl.u32 %v2848, 7
    %v2850 = vsub.s32 %v2847, %v2849
    %v2851 = vrot.slane %v2843, %v2850
    %v2853 = vunpack.c.l.s4 1934713408
    %v2854 = vunpack.c.0.s8 %v2853
    %v2855 = vlaneseq
    %v2856 = vshrl.u32 %v2855, 7
    %v2857 = vsub.s32 %v2854, %v2856
    %v2858 = vrot.slane %v2844, %v2857
    %v2859 = vcombine.high %v2835, 0.0
    %v2860 = vcombine.high %v2842, 0.0
    %v2861 = vcombine.high %v2851, 0.0
    %v2862 = vcombine.high %v2858, 0.0
    %v2863 = vcombine.high %v2272, 0.0
    %v2865 = vunpack.c.l.s4 1983009808
    %v2866 = vunpack.c.0.s8 %v2865
    %v2867 = vlaneseq
    %v2868 = vshrl.u32 %v2867, 7
    %v2869 = vsub.s32 %v2866, %v2868
    %v2870 = vrot.slane %v2272, %v2869
    %v2872 = vunpack.c.l.s4 1983009808
    %v2873 = vunpack.c.0.s8 %v2872
    %v2874 = vlaneseq
    %v2875 = vshrl.u32 %v2874, 7
    %v2876 = vsub.s32 %v2873, %v2875
    %v2877 = vrot.slane %v2863, %v2876
    %v2878 = vcombine.high %v2688, 0.0
    %v2880 = vunpack.c.l.s4 1983009808
    %v2881 = vunpack.c.0.s8 %v2880
    %v2882 = vlaneseq
    %v2883 = vshrl.u32 %v2882, 7
    %v2884 = vsub.s32 %v2881, %v2883
    %v2885 = vrot.slane %v2688, %v2884
    %v2887 = vunpack.c.l.s4 1983009808
    %v2888 = vunpack.c.0.s8 %v2887
    %v2889 = vlaneseq
    %v2890 = vshrl.u32 %v2889, 7
    %v2891 = vsub.s32 %v2888, %v2890
    %v2892 = vrot.slane %v2878, %v2891
    %v2893 = vcombine.low %v2870, %v2885
    %v2894 = vcombine.high %v2870, %v2885
    %v2896 = vunpack.c.l.s4 1934713408
    %v2897 = vunpack.c.0.s8 %v2896
    %v2898 = vlaneseq
    %v2899 = vshrl.u32 %v2898, 7
    %v2900 = vsub.s32 %v2897, %v2899
    %v2901 = vrot.slane %v2893, %v2900
    %v2903 = vunpack.c.l.s4 1934713408
    %v2904 = vunpack.c.0.s8 %v2903
    %v2905 = vlaneseq
    %v2906 = vshrl.u32 %v2905, 7
    %v2907 = vsub.s32 %v2904, %v2906
    %v2908 = vrot.slane %v2894, %v2907
    %v2909 = vcombine.low %v2877, %v2892
    %v2910 = vcombine.high %v2877, %v2892
    %v2912 = vunpack.c.l.s4 1934713408
    %v2913 = vunpack.c.0.s8 %v2912
    %v2914 = vlaneseq
    %v2915 = vshrl.u32 %v2914, 7
    %v2916 = vsub.s32 %v2913, %v2915
    %v2917 = vrot.slane %v2909, %v2916
    %v2919 = vunpack.c.l.s4 1934713408
    %v2920 = vunpack.c.0.s8 %v2919
    %v2921 = vlaneseq
    %v2922 = vshrl.u32 %v2921, 7
    %v2923 = vsub.s32 %v2920, %v2922
    %v2924 = vrot.slane %v2910, %v2923
    %v2925 = vcombine.high %v2901, 0.0
    %v2926 = vcombine.high %v2908, 0.0
    %v2927 = vcombine.high %v2917, 0.0
    %v2928 = vcombine.high %v2924, 0.0
    %v2929 = vcombine.high %v2277, 0.0
    %v2931 = vunpack.c.l.s4 1983009808
    %v2932 = vunpack.c.0.s8 %v2931
    %v2933 = vlaneseq
    %v2934 = vshrl.u32 %v2933, 7
    %v2935 = vsub.s32 %v2932, %v2934
    %v2936 = vrot.slane %v2277, %v2935
    %v2938 = vunpack.c.l.s4 1983009808
    %v2939 = vunpack.c.0.s8 %v2938
    %v2940 = vlaneseq
    %v2941 = vshrl.u32 %v2940, 7
    %v2942 = vsub.s32 %v2939, %v2941
    %v2943 = vrot.slane %v2929, %v2942
    %v2944 = vcombine.high %v2690, 0.0
    %v2946 = vunpack.c.l.s4 1983009808
    %v2947 = vunpack.c.0.s8 %v2946
    %v2948 = vlaneseq
    %v2949 = vshrl.u32 %v2948, 7
    %v2950 = vsub.s32 %v2947, %v2949
    %v2951 = vrot.slane %v2690, %v2950
    %v2953 = vunpack.c.l.s4 1983009808
    %v2954 = vunpack.c.0.s8 %v2953
    %v2955 = vlaneseq
    %v2956 = vshrl.u32 %v2955, 7
    %v2957 = vsub.s32 %v2954, %v2956
    %v2958 = vrot.slane %v2944, %v2957
    %v2959 = vcombine.low %v2936, %v2951
    %v2960 = vcombine.high %v2936, %v2951
    %v2962 = vunpack.c.l.s4 1934713408
    %v2963 = vunpack.c.0.s8 %v2962
    %v2964 = vlaneseq
    %v2965 = vshrl.u32 %v2964, 7
    %v2966 = vsub.s32 %v2963, %v2965
    %v2967 = vrot.slane %v2959, %v2966
    %v2969 = vunpack.c.l.s4 1934713408
    %v2970 = vunpack.c.0.s8 %v2969
    %v2971 = vlaneseq
    %v2972 = vshrl.u32 %v2971, 7
    %v2973 = vsub.s32 %v2970, %v2972
    %v2974 = vrot.slane %v2960, %v2973
    %v2975 = vcombine.low %v2943, %v2958
    %v2976 = vcombine.high %v2943, %v2958
    %v2978 = vunpack.c.l.s4 1934713408
    %v2979 = vunpack.c.0.s8 %v2978
    %v2980 = vlaneseq
    %v2981 = vshrl.u32 %v2980, 7
    %v2982 = vsub.s32 %v2979, %v2981
    %v2983 = vrot.slane %v2975, %v2982
    %v2985 = vunpack.c.l.s4 1934713408
    %v2986 = vunpack.c.0.s8 %v2985
    %v2987 = vlaneseq
    %v2988 = vshrl.u32 %v2987, 7
    %v2989 = vsub.s32 %v2986, %v2988
    %v2990 = vrot.slane %v2976, %v2989
    %v2991 = vcombine.high %v2967, 0.0
    %v2992 = vcombine.high %v2974, 0.0
    %v2993 = vcombine.high %v2983, 0.0
    %v2994 = vcombine.high %v2990, 0.0
    %v2995 = vcombine.high %v2391, 0.0
    %v2997 = vunpack.c.l.s4 1983009808
    %v2998 = vunpack.c.0.s8 %v2997
    %v2999 = vlaneseq
    %v3000 = vshrl.u32 %v2999, 7
    %v3001 = vsub.s32 %v2998, %v3000
    %v3002 = vrot.slane %v2391, %v3001
    %v3004 = vunpack.c.l.s4 1983009808
    %v3005 = vunpack.c.0.s8 %v3004
    %v3006 = vlaneseq
    %v3007 = vshrl.u32 %v3006, 7
    %v3008 = vsub.s32 %v3005, %v3007
    %v3009 = vrot.slane %v2995, %v3008
    %v3010 = vcombine.high %v2692, 0.0
    %v3012 = vunpack.c.l.s4 1983009808
    %v3013 = vunpack.c.0.s8 %v3012
    %v3014 = vlaneseq
    %v3015 = vshrl.u32 %v3014, 7
    %v3016 = vsub.s32 %v3013, %v3015
    %v3017 = vrot.slane %v2692, %v3016
    %v3019 = vunpack.c.l.s4 1983009808
    %v3020 = vunpack.c.0.s8 %v3019
    %v3021 = vlaneseq
    %v3022 = vshrl.u32 %v3021, 7
    %v3023 = vsub.s32 %v3020, %v3022
    %v3024 = vrot.slane %v3010, %v3023
    %v3025 = vcombine.low %v3002, %v3017
    %v3026 = vcombine.high %v3002, %v3017
    %v3028 = vunpack.c.l.s4 1934713408
    %v3029 = vunpack.c.0.s8 %v3028
    %v3030 = vlaneseq
    %v3031 = vshrl.u32 %v3030, 7
    %v3032 = vsub.s32 %v3029, %v3031
    %v3033 = vrot.slane %v3025, %v3032
    %v3035 = vunpack.c.l.s4 1934713408
    %v3036 = vunpack.c.0.s8 %v3035
    %v3037 = vlaneseq
    %v3038 = vshrl.u32 %v3037, 7
    %v3039 = vsub.s32 %v3036, %v3038
    %v3040 = vrot.slane %v3026, %v3039
    %v3041 = vcombine.low %v3009, %v3024
    %v3042 = vcombine.high %v3009, %v3024
    %v3044 = vunpack.c.l.s4 1934713408
    %v3045 = vunpack.c.0.s8 %v3044
    %v3046 = vlaneseq
    %v3047 = vshrl.u32 %v3046, 7
    %v3048 = vsub.s32 %v3045, %v3047
    %v3049 = vrot.slane %v3041, %v3048
    %v3051 = vunpack.c.l.s4 1934713408
    %v3052 = vunpack.c.0.s8 %v3051
    %v3053 = vlaneseq
    %v3054 = vshrl.u32 %v3053, 7
    %v3055 = vsub.s32 %v3052, %v3054
    %v3056 = vrot.slane %v3042, %v3055
    %v3057 = vcombine.high %v3033, 0.0
    %v3058 = vcombine.high %v3040, 0.0
    %v3059 = vcombine.high %v3049, 0.0
    %v3060 = vcombine.high %v3056, 0.0
    %v3061 = vcombine.high %v2396, 0.0
    %v3063 = vunpack.c.l.s4 1983009808
    %v3064 = vunpack.c.0.s8 %v3063
    %v3065 = vlaneseq
    %v3066 = vshrl.u32 %v3065, 7
    %v3067 = vsub.s32 %v3064, %v3066
    %v3068 = vrot.slane %v2396, %v3067
    %v3070 = vunpack.c.l.s4 1983009808
    %v3071 = vunpack.c.0.s8 %v3070
    %v3072 = vlaneseq
    %v3073 = vshrl.u32 %v3072, 7
    %v3074 = vsub.s32 %v3071, %v3073
    %v3075 = vrot.slane %v3061, %v3074
    %v3076 = vcombine.high %v2694, 0.0
    %v3078 = vunpack.c.l.s4 1983009808
    %v3079 = vunpack.c.0.s8 %v3078
    %v3080 = vlaneseq
    %v3081 = vshrl.u32 %v3080, 7
    %v3082 = vsub.s32 %v3079, %v3081
    %v3083 = vrot.slane %v2694, %v3082
    %v3085 = vunpack.c.l.s4 1983009808
    %v3086 = vunpack.c.0.s8 %v3085
    %v3087 = vlaneseq
    %v3088 = vshrl.u32 %v3087, 7
    %v3089 = vsub.s32 %v3086, %v3088
    %v3090 = vrot.slane %v3076, %v3089
    %v3091 = vcombine.low %v3068, %v3083
    %v3092 = vcombine.high %v3068, %v3083
    %v3094 = vunpack.c.l.s4 1934713408
    %v3095 = vunpack.c.0.s8 %v3094
    %v3096 = vlaneseq
    %v3097 = vshrl.u32 %v3096, 7
    %v3098 = vsub.s32 %v3095, %v3097
    %v3099 = vrot.slane %v3091, %v3098
    %v3101 = vunpack.c.l.s4 1934713408
    %v3102 = vunpack.c.0.s8 %v3101
    %v3103 = vlaneseq
    %v3104 = vshrl.u32 %v3103, 7
    %v3105 = vsub.s32 %v3102, %v3104
    %v3106 = vrot.slane %v3092, %v3105
    %v3107 = vcombine.low %v3075, %v3090
    %v3108 = vcombine.high %v3075, %v3090
    %v3110 = vunpack.c.l.s4 1934713408
    %v3111 = vunpack.c.0.s8 %v3110
    %v3112 = vlaneseq
    %v3113 = vshrl.u32 %v3112, 7
    %v3114 = vsub.s32 %v3111, %v3113
    %v3115 = vrot.slane %v3107, %v3114
    %v3117 = vunpack.c.l.s4 1934713408
    %v3118 = vunpack.c.0.s8 %v3117
    %v3119 = vlaneseq
    %v3120 = vshrl.u32 %v3119, 7
    %v3121 = vsub.s32 %v3118, %v3120
    %v3122 = vrot.slane %v3108, %v3121
    %v3123 = vcombine.high %v3099, 0.0
    %v3124 = vcombine.high %v3106, 0.0
    %v3125 = vcombine.high %v3115, 0.0
    %v3126 = vcombine.high %v3122, 0.0
    %v3127 = vcombine.high %v2401, 0.0
    %v3129 = vunpack.c.l.s4 1983009808
    %v3130 = vunpack.c.0.s8 %v3129
    %v3131 = vlaneseq
    %v3132 = vshrl.u32 %v3131, 7
    %v3133 = vsub.s32 %v3130, %v3132
    %v3134 = vrot.slane %v2401, %v3133
    %v3136 = vunpack.c.l.s4 1983009808
    %v3137 = vunpack.c.0.s8 %v3136
    %v3138 = vlaneseq
    %v3139 = vshrl.u32 %v3138, 7
    %v3140 = vsub.s32 %v3137, %v3139
    %v3141 = vrot.slane %v3127, %v3140
    %v3142 = vcombine.high %v2696, 0.0
    %v3144 = vunpack.c.l.s4 1983009808
    %v3145 = vunpack.c.0.s8 %v3144
    %v3146 = vlaneseq
    %v3147 = vshrl.u32 %v3146, 7
    %v3148 = vsub.s32 %v3145, %v3147
    %v3149 = vrot.slane %v2696, %v3148
    %v3151 = vunpack.c.l.s4 1983009808
    %v3152 = vunpack.c.0.s8 %v3151
    %v3153 = vlaneseq
    %v3154 = vshrl.u32 %v3153, 7
    %v3155 = vsub.s32 %v3152, %v3154
    %v3156 = vrot.slane %v3142, %v3155
    %v3157 = vcombine.low %v3134, %v3149
    %v3158 = vcombine.high %v3134, %v3149
    %v3160 = vunpack.c.l.s4 1934713408
    %v3161 = vunpack.c.0.s8 %v3160
    %v3162 = vlaneseq
    %v3163 = vshrl.u32 %v3162, 7
    %v3164 = vsub.s32 %v3161, %v3163
    %v3165 = vrot.slane %v3157, %v3164
    %v3167 = vunpack.c.l.s4 1934713408
    %v3168 = vunpack.c.0.s8 %v3167
    %v3169 = vlaneseq
    %v3170 = vshrl.u32 %v3169, 7
    %v3171 = vsub.s32 %v3168, %v3170
    %v3172 = vrot.slane %v3158, %v3171
    %v3173 = vcombine.low %v3141, %v3156
    %v3174 = vcombine.high %v3141, %v3156
    %v3176 = vunpack.c.l.s4 1934713408
    %v3177 = vunpack.c.0.s8 %v3176
    %v3178 = vlaneseq
    %v3179 = vshrl.u32 %v3178, 7
    %v3180 = vsub.s32 %v3177, %v3179
    %v3181 = vrot.slane %v3173, %v3180
    %v3183 = vunpack.c.l.s4 1934713408
    %v3184 = vunpack.c.0.s8 %v3183
    %v3185 = vlaneseq
    %v3186 = vshrl.u32 %v3185, 7
    %v3187 = vsub.s32 %v3184, %v3186
    %v3188 = vrot.slane %v3174, %v3187
    %v3189 = vcombine.high %v3165, 0.0
    %v3190 = vcombine.high %v3172, 0.0
    %v3191 = vcombine.high %v3181, 0.0
    %v3192 = vcombine.high %v3188, 0.0
    %v3193 = vcombine.high %v2406, 0.0
    %v3195 = vunpack.c.l.s4 1983009808
    %v3196 = vunpack.c.0.s8 %v3195
    %v3197 = vlaneseq
    %v3198 = vshrl.u32 %v3197, 7
    %v3199 = vsub.s32 %v3196, %v3198
    %v3200 = vrot.slane %v2406, %v3199
    %v3202 = vunpack.c.l.s4 1983009808
    %v3203 = vunpack.c.0.s8 %v3202
    %v3204 = vlaneseq
    %v3205 = vshrl.u32 %v3204, 7
    %v3206 = vsub.s32 %v3203, %v3205
    %v3207 = vrot.slane %v3193, %v3206
    %v3208 = vcombine.high %v2698, 0.0
    %v3210 = vunpack.c.l.s4 1983009808
    %v3211 = vunpack.c.0.s8 %v3210
    %v3212 = vlaneseq
    %v3213 = vshrl.u32 %v3212, 7
    %v3214 = vsub.s32 %v3211, %v3213
    %v3215 = vrot.slane %v2698, %v3214
    %v3217 = vunpack.c.l.s4 1983009808
    %v3218 = vunpack.c.0.s8 %v3217
    %v3219 = vlaneseq
    %v3220 = vshrl.u32 %v3219, 7
    %v3221 = vsub.s32 %v3218, %v3220
    %v3222 = vrot.slane %v3208, %v3221
    %v3223 = vcombine.low %v3200, %v3215
    %v3224 = vcombine.high %v3200, %v3215
    %v3226 = vunpack.c.l.s4 1934713408
    %v3227 = vunpack.c.0.s8 %v3226
    %v3228 = vlaneseq
    %v3229 = vshrl.u32 %v3228, 7
    %v3230 = vsub.s32 %v3227, %v3229
    %v3231 = vrot.slane %v3223, %v3230
    %v3233 = vunpack.c.l.s4 1934713408
    %v3234 = vunpack.c.0.s8 %v3233
    %v3235 = vlaneseq
    %v3236 = vshrl.u32 %v3235, 7
    %v3237 = vsub.s32 %v3234, %v3236
    %v3238 = vrot.slane %v3224, %v3237
    %v3239 = vcombine.low %v3207, %v3222
    %v3240 = vcombine.high %v3207, %v3222
    %v3242 = vunpack.c.l.s4 1934713408
    %v3243 = vunpack.c.0.s8 %v3242
    %v3244 = vlaneseq
    %v3245 = vshrl.u32 %v3244, 7
    %v3246 = vsub.s32 %v3243, %v3245
    %v3247 = vrot.slane %v3239, %v3246
    %v3249 = vunpack.c.l.s4 1934713408
    %v3250 = vunpack.c.0.s8 %v3249
    %v3251 = vlaneseq
    %v3252 = vshrl.u32 %v3251, 7
    %v3253 = vsub.s32 %v3250, %v3252
    %v3254 = vrot.slane %v3240, %v3253
    %v3255 = vcombine.high %v3231, 0.0
    %v3256 = vcombine.high %v3238, 0.0
    %v3257 = vcombine.high %v3247, 0.0
    %v3258 = vcombine.high %v3254, 0.0
    %v3259 = vcombine.high %v2520, 0.0
    %v3261 = vunpack.c.l.s4 1983009808
    %v3262 = vunpack.c.0.s8 %v3261
    %v3263 = vlaneseq
    %v3264 = vshrl.u32 %v3263, 7
    %v3265 = vsub.s32 %v3262, %v3264
    %v3266 = vrot.slane %v2520, %v3265
    %v3268 = vunpack.c.l.s4 1983009808
    %v3269 = vunpack.c.0.s8 %v3268
    %v3270 = vlaneseq
    %v3271 = vshrl.u32 %v3270, 7
    %v3272 = vsub.s32 %v3269, %v3271
    %v3273 = vrot.slane %v3259, %v3272
    %v3274 = vcombine.high %v2700, 0.0
    %v3276 = vunpack.c.l.s4 1983009808
    %v3277 = vunpack.c.0.s8 %v3276
    %v3278 = vlaneseq
    %v3279 = vshrl.u32 %v3278, 7
    %v3280 = vsub.s32 %v3277, %v3279
    %v3281 = vrot.slane %v2700, %v3280
    %v3283 = vunpack.c.l.s4 1983009808
    %v3284 = vunpack.c.0.s8 %v3283
    %v3285 = vlaneseq
    %v3286 = vshrl.u32 %v3285, 7
    %v3287 = vsub.s32 %v3284, %v3286
    %v3288 = vrot.slane %v3274, %v3287
    %v3289 = vcombine.low %v3266, %v3281
    %v3290 = vcombine.high %v3266, %v3281
    %v3292 = vunpack.c.l.s4 1934713408
    %v3293 = vunpack.c.0.s8 %v3292
    %v3294 = vlaneseq
    %v3295 = vshrl.u32 %v3294, 7
    %v3296 = vsub.s32 %v3293, %v3295
    %v3297 = vrot.slane %v3289, %v3296
    %v3299 = vunpack.c.l.s4 1934713408
    %v3300 = vunpack.c.0.s8 %v3299
    %v3301 = vlaneseq
    %v3302 = vshrl.u32 %v3301, 7
    %v3303 = vsub.s32 %v3300, %v3302
    %v3304 = vrot.slane %v3290, %v3303
    %v3305 = vcombine.low %v3273, %v3288
    %v3306 = vcombine.high %v3273, %v3288
    %v3308 = vunpack.c.l.s4 1934713408
    %v3309 = vunpack.c.0.s8 %v3308
    %v3310 = vlaneseq
    %v3311 = vshrl.u32 %v3310, 7
    %v3312 = vsub.s32 %v3309, %v3311
    %v3313 = vrot.slane %v3305, %v3312
    %v3315 = vunpack.c.l.s4 1934713408
    %v3316 = vunpack.c.0.s8 %v3315
    %v3317 = vlaneseq
    %v3318 = vshrl.u32 %v3317, 7
    %v3319 = vsub.s32 %v3316, %v3318
    %v3320 = vrot.slane %v3306, %v3319
    %v3321 = vcombine.high %v3297, 0.0
    %v3322 = vcombine.high %v3304, 0.0
    %v3323 = vcombine.high %v3313, 0.0
    %v3324 = vcombine.high %v3320, 0.0
    %v3325 = vcombine.high %v2525, 0.0
    %v3327 = vunpack.c.l.s4 1983009808
    %v3328 = vunpack.c.0.s8 %v3327
    %v3329 = vlaneseq
    %v3330 = vshrl.u32 %v3329, 7
    %v3331 = vsub.s32 %v3328, %v3330
    %v3332 = vrot.slane %v2525, %v3331
    %v3334 = vunpack.c.l.s4 1983009808
    %v3335 = vunpack.c.0.s8 %v3334
    %v3336 = vlaneseq
    %v3337 = vshrl.u32 %v3336, 7
    %v3338 = vsub.s32 %v3335, %v3337
    %v3339 = vrot.slane %v3325, %v3338
    %v3340 = vcombine.high %v2702, 0.0
    %v3342 = vunpack.c.l.s4 1983009808
    %v3343 = vunpack.c.0.s8 %v3342
    %v3344 = vlaneseq
    %v3345 = vshrl.u32 %v3344, 7
    %v3346 = vsub.s32 %v3343, %v3345
    %v3347 = vrot.slane %v2702, %v3346
    %v3349 = vunpack.c.l.s4 1983009808
    %v3350 = vunpack.c.0.s8 %v3349
    %v3351 = vlaneseq
    %v3352 = vshrl.u32 %v3351, 7
    %v3353 = vsub.s32 %v3350, %v3352
    %v3354 = vrot.slane %v3340, %v3353
    %v3355 = vcombine.low %v3332, %v3347
    %v3356 = vcombine.high %v3332, %v3347
    %v3358 = vunpack.c.l.s4 1934713408
    %v3359 = vunpack.c.0.s8 %v3358
    %v3360 = vlaneseq
    %v3361 = vshrl.u32 %v3360, 7
    %v3362 = vsub.s32 %v3359, %v3361
    %v3363 = vrot.slane %v3355, %v3362
    %v3365 = vunpack.c.l.s4 1934713408
    %v3366 = vunpack.c.0.s8 %v3365
    %v3367 = vlaneseq
    %v3368 = vshrl.u32 %v3367, 7
    %v3369 = vsub.s32 %v3366, %v3368
    %v3370 = vrot.slane %v3356, %v3369
    %v3371 = vcombine.low %v3339, %v3354
    %v3372 = vcombine.high %v3339, %v3354
    %v3374 = vunpack.c.l.s4 1934713408
    %v3375 = vunpack.c.0.s8 %v3374
    %v3376 = vlaneseq
    %v3377 = vshrl.u32 %v3376, 7
    %v3378 = vsub.s32 %v3375, %v3377
    %v3379 = vrot.slane %v3371, %v3378
    %v3381 = vunpack.c.l.s4 1934713408
    %v3382 = vunpack.c.0.s8 %v3381
    %v3383 = vlaneseq
    %v3384 = vshrl.u32 %v3383, 7
    %v3385 = vsub.s32 %v3382, %v3384
    %v3386 = vrot.slane %v3372, %v3385
    %v3387 = vcombine.high %v3363, 0.0
    %v3388 = vcombine.high %v3370, 0.0
    %v3389 = vcombine.high %v3379, 0.0
    %v3390 = vcombine.high %v3386, 0.0
    %v3391 = vcombine.high %v2530, 0.0
    %v3393 = vunpack.c.l.s4 1983009808
    %v3394 = vunpack.c.0.s8 %v3393
    %v3395 = vlaneseq
    %v3396 = vshrl.u32 %v3395, 7
    %v3397 = vsub.s32 %v3394, %v3396
    %v3398 = vrot.slane %v2530, %v3397
    %v3400 = vunpack.c.l.s4 1983009808
    %v3401 = vunpack.c.0.s8 %v3400
    %v3402 = vlaneseq
    %v3403 = vshrl.u32 %v3402, 7
    %v3404 = vsub.s32 %v3401, %v3403
    %v3405 = vrot.slane %v3391, %v3404
    %v3406 = vcombine.high %v2704, 0.0
    %v3408 = vunpack.c.l.s4 1983009808
    %v3409 = vunpack.c.0.s8 %v3408
    %v3410 = vlaneseq
    %v3411 = vshrl.u32 %v3410, 7
    %v3412 = vsub.s32 %v3409, %v3411
    %v3413 = vrot.slane %v2704, %v3412
    %v3415 = vunpack.c.l.s4 1983009808
    %v3416 = vunpack.c.0.s8 %v3415
    %v3417 = vlaneseq
    %v3418 = vshrl.u32 %v3417, 7
    %v3419 = vsub.s32 %v3416, %v3418
    %v3420 = vrot.slane %v3406, %v3419
    %v3421 = vcombine.low %v3398, %v3413
    %v3422 = vcombine.high %v3398, %v3413
    %v3424 = vunpack.c.l.s4 1934713408
    %v3425 = vunpack.c.0.s8 %v3424
    %v3426 = vlaneseq
    %v3427 = vshrl.u32 %v3426, 7
    %v3428 = vsub.s32 %v3425, %v3427
    %v3429 = vrot.slane %v3421, %v3428
    %v3431 = vunpack.c.l.s4 1934713408
    %v3432 = vunpack.c.0.s8 %v3431
    %v3433 = vlaneseq
    %v3434 = vshrl.u32 %v3433, 7
    %v3435 = vsub.s32 %v3432, %v3434
    %v3436 = vrot.slane %v3422, %v3435
    %v3437 = vcombine.low %v3405, %v3420
    %v3438 = vcombine.high %v3405, %v3420
    %v3440 = vunpack.c.l.s4 1934713408
    %v3441 = vunpack.c.0.s8 %v3440
    %v3442 = vlaneseq
    %v3443 = vshrl.u32 %v3442, 7
    %v3444 = vsub.s32 %v3441, %v3443
    %v3445 = vrot.slane %v3437, %v3444
    %v3447 = vunpack.c.l.s4 1934713408
    %v3448 = vunpack.c.0.s8 %v3447
    %v3449 = vlaneseq
    %v3450 = vshrl.u32 %v3449, 7
    %v3451 = vsub.s32 %v3448, %v3450
    %v3452 = vrot.slane %v3438, %v3451
    %v3453 = vcombine.high %v3429, 0.0
    %v3454 = vcombine.high %v3436, 0.0
    %v3455 = vcombine.high %v3445, 0.0
    %v3456 = vcombine.high %v3452, 0.0
    %v3457 = vcombine.high %v2535, 0.0
    %v3459 = vunpack.c.l.s4 1983009808
    %v3460 = vunpack.c.0.s8 %v3459
    %v3461 = vlaneseq
    %v3462 = vshrl.u32 %v3461, 7
    %v3463 = vsub.s32 %v3460, %v3462
    %v3464 = vrot.slane %v2535, %v3463
    %v3466 = vunpack.c.l.s4 1983009808
    %v3467 = vunpack.c.0.s8 %v3466
    %v3468 = vlaneseq
    %v3469 = vshrl.u32 %v3468, 7
    %v3470 = vsub.s32 %v3467, %v3469
    %v3471 = vrot.slane %v3457, %v3470
    %v3472 = vcombine.high %v2706, 0.0
    %v3474 = vunpack.c.l.s4 1983009808
    %v3475 = vunpack.c.0.s8 %v3474
    %v3476 = vlaneseq
    %v3477 = vshrl.u32 %v3476, 7
    %v3478 = vsub.s32 %v3475, %v3477
    %v3479 = vrot.slane %v2706, %v3478
    %v3481 = vunpack.c.l.s4 1983009808
    %v3482 = vunpack.c.0.s8 %v3481
    %v3483 = vlaneseq
    %v3484 = vshrl.u32 %v3483, 7
    %v3485 = vsub.s32 %v3482, %v3484
    %v3486 = vrot.slane %v3472, %v3485
    %v3487 = vcombine.low %v3464, %v3479
    %v3488 = vcombine.high %v3464, %v3479
    %v3490 = vunpack.c.l.s4 1934713408
    %v3491 = vunpack.c.0.s8 %v3490
    %v3492 = vlaneseq
    %v3493 = vshrl.u32 %v3492, 7
    %v3494 = vsub.s32 %v3491, %v3493
    %v3495 = vrot.slane %v3487, %v3494
    %v3497 = vunpack.c.l.s4 1934713408
    %v3498 = vunpack.c.0.s8 %v3497
    %v3499 = vlaneseq
    %v3500 = vshrl.u32 %v3499, 7
    %v3501 = vsub.s32 %v3498, %v3500
    %v3502 = vrot.slane %v3488, %v3501
    %v3503 = vcombine.low %v3471, %v3486
    %v3504 = vcombine.high %v3471, %v3486
    %v3506 = vunpack.c.l.s4 1934713408
    %v3507 = vunpack.c.0.s8 %v3506
    %v3508 = vlaneseq
    %v3509 = vshrl.u32 %v3508, 7
    %v3510 = vsub.s32 %v3507, %v3509
    %v3511 = vrot.slane %v3503, %v3510
    %v3513 = vunpack.c.l.s4 1934713408
    %v3514 = vunpack.c.0.s8 %v3513
    %v3515 = vlaneseq
    %v3516 = vshrl.u32 %v3515, 7
    %v3517 = vsub.s32 %v3514, %v3516
    %v3518 = vrot.slane %v3504, %v3517
    %v3519 = vcombine.high %v3495, 0.0
    %v3520 = vcombine.high %v3502, 0.0
    %v3521 = vcombine.high %v3511, 0.0
    %v3522 = vcombine.high %v3518, 0.0
    %v3523 = vcombine.high %v2649, 0.0
    %v3525 = vunpack.c.l.s4 1983009808
    %v3526 = vunpack.c.0.s8 %v3525
    %v3527 = vlaneseq
    %v3528 = vshrl.u32 %v3527, 7
    %v3529 = vsub.s32 %v3526, %v3528
    %v3530 = vrot.slane %v2649, %v3529
    %v3532 = vunpack.c.l.s4 1983009808
    %v3533 = vunpack.c.0.s8 %v3532
    %v3534 = vlaneseq
    %v3535 = vshrl.u32 %v3534, 7
    %v3536 = vsub.s32 %v3533, %v3535
    %v3537 = vrot.slane %v3523, %v3536
    %v3538 = vcombine.high %v2708, 0.0
    %v3540 = vunpack.c.l.s4 1983009808
    %v3541 = vunpack.c.0.s8 %v3540
    %v3542 = vlaneseq
    %v3543 = vshrl.u32 %v3542, 7
    %v3544 = vsub.s32 %v3541, %v3543
    %v3545 = vrot.slane %v2708, %v3544
    %v3547 = vunpack.c.l.s4 1983009808
    %v3548 = vunpack.c.0.s8 %v3547
    %v3549 = vlaneseq
    %v3550 = vshrl.u32 %v3549, 7
    %v3551 = vsub.s32 %v3548, %v3550
    %v3552 = vrot.slane %v3538, %v3551
    %v3553 = vcombine.low %v3530, %v3545
    %v3554 = vcombine.high %v3530, %v3545
    %v3556 = vunpack.c.l.s4 1934713408
    %v3557 = vunpack.c.0.s8 %v3556
    %v3558 = vlaneseq
    %v3559 = vshrl.u32 %v3558, 7
    %v3560 = vsub.s32 %v3557, %v3559
    %v3561 = vrot.slane %v3553, %v3560
    %v3563 = vunpack.c.l.s4 1934713408
    %v3564 = vunpack.c.0.s8 %v3563
    %v3565 = vlaneseq
    %v3566 = vshrl.u32 %v3565, 7
    %v3567 = vsub.s32 %v3564, %v3566
    %v3568 = vrot.slane %v3554, %v3567
    %v3569 = vcombine.low %v3537, %v3552
    %v3570 = vcombine.high %v3537, %v3552
    %v3572 = vunpack.c.l.s4 1934713408
    %v3573 = vunpack.c.0.s8 %v3572
    %v3574 = vlaneseq
    %v3575 = vshrl.u32 %v3574, 7
    %v3576 = vsub.s32 %v3573, %v3575
    %v3577 = vrot.slane %v3569, %v3576
    %v3579 = vunpack.c.l.s4 1934713408
    %v3580 = vunpack.c.0.s8 %v3579
    %v3581 = vlaneseq
    %v3582 = vshrl.u32 %v3581, 7
    %v3583 = vsub.s32 %v3580, %v3582
    %v3584 = vrot.slane %v3570, %v3583
    %v3585 = vcombine.high %v3561, 0.0
    %v3586 = vcombine.high %v3568, 0.0
    %v3587 = vcombine.high %v3577, 0.0
    %v3588 = vcombine.high %v3584, 0.0
    %v3589 = vcombine.high %v2654, 0.0
    %v3591 = vunpack.c.l.s4 1983009808
    %v3592 = vunpack.c.0.s8 %v3591
    %v3593 = vlaneseq
    %v3594 = vshrl.u32 %v3593, 7
    %v3595 = vsub.s32 %v3592, %v3594
    %v3596 = vrot.slane %v2654, %v3595
    %v3598 = vunpack.c.l.s4 1983009808
    %v3599 = vunpack.c.0.s8 %v3598
    %v3600 = vlaneseq
    %v3601 = vshrl.u32 %v3600, 7
    %v3602 = vsub.s32 %v3599, %v3601
    %v3603 = vrot.slane %v3589, %v3602
    %v3604 = vcombine.high %v2710, 0.0
    %v3606 = vunpack.c.l.s4 1983009808
    %v3607 = vunpack.c.0.s8 %v3606
    %v3608 = vlaneseq
    %v3609 = vshrl.u32 %v3608, 7
    %v3610 = vsub.s32 %v3607, %v3609
    %v3611 = vrot.slane %v2710, %v3610
    %v3613 = vunpack.c.l.s4 1983009808
    %v3614 = vunpack.c.0.s8 %v3613
    %v3615 = vlaneseq
    %v3616 = vshrl.u32 %v3615, 7
    %v3617 = vsub.s32 %v3614, %v3616
    %v3618 = vrot.slane %v3604, %v3617
    %v3619 = vcombine.low %v3596, %v3611
    %v3620 = vcombine.high %v3596, %v3611
    %v3622 = vunpack.c.l.s4 1934713408
    %v3623 = vunpack.c.0.s8 %v3622
    %v3624 = vlaneseq
    %v3625 = vshrl.u32 %v3624, 7
    %v3626 = vsub.s32 %v3623, %v3625
    %v3627 = vrot.slane %v3619, %v3626
    %v3629 = vunpack.c.l.s4 1934713408
    %v3630 = vunpack.c.0.s8 %v3629
    %v3631 = vlaneseq
    %v3632 = vshrl.u32 %v3631, 7
    %v3633 = vsub.s32 %v3630, %v3632
    %v3634 = vrot.slane %v3620, %v3633
    %v3635 = vcombine.low %v3603, %v3618
    %v3636 = vcombine.high %v3603, %v3618
    %v3638 = vunpack.c.l.s4 1934713408
    %v3639 = vunpack.c.0.s8 %v3638
    %v3640 = vlaneseq
    %v3641 = vshrl.u32 %v3640, 7
    %v3642 = vsub.s32 %v3639, %v3641
    %v3643 = vrot.slane %v3635, %v3642
    %v3645 = vunpack.c.l.s4 1934713408
    %v3646 = vunpack.c.0.s8 %v3645
    %v3647 = vlaneseq
    %v3648 = vshrl.u32 %v3647, 7
    %v3649 = vsub.s32 %v3646, %v3648
    %v3650 = vrot.slane %v3636, %v3649
    %v3651 = vcombine.high %v3627, 0.0
    %v3652 = vcombine.high %v3634, 0.0
    %v3653 = vcombine.high %v3643, 0.0
    %v3654 = vcombine.high %v3650, 0.0
    %v3655 = vcombine.high %v2659, 0.0
    %v3657 = vunpack.c.l.s4 1983009808
    %v3658 = vunpack.c.0.s8 %v3657
    %v3659 = vlaneseq
    %v3660 = vshrl.u32 %v3659, 7
    %v3661 = vsub.s32 %v3658, %v3660
    %v3662 = vrot.slane %v2659, %v3661
    %v3664 = vunpack.c.l.s4 1983009808
    %v3665 = vunpack.c.0.s8 %v3664
    %v3666 = vlaneseq
    %v3667 = vshrl.u32 %v3666, 7
    %v3668 = vsub.s32 %v3665, %v3667
    %v3669 = vrot.slane %v3655, %v3668
    %v3670 = vcombine.high %v2712, 0.0
    %v3672 = vunpack.c.l.s4 1983009808
    %v3673 = vunpack.c.0.s8 %v3672
    %v3674 = vlaneseq
    %v3675 = vshrl.u32 %v3674, 7
    %v3676 = vsub.s32 %v3673, %v3675
    %v3677 = vrot.slane %v2712, %v3676
    %v3679 = vunpack.c.l.s4 1983009808
    %v3680 = vunpack.c.0.s8 %v3679
    %v3681 = vlaneseq
    %v3682 = vshrl.u32 %v3681, 7
    %v3683 = vsub.s32 %v3680, %v3682
    %v3684 = vrot.slane %v3670, %v3683
    %v3685 = vcombine.low %v3662, %v3677
    %v3686 = vcombine.high %v3662, %v3677
    %v3688 = vunpack.c.l.s4 1934713408
    %v3689 = vunpack.c.0.s8 %v3688
    %v3690 = vlaneseq
    %v3691 = vshrl.u32 %v3690, 7
    %v3692 = vsub.s32 %v3689, %v3691
    %v3693 = vrot.slane %v3685, %v3692
    %v3695 = vunpack.c.l.s4 1934713408
    %v3696 = vunpack.c.0.s8 %v3695
    %v3697 = vlaneseq
    %v3698 = vshrl.u32 %v3697, 7
    %v3699 = vsub.s32 %v3696, %v3698
    %v3700 = vrot.slane %v3686, %v3699
    %v3701 = vcombine.low %v3669, %v3684
    %v3702 = vcombine.high %v3669, %v3684
    %v3704 = vunpack.c.l.s4 1934713408
    %v3705 = vunpack.c.0.s8 %v3704
    %v3706 = vlaneseq
    %v3707 = vshrl.u32 %v3706, 7
    %v3708 = vsub.s32 %v3705, %v3707
    %v3709 = vrot.slane %v3701, %v3708
    %v3711 = vunpack.c.l.s4 1934713408
    %v3712 = vunpack.c.0.s8 %v3711
    %v3713 = vlaneseq
    %v3714 = vshrl.u32 %v3713, 7
    %v3715 = vsub.s32 %v3712, %v3714
    %v3716 = vrot.slane %v3702, %v3715
    %v3717 = vcombine.high %v3693, 0.0
    %v3718 = vcombine.high %v3700, 0.0
    %v3719 = vcombine.high %v3709, 0.0
    %v3720 = vcombine.high %v3716, 0.0
    %v3721 = vcombine.high %v2664, 0.0
    %v3723 = vunpack.c.l.s4 1983009808
    %v3724 = vunpack.c.0.s8 %v3723
    %v3725 = vlaneseq
    %v3726 = vshrl.u32 %v3725, 7
    %v3727 = vsub.s32 %v3724, %v3726
    %v3728 = vrot.slane %v2664, %v3727
    %v3730 = vunpack.c.l.s4 1983009808
    %v3731 = vunpack.c.0.s8 %v3730
    %v3732 = vlaneseq
    %v3733 = vshrl.u32 %v3732, 7
    %v3734 = vsub.s32 %v3731, %v3733
    %v3735 = vrot.slane %v3721, %v3734
    %v3736 = vcombine.high %v2714, 0.0
    %v3738 = vunpack.c.l.s4 1983009808
    %v3739 = vunpack.c.0.s8 %v3738
    %v3740 = vlaneseq
    %v3741 = vshrl.u32 %v3740, 7
    %v3742 = vsub.s32 %v3739, %v3741
    %v3743 = vrot.slane %v2714, %v3742
    %v3745 = vunpack.c.l.s4 1983009808
    %v3746 = vunpack.c.0.s8 %v3745
    %v3747 = vlaneseq
    %v3748 = vshrl.u32 %v3747, 7
    %v3749 = vsub.s32 %v3746, %v3748
    %v3750 = vrot.slane %v3736, %v3749
    %v3751 = vcombine.low %v3728, %v3743
    %v3752 = vcombine.high %v3728, %v3743
    %v3754 = vunpack.c.l.s4 1934713408
    %v3755 = vunpack.c.0.s8 %v3754
    %v3756 = vlaneseq
    %v3757 = vshrl.u32 %v3756, 7
    %v3758 = vsub.s32 %v3755, %v3757
    %v3759 = vrot.slane %v3751, %v3758
    %v3761 = vunpack.c.l.s4 1934713408
    %v3762 = vunpack.c.0.s8 %v3761
    %v3763 = vlaneseq
    %v3764 = vshrl.u32 %v3763, 7
    %v3765 = vsub.s32 %v3762, %v3764
    %v3766 = vrot.slane %v3752, %v3765
    %v3767 = vcombine.low %v3735, %v3750
    %v3768 = vcombine.high %v3735, %v3750
    %v3770 = vunpack.c.l.s4 1934713408
    %v3771 = vunpack.c.0.s8 %v3770
    %v3772 = vlaneseq
    %v3773 = vshrl.u32 %v3772, 7
    %v3774 = vsub.s32 %v3771, %v3773
    %v3775 = vrot.slane %v3767, %v3774
    %v3777 = vunpack.c.l.s4 1934713408
    %v3778 = vunpack.c.0.s8 %v3777
    %v3779 = vlaneseq
    %v3780 = vshrl.u32 %v3779, 7
    %v3781 = vsub.s32 %v3778, %v3780
    %v3782 = vrot.slane %v3768, %v3781
    %v3783 = vcombine.high %v3759, 0.0
    %v3784 = vcombine.high %v3766, 0.0
    %v3785 = vcombine.high %v3775, 0.0
    %v3786 = vcombine.high %v3782, 0.0
    %3787 = vxpose.xlu0.b32.start [1/16] %v2769, 128
    %3788 = vxpose.xlu0.b32.cont [2/16] 0.0, 128
    %3789 = vxpose.xlu0.b32.cont [3/16] 0.0, 128
    %3790 = vxpose.xlu0.b32.cont [4/16] 0.0, 128
    %3791 = vxpose.xlu0.b32.cont [5/16] 0.0, 128
    %3792 = vxpose.xlu0.b32.cont [6/16] 0.0, 128
    %3793 = vxpose.xlu0.b32.cont [7/16] 0.0, 128
    %3794 = vxpose.xlu0.b32.cont [8/16] 0.0, 128
    %3795 = vxpose.xlu0.b32.cont [9/16] 0.0, 128
    %3796 = vxpose.xlu0.b32.cont [10/16] 0.0, 128
    %3797 = vxpose.xlu0.b32.cont [11/16] 0.0, 128
    %3798 = vxpose.xlu0.b32.cont [12/16] 0.0, 128
    %3799 = vxpose.xlu0.b32.cont [13/16] 0.0, 128
    %3800 = vxpose.xlu0.b32.cont [14/16] 0.0, 128
    %3801 = vxpose.xlu0.b32.cont [15/16] 0.0, 128
    %3802 = vxpose.xlu0.b32.end [16/16] 0.0, 128
    %v3803 = vpop.trf.xlu0
    %v3804 = vpop.trf.xlu0
    %v3805 = vpop.trf.xlu0
    %v3806 = vpop.trf.xlu0
    %v3807 = vpop.trf.xlu0
    %v3808 = vpop.trf.xlu0
    %v3809 = vpop.trf.xlu0
    %v3810 = vpop.trf.xlu0
    %v3811 = vpop.trf.xlu0
    %v3812 = vpop.trf.xlu0
    %v3813 = vpop.trf.xlu0
    %v3814 = vpop.trf.xlu0
    %v3815 = vpop.trf.xlu0
    %v3816 = vpop.trf.xlu0
    %v3817 = vpop.trf.xlu0
    %v3818 = vpop.trf.xlu0
    %3819 = vxpose.xlu0.b32.start [1/16] %v2793, 128
    %3820 = vxpose.xlu0.b32.cont [2/16] 0.0, 128
    %3821 = vxpose.xlu0.b32.cont [3/16] 0.0, 128
    %3822 = vxpose.xlu0.b32.cont [4/16] 0.0, 128
    %3823 = vxpose.xlu0.b32.cont [5/16] 0.0, 128
    %3824 = vxpose.xlu0.b32.cont [6/16] 0.0, 128
    %3825 = vxpose.xlu0.b32.cont [7/16] 0.0, 128
    %3826 = vxpose.xlu0.b32.cont [8/16] 0.0, 128
    %3827 = vxpose.xlu0.b32.cont [9/16] 0.0, 128
    %3828 = vxpose.xlu0.b32.cont [10/16] 0.0, 128
    %3829 = vxpose.xlu0.b32.cont [11/16] 0.0, 128
    %3830 = vxpose.xlu0.b32.cont [12/16] 0.0, 128
    %3831 = vxpose.xlu0.b32.cont [13/16] 0.0, 128
    %3832 = vxpose.xlu0.b32.cont [14/16] 0.0, 128
    %3833 = vxpose.xlu0.b32.cont [15/16] 0.0, 128
    %3834 = vxpose.xlu0.b32.end [16/16] 0.0, 128
    %v3835 = vpop.trf.xlu0
    %v3836 = vpop.trf.xlu0
    %v3837 = vpop.trf.xlu0
    %v3838 = vpop.trf.xlu0
    %v3839 = vpop.trf.xlu0
    %v3840 = vpop.trf.xlu0
    %v3841 = vpop.trf.xlu0
    %v3842 = vpop.trf.xlu0
    %v3843 = vpop.trf.xlu0
    %v3844 = vpop.trf.xlu0
    %v3845 = vpop.trf.xlu0
    %v3846 = vpop.trf.xlu0
    %v3847 = vpop.trf.xlu0
    %v3848 = vpop.trf.xlu0
    %v3849 = vpop.trf.xlu0
    %v3850 = vpop.trf.xlu0
    %3851 = vxpose.xlu0.b32.start [1/16] %v2776, 128
    %3852 = vxpose.xlu0.b32.cont [2/16] 0.0, 128
    %3853 = vxpose.xlu0.b32.cont [3/16] 0.0, 128
    %3854 = vxpose.xlu0.b32.cont [4/16] 0.0, 128
    %3855 = vxpose.xlu0.b32.cont [5/16] 0.0, 128
    %3856 = vxpose.xlu0.b32.cont [6/16] 0.0, 128
    %3857 = vxpose.xlu0.b32.cont [7/16] 0.0, 128
    %3858 = vxpose.xlu0.b32.cont [8/16] 0.0, 128
    %3859 = vxpose.xlu0.b32.cont [9/16] 0.0, 128
    %3860 = vxpose.xlu0.b32.cont [10/16] 0.0, 128
    %3861 = vxpose.xlu0.b32.cont [11/16] 0.0, 128
    %3862 = vxpose.xlu0.b32.cont [12/16] 0.0, 128
    %3863 = vxpose.xlu0.b32.cont [13/16] 0.0, 128
    %3864 = vxpose.xlu0.b32.cont [14/16] 0.0, 128
    %3865 = vxpose.xlu0.b32.cont [15/16] 0.0, 128
    %3866 = vxpose.xlu0.b32.end [16/16] 0.0, 128
    %v3867 = vpop.trf.xlu0
    %v3868 = vpop.trf.xlu0
    %v3869 = vpop.trf.xlu0
    %v3870 = vpop.trf.xlu0
    %v3871 = vpop.trf.xlu0
    %v3872 = vpop.trf.xlu0
    %v3873 = vpop.trf.xlu0
    %v3874 = vpop.trf.xlu0
    %v3875 = vpop.trf.xlu0
    %v3876 = vpop.trf.xlu0
    %v3877 = vpop.trf.xlu0
    %v3878 = vpop.trf.xlu0
    %v3879 = vpop.trf.xlu0
    %v3880 = vpop.trf.xlu0
    %v3881 = vpop.trf.xlu0
    %v3882 = vpop.trf.xlu0
    %3883 = vxpose.xlu0.b32.start [1/16] %v2794, 128
    %3884 = vxpose.xlu0.b32.cont [2/16] 0.0, 128
    %3885 = vxpose.xlu0.b32.cont [3/16] 0.0, 128
    %3886 = vxpose.xlu0.b32.cont [4/16] 0.0, 128
    %3887 = vxpose.xlu0.b32.cont [5/16] 0.0, 128
    %3888 = vxpose.xlu0.b32.cont [6/16] 0.0, 128
    %3889 = vxpose.xlu0.b32.cont [7/16] 0.0, 128
    %3890 = vxpose.xlu0.b32.cont [8/16] 0.0, 128
    %3891 = vxpose.xlu0.b32.cont [9/16] 0.0, 128
    %3892 = vxpose.xlu0.b32.cont [10/16] 0.0, 128
    %3893 = vxpose.xlu0.b32.cont [11/16] 0.0, 128
    %3894 = vxpose.xlu0.b32.cont [12/16] 0.0, 128
    %3895 = vxpose.xlu0.b32.cont [13/16] 0.0, 128
    %3896 = vxpose.xlu0.b32.cont [14/16] 0.0, 128
    %3897 = vxpose.xlu0.b32.cont [15/16] 0.0, 128
    %3898 = vxpose.xlu0.b32.end [16/16] 0.0, 128
    %v3899 = vpop.trf.xlu0
    %v3900 = vpop.trf.xlu0
    %v3901 = vpop.trf.xlu0
    %v3902 = vpop.trf.xlu0
    %v3903 = vpop.trf.xlu0
    %v3904 = vpop.trf.xlu0
    %v3905 = vpop.trf.xlu0
    %v3906 = vpop.trf.xlu0
    %v3907 = vpop.trf.xlu0
    %v3908 = vpop.trf.xlu0
    %v3909 = vpop.trf.xlu0
    %v3910 = vpop.trf.xlu0
    %v3911 = vpop.trf.xlu0
    %v3912 = vpop.trf.xlu0
    %v3913 = vpop.trf.xlu0
    %v3914 = vpop.trf.xlu0
    %3915 = vxpose.xlu0.b32.start [1/16] %v2785, 128
    %3916 = vxpose.xlu0.b32.cont [2/16] 0.0, 128
    %3917 = vxpose.xlu0.b32.cont [3/16] 0.0, 128
    %3918 = vxpose.xlu0.b32.cont [4/16] 0.0, 128
    %3919 = vxpose.xlu0.b32.cont [5/16] 0.0, 128
    %3920 = vxpose.xlu0.b32.cont [6/16] 0.0, 128
    %3921 = vxpose.xlu0.b32.cont [7/16] 0.0, 128
    %3922 = vxpose.xlu0.b32.cont [8/16] 0.0, 128
    %3923 = vxpose.xlu0.b32.cont [9/16] 0.0, 128
    %3924 = vxpose.xlu0.b32.cont [10/16] 0.0, 128
    %3925 = vxpose.xlu0.b32.cont [11/16] 0.0, 128
    %3926 = vxpose.xlu0.b32.cont [12/16] 0.0, 128
    %3927 = vxpose.xlu0.b32.cont [13/16] 0.0, 128
    %3928 = vxpose.xlu0.b32.cont [14/16] 0.0, 128
    %3929 = vxpose.xlu0.b32.cont [15/16] 0.0, 128
    %3930 = vxpose.xlu0.b32.end [16/16] 0.0, 128
    %v3931 = vpop.trf.xlu0
    %v3932 = vpop.trf.xlu0
    %v3933 = vpop.trf.xlu0
    %v3934 = vpop.trf.xlu0
    %v3935 = vpop.trf.xlu0
    %v3936 = vpop.trf.xlu0
    %v3937 = vpop.trf.xlu0
    %v3938 = vpop.trf.xlu0
    %v3939 = vpop.trf.xlu0
    %v3940 = vpop.trf.xlu0
    %v3941 = vpop.trf.xlu0
    %v3942 = vpop.trf.xlu0
    %v3943 = vpop.trf.xlu0
    %v3944 = vpop.trf.xlu0
    %v3945 = vpop.trf.xlu0
    %v3946 = vpop.trf.xlu0
    %3947 = vxpose.xlu0.b32.start [1/16] %v2795, 128
    %3948 = vxpose.xlu0.b32.cont [2/16] 0.0, 128
    %3949 = vxpose.xlu0.b32.cont [3/16] 0.0, 128
    %3950 = vxpose.xlu0.b32.cont [4/16] 0.0, 128
    %3951 = vxpose.xlu0.b32.cont [5/16] 0.0, 128
    %3952 = vxpose.xlu0.b32.cont [6/16] 0.0, 128
    %3953 = vxpose.xlu0.b32.cont [7/16] 0.0, 128
    %3954 = vxpose.xlu0.b32.cont [8/16] 0.0, 128
    %3955 = vxpose.xlu0.b32.cont [9/16] 0.0, 128
    %3956 = vxpose.xlu0.b32.cont [10/16] 0.0, 128
    %3957 = vxpose.xlu0.b32.cont [11/16] 0.0, 128
    %3958 = vxpose.xlu0.b32.cont [12/16] 0.0, 128
    %3959 = vxpose.xlu0.b32.cont [13/16] 0.0, 128
    %3960 = vxpose.xlu0.b32.cont [14/16] 0.0, 128
    %3961 = vxpose.xlu0.b32.cont [15/16] 0.0, 128
    %3962 = vxpose.xlu0.b32.end [16/16] 0.0, 128
    %v3963 = vpop.trf.xlu0
    %v3964 = vpop.trf.xlu0
    %v3965 = vpop.trf.xlu0
    %v3966 = vpop.trf.xlu0
    %v3967 = vpop.trf.xlu0
    %v3968 = vpop.trf.xlu0
    %v3969 = vpop.trf.xlu0
    %v3970 = vpop.trf.xlu0
    %v3971 = vpop.trf.xlu0
    %v3972 = vpop.trf.xlu0
    %v3973 = vpop.trf.xlu0
    %v3974 = vpop.trf.xlu0
    %v3975 = vpop.trf.xlu0
    %v3976 = vpop.trf.xlu0
    %v3977 = vpop.trf.xlu0
    %v3978 = vpop.trf.xlu0
    %3979 = vxpose.xlu0.b32.start [1/16] %v2792, 128
    %3980 = vxpose.xlu0.b32.cont [2/16] 0.0, 128
    %3981 = vxpose.xlu0.b32.cont [3/16] 0.0, 128
    %3982 = vxpose.xlu0.b32.cont [4/16] 0.0, 128
    %3983 = vxpose.xlu0.b32.cont [5/16] 0.0, 128
    %3984 = vxpose.xlu0.b32.cont [6/16] 0.0, 128
    %3985 = vxpose.xlu0.b32.cont [7/16] 0.0, 128
    %3986 = vxpose.xlu0.b32.cont [8/16] 0.0, 128
    %3987 = vxpose.xlu0.b32.cont [9/16] 0.0, 128
    %3988 = vxpose.xlu0.b32.cont [10/16] 0.0, 128
    %3989 = vxpose.xlu0.b32.cont [11/16] 0.0, 128
    %3990 = vxpose.xlu0.b32.cont [12/16] 0.0, 128
    %3991 = vxpose.xlu0.b32.cont [13/16] 0.0, 128
    %3992 = vxpose.xlu0.b32.cont [14/16] 0.0, 128
    %3993 = vxpose.xlu0.b32.cont [15/16] 0.0, 128
    %3994 = vxpose.xlu0.b32.end [16/16] 0.0, 128
    %v3995 = vpop.trf.xlu0
    %v3996 = vpop.trf.xlu0
    %v3997 = vpop.trf.xlu0
    %v3998 = vpop.trf.xlu0
    %v3999 = vpop.trf.xlu0
    %v4000 = vpop.trf.xlu0
    %v4001 = vpop.trf.xlu0
    %v4002 = vpop.trf.xlu0
    %v4003 = vpop.trf.xlu0
    %v4004 = vpop.trf.xlu0
    %v4005 = vpop.trf.xlu0
    %v4006 = vpop.trf.xlu0
    %v4007 = vpop.trf.xlu0
    %v4008 = vpop.trf.xlu0
    %v4009 = vpop.trf.xlu0
    %v4010 = vpop.trf.xlu0
    %4011 = vxpose.xlu0.b32.start [1/16] %v2796, 128
    %4012 = vxpose.xlu0.b32.cont [2/16] 0.0, 128
    %4013 = vxpose.xlu0.b32.cont [3/16] 0.0, 128
    %4014 = vxpose.xlu0.b32.cont [4/16] 0.0, 128
    %4015 = vxpose.xlu0.b32.cont [5/16] 0.0, 128
    %4016 = vxpose.xlu0.b32.cont [6/16] 0.0, 128
    %4017 = vxpose.xlu0.b32.cont [7/16] 0.0, 128
    %4018 = vxpose.xlu0.b32.cont [8/16] 0.0, 128
    %4019 = vxpose.xlu0.b32.cont [9/16] 0.0, 128
    %4020 = vxpose.xlu0.b32.cont [10/16] 0.0, 128
    %4021 = vxpose.xlu0.b32.cont [11/16] 0.0, 128
    %4022 = vxpose.xlu0.b32.cont [12/16] 0.0, 128
    %4023 = vxpose.xlu0.b32.cont [13/16] 0.0, 128
    %4024 = vxpose.xlu0.b32.cont [14/16] 0.0, 128
    %4025 = vxpose.xlu0.b32.cont [15/16] 0.0, 128
    %4026 = vxpose.xlu0.b32.end [16/16] 0.0, 128
    %v4027 = vpop.trf.xlu0
    %v4028 = vpop.trf.xlu0
    %v4029 = vpop.trf.xlu0
    %v4030 = vpop.trf.xlu0
    %v4031 = vpop.trf.xlu0
    %v4032 = vpop.trf.xlu0
    %v4033 = vpop.trf.xlu0
    %v4034 = vpop.trf.xlu0
    %v4035 = vpop.trf.xlu0
    %v4036 = vpop.trf.xlu0
    %v4037 = vpop.trf.xlu0
    %v4038 = vpop.trf.xlu0
    %v4039 = vpop.trf.xlu0
    %v4040 = vpop.trf.xlu0
    %v4041 = vpop.trf.xlu0
    %v4042 = vpop.trf.xlu0
    %4043 = vxpose.xlu0.b32.start [1/16] %v2835, 128
    %4044 = vxpose.xlu0.b32.cont [2/16] 0.0, 128
    %4045 = vxpose.xlu0.b32.cont [3/16] 0.0, 128
    %4046 = vxpose.xlu0.b32.cont [4/16] 0.0, 128
    %4047 = vxpose.xlu0.b32.cont [5/16] 0.0, 128
    %4048 = vxpose.xlu0.b32.cont [6/16] 0.0, 128
    %4049 = vxpose.xlu0.b32.cont [7/16] 0.0, 128
    %4050 = vxpose.xlu0.b32.cont [8/16] 0.0, 128
    %4051 = vxpose.xlu0.b32.cont [9/16] 0.0, 128
    %4052 = vxpose.xlu0.b32.cont [10/16] 0.0, 128
    %4053 = vxpose.xlu0.b32.cont [11/16] 0.0, 128
    %4054 = vxpose.xlu0.b32.cont [12/16] 0.0, 128
    %4055 = vxpose.xlu0.b32.cont [13/16] 0.0, 128
    %4056 = vxpose.xlu0.b32.cont [14/16] 0.0, 128
    %4057 = vxpose.xlu0.b32.cont [15/16] 0.0, 128
    %4058 = vxpose.xlu0.b32.end [16/16] 0.0, 128
    %v4059 = vpop.trf.xlu0
    %v4060 = vpop.trf.xlu0
    %v4061 = vpop.trf.xlu0
    %v4062 = vpop.trf.xlu0
    %v4063 = vpop.trf.xlu0
    %v4064 = vpop.trf.xlu0
    %v4065 = vpop.trf.xlu0
    %v4066 = vpop.trf.xlu0
    %v4067 = vpop.trf.xlu0
    %v4068 = vpop.trf.xlu0
    %v4069 = vpop.trf.xlu0
    %v4070 = vpop.trf.xlu0
    %v4071 = vpop.trf.xlu0
    %v4072 = vpop.trf.xlu0
    %v4073 = vpop.trf.xlu0
    %v4074 = vpop.trf.xlu0
    %4075 = vxpose.xlu0.b32.start [1/16] %v2859, 128
    %4076 = vxpose.xlu0.b32.cont [2/16] 0.0, 128
    %4077 = vxpose.xlu0.b32.cont [3/16] 0.0, 128
    %4078 = vxpose.xlu0.b32.cont [4/16] 0.0, 128
    %4079 = vxpose.xlu0.b32.cont [5/16] 0.0, 128
    %4080 = vxpose.xlu0.b32.cont [6/16] 0.0, 128
    %4081 = vxpose.xlu0.b32.cont [7/16] 0.0, 128
    %4082 = vxpose.xlu0.b32.cont [8/16] 0.0, 128
    %4083 = vxpose.xlu0.b32.cont [9/16] 0.0, 128
    %4084 = vxpose.xlu0.b32.cont [10/16] 0.0, 128
    %4085 = vxpose.xlu0.b32.cont [11/16] 0.0, 128
    %4086 = vxpose.xlu0.b32.cont [12/16] 0.0, 128
    %4087 = vxpose.xlu0.b32.cont [13/16] 0.0, 128
    %4088 = vxpose.xlu0.b32.cont [14/16] 0.0, 128
    %4089 = vxpose.xlu0.b32.cont [15/16] 0.0, 128
    %4090 = vxpose.xlu0.b32.end [16/16] 0.0, 128
    %v4091 = vpop.trf.xlu0
    %v4092 = vpop.trf.xlu0
    %v4093 = vpop.trf.xlu0
    %v4094 = vpop.trf.xlu0
    %v4095 = vpop.trf.xlu0
    %v4096 = vpop.trf.xlu0
    %v4097 = vpop.trf.xlu0
    %v4098 = vpop.trf.xlu0
    %v4099 = vpop.trf.xlu0
    %v4100 = vpop.trf.xlu0
    %v4101 = vpop.trf.xlu0
    %v4102 = vpop.trf.xlu0
    %v4103 = vpop.trf.xlu0
    %v4104 = vpop.trf.xlu0
    %v4105 = vpop.trf.xlu0
    %v4106 = vpop.trf.xlu0
    %4107 = vxpose.xlu0.b32.start [1/16] %v2842, 128
    %4108 = vxpose.xlu0.b32.cont [2/16] 0.0, 128
    %4109 = vxpose.xlu0.b32.cont [3/16] 0.0, 128
    %4110 = vxpose.xlu0.b32.cont [4/16] 0.0, 128
    %4111 = vxpose.xlu0.b32.cont [5/16] 0.0, 128
    %4112 = vxpose.xlu0.b32.cont [6/16] 0.0, 128
    %4113 = vxpose.xlu0.b32.cont [7/16] 0.0, 128
    %4114 = vxpose.xlu0.b32.cont [8/16] 0.0, 128
    %4115 = vxpose.xlu0.b32.cont [9/16] 0.0, 128
    %4116 = vxpose.xlu0.b32.cont [10/16] 0.0, 128
    %4117 = vxpose.xlu0.b32.cont [11/16] 0.0, 128
    %4118 = vxpose.xlu0.b32.cont [12/16] 0.0, 128
    %4119 = vxpose.xlu0.b32.cont [13/16] 0.0, 128
    %4120 = vxpose.xlu0.b32.cont [14/16] 0.0, 128
    %4121 = vxpose.xlu0.b32.cont [15/16] 0.0, 128
    %4122 = vxpose.xlu0.b32.end [16/16] 0.0, 128
    %v4123 = vpop.trf.xlu0
    %v4124 = vpop.trf.xlu0
    %v4125 = vpop.trf.xlu0
    %v4126 = vpop.trf.xlu0
    %v4127 = vpop.trf.xlu0
    %v4128 = vpop.trf.xlu0
    %v4129 = vpop.trf.xlu0
    %v4130 = vpop.trf.xlu0
    %v4131 = vpop.trf.xlu0
    %v4132 = vpop.trf.xlu0
    %v4133 = vpop.trf.xlu0
    %v4134 = vpop.trf.xlu0
    %v4135 = vpop.trf.xlu0
    %v4136 = vpop.trf.xlu0
    %v4137 = vpop.trf.xlu0
    %v4138 = vpop.trf.xlu0
    %4139 = vxpose.xlu0.b32.start [1/16] %v2860, 128
    %4140 = vxpose.xlu0.b32.cont [2/16] 0.0, 128
    %4141 = vxpose.xlu0.b32.cont [3/16] 0.0, 128
    %4142 = vxpose.xlu0.b32.cont [4/16] 0.0, 128
    %4143 = vxpose.xlu0.b32.cont [5/16] 0.0, 128
    %4144 = vxpose.xlu0.b32.cont [6/16] 0.0, 128
    %4145 = vxpose.xlu0.b32.cont [7/16] 0.0, 128
    %4146 = vxpose.xlu0.b32.cont [8/16] 0.0, 128
    %4147 = vxpose.xlu0.b32.cont [9/16] 0.0, 128
    %4148 = vxpose.xlu0.b32.cont [10/16] 0.0, 128
    %4149 = vxpose.xlu0.b32.cont [11/16] 0.0, 128
    %4150 = vxpose.xlu0.b32.cont [12/16] 0.0, 128
    %4151 = vxpose.xlu0.b32.cont [13/16] 0.0, 128
    %4152 = vxpose.xlu0.b32.cont [14/16] 0.0, 128
    %4153 = vxpose.xlu0.b32.cont [15/16] 0.0, 128
    %4154 = vxpose.xlu0.b32.end [16/16] 0.0, 128
    %v4155 = vpop.trf.xlu0
    %v4156 = vpop.trf.xlu0
    %v4157 = vpop.trf.xlu0
    %v4158 = vpop.trf.xlu0
    %v4159 = vpop.trf.xlu0
    %v4160 = vpop.trf.xlu0
    %v4161 = vpop.trf.xlu0
    %v4162 = vpop.trf.xlu0
    %v4163 = vpop.trf.xlu0
    %v4164 = vpop.trf.xlu0
    %v4165 = vpop.trf.xlu0
    %v4166 = vpop.trf.xlu0
    %v4167 = vpop.trf.xlu0
    %v4168 = vpop.trf.xlu0
    %v4169 = vpop.trf.xlu0
    %v4170 = vpop.trf.xlu0
    %4171 = vxpose.xlu0.b32.start [1/16] %v2851, 128
    %4172 = vxpose.xlu0.b32.cont [2/16] 0.0, 128
    %4173 = vxpose.xlu0.b32.cont [3/16] 0.0, 128
    %4174 = vxpose.xlu0.b32.cont [4/16] 0.0, 128
    %4175 = vxpose.xlu0.b32.cont [5/16] 0.0, 128
    %4176 = vxpose.xlu0.b32.cont [6/16] 0.0, 128
    %4177 = vxpose.xlu0.b32.cont [7/16] 0.0, 128
    %4178 = vxpose.xlu0.b32.cont [8/16] 0.0, 128
    %4179 = vxpose.xlu0.b32.cont [9/16] 0.0, 128
    %4180 = vxpose.xlu0.b32.cont [10/16] 0.0, 128
    %4181 = vxpose.xlu0.b32.cont [11/16] 0.0, 128
    %4182 = vxpose.xlu0.b32.cont [12/16] 0.0, 128
    %4183 = vxpose.xlu0.b32.cont [13/16] 0.0, 128
    %4184 = vxpose.xlu0.b32.cont [14/16] 0.0, 128
    %4185 = vxpose.xlu0.b32.cont [15/16] 0.0, 128
    %4186 = vxpose.xlu0.b32.end [16/16] 0.0, 128
    %v4187 = vpop.trf.xlu0
    %v4188 = vpop.trf.xlu0
    %v4189 = vpop.trf.xlu0
    %v4190 = vpop.trf.xlu0
    %v4191 = vpop.trf.xlu0
    %v4192 = vpop.trf.xlu0
    %v4193 = vpop.trf.xlu0
    %v4194 = vpop.trf.xlu0
    %v4195 = vpop.trf.xlu0
    %v4196 = vpop.trf.xlu0
    %v4197 = vpop.trf.xlu0
    %v4198 = vpop.trf.xlu0
    %v4199 = vpop.trf.xlu0
    %v4200 = vpop.trf.xlu0
    %v4201 = vpop.trf.xlu0
    %v4202 = vpop.trf.xlu0
    %4203 = vxpose.xlu0.b32.start [1/16] %v2861, 128
    %4204 = vxpose.xlu0.b32.cont [2/16] 0.0, 128
    %4205 = vxpose.xlu0.b32.cont [3/16] 0.0, 128
    %4206 = vxpose.xlu0.b32.cont [4/16] 0.0, 128
    %4207 = vxpose.xlu0.b32.cont [5/16] 0.0, 128
    %4208 = vxpose.xlu0.b32.cont [6/16] 0.0, 128
    %4209 = vxpose.xlu0.b32.cont [7/16] 0.0, 128
    %4210 = vxpose.xlu0.b32.cont [8/16] 0.0, 128
    %4211 = vxpose.xlu0.b32.cont [9/16] 0.0, 128
    %4212 = vxpose.xlu0.b32.cont [10/16] 0.0, 128
    %4213 = vxpose.xlu0.b32.cont [11/16] 0.0, 128
    %4214 = vxpose.xlu0.b32.cont [12/16] 0.0, 128
    %4215 = vxpose.xlu0.b32.cont [13/16] 0.0, 128
    %4216 = vxpose.xlu0.b32.cont [14/16] 0.0, 128
    %4217 = vxpose.xlu0.b32.cont [15/16] 0.0, 128
    %4218 = vxpose.xlu0.b32.end [16/16] 0.0, 128
    %v4219 = vpop.trf.xlu0
    %v4220 = vpop.trf.xlu0
    %v4221 = vpop.trf.xlu0
    %v4222 = vpop.trf.xlu0
    %v4223 = vpop.trf.xlu0
    %v4224 = vpop.trf.xlu0
    %v4225 = vpop.trf.xlu0
    %v4226 = vpop.trf.xlu0
    %v4227 = vpop.trf.xlu0
    %v4228 = vpop.trf.xlu0
    %v4229 = vpop.trf.xlu0
    %v4230 = vpop.trf.xlu0
    %v4231 = vpop.trf.xlu0
    %v4232 = vpop.trf.xlu0
    %v4233 = vpop.trf.xlu0
    %v4234 = vpop.trf.xlu0
    %4235 = vxpose.xlu0.b32.start [1/16] %v2858, 128
    %4236 = vxpose.xlu0.b32.cont [2/16] 0.0, 128
    %4237 = vxpose.xlu0.b32.cont [3/16] 0.0, 128
    %4238 = vxpose.xlu0.b32.cont [4/16] 0.0, 128
    %4239 = vxpose.xlu0.b32.cont [5/16] 0.0, 128
    %4240 = vxpose.xlu0.b32.cont [6/16] 0.0, 128
    %4241 = vxpose.xlu0.b32.cont [7/16] 0.0, 128
    %4242 = vxpose.xlu0.b32.cont [8/16] 0.0, 128
    %4243 = vxpose.xlu0.b32.cont [9/16] 0.0, 128
    %4244 = vxpose.xlu0.b32.cont [10/16] 0.0, 128
    %4245 = vxpose.xlu0.b32.cont [11/16] 0.0, 128
    %4246 = vxpose.xlu0.b32.cont [12/16] 0.0, 128
    %4247 = vxpose.xlu0.b32.cont [13/16] 0.0, 128
    %4248 = vxpose.xlu0.b32.cont [14/16] 0.0, 128
    %4249 = vxpose.xlu0.b32.cont [15/16] 0.0, 128
    %4250 = vxpose.xlu0.b32.end [16/16] 0.0, 128
    %v4251 = vpop.trf.xlu0
    %v4252 = vpop.trf.xlu0
    %v4253 = vpop.trf.xlu0
    %v4254 = vpop.trf.xlu0
    %v4255 = vpop.trf.xlu0
    %v4256 = vpop.trf.xlu0
    %v4257 = vpop.trf.xlu0
    %v4258 = vpop.trf.xlu0
    %v4259 = vpop.trf.xlu0
    %v4260 = vpop.trf.xlu0
    %v4261 = vpop.trf.xlu0
    %v4262 = vpop.trf.xlu0
    %v4263 = vpop.trf.xlu0
    %v4264 = vpop.trf.xlu0
    %v4265 = vpop.trf.xlu0
    %v4266 = vpop.trf.xlu0
    %4267 = vxpose.xlu0.b32.start [1/16] %v2862, 128
    %4268 = vxpose.xlu0.b32.cont [2/16] 0.0, 128
    %4269 = vxpose.xlu0.b32.cont [3/16] 0.0, 128
    %4270 = vxpose.xlu0.b32.cont [4/16] 0.0, 128
    %4271 = vxpose.xlu0.b32.cont [5/16] 0.0, 128
    %4272 = vxpose.xlu0.b32.cont [6/16] 0.0, 128
    %4273 = vxpose.xlu0.b32.cont [7/16] 0.0, 128
    %4274 = vxpose.xlu0.b32.cont [8/16] 0.0, 128
    %4275 = vxpose.xlu0.b32.cont [9/16] 0.0, 128
    %4276 = vxpose.xlu0.b32.cont [10/16] 0.0, 128
    %4277 = vxpose.xlu0.b32.cont [11/16] 0.0, 128
    %4278 = vxpose.xlu0.b32.cont [12/16] 0.0, 128
    %4279 = vxpose.xlu0.b32.cont [13/16] 0.0, 128
    %4280 = vxpose.xlu0.b32.cont [14/16] 0.0, 128
    %4281 = vxpose.xlu0.b32.cont [15/16] 0.0, 128
    %4282 = vxpose.xlu0.b32.end [16/16] 0.0, 128
    %v4283 = vpop.trf.xlu0
    %v4284 = vpop.trf.xlu0
    %v4285 = vpop.trf.xlu0
    %v4286 = vpop.trf.xlu0
    %v4287 = vpop.trf.xlu0
    %v4288 = vpop.trf.xlu0
    %v4289 = vpop.trf.xlu0
    %v4290 = vpop.trf.xlu0
    %v4291 = vpop.trf.xlu0
    %v4292 = vpop.trf.xlu0
    %v4293 = vpop.trf.xlu0
    %v4294 = vpop.trf.xlu0
    %v4295 = vpop.trf.xlu0
    %v4296 = vpop.trf.xlu0
    %v4297 = vpop.trf.xlu0
    %v4298 = vpop.trf.xlu0
    %4299 = vxpose.xlu0.b32.start [1/16] %v2901, 128
    %4300 = vxpose.xlu0.b32.cont [2/16] 0.0, 128
    %4301 = vxpose.xlu0.b32.cont [3/16] 0.0, 128
    %4302 = vxpose.xlu0.b32.cont [4/16] 0.0, 128
    %4303 = vxpose.xlu0.b32.cont [5/16] 0.0, 128
    %4304 = vxpose.xlu0.b32.cont [6/16] 0.0, 128
    %4305 = vxpose.xlu0.b32.cont [7/16] 0.0, 128
    %4306 = vxpose.xlu0.b32.cont [8/16] 0.0, 128
    %4307 = vxpose.xlu0.b32.cont [9/16] 0.0, 128
    %4308 = vxpose.xlu0.b32.cont [10/16] 0.0, 128
    %4309 = vxpose.xlu0.b32.cont [11/16] 0.0, 128
    %4310 = vxpose.xlu0.b32.cont [12/16] 0.0, 128
    %4311 = vxpose.xlu0.b32.cont [13/16] 0.0, 128
    %4312 = vxpose.xlu0.b32.cont [14/16] 0.0, 128
    %4313 = vxpose.xlu0.b32.cont [15/16] 0.0, 128
    %4314 = vxpose.xlu0.b32.end [16/16] 0.0, 128
    %v4315 = vpop.trf.xlu0
    %v4316 = vpop.trf.xlu0
    %v4317 = vpop.trf.xlu0
    %v4318 = vpop.trf.xlu0
    %v4319 = vpop.trf.xlu0
    %v4320 = vpop.trf.xlu0
    %v4321 = vpop.trf.xlu0
    %v4322 = vpop.trf.xlu0
    %v4323 = vpop.trf.xlu0
    %v4324 = vpop.trf.xlu0
    %v4325 = vpop.trf.xlu0
    %v4326 = vpop.trf.xlu0
    %v4327 = vpop.trf.xlu0
    %v4328 = vpop.trf.xlu0
    %v4329 = vpop.trf.xlu0
    %v4330 = vpop.trf.xlu0
    %4331 = vxpose.xlu0.b32.start [1/16] %v2925, 128
    %4332 = vxpose.xlu0.b32.cont [2/16] 0.0, 128
    %4333 = vxpose.xlu0.b32.cont [3/16] 0.0, 128
    %4334 = vxpose.xlu0.b32.cont [4/16] 0.0, 128
    %4335 = vxpose.xlu0.b32.cont [5/16] 0.0, 128
    %4336 = vxpose.xlu0.b32.cont [6/16] 0.0, 128
    %4337 = vxpose.xlu0.b32.cont [7/16] 0.0, 128
    %4338 = vxpose.xlu0.b32.cont [8/16] 0.0, 128
    %4339 = vxpose.xlu0.b32.cont [9/16] 0.0, 128
    %4340 = vxpose.xlu0.b32.cont [10/16] 0.0, 128
    %4341 = vxpose.xlu0.b32.cont [11/16] 0.0, 128
    %4342 = vxpose.xlu0.b32.cont [12/16] 0.0, 128
    %4343 = vxpose.xlu0.b32.cont [13/16] 0.0, 128
    %4344 = vxpose.xlu0.b32.cont [14/16] 0.0, 128
    %4345 = vxpose.xlu0.b32.cont [15/16] 0.0, 128
    %4346 = vxpose.xlu0.b32.end [16/16] 0.0, 128
    %v4347 = vpop.trf.xlu0
    %v4348 = vpop.trf.xlu0
    %v4349 = vpop.trf.xlu0
    %v4350 = vpop.trf.xlu0
    %v4351 = vpop.trf.xlu0
    %v4352 = vpop.trf.xlu0
    %v4353 = vpop.trf.xlu0
    %v4354 = vpop.trf.xlu0
    %v4355 = vpop.trf.xlu0
    %v4356 = vpop.trf.xlu0
    %v4357 = vpop.trf.xlu0
    %v4358 = vpop.trf.xlu0
    %v4359 = vpop.trf.xlu0
    %v4360 = vpop.trf.xlu0
    %v4361 = vpop.trf.xlu0
    %v4362 = vpop.trf.xlu0
    %4363 = vxpose.xlu0.b32.start [1/16] %v2908, 128
    %4364 = vxpose.xlu0.b32.cont [2/16] 0.0, 128
    %4365 = vxpose.xlu0.b32.cont [3/16] 0.0, 128
    %4366 = vxpose.xlu0.b32.cont [4/16] 0.0, 128
    %4367 = vxpose.xlu0.b32.cont [5/16] 0.0, 128
    %4368 = vxpose.xlu0.b32.cont [6/16] 0.0, 128
    %4369 = vxpose.xlu0.b32.cont [7/16] 0.0, 128
    %4370 = vxpose.xlu0.b32.cont [8/16] 0.0, 128
    %4371 = vxpose.xlu0.b32.cont [9/16] 0.0, 128
    %4372 = vxpose.xlu0.b32.cont [10/16] 0.0, 128
    %4373 = vxpose.xlu0.b32.cont [11/16] 0.0, 128
    %4374 = vxpose.xlu0.b32.cont [12/16] 0.0, 128
    %4375 = vxpose.xlu0.b32.cont [13/16] 0.0, 128
    %4376 = vxpose.xlu0.b32.cont [14/16] 0.0, 128
    %4377 = vxpose.xlu0.b32.cont [15/16] 0.0, 128
    %4378 = vxpose.xlu0.b32.end [16/16] 0.0, 128
    %v4379 = vpop.trf.xlu0
    %v4380 = vpop.trf.xlu0
    %v4381 = vpop.trf.xlu0
    %v4382 = vpop.trf.xlu0
    %v4383 = vpop.trf.xlu0
    %v4384 = vpop.trf.xlu0
    %v4385 = vpop.trf.xlu0
    %v4386 = vpop.trf.xlu0
    %v4387 = vpop.trf.xlu0
    %v4388 = vpop.trf.xlu0
    %v4389 = vpop.trf.xlu0
    %v4390 = vpop.trf.xlu0
    %v4391 = vpop.trf.xlu0
    %v4392 = vpop.trf.xlu0
    %v4393 = vpop.trf.xlu0
    %v4394 = vpop.trf.xlu0
    %4395 = vxpose.xlu0.b32.start [1/16] %v2926, 128
    %4396 = vxpose.xlu0.b32.cont [2/16] 0.0, 128
    %4397 = vxpose.xlu0.b32.cont [3/16] 0.0, 128
    %4398 = vxpose.xlu0.b32.cont [4/16] 0.0, 128
    %4399 = vxpose.xlu0.b32.cont [5/16] 0.0, 128
    %4400 = vxpose.xlu0.b32.cont [6/16] 0.0, 128
    %4401 = vxpose.xlu0.b32.cont [7/16] 0.0, 128
    %4402 = vxpose.xlu0.b32.cont [8/16] 0.0, 128
    %4403 = vxpose.xlu0.b32.cont [9/16] 0.0, 128
    %4404 = vxpose.xlu0.b32.cont [10/16] 0.0, 128
    %4405 = vxpose.xlu0.b32.cont [11/16] 0.0, 128
    %4406 = vxpose.xlu0.b32.cont [12/16] 0.0, 128
    %4407 = vxpose.xlu0.b32.cont [13/16] 0.0, 128
    %4408 = vxpose.xlu0.b32.cont [14/16] 0.0, 128
    %4409 = vxpose.xlu0.b32.cont [15/16] 0.0, 128
    %4410 = vxpose.xlu0.b32.end [16/16] 0.0, 128
    %v4411 = vpop.trf.xlu0
    %v4412 = vpop.trf.xlu0
    %v4413 = vpop.trf.xlu0
    %v4414 = vpop.trf.xlu0
    %v4415 = vpop.trf.xlu0
    %v4416 = vpop.trf.xlu0
    %v4417 = vpop.trf.xlu0
    %v4418 = vpop.trf.xlu0
    %v4419 = vpop.trf.xlu0
    %v4420 = vpop.trf.xlu0
    %v4421 = vpop.trf.xlu0
    %v4422 = vpop.trf.xlu0
    %v4423 = vpop.trf.xlu0
    %v4424 = vpop.trf.xlu0
    %v4425 = vpop.trf.xlu0
    %v4426 = vpop.trf.xlu0
    %4427 = vxpose.xlu0.b32.start [1/16] %v2917, 128
    %4428 = vxpose.xlu0.b32.cont [2/16] 0.0, 128
    %4429 = vxpose.xlu0.b32.cont [3/16] 0.0, 128
    %4430 = vxpose.xlu0.b32.cont [4/16] 0.0, 128
    %4431 = vxpose.xlu0.b32.cont [5/16] 0.0, 128
    %4432 = vxpose.xlu0.b32.cont [6/16] 0.0, 128
    %4433 = vxpose.xlu0.b32.cont [7/16] 0.0, 128
    %4434 = vxpose.xlu0.b32.cont [8/16] 0.0, 128
    %4435 = vxpose.xlu0.b32.cont [9/16] 0.0, 128
    %4436 = vxpose.xlu0.b32.cont [10/16] 0.0, 128
    %4437 = vxpose.xlu0.b32.cont [11/16] 0.0, 128
    %4438 = vxpose.xlu0.b32.cont [12/16] 0.0, 128
    %4439 = vxpose.xlu0.b32.cont [13/16] 0.0, 128
    %4440 = vxpose.xlu0.b32.cont [14/16] 0.0, 128
    %4441 = vxpose.xlu0.b32.cont [15/16] 0.0, 128
    %4442 = vxpose.xlu0.b32.end [16/16] 0.0, 128
    %v4443 = vpop.trf.xlu0
    %v4444 = vpop.trf.xlu0
    %v4445 = vpop.trf.xlu0
    %v4446 = vpop.trf.xlu0
    %v4447 = vpop.trf.xlu0
    %v4448 = vpop.trf.xlu0
    %v4449 = vpop.trf.xlu0
    %v4450 = vpop.trf.xlu0
    %v4451 = vpop.trf.xlu0
    %v4452 = vpop.trf.xlu0
    %v4453 = vpop.trf.xlu0
    %v4454 = vpop.trf.xlu0
    %v4455 = vpop.trf.xlu0
    %v4456 = vpop.trf.xlu0
    %v4457 = vpop.trf.xlu0
    %v4458 = vpop.trf.xlu0
    %4459 = vxpose.xlu0.b32.start [1/16] %v2927, 128
    %4460 = vxpose.xlu0.b32.cont [2/16] 0.0, 128
    %4461 = vxpose.xlu0.b32.cont [3/16] 0.0, 128
    %4462 = vxpose.xlu0.b32.cont [4/16] 0.0, 128
    %4463 = vxpose.xlu0.b32.cont [5/16] 0.0, 128
    %4464 = vxpose.xlu0.b32.cont [6/16] 0.0, 128
    %4465 = vxpose.xlu0.b32.cont [7/16] 0.0, 128
    %4466 = vxpose.xlu0.b32.cont [8/16] 0.0, 128
    %4467 = vxpose.xlu0.b32.cont [9/16] 0.0, 128
    %4468 = vxpose.xlu0.b32.cont [10/16] 0.0, 128
    %4469 = vxpose.xlu0.b32.cont [11/16] 0.0, 128
    %4470 = vxpose.xlu0.b32.cont [12/16] 0.0, 128
    %4471 = vxpose.xlu0.b32.cont [13/16] 0.0, 128
    %4472 = vxpose.xlu0.b32.cont [14/16] 0.0, 128
    %4473 = vxpose.xlu0.b32.cont [15/16] 0.0, 128
    %4474 = vxpose.xlu0.b32.end [16/16] 0.0, 128
    %v4475 = vpop.trf.xlu0
    %v4476 = vpop.trf.xlu0
    %v4477 = vpop.trf.xlu0
    %v4478 = vpop.trf.xlu0
    %v4479 = vpop.trf.xlu0
    %v4480 = vpop.trf.xlu0
    %v4481 = vpop.trf.xlu0
    %v4482 = vpop.trf.xlu0
    %v4483 = vpop.trf.xlu0
    %v4484 = vpop.trf.xlu0
    %v4485 = vpop.trf.xlu0
    %v4486 = vpop.trf.xlu0
    %v4487 = vpop.trf.xlu0
    %v4488 = vpop.trf.xlu0
    %v4489 = vpop.trf.xlu0
    %v4490 = vpop.trf.xlu0
    %4491 = vxpose.xlu0.b32.start [1/16] %v2924, 128
    %4492 = vxpose.xlu0.b32.cont [2/16] 0.0, 128
    %4493 = vxpose.xlu0.b32.cont [3/16] 0.0, 128
    %4494 = vxpose.xlu0.b32.cont [4/16] 0.0, 128
    %4495 = vxpose.xlu0.b32.cont [5/16] 0.0, 128
    %4496 = vxpose.xlu0.b32.cont [6/16] 0.0, 128
    %4497 = vxpose.xlu0.b32.cont [7/16] 0.0, 128
    %4498 = vxpose.xlu0.b32.cont [8/16] 0.0, 128
    %4499 = vxpose.xlu0.b32.cont [9/16] 0.0, 128
    %4500 = vxpose.xlu0.b32.cont [10/16] 0.0, 128
    %4501 = vxpose.xlu0.b32.cont [11/16] 0.0, 128
    %4502 = vxpose.xlu0.b32.cont [12/16] 0.0, 128
    %4503 = vxpose.xlu0.b32.cont [13/16] 0.0, 128
    %4504 = vxpose.xlu0.b32.cont [14/16] 0.0, 128
    %4505 = vxpose.xlu0.b32.cont [15/16] 0.0, 128
    %4506 = vxpose.xlu0.b32.end [16/16] 0.0, 128
    %v4507 = vpop.trf.xlu0
    %v4508 = vpop.trf.xlu0
    %v4509 = vpop.trf.xlu0
    %v4510 = vpop.trf.xlu0
    %v4511 = vpop.trf.xlu0
    %v4512 = vpop.trf.xlu0
    %v4513 = vpop.trf.xlu0
    %v4514 = vpop.trf.xlu0
    %v4515 = vpop.trf.xlu0
    %v4516 = vpop.trf.xlu0
    %v4517 = vpop.trf.xlu0
    %v4518 = vpop.trf.xlu0
    %v4519 = vpop.trf.xlu0
    %v4520 = vpop.trf.xlu0
    %v4521 = vpop.trf.xlu0
    %v4522 = vpop.trf.xlu0
    %4523 = vxpose.xlu0.b32.start [1/16] %v2928, 128
    %4524 = vxpose.xlu0.b32.cont [2/16] 0.0, 128
    %4525 = vxpose.xlu0.b32.cont [3/16] 0.0, 128
    %4526 = vxpose.xlu0.b32.cont [4/16] 0.0, 128
    %4527 = vxpose.xlu0.b32.cont [5/16] 0.0, 128
    %4528 = vxpose.xlu0.b32.cont [6/16] 0.0, 128
    %4529 = vxpose.xlu0.b32.cont [7/16] 0.0, 128
    %4530 = vxpose.xlu0.b32.cont [8/16] 0.0, 128
    %4531 = vxpose.xlu0.b32.cont [9/16] 0.0, 128
    %4532 = vxpose.xlu0.b32.cont [10/16] 0.0, 128
    %4533 = vxpose.xlu0.b32.cont [11/16] 0.0, 128
    %4534 = vxpose.xlu0.b32.cont [12/16] 0.0, 128
    %4535 = vxpose.xlu0.b32.cont [13/16] 0.0, 128
    %4536 = vxpose.xlu0.b32.cont [14/16] 0.0, 128
    %4537 = vxpose.xlu0.b32.cont [15/16] 0.0, 128
    %4538 = vxpose.xlu0.b32.end [16/16] 0.0, 128
    %v4539 = vpop.trf.xlu0
    %v4540 = vpop.trf.xlu0
    %v4541 = vpop.trf.xlu0
    %v4542 = vpop.trf.xlu0
    %v4543 = vpop.trf.xlu0
    %v4544 = vpop.trf.xlu0
    %v4545 = vpop.trf.xlu0
    %v4546 = vpop.trf.xlu0
    %v4547 = vpop.trf.xlu0
    %v4548 = vpop.trf.xlu0
    %v4549 = vpop.trf.xlu0
    %v4550 = vpop.trf.xlu0
    %v4551 = vpop.trf.xlu0
    %v4552 = vpop.trf.xlu0
    %v4553 = vpop.trf.xlu0
    %v4554 = vpop.trf.xlu0
    %4555 = vxpose.xlu0.b32.start [1/16] %v2967, 128
    %4556 = vxpose.xlu0.b32.cont [2/16] 0.0, 128
    %4557 = vxpose.xlu0.b32.cont [3/16] 0.0, 128
    %4558 = vxpose.xlu0.b32.cont [4/16] 0.0, 128
    %4559 = vxpose.xlu0.b32.cont [5/16] 0.0, 128
    %4560 = vxpose.xlu0.b32.cont [6/16] 0.0, 128
    %4561 = vxpose.xlu0.b32.cont [7/16] 0.0, 128
    %4562 = vxpose.xlu0.b32.cont [8/16] 0.0, 128
    %4563 = vxpose.xlu0.b32.cont [9/16] 0.0, 128
    %4564 = vxpose.xlu0.b32.cont [10/16] 0.0, 128
    %4565 = vxpose.xlu0.b32.cont [11/16] 0.0, 128
    %4566 = vxpose.xlu0.b32.cont [12/16] 0.0, 128
    %4567 = vxpose.xlu0.b32.cont [13/16] 0.0, 128
    %4568 = vxpose.xlu0.b32.cont [14/16] 0.0, 128
    %4569 = vxpose.xlu0.b32.cont [15/16] 0.0, 128
    %4570 = vxpose.xlu0.b32.end [16/16] 0.0, 128
    %v4571 = vpop.trf.xlu0
    %v4572 = vpop.trf.xlu0
    %v4573 = vpop.trf.xlu0
    %v4574 = vpop.trf.xlu0
    %v4575 = vpop.trf.xlu0
    %v4576 = vpop.trf.xlu0
    %v4577 = vpop.trf.xlu0
    %v4578 = vpop.trf.xlu0
    %v4579 = vpop.trf.xlu0
    %v4580 = vpop.trf.xlu0
    %v4581 = vpop.trf.xlu0
    %v4582 = vpop.trf.xlu0
    %v4583 = vpop.trf.xlu0
    %v4584 = vpop.trf.xlu0
    %v4585 = vpop.trf.xlu0
    %v4586 = vpop.trf.xlu0
    %4587 = vxpose.xlu0.b32.start [1/16] %v2991, 128
    %4588 = vxpose.xlu0.b32.cont [2/16] 0.0, 128
    %4589 = vxpose.xlu0.b32.cont [3/16] 0.0, 128
    %4590 = vxpose.xlu0.b32.cont [4/16] 0.0, 128
    %4591 = vxpose.xlu0.b32.cont [5/16] 0.0, 128
    %4592 = vxpose.xlu0.b32.cont [6/16] 0.0, 128
    %4593 = vxpose.xlu0.b32.cont [7/16] 0.0, 128
    %4594 = vxpose.xlu0.b32.cont [8/16] 0.0, 128
    %4595 = vxpose.xlu0.b32.cont [9/16] 0.0, 128
    %4596 = vxpose.xlu0.b32.cont [10/16] 0.0, 128
    %4597 = vxpose.xlu0.b32.cont [11/16] 0.0, 128
    %4598 = vxpose.xlu0.b32.cont [12/16] 0.0, 128
    %4599 = vxpose.xlu0.b32.cont [13/16] 0.0, 128
    %4600 = vxpose.xlu0.b32.cont [14/16] 0.0, 128
    %4601 = vxpose.xlu0.b32.cont [15/16] 0.0, 128
    %4602 = vxpose.xlu0.b32.end [16/16] 0.0, 128
    %v4603 = vpop.trf.xlu0
    %v4604 = vpop.trf.xlu0
    %v4605 = vpop.trf.xlu0
    %v4606 = vpop.trf.xlu0
    %v4607 = vpop.trf.xlu0
    %v4608 = vpop.trf.xlu0
    %v4609 = vpop.trf.xlu0
    %v4610 = vpop.trf.xlu0
    %v4611 = vpop.trf.xlu0
    %v4612 = vpop.trf.xlu0
    %v4613 = vpop.trf.xlu0
    %v4614 = vpop.trf.xlu0
    %v4615 = vpop.trf.xlu0
    %v4616 = vpop.trf.xlu0
    %v4617 = vpop.trf.xlu0
    %v4618 = vpop.trf.xlu0
    %4619 = vxpose.xlu0.b32.start [1/16] %v2974, 128
    %4620 = vxpose.xlu0.b32.cont [2/16] 0.0, 128
    %4621 = vxpose.xlu0.b32.cont [3/16] 0.0, 128
    %4622 = vxpose.xlu0.b32.cont [4/16] 0.0, 128
    %4623 = vxpose.xlu0.b32.cont [5/16] 0.0, 128
    %4624 = vxpose.xlu0.b32.cont [6/16] 0.0, 128
    %4625 = vxpose.xlu0.b32.cont [7/16] 0.0, 128
    %4626 = vxpose.xlu0.b32.cont [8/16] 0.0, 128
    %4627 = vxpose.xlu0.b32.cont [9/16] 0.0, 128
    %4628 = vxpose.xlu0.b32.cont [10/16] 0.0, 128
    %4629 = vxpose.xlu0.b32.cont [11/16] 0.0, 128
    %4630 = vxpose.xlu0.b32.cont [12/16] 0.0, 128
    %4631 = vxpose.xlu0.b32.cont [13/16] 0.0, 128
    %4632 = vxpose.xlu0.b32.cont [14/16] 0.0, 128
    %4633 = vxpose.xlu0.b32.cont [15/16] 0.0, 128
    %4634 = vxpose.xlu0.b32.end [16/16] 0.0, 128
    %v4635 = vpop.trf.xlu0
    %v4636 = vpop.trf.xlu0
    %v4637 = vpop.trf.xlu0
    %v4638 = vpop.trf.xlu0
    %v4639 = vpop.trf.xlu0
    %v4640 = vpop.trf.xlu0
    %v4641 = vpop.trf.xlu0
    %v4642 = vpop.trf.xlu0
    %v4643 = vpop.trf.xlu0
    %v4644 = vpop.trf.xlu0
    %v4645 = vpop.trf.xlu0
    %v4646 = vpop.trf.xlu0
    %v4647 = vpop.trf.xlu0
    %v4648 = vpop.trf.xlu0
    %v4649 = vpop.trf.xlu0
    %v4650 = vpop.trf.xlu0
    %4651 = vxpose.xlu0.b32.start [1/16] %v2992, 128
    %4652 = vxpose.xlu0.b32.cont [2/16] 0.0, 128
    %4653 = vxpose.xlu0.b32.cont [3/16] 0.0, 128
    %4654 = vxpose.xlu0.b32.cont [4/16] 0.0, 128
    %4655 = vxpose.xlu0.b32.cont [5/16] 0.0, 128
    %4656 = vxpose.xlu0.b32.cont [6/16] 0.0, 128
    %4657 = vxpose.xlu0.b32.cont [7/16] 0.0, 128
    %4658 = vxpose.xlu0.b32.cont [8/16] 0.0, 128
    %4659 = vxpose.xlu0.b32.cont [9/16] 0.0, 128
    %4660 = vxpose.xlu0.b32.cont [10/16] 0.0, 128
    %4661 = vxpose.xlu0.b32.cont [11/16] 0.0, 128
    %4662 = vxpose.xlu0.b32.cont [12/16] 0.0, 128
    %4663 = vxpose.xlu0.b32.cont [13/16] 0.0, 128
    %4664 = vxpose.xlu0.b32.cont [14/16] 0.0, 128
    %4665 = vxpose.xlu0.b32.cont [15/16] 0.0, 128
    %4666 = vxpose.xlu0.b32.end [16/16] 0.0, 128
    %v4667 = vpop.trf.xlu0
    %v4668 = vpop.trf.xlu0
    %v4669 = vpop.trf.xlu0
    %v4670 = vpop.trf.xlu0
    %v4671 = vpop.trf.xlu0
    %v4672 = vpop.trf.xlu0
    %v4673 = vpop.trf.xlu0
    %v4674 = vpop.trf.xlu0
    %v4675 = vpop.trf.xlu0
    %v4676 = vpop.trf.xlu0
    %v4677 = vpop.trf.xlu0
    %v4678 = vpop.trf.xlu0
    %v4679 = vpop.trf.xlu0
    %v4680 = vpop.trf.xlu0
    %v4681 = vpop.trf.xlu0
    %v4682 = vpop.trf.xlu0
    %4683 = vxpose.xlu0.b32.start [1/16] %v2983, 128
    %4684 = vxpose.xlu0.b32.cont [2/16] 0.0, 128
    %4685 = vxpose.xlu0.b32.cont [3/16] 0.0, 128
    %4686 = vxpose.xlu0.b32.cont [4/16] 0.0, 128
    %4687 = vxpose.xlu0.b32.cont [5/16] 0.0, 128
    %4688 = vxpose.xlu0.b32.cont [6/16] 0.0, 128
    %4689 = vxpose.xlu0.b32.cont [7/16] 0.0, 128
    %4690 = vxpose.xlu0.b32.cont [8/16] 0.0, 128
    %4691 = vxpose.xlu0.b32.cont [9/16] 0.0, 128
    %4692 = vxpose.xlu0.b32.cont [10/16] 0.0, 128
    %4693 = vxpose.xlu0.b32.cont [11/16] 0.0, 128
    %4694 = vxpose.xlu0.b32.cont [12/16] 0.0, 128
    %4695 = vxpose.xlu0.b32.cont [13/16] 0.0, 128
    %4696 = vxpose.xlu0.b32.cont [14/16] 0.0, 128
    %4697 = vxpose.xlu0.b32.cont [15/16] 0.0, 128
    %4698 = vxpose.xlu0.b32.end [16/16] 0.0, 128
    %v4699 = vpop.trf.xlu0
    %v4700 = vpop.trf.xlu0
    %v4701 = vpop.trf.xlu0
    %v4702 = vpop.trf.xlu0
    %v4703 = vpop.trf.xlu0
    %v4704 = vpop.trf.xlu0
    %v4705 = vpop.trf.xlu0
    %v4706 = vpop.trf.xlu0
    %v4707 = vpop.trf.xlu0
    %v4708 = vpop.trf.xlu0
    %v4709 = vpop.trf.xlu0
    %v4710 = vpop.trf.xlu0
    %v4711 = vpop.trf.xlu0
    %v4712 = vpop.trf.xlu0
    %v4713 = vpop.trf.xlu0
    %v4714 = vpop.trf.xlu0
    %4715 = vxpose.xlu0.b32.start [1/16] %v2993, 128
    %4716 = vxpose.xlu0.b32.cont [2/16] 0.0, 128
    %4717 = vxpose.xlu0.b32.cont [3/16] 0.0, 128
    %4718 = vxpose.xlu0.b32.cont [4/16] 0.0, 128
    %4719 = vxpose.xlu0.b32.cont [5/16] 0.0, 128
    %4720 = vxpose.xlu0.b32.cont [6/16] 0.0, 128
    %4721 = vxpose.xlu0.b32.cont [7/16] 0.0, 128
    %4722 = vxpose.xlu0.b32.cont [8/16] 0.0, 128
    %4723 = vxpose.xlu0.b32.cont [9/16] 0.0, 128
    %4724 = vxpose.xlu0.b32.cont [10/16] 0.0, 128
    %4725 = vxpose.xlu0.b32.cont [11/16] 0.0, 128
    %4726 = vxpose.xlu0.b32.cont [12/16] 0.0, 128
    %4727 = vxpose.xlu0.b32.cont [13/16] 0.0, 128
    %4728 = vxpose.xlu0.b32.cont [14/16] 0.0, 128
    %4729 = vxpose.xlu0.b32.cont [15/16] 0.0, 128
    %4730 = vxpose.xlu0.b32.end [16/16] 0.0, 128
    %v4731 = vpop.trf.xlu0
    %v4732 = vpop.trf.xlu0
    %v4733 = vpop.trf.xlu0
    %v4734 = vpop.trf.xlu0
    %v4735 = vpop.trf.xlu0
    %v4736 = vpop.trf.xlu0
    %v4737 = vpop.trf.xlu0
    %v4738 = vpop.trf.xlu0
    %v4739 = vpop.trf.xlu0
    %v4740 = vpop.trf.xlu0
    %v4741 = vpop.trf.xlu0
    %v4742 = vpop.trf.xlu0
    %v4743 = vpop.trf.xlu0
    %v4744 = vpop.trf.xlu0
    %v4745 = vpop.trf.xlu0
    %v4746 = vpop.trf.xlu0
    %4747 = vxpose.xlu0.b32.start [1/16] %v2990, 128
    %4748 = vxpose.xlu0.b32.cont [2/16] 0.0, 128
    %4749 = vxpose.xlu0.b32.cont [3/16] 0.0, 128
    %4750 = vxpose.xlu0.b32.cont [4/16] 0.0, 128
    %4751 = vxpose.xlu0.b32.cont [5/16] 0.0, 128
    %4752 = vxpose.xlu0.b32.cont [6/16] 0.0, 128
    %4753 = vxpose.xlu0.b32.cont [7/16] 0.0, 128
    %4754 = vxpose.xlu0.b32.cont [8/16] 0.0, 128
    %4755 = vxpose.xlu0.b32.cont [9/16] 0.0, 128
    %4756 = vxpose.xlu0.b32.cont [10/16] 0.0, 128
    %4757 = vxpose.xlu0.b32.cont [11/16] 0.0, 128
    %4758 = vxpose.xlu0.b32.cont [12/16] 0.0, 128
    %4759 = vxpose.xlu0.b32.cont [13/16] 0.0, 128
    %4760 = vxpose.xlu0.b32.cont [14/16] 0.0, 128
    %4761 = vxpose.xlu0.b32.cont [15/16] 0.0, 128
    %4762 = vxpose.xlu0.b32.end [16/16] 0.0, 128
    %v4763 = vpop.trf.xlu0
    %v4764 = vpop.trf.xlu0
    %v4765 = vpop.trf.xlu0
    %v4766 = vpop.trf.xlu0
    %v4767 = vpop.trf.xlu0
    %v4768 = vpop.trf.xlu0
    %v4769 = vpop.trf.xlu0
    %v4770 = vpop.trf.xlu0
    %v4771 = vpop.trf.xlu0
    %v4772 = vpop.trf.xlu0
    %v4773 = vpop.trf.xlu0
    %v4774 = vpop.trf.xlu0
    %v4775 = vpop.trf.xlu0
    %v4776 = vpop.trf.xlu0
    %v4777 = vpop.trf.xlu0
    %v4778 = vpop.trf.xlu0
    %4779 = vxpose.xlu0.b32.start [1/16] %v2994, 128
    %4780 = vxpose.xlu0.b32.cont [2/16] 0.0, 128
    %4781 = vxpose.xlu0.b32.cont [3/16] 0.0, 128
    %4782 = vxpose.xlu0.b32.cont [4/16] 0.0, 128
    %4783 = vxpose.xlu0.b32.cont [5/16] 0.0, 128
    %4784 = vxpose.xlu0.b32.cont [6/16] 0.0, 128
    %4785 = vxpose.xlu0.b32.cont [7/16] 0.0, 128
    %4786 = vxpose.xlu0.b32.cont [8/16] 0.0, 128
    %4787 = vxpose.xlu0.b32.cont [9/16] 0.0, 128
    %4788 = vxpose.xlu0.b32.cont [10/16] 0.0, 128
    %4789 = vxpose.xlu0.b32.cont [11/16] 0.0, 128
    %4790 = vxpose.xlu0.b32.cont [12/16] 0.0, 128
    %4791 = vxpose.xlu0.b32.cont [13/16] 0.0, 128
    %4792 = vxpose.xlu0.b32.cont [14/16] 0.0, 128
    %4793 = vxpose.xlu0.b32.cont [15/16] 0.0, 128
    %4794 = vxpose.xlu0.b32.end [16/16] 0.0, 128
    %v4795 = vpop.trf.xlu0
    %v4796 = vpop.trf.xlu0
    %v4797 = vpop.trf.xlu0
    %v4798 = vpop.trf.xlu0
    %v4799 = vpop.trf.xlu0
    %v4800 = vpop.trf.xlu0
    %v4801 = vpop.trf.xlu0
    %v4802 = vpop.trf.xlu0
    %v4803 = vpop.trf.xlu0
    %v4804 = vpop.trf.xlu0
    %v4805 = vpop.trf.xlu0
    %v4806 = vpop.trf.xlu0
    %v4807 = vpop.trf.xlu0
    %v4808 = vpop.trf.xlu0
    %v4809 = vpop.trf.xlu0
    %v4810 = vpop.trf.xlu0
    %4811 = vxpose.xlu0.b32.start [1/16] %v3033, 128
    %4812 = vxpose.xlu0.b32.cont [2/16] 0.0, 128
    %4813 = vxpose.xlu0.b32.cont [3/16] 0.0, 128
    %4814 = vxpose.xlu0.b32.cont [4/16] 0.0, 128
    %4815 = vxpose.xlu0.b32.cont [5/16] 0.0, 128
    %4816 = vxpose.xlu0.b32.cont [6/16] 0.0, 128
    %4817 = vxpose.xlu0.b32.cont [7/16] 0.0, 128
    %4818 = vxpose.xlu0.b32.cont [8/16] 0.0, 128
    %4819 = vxpose.xlu0.b32.cont [9/16] 0.0, 128
    %4820 = vxpose.xlu0.b32.cont [10/16] 0.0, 128
    %4821 = vxpose.xlu0.b32.cont [11/16] 0.0, 128
    %4822 = vxpose.xlu0.b32.cont [12/16] 0.0, 128
    %4823 = vxpose.xlu0.b32.cont [13/16] 0.0, 128
    %4824 = vxpose.xlu0.b32.cont [14/16] 0.0, 128
    %4825 = vxpose.xlu0.b32.cont [15/16] 0.0, 128
    %4826 = vxpose.xlu0.b32.end [16/16] 0.0, 128
    %v4827 = vpop.trf.xlu0
    %v4828 = vpop.trf.xlu0
    %v4829 = vpop.trf.xlu0
    %v4830 = vpop.trf.xlu0
    %v4831 = vpop.trf.xlu0
    %v4832 = vpop.trf.xlu0
    %v4833 = vpop.trf.xlu0
    %v4834 = vpop.trf.xlu0
    %v4835 = vpop.trf.xlu0
    %v4836 = vpop.trf.xlu0
    %v4837 = vpop.trf.xlu0
    %v4838 = vpop.trf.xlu0
    %v4839 = vpop.trf.xlu0
    %v4840 = vpop.trf.xlu0
    %v4841 = vpop.trf.xlu0
    %v4842 = vpop.trf.xlu0
    %4843 = vxpose.xlu0.b32.start [1/16] %v3057, 128
    %4844 = vxpose.xlu0.b32.cont [2/16] 0.0, 128
    %4845 = vxpose.xlu0.b32.cont [3/16] 0.0, 128
    %4846 = vxpose.xlu0.b32.cont [4/16] 0.0, 128
    %4847 = vxpose.xlu0.b32.cont [5/16] 0.0, 128
    %4848 = vxpose.xlu0.b32.cont [6/16] 0.0, 128
    %4849 = vxpose.xlu0.b32.cont [7/16] 0.0, 128
    %4850 = vxpose.xlu0.b32.cont [8/16] 0.0, 128
    %4851 = vxpose.xlu0.b32.cont [9/16] 0.0, 128
    %4852 = vxpose.xlu0.b32.cont [10/16] 0.0, 128
    %4853 = vxpose.xlu0.b32.cont [11/16] 0.0, 128
    %4854 = vxpose.xlu0.b32.cont [12/16] 0.0, 128
    %4855 = vxpose.xlu0.b32.cont [13/16] 0.0, 128
    %4856 = vxpose.xlu0.b32.cont [14/16] 0.0, 128
    %4857 = vxpose.xlu0.b32.cont [15/16] 0.0, 128
    %4858 = vxpose.xlu0.b32.end [16/16] 0.0, 128
    %v4859 = vpop.trf.xlu0
    %v4860 = vpop.trf.xlu0
    %v4861 = vpop.trf.xlu0
    %v4862 = vpop.trf.xlu0
    %v4863 = vpop.trf.xlu0
    %v4864 = vpop.trf.xlu0
    %v4865 = vpop.trf.xlu0
    %v4866 = vpop.trf.xlu0
    %v4867 = vpop.trf.xlu0
    %v4868 = vpop.trf.xlu0
    %v4869 = vpop.trf.xlu0
    %v4870 = vpop.trf.xlu0
    %v4871 = vpop.trf.xlu0
    %v4872 = vpop.trf.xlu0
    %v4873 = vpop.trf.xlu0
    %v4874 = vpop.trf.xlu0
    %4875 = vxpose.xlu0.b32.start [1/16] %v3040, 128
    %4876 = vxpose.xlu0.b32.cont [2/16] 0.0, 128
    %4877 = vxpose.xlu0.b32.cont [3/16] 0.0, 128
    %4878 = vxpose.xlu0.b32.cont [4/16] 0.0, 128
    %4879 = vxpose.xlu0.b32.cont [5/16] 0.0, 128
    %4880 = vxpose.xlu0.b32.cont [6/16] 0.0, 128
    %4881 = vxpose.xlu0.b32.cont [7/16] 0.0, 128
    %4882 = vxpose.xlu0.b32.cont [8/16] 0.0, 128
    %4883 = vxpose.xlu0.b32.cont [9/16] 0.0, 128
    %4884 = vxpose.xlu0.b32.cont [10/16] 0.0, 128
    %4885 = vxpose.xlu0.b32.cont [11/16] 0.0, 128
    %4886 = vxpose.xlu0.b32.cont [12/16] 0.0, 128
    %4887 = vxpose.xlu0.b32.cont [13/16] 0.0, 128
    %4888 = vxpose.xlu0.b32.cont [14/16] 0.0, 128
    %4889 = vxpose.xlu0.b32.cont [15/16] 0.0, 128
    %4890 = vxpose.xlu0.b32.end [16/16] 0.0, 128
    %v4891 = vpop.trf.xlu0
    %v4892 = vpop.trf.xlu0
    %v4893 = vpop.trf.xlu0
    %v4894 = vpop.trf.xlu0
    %v4895 = vpop.trf.xlu0
    %v4896 = vpop.trf.xlu0
    %v4897 = vpop.trf.xlu0
    %v4898 = vpop.trf.xlu0
    %v4899 = vpop.trf.xlu0
    %v4900 = vpop.trf.xlu0
    %v4901 = vpop.trf.xlu0
    %v4902 = vpop.trf.xlu0
    %v4903 = vpop.trf.xlu0
    %v4904 = vpop.trf.xlu0
    %v4905 = vpop.trf.xlu0
    %v4906 = vpop.trf.xlu0
    %4907 = vxpose.xlu0.b32.start [1/16] %v3058, 128
    %4908 = vxpose.xlu0.b32.cont [2/16] 0.0, 128
    %4909 = vxpose.xlu0.b32.cont [3/16] 0.0, 128
    %4910 = vxpose.xlu0.b32.cont [4/16] 0.0, 128
    %4911 = vxpose.xlu0.b32.cont [5/16] 0.0, 128
    %4912 = vxpose.xlu0.b32.cont [6/16] 0.0, 128
    %4913 = vxpose.xlu0.b32.cont [7/16] 0.0, 128
    %4914 = vxpose.xlu0.b32.cont [8/16] 0.0, 128
    %4915 = vxpose.xlu0.b32.cont [9/16] 0.0, 128
    %4916 = vxpose.xlu0.b32.cont [10/16] 0.0, 128
    %4917 = vxpose.xlu0.b32.cont [11/16] 0.0, 128
    %4918 = vxpose.xlu0.b32.cont [12/16] 0.0, 128
    %4919 = vxpose.xlu0.b32.cont [13/16] 0.0, 128
    %4920 = vxpose.xlu0.b32.cont [14/16] 0.0, 128
    %4921 = vxpose.xlu0.b32.cont [15/16] 0.0, 128
    %4922 = vxpose.xlu0.b32.end [16/16] 0.0, 128
    %v4923 = vpop.trf.xlu0
    %v4924 = vpop.trf.xlu0
    %v4925 = vpop.trf.xlu0
    %v4926 = vpop.trf.xlu0
    %v4927 = vpop.trf.xlu0
    %v4928 = vpop.trf.xlu0
    %v4929 = vpop.trf.xlu0
    %v4930 = vpop.trf.xlu0
    %v4931 = vpop.trf.xlu0
    %v4932 = vpop.trf.xlu0
    %v4933 = vpop.trf.xlu0
    %v4934 = vpop.trf.xlu0
    %v4935 = vpop.trf.xlu0
    %v4936 = vpop.trf.xlu0
    %v4937 = vpop.trf.xlu0
    %v4938 = vpop.trf.xlu0
    %4939 = vxpose.xlu0.b32.start [1/16] %v3049, 128
    %4940 = vxpose.xlu0.b32.cont [2/16] 0.0, 128
    %4941 = vxpose.xlu0.b32.cont [3/16] 0.0, 128
    %4942 = vxpose.xlu0.b32.cont [4/16] 0.0, 128
    %4943 = vxpose.xlu0.b32.cont [5/16] 0.0, 128
    %4944 = vxpose.xlu0.b32.cont [6/16] 0.0, 128
    %4945 = vxpose.xlu0.b32.cont [7/16] 0.0, 128
    %4946 = vxpose.xlu0.b32.cont [8/16] 0.0, 128
    %4947 = vxpose.xlu0.b32.cont [9/16] 0.0, 128
    %4948 = vxpose.xlu0.b32.cont [10/16] 0.0, 128
    %4949 = vxpose.xlu0.b32.cont [11/16] 0.0, 128
    %4950 = vxpose.xlu0.b32.cont [12/16] 0.0, 128
    %4951 = vxpose.xlu0.b32.cont [13/16] 0.0, 128
    %4952 = vxpose.xlu0.b32.cont [14/16] 0.0, 128
    %4953 = vxpose.xlu0.b32.cont [15/16] 0.0, 128
    %4954 = vxpose.xlu0.b32.end [16/16] 0.0, 128
    %v4955 = vpop.trf.xlu0
    %v4956 = vpop.trf.xlu0
    %v4957 = vpop.trf.xlu0
    %v4958 = vpop.trf.xlu0
    %v4959 = vpop.trf.xlu0
    %v4960 = vpop.trf.xlu0
    %v4961 = vpop.trf.xlu0
    %v4962 = vpop.trf.xlu0
    %v4963 = vpop.trf.xlu0
    %v4964 = vpop.trf.xlu0
    %v4965 = vpop.trf.xlu0
    %v4966 = vpop.trf.xlu0
    %v4967 = vpop.trf.xlu0
    %v4968 = vpop.trf.xlu0
    %v4969 = vpop.trf.xlu0
    %v4970 = vpop.trf.xlu0
    %4971 = vxpose.xlu0.b32.start [1/16] %v3059, 128
    %4972 = vxpose.xlu0.b32.cont [2/16] 0.0, 128
    %4973 = vxpose.xlu0.b32.cont [3/16] 0.0, 128
    %4974 = vxpose.xlu0.b32.cont [4/16] 0.0, 128
    %4975 = vxpose.xlu0.b32.cont [5/16] 0.0, 128
    %4976 = vxpose.xlu0.b32.cont [6/16] 0.0, 128
    %4977 = vxpose.xlu0.b32.cont [7/16] 0.0, 128
    %4978 = vxpose.xlu0.b32.cont [8/16] 0.0, 128
    %4979 = vxpose.xlu0.b32.cont [9/16] 0.0, 128
    %4980 = vxpose.xlu0.b32.cont [10/16] 0.0, 128
    %4981 = vxpose.xlu0.b32.cont [11/16] 0.0, 128
    %4982 = vxpose.xlu0.b32.cont [12/16] 0.0, 128
    %4983 = vxpose.xlu0.b32.cont [13/16] 0.0, 128
    %4984 = vxpose.xlu0.b32.cont [14/16] 0.0, 128
    %4985 = vxpose.xlu0.b32.cont [15/16] 0.0, 128
    %4986 = vxpose.xlu0.b32.end [16/16] 0.0, 128
    %v4987 = vpop.trf.xlu0
    %v4988 = vpop.trf.xlu0
    %v4989 = vpop.trf.xlu0
    %v4990 = vpop.trf.xlu0
    %v4991 = vpop.trf.xlu0
    %v4992 = vpop.trf.xlu0
    %v4993 = vpop.trf.xlu0
    %v4994 = vpop.trf.xlu0
    %v4995 = vpop.trf.xlu0
    %v4996 = vpop.trf.xlu0
    %v4997 = vpop.trf.xlu0
    %v4998 = vpop.trf.xlu0
    %v4999 = vpop.trf.xlu0
    %v5000 = vpop.trf.xlu0
    %v5001 = vpop.trf.xlu0
    %v5002 = vpop.trf.xlu0
    %5003 = vxpose.xlu0.b32.start [1/16] %v3056, 128
    %5004 = vxpose.xlu0.b32.cont [2/16] 0.0, 128
    %5005 = vxpose.xlu0.b32.cont [3/16] 0.0, 128
    %5006 = vxpose.xlu0.b32.cont [4/16] 0.0, 128
    %5007 = vxpose.xlu0.b32.cont [5/16] 0.0, 128
    %5008 = vxpose.xlu0.b32.cont [6/16] 0.0, 128
    %5009 = vxpose.xlu0.b32.cont [7/16] 0.0, 128
    %5010 = vxpose.xlu0.b32.cont [8/16] 0.0, 128
    %5011 = vxpose.xlu0.b32.cont [9/16] 0.0, 128
    %5012 = vxpose.xlu0.b32.cont [10/16] 0.0, 128
    %5013 = vxpose.xlu0.b32.cont [11/16] 0.0, 128
    %5014 = vxpose.xlu0.b32.cont [12/16] 0.0, 128
    %5015 = vxpose.xlu0.b32.cont [13/16] 0.0, 128
    %5016 = vxpose.xlu0.b32.cont [14/16] 0.0, 128
    %5017 = vxpose.xlu0.b32.cont [15/16] 0.0, 128
    %5018 = vxpose.xlu0.b32.end [16/16] 0.0, 128
    %v5019 = vpop.trf.xlu0
    %v5020 = vpop.trf.xlu0
    %v5021 = vpop.trf.xlu0
    %v5022 = vpop.trf.xlu0
    %v5023 = vpop.trf.xlu0
    %v5024 = vpop.trf.xlu0
    %v5025 = vpop.trf.xlu0
    %v5026 = vpop.trf.xlu0
    %v5027 = vpop.trf.xlu0
    %v5028 = vpop.trf.xlu0
    %v5029 = vpop.trf.xlu0
    %v5030 = vpop.trf.xlu0
    %v5031 = vpop.trf.xlu0
    %v5032 = vpop.trf.xlu0
    %v5033 = vpop.trf.xlu0
    %v5034 = vpop.trf.xlu0
    %5035 = vxpose.xlu0.b32.start [1/16] %v3060, 128
    %5036 = vxpose.xlu0.b32.cont [2/16] 0.0, 128
    %5037 = vxpose.xlu0.b32.cont [3/16] 0.0, 128
    %5038 = vxpose.xlu0.b32.cont [4/16] 0.0, 128
    %5039 = vxpose.xlu0.b32.cont [5/16] 0.0, 128
    %5040 = vxpose.xlu0.b32.cont [6/16] 0.0, 128
    %5041 = vxpose.xlu0.b32.cont [7/16] 0.0, 128
    %5042 = vxpose.xlu0.b32.cont [8/16] 0.0, 128
    %5043 = vxpose.xlu0.b32.cont [9/16] 0.0, 128
    %5044 = vxpose.xlu0.b32.cont [10/16] 0.0, 128
    %5045 = vxpose.xlu0.b32.cont [11/16] 0.0, 128
    %5046 = vxpose.xlu0.b32.cont [12/16] 0.0, 128
    %5047 = vxpose.xlu0.b32.cont [13/16] 0.0, 128
    %5048 = vxpose.xlu0.b32.cont [14/16] 0.0, 128
    %5049 = vxpose.xlu0.b32.cont [15/16] 0.0, 128
    %5050 = vxpose.xlu0.b32.end [16/16] 0.0, 128
    %v5051 = vpop.trf.xlu0
    %v5052 = vpop.trf.xlu0
    %v5053 = vpop.trf.xlu0
    %v5054 = vpop.trf.xlu0
    %v5055 = vpop.trf.xlu0
    %v5056 = vpop.trf.xlu0
    %v5057 = vpop.trf.xlu0
    %v5058 = vpop.trf.xlu0
    %v5059 = vpop.trf.xlu0
    %v5060 = vpop.trf.xlu0
    %v5061 = vpop.trf.xlu0
    %v5062 = vpop.trf.xlu0
    %v5063 = vpop.trf.xlu0
    %v5064 = vpop.trf.xlu0
    %v5065 = vpop.trf.xlu0
    %v5066 = vpop.trf.xlu0
    %5067 = vxpose.xlu0.b32.start [1/16] %v3099, 128
    %5068 = vxpose.xlu0.b32.cont [2/16] 0.0, 128
    %5069 = vxpose.xlu0.b32.cont [3/16] 0.0, 128
    %5070 = vxpose.xlu0.b32.cont [4/16] 0.0, 128
    %5071 = vxpose.xlu0.b32.cont [5/16] 0.0, 128
    %5072 = vxpose.xlu0.b32.cont [6/16] 0.0, 128
    %5073 = vxpose.xlu0.b32.cont [7/16] 0.0, 128
    %5074 = vxpose.xlu0.b32.cont [8/16] 0.0, 128
    %5075 = vxpose.xlu0.b32.cont [9/16] 0.0, 128
    %5076 = vxpose.xlu0.b32.cont [10/16] 0.0, 128
    %5077 = vxpose.xlu0.b32.cont [11/16] 0.0, 128
    %5078 = vxpose.xlu0.b32.cont [12/16] 0.0, 128
    %5079 = vxpose.xlu0.b32.cont [13/16] 0.0, 128
    %5080 = vxpose.xlu0.b32.cont [14/16] 0.0, 128
    %5081 = vxpose.xlu0.b32.cont [15/16] 0.0, 128
    %5082 = vxpose.xlu0.b32.end [16/16] 0.0, 128
    %v5083 = vpop.trf.xlu0
    %v5084 = vpop.trf.xlu0
    %v5085 = vpop.trf.xlu0
    %v5086 = vpop.trf.xlu0
    %v5087 = vpop.trf.xlu0
    %v5088 = vpop.trf.xlu0
    %v5089 = vpop.trf.xlu0
    %v5090 = vpop.trf.xlu0
    %v5091 = vpop.trf.xlu0
    %v5092 = vpop.trf.xlu0
    %v5093 = vpop.trf.xlu0
    %v5094 = vpop.trf.xlu0
    %v5095 = vpop.trf.xlu0
    %v5096 = vpop.trf.xlu0
    %v5097 = vpop.trf.xlu0
    %v5098 = vpop.trf.xlu0
    %5099 = vxpose.xlu0.b32.start [1/16] %v3123, 128
    %5100 = vxpose.xlu0.b32.cont [2/16] 0.0, 128
    %5101 = vxpose.xlu0.b32.cont [3/16] 0.0, 128
    %5102 = vxpose.xlu0.b32.cont [4/16] 0.0, 128
    %5103 = vxpose.xlu0.b32.cont [5/16] 0.0, 128
    %5104 = vxpose.xlu0.b32.cont [6/16] 0.0, 128
    %5105 = vxpose.xlu0.b32.cont [7/16] 0.0, 128
    %5106 = vxpose.xlu0.b32.cont [8/16] 0.0, 128
    %5107 = vxpose.xlu0.b32.cont [9/16] 0.0, 128
    %5108 = vxpose.xlu0.b32.cont [10/16] 0.0, 128
    %5109 = vxpose.xlu0.b32.cont [11/16] 0.0, 128
    %5110 = vxpose.xlu0.b32.cont [12/16] 0.0, 128
    %5111 = vxpose.xlu0.b32.cont [13/16] 0.0, 128
    %5112 = vxpose.xlu0.b32.cont [14/16] 0.0, 128
    %5113 = vxpose.xlu0.b32.cont [15/16] 0.0, 128
    %5114 = vxpose.xlu0.b32.end [16/16] 0.0, 128
    %v5115 = vpop.trf.xlu0
    %v5116 = vpop.trf.xlu0
    %v5117 = vpop.trf.xlu0
    %v5118 = vpop.trf.xlu0
    %v5119 = vpop.trf.xlu0
    %v5120 = vpop.trf.xlu0
    %v5121 = vpop.trf.xlu0
    %v5122 = vpop.trf.xlu0
    %v5123 = vpop.trf.xlu0
    %v5124 = vpop.trf.xlu0
    %v5125 = vpop.trf.xlu0
    %v5126 = vpop.trf.xlu0
    %v5127 = vpop.trf.xlu0
    %v5128 = vpop.trf.xlu0
    %v5129 = vpop.trf.xlu0
    %v5130 = vpop.trf.xlu0
    %5131 = vxpose.xlu0.b32.start [1/16] %v3106, 128
    %5132 = vxpose.xlu0.b32.cont [2/16] 0.0, 128
    %5133 = vxpose.xlu0.b32.cont [3/16] 0.0, 128
    %5134 = vxpose.xlu0.b32.cont [4/16] 0.0, 128
    %5135 = vxpose.xlu0.b32.cont [5/16] 0.0, 128
    %5136 = vxpose.xlu0.b32.cont [6/16] 0.0, 128
    %5137 = vxpose.xlu0.b32.cont [7/16] 0.0, 128
    %5138 = vxpose.xlu0.b32.cont [8/16] 0.0, 128
    %5139 = vxpose.xlu0.b32.cont [9/16] 0.0, 128
    %5140 = vxpose.xlu0.b32.cont [10/16] 0.0, 128
    %5141 = vxpose.xlu0.b32.cont [11/16] 0.0, 128
    %5142 = vxpose.xlu0.b32.cont [12/16] 0.0, 128
    %5143 = vxpose.xlu0.b32.cont [13/16] 0.0, 128
    %5144 = vxpose.xlu0.b32.cont [14/16] 0.0, 128
    %5145 = vxpose.xlu0.b32.cont [15/16] 0.0, 128
    %5146 = vxpose.xlu0.b32.end [16/16] 0.0, 128
    %v5147 = vpop.trf.xlu0
    %v5148 = vpop.trf.xlu0
    %v5149 = vpop.trf.xlu0
    %v5150 = vpop.trf.xlu0
    %v5151 = vpop.trf.xlu0
    %v5152 = vpop.trf.xlu0
    %v5153 = vpop.trf.xlu0
    %v5154 = vpop.trf.xlu0
    %v5155 = vpop.trf.xlu0
    %v5156 = vpop.trf.xlu0
    %v5157 = vpop.trf.xlu0
    %v5158 = vpop.trf.xlu0
    %v5159 = vpop.trf.xlu0
    %v5160 = vpop.trf.xlu0
    %v5161 = vpop.trf.xlu0
    %v5162 = vpop.trf.xlu0
    %5163 = vxpose.xlu0.b32.start [1/16] %v3124, 128
    %5164 = vxpose.xlu0.b32.cont [2/16] 0.0, 128
    %5165 = vxpose.xlu0.b32.cont [3/16] 0.0, 128
    %5166 = vxpose.xlu0.b32.cont [4/16] 0.0, 128
    %5167 = vxpose.xlu0.b32.cont [5/16] 0.0, 128
    %5168 = vxpose.xlu0.b32.cont [6/16] 0.0, 128
    %5169 = vxpose.xlu0.b32.cont [7/16] 0.0, 128
    %5170 = vxpose.xlu0.b32.cont [8/16] 0.0, 128
    %5171 = vxpose.xlu0.b32.cont [9/16] 0.0, 128
    %5172 = vxpose.xlu0.b32.cont [10/16] 0.0, 128
    %5173 = vxpose.xlu0.b32.cont [11/16] 0.0, 128
    %5174 = vxpose.xlu0.b32.cont [12/16] 0.0, 128
    %5175 = vxpose.xlu0.b32.cont [13/16] 0.0, 128
    %5176 = vxpose.xlu0.b32.cont [14/16] 0.0, 128
    %5177 = vxpose.xlu0.b32.cont [15/16] 0.0, 128
    %5178 = vxpose.xlu0.b32.end [16/16] 0.0, 128
    %v5179 = vpop.trf.xlu0
    %v5180 = vpop.trf.xlu0
    %v5181 = vpop.trf.xlu0
    %v5182 = vpop.trf.xlu0
    %v5183 = vpop.trf.xlu0
    %v5184 = vpop.trf.xlu0
    %v5185 = vpop.trf.xlu0
    %v5186 = vpop.trf.xlu0
    %v5187 = vpop.trf.xlu0
    %v5188 = vpop.trf.xlu0
    %v5189 = vpop.trf.xlu0
    %v5190 = vpop.trf.xlu0
    %v5191 = vpop.trf.xlu0
    %v5192 = vpop.trf.xlu0
    %v5193 = vpop.trf.xlu0
    %v5194 = vpop.trf.xlu0
    %5195 = vxpose.xlu0.b32.start [1/16] %v3115, 128
    %5196 = vxpose.xlu0.b32.cont [2/16] 0.0, 128
    %5197 = vxpose.xlu0.b32.cont [3/16] 0.0, 128
    %5198 = vxpose.xlu0.b32.cont [4/16] 0.0, 128
    %5199 = vxpose.xlu0.b32.cont [5/16] 0.0, 128
    %5200 = vxpose.xlu0.b32.cont [6/16] 0.0, 128
    %5201 = vxpose.xlu0.b32.cont [7/16] 0.0, 128
    %5202 = vxpose.xlu0.b32.cont [8/16] 0.0, 128
    %5203 = vxpose.xlu0.b32.cont [9/16] 0.0, 128
    %5204 = vxpose.xlu0.b32.cont [10/16] 0.0, 128
    %5205 = vxpose.xlu0.b32.cont [11/16] 0.0, 128
    %5206 = vxpose.xlu0.b32.cont [12/16] 0.0, 128
    %5207 = vxpose.xlu0.b32.cont [13/16] 0.0, 128
    %5208 = vxpose.xlu0.b32.cont [14/16] 0.0, 128
    %5209 = vxpose.xlu0.b32.cont [15/16] 0.0, 128
    %5210 = vxpose.xlu0.b32.end [16/16] 0.0, 128
    %v5211 = vpop.trf.xlu0
    %v5212 = vpop.trf.xlu0
    %v5213 = vpop.trf.xlu0
    %v5214 = vpop.trf.xlu0
    %v5215 = vpop.trf.xlu0
    %v5216 = vpop.trf.xlu0
    %v5217 = vpop.trf.xlu0
    %v5218 = vpop.trf.xlu0
    %v5219 = vpop.trf.xlu0
    %v5220 = vpop.trf.xlu0
    %v5221 = vpop.trf.xlu0
    %v5222 = vpop.trf.xlu0
    %v5223 = vpop.trf.xlu0
    %v5224 = vpop.trf.xlu0
    %v5225 = vpop.trf.xlu0
    %v5226 = vpop.trf.xlu0
    %5227 = vxpose.xlu0.b32.start [1/16] %v3125, 128
    %5228 = vxpose.xlu0.b32.cont [2/16] 0.0, 128
    %5229 = vxpose.xlu0.b32.cont [3/16] 0.0, 128
    %5230 = vxpose.xlu0.b32.cont [4/16] 0.0, 128
    %5231 = vxpose.xlu0.b32.cont [5/16] 0.0, 128
    %5232 = vxpose.xlu0.b32.cont [6/16] 0.0, 128
    %5233 = vxpose.xlu0.b32.cont [7/16] 0.0, 128
    %5234 = vxpose.xlu0.b32.cont [8/16] 0.0, 128
    %5235 = vxpose.xlu0.b32.cont [9/16] 0.0, 128
    %5236 = vxpose.xlu0.b32.cont [10/16] 0.0, 128
    %5237 = vxpose.xlu0.b32.cont [11/16] 0.0, 128
    %5238 = vxpose.xlu0.b32.cont [12/16] 0.0, 128
    %5239 = vxpose.xlu0.b32.cont [13/16] 0.0, 128
    %5240 = vxpose.xlu0.b32.cont [14/16] 0.0, 128
    %5241 = vxpose.xlu0.b32.cont [15/16] 0.0, 128
    %5242 = vxpose.xlu0.b32.end [16/16] 0.0, 128
    %v5243 = vpop.trf.xlu0
    %v5244 = vpop.trf.xlu0
    %v5245 = vpop.trf.xlu0
    %v5246 = vpop.trf.xlu0
    %v5247 = vpop.trf.xlu0
    %v5248 = vpop.trf.xlu0
    %v5249 = vpop.trf.xlu0
    %v5250 = vpop.trf.xlu0
    %v5251 = vpop.trf.xlu0
    %v5252 = vpop.trf.xlu0
    %v5253 = vpop.trf.xlu0
    %v5254 = vpop.trf.xlu0
    %v5255 = vpop.trf.xlu0
    %v5256 = vpop.trf.xlu0
    %v5257 = vpop.trf.xlu0
    %v5258 = vpop.trf.xlu0
    %5259 = vxpose.xlu0.b32.start [1/16] %v3122, 128
    %5260 = vxpose.xlu0.b32.cont [2/16] 0.0, 128
    %5261 = vxpose.xlu0.b32.cont [3/16] 0.0, 128
    %5262 = vxpose.xlu0.b32.cont [4/16] 0.0, 128
    %5263 = vxpose.xlu0.b32.cont [5/16] 0.0, 128
    %5264 = vxpose.xlu0.b32.cont [6/16] 0.0, 128
    %5265 = vxpose.xlu0.b32.cont [7/16] 0.0, 128
    %5266 = vxpose.xlu0.b32.cont [8/16] 0.0, 128
    %5267 = vxpose.xlu0.b32.cont [9/16] 0.0, 128
    %5268 = vxpose.xlu0.b32.cont [10/16] 0.0, 128
    %5269 = vxpose.xlu0.b32.cont [11/16] 0.0, 128
    %5270 = vxpose.xlu0.b32.cont [12/16] 0.0, 128
    %5271 = vxpose.xlu0.b32.cont [13/16] 0.0, 128
    %5272 = vxpose.xlu0.b32.cont [14/16] 0.0, 128
    %5273 = vxpose.xlu0.b32.cont [15/16] 0.0, 128
    %5274 = vxpose.xlu0.b32.end [16/16] 0.0, 128
    %v5275 = vpop.trf.xlu0
    %v5276 = vpop.trf.xlu0
    %v5277 = vpop.trf.xlu0
    %v5278 = vpop.trf.xlu0
    %v5279 = vpop.trf.xlu0
    %v5280 = vpop.trf.xlu0
    %v5281 = vpop.trf.xlu0
    %v5282 = vpop.trf.xlu0
    %v5283 = vpop.trf.xlu0
    %v5284 = vpop.trf.xlu0
    %v5285 = vpop.trf.xlu0
    %v5286 = vpop.trf.xlu0
    %v5287 = vpop.trf.xlu0
    %v5288 = vpop.trf.xlu0
    %v5289 = vpop.trf.xlu0
    %v5290 = vpop.trf.xlu0
    %5291 = vxpose.xlu0.b32.start [1/16] %v3126, 128
    %5292 = vxpose.xlu0.b32.cont [2/16] 0.0, 128
    %5293 = vxpose.xlu0.b32.cont [3/16] 0.0, 128
    %5294 = vxpose.xlu0.b32.cont [4/16] 0.0, 128
    %5295 = vxpose.xlu0.b32.cont [5/16] 0.0, 128
    %5296 = vxpose.xlu0.b32.cont [6/16] 0.0, 128
    %5297 = vxpose.xlu0.b32.cont [7/16] 0.0, 128
    %5298 = vxpose.xlu0.b32.cont [8/16] 0.0, 128
    %5299 = vxpose.xlu0.b32.cont [9/16] 0.0, 128
    %5300 = vxpose.xlu0.b32.cont [10/16] 0.0, 128
    %5301 = vxpose.xlu0.b32.cont [11/16] 0.0, 128
    %5302 = vxpose.xlu0.b32.cont [12/16] 0.0, 128
    %5303 = vxpose.xlu0.b32.cont [13/16] 0.0, 128
    %5304 = vxpose.xlu0.b32.cont [14/16] 0.0, 128
    %5305 = vxpose.xlu0.b32.cont [15/16] 0.0, 128
    %5306 = vxpose.xlu0.b32.end [16/16] 0.0, 128
    %v5307 = vpop.trf.xlu0
    %v5308 = vpop.trf.xlu0
    %v5309 = vpop.trf.xlu0
    %v5310 = vpop.trf.xlu0
    %v5311 = vpop.trf.xlu0
    %v5312 = vpop.trf.xlu0
    %v5313 = vpop.trf.xlu0
    %v5314 = vpop.trf.xlu0
    %v5315 = vpop.trf.xlu0
    %v5316 = vpop.trf.xlu0
    %v5317 = vpop.trf.xlu0
    %v5318 = vpop.trf.xlu0
    %v5319 = vpop.trf.xlu0
    %v5320 = vpop.trf.xlu0
    %v5321 = vpop.trf.xlu0
    %v5322 = vpop.trf.xlu0
    %5323 = vxpose.xlu0.b32.start [1/16] %v3165, 128
    %5324 = vxpose.xlu0.b32.cont [2/16] 0.0, 128
    %5325 = vxpose.xlu0.b32.cont [3/16] 0.0, 128
    %5326 = vxpose.xlu0.b32.cont [4/16] 0.0, 128
    %5327 = vxpose.xlu0.b32.cont [5/16] 0.0, 128
    %5328 = vxpose.xlu0.b32.cont [6/16] 0.0, 128
    %5329 = vxpose.xlu0.b32.cont [7/16] 0.0, 128
    %5330 = vxpose.xlu0.b32.cont [8/16] 0.0, 128
    %5331 = vxpose.xlu0.b32.cont [9/16] 0.0, 128
    %5332 = vxpose.xlu0.b32.cont [10/16] 0.0, 128
    %5333 = vxpose.xlu0.b32.cont [11/16] 0.0, 128
    %5334 = vxpose.xlu0.b32.cont [12/16] 0.0, 128
    %5335 = vxpose.xlu0.b32.cont [13/16] 0.0, 128
    %5336 = vxpose.xlu0.b32.cont [14/16] 0.0, 128
    %5337 = vxpose.xlu0.b32.cont [15/16] 0.0, 128
    %5338 = vxpose.xlu0.b32.end [16/16] 0.0, 128
    %v5339 = vpop.trf.xlu0
    %v5340 = vpop.trf.xlu0
    %v5341 = vpop.trf.xlu0
    %v5342 = vpop.trf.xlu0
    %v5343 = vpop.trf.xlu0
    %v5344 = vpop.trf.xlu0
    %v5345 = vpop.trf.xlu0
    %v5346 = vpop.trf.xlu0
    %v5347 = vpop.trf.xlu0
    %v5348 = vpop.trf.xlu0
    %v5349 = vpop.trf.xlu0
    %v5350 = vpop.trf.xlu0
    %v5351 = vpop.trf.xlu0
    %v5352 = vpop.trf.xlu0
    %v5353 = vpop.trf.xlu0
    %v5354 = vpop.trf.xlu0
    %5355 = vxpose.xlu0.b32.start [1/16] %v3189, 128
    %5356 = vxpose.xlu0.b32.cont [2/16] 0.0, 128
    %5357 = vxpose.xlu0.b32.cont [3/16] 0.0, 128
    %5358 = vxpose.xlu0.b32.cont [4/16] 0.0, 128
    %5359 = vxpose.xlu0.b32.cont [5/16] 0.0, 128
    %5360 = vxpose.xlu0.b32.cont [6/16] 0.0, 128
    %5361 = vxpose.xlu0.b32.cont [7/16] 0.0, 128
    %5362 = vxpose.xlu0.b32.cont [8/16] 0.0, 128
    %5363 = vxpose.xlu0.b32.cont [9/16] 0.0, 128
    %5364 = vxpose.xlu0.b32.cont [10/16] 0.0, 128
    %5365 = vxpose.xlu0.b32.cont [11/16] 0.0, 128
    %5366 = vxpose.xlu0.b32.cont [12/16] 0.0, 128
    %5367 = vxpose.xlu0.b32.cont [13/16] 0.0, 128
    %5368 = vxpose.xlu0.b32.cont [14/16] 0.0, 128
    %5369 = vxpose.xlu0.b32.cont [15/16] 0.0, 128
    %5370 = vxpose.xlu0.b32.end [16/16] 0.0, 128
    %v5371 = vpop.trf.xlu0
    %v5372 = vpop.trf.xlu0
    %v5373 = vpop.trf.xlu0
    %v5374 = vpop.trf.xlu0
    %v5375 = vpop.trf.xlu0
    %v5376 = vpop.trf.xlu0
    %v5377 = vpop.trf.xlu0
    %v5378 = vpop.trf.xlu0
    %v5379 = vpop.trf.xlu0
    %v5380 = vpop.trf.xlu0
    %v5381 = vpop.trf.xlu0
    %v5382 = vpop.trf.xlu0
    %v5383 = vpop.trf.xlu0
    %v5384 = vpop.trf.xlu0
    %v5385 = vpop.trf.xlu0
    %v5386 = vpop.trf.xlu0
    %5387 = vxpose.xlu0.b32.start [1/16] %v3172, 128
    %5388 = vxpose.xlu0.b32.cont [2/16] 0.0, 128
    %5389 = vxpose.xlu0.b32.cont [3/16] 0.0, 128
    %5390 = vxpose.xlu0.b32.cont [4/16] 0.0, 128
    %5391 = vxpose.xlu0.b32.cont [5/16] 0.0, 128
    %5392 = vxpose.xlu0.b32.cont [6/16] 0.0, 128
    %5393 = vxpose.xlu0.b32.cont [7/16] 0.0, 128
    %5394 = vxpose.xlu0.b32.cont [8/16] 0.0, 128
    %5395 = vxpose.xlu0.b32.cont [9/16] 0.0, 128
    %5396 = vxpose.xlu0.b32.cont [10/16] 0.0, 128
    %5397 = vxpose.xlu0.b32.cont [11/16] 0.0, 128
    %5398 = vxpose.xlu0.b32.cont [12/16] 0.0, 128
    %5399 = vxpose.xlu0.b32.cont [13/16] 0.0, 128
    %5400 = vxpose.xlu0.b32.cont [14/16] 0.0, 128
    %5401 = vxpose.xlu0.b32.cont [15/16] 0.0, 128
    %5402 = vxpose.xlu0.b32.end [16/16] 0.0, 128
    %v5403 = vpop.trf.xlu0
    %v5404 = vpop.trf.xlu0
    %v5405 = vpop.trf.xlu0
    %v5406 = vpop.trf.xlu0
    %v5407 = vpop.trf.xlu0
    %v5408 = vpop.trf.xlu0
    %v5409 = vpop.trf.xlu0
    %v5410 = vpop.trf.xlu0
    %v5411 = vpop.trf.xlu0
    %v5412 = vpop.trf.xlu0
    %v5413 = vpop.trf.xlu0
    %v5414 = vpop.trf.xlu0
    %v5415 = vpop.trf.xlu0
    %v5416 = vpop.trf.xlu0
    %v5417 = vpop.trf.xlu0
    %v5418 = vpop.trf.xlu0
    %5419 = vxpose.xlu0.b32.start [1/16] %v3190, 128
    %5420 = vxpose.xlu0.b32.cont [2/16] 0.0, 128
    %5421 = vxpose.xlu0.b32.cont [3/16] 0.0, 128
    %5422 = vxpose.xlu0.b32.cont [4/16] 0.0, 128
    %5423 = vxpose.xlu0.b32.cont [5/16] 0.0, 128
    %5424 = vxpose.xlu0.b32.cont [6/16] 0.0, 128
    %5425 = vxpose.xlu0.b32.cont [7/16] 0.0, 128
    %5426 = vxpose.xlu0.b32.cont [8/16] 0.0, 128
    %5427 = vxpose.xlu0.b32.cont [9/16] 0.0, 128
    %5428 = vxpose.xlu0.b32.cont [10/16] 0.0, 128
    %5429 = vxpose.xlu0.b32.cont [11/16] 0.0, 128
    %5430 = vxpose.xlu0.b32.cont [12/16] 0.0, 128
    %5431 = vxpose.xlu0.b32.cont [13/16] 0.0, 128
    %5432 = vxpose.xlu0.b32.cont [14/16] 0.0, 128
    %5433 = vxpose.xlu0.b32.cont [15/16] 0.0, 128
    %5434 = vxpose.xlu0.b32.end [16/16] 0.0, 128
    %v5435 = vpop.trf.xlu0
    %v5436 = vpop.trf.xlu0
    %v5437 = vpop.trf.xlu0
    %v5438 = vpop.trf.xlu0
    %v5439 = vpop.trf.xlu0
    %v5440 = vpop.trf.xlu0
    %v5441 = vpop.trf.xlu0
    %v5442 = vpop.trf.xlu0
    %v5443 = vpop.trf.xlu0
    %v5444 = vpop.trf.xlu0
    %v5445 = vpop.trf.xlu0
    %v5446 = vpop.trf.xlu0
    %v5447 = vpop.trf.xlu0
    %v5448 = vpop.trf.xlu0
    %v5449 = vpop.trf.xlu0
    %v5450 = vpop.trf.xlu0
    %5451 = vxpose.xlu0.b32.start [1/16] %v3181, 128
    %5452 = vxpose.xlu0.b32.cont [2/16] 0.0, 128
    %5453 = vxpose.xlu0.b32.cont [3/16] 0.0, 128
    %5454 = vxpose.xlu0.b32.cont [4/16] 0.0, 128
    %5455 = vxpose.xlu0.b32.cont [5/16] 0.0, 128
    %5456 = vxpose.xlu0.b32.cont [6/16] 0.0, 128
    %5457 = vxpose.xlu0.b32.cont [7/16] 0.0, 128
    %5458 = vxpose.xlu0.b32.cont [8/16] 0.0, 128
    %5459 = vxpose.xlu0.b32.cont [9/16] 0.0, 128
    %5460 = vxpose.xlu0.b32.cont [10/16] 0.0, 128
    %5461 = vxpose.xlu0.b32.cont [11/16] 0.0, 128
    %5462 = vxpose.xlu0.b32.cont [12/16] 0.0, 128
    %5463 = vxpose.xlu0.b32.cont [13/16] 0.0, 128
    %5464 = vxpose.xlu0.b32.cont [14/16] 0.0, 128
    %5465 = vxpose.xlu0.b32.cont [15/16] 0.0, 128
    %5466 = vxpose.xlu0.b32.end [16/16] 0.0, 128
    %v5467 = vpop.trf.xlu0
    %v5468 = vpop.trf.xlu0
    %v5469 = vpop.trf.xlu0
    %v5470 = vpop.trf.xlu0
    %v5471 = vpop.trf.xlu0
    %v5472 = vpop.trf.xlu0
    %v5473 = vpop.trf.xlu0
    %v5474 = vpop.trf.xlu0
    %v5475 = vpop.trf.xlu0
    %v5476 = vpop.trf.xlu0
    %v5477 = vpop.trf.xlu0
    %v5478 = vpop.trf.xlu0
    %v5479 = vpop.trf.xlu0
    %v5480 = vpop.trf.xlu0
    %v5481 = vpop.trf.xlu0
    %v5482 = vpop.trf.xlu0
    %5483 = vxpose.xlu0.b32.start [1/16] %v3191, 128
    %5484 = vxpose.xlu0.b32.cont [2/16] 0.0, 128
    %5485 = vxpose.xlu0.b32.cont [3/16] 0.0, 128
    %5486 = vxpose.xlu0.b32.cont [4/16] 0.0, 128
    %5487 = vxpose.xlu0.b32.cont [5/16] 0.0, 128
    %5488 = vxpose.xlu0.b32.cont [6/16] 0.0, 128
    %5489 = vxpose.xlu0.b32.cont [7/16] 0.0, 128
    %5490 = vxpose.xlu0.b32.cont [8/16] 0.0, 128
    %5491 = vxpose.xlu0.b32.cont [9/16] 0.0, 128
    %5492 = vxpose.xlu0.b32.cont [10/16] 0.0, 128
    %5493 = vxpose.xlu0.b32.cont [11/16] 0.0, 128
    %5494 = vxpose.xlu0.b32.cont [12/16] 0.0, 128
    %5495 = vxpose.xlu0.b32.cont [13/16] 0.0, 128
    %5496 = vxpose.xlu0.b32.cont [14/16] 0.0, 128
    %5497 = vxpose.xlu0.b32.cont [15/16] 0.0, 128
    %5498 = vxpose.xlu0.b32.end [16/16] 0.0, 128
    %v5499 = vpop.trf.xlu0
    %v5500 = vpop.trf.xlu0
    %v5501 = vpop.trf.xlu0
    %v5502 = vpop.trf.xlu0
    %v5503 = vpop.trf.xlu0
    %v5504 = vpop.trf.xlu0
    %v5505 = vpop.trf.xlu0
    %v5506 = vpop.trf.xlu0
    %v5507 = vpop.trf.xlu0
    %v5508 = vpop.trf.xlu0
    %v5509 = vpop.trf.xlu0
    %v5510 = vpop.trf.xlu0
    %v5511 = vpop.trf.xlu0
    %v5512 = vpop.trf.xlu0
    %v5513 = vpop.trf.xlu0
    %v5514 = vpop.trf.xlu0
    %5515 = vxpose.xlu0.b32.start [1/16] %v3188, 128
    %5516 = vxpose.xlu0.b32.cont [2/16] 0.0, 128
    %5517 = vxpose.xlu0.b32.cont [3/16] 0.0, 128
    %5518 = vxpose.xlu0.b32.cont [4/16] 0.0, 128
    %5519 = vxpose.xlu0.b32.cont [5/16] 0.0, 128
    %5520 = vxpose.xlu0.b32.cont [6/16] 0.0, 128
    %5521 = vxpose.xlu0.b32.cont [7/16] 0.0, 128
    %5522 = vxpose.xlu0.b32.cont [8/16] 0.0, 128
    %5523 = vxpose.xlu0.b32.cont [9/16] 0.0, 128
    %5524 = vxpose.xlu0.b32.cont [10/16] 0.0, 128
    %5525 = vxpose.xlu0.b32.cont [11/16] 0.0, 128
    %5526 = vxpose.xlu0.b32.cont [12/16] 0.0, 128
    %5527 = vxpose.xlu0.b32.cont [13/16] 0.0, 128
    %5528 = vxpose.xlu0.b32.cont [14/16] 0.0, 128
    %5529 = vxpose.xlu0.b32.cont [15/16] 0.0, 128
    %5530 = vxpose.xlu0.b32.end [16/16] 0.0, 128
    %v5531 = vpop.trf.xlu0
    %v5532 = vpop.trf.xlu0
    %v5533 = vpop.trf.xlu0
    %v5534 = vpop.trf.xlu0
    %v5535 = vpop.trf.xlu0
    %v5536 = vpop.trf.xlu0
    %v5537 = vpop.trf.xlu0
    %v5538 = vpop.trf.xlu0
    %v5539 = vpop.trf.xlu0
    %v5540 = vpop.trf.xlu0
    %v5541 = vpop.trf.xlu0
    %v5542 = vpop.trf.xlu0
    %v5543 = vpop.trf.xlu0
    %v5544 = vpop.trf.xlu0
    %v5545 = vpop.trf.xlu0
    %v5546 = vpop.trf.xlu0
    %5547 = vxpose.xlu0.b32.start [1/16] %v3192, 128
    %5548 = vxpose.xlu0.b32.cont [2/16] 0.0, 128
    %5549 = vxpose.xlu0.b32.cont [3/16] 0.0, 128
    %5550 = vxpose.xlu0.b32.cont [4/16] 0.0, 128
    %5551 = vxpose.xlu0.b32.cont [5/16] 0.0, 128
    %5552 = vxpose.xlu0.b32.cont [6/16] 0.0, 128
    %5553 = vxpose.xlu0.b32.cont [7/16] 0.0, 128
    %5554 = vxpose.xlu0.b32.cont [8/16] 0.0, 128
    %5555 = vxpose.xlu0.b32.cont [9/16] 0.0, 128
    %5556 = vxpose.xlu0.b32.cont [10/16] 0.0, 128
    %5557 = vxpose.xlu0.b32.cont [11/16] 0.0, 128
    %5558 = vxpose.xlu0.b32.cont [12/16] 0.0, 128
    %5559 = vxpose.xlu0.b32.cont [13/16] 0.0, 128
    %5560 = vxpose.xlu0.b32.cont [14/16] 0.0, 128
    %5561 = vxpose.xlu0.b32.cont [15/16] 0.0, 128
    %5562 = vxpose.xlu0.b32.end [16/16] 0.0, 128
    %v5563 = vpop.trf.xlu0
    %v5564 = vpop.trf.xlu0
    %v5565 = vpop.trf.xlu0
    %v5566 = vpop.trf.xlu0
    %v5567 = vpop.trf.xlu0
    %v5568 = vpop.trf.xlu0
    %v5569 = vpop.trf.xlu0
    %v5570 = vpop.trf.xlu0
    %v5571 = vpop.trf.xlu0
    %v5572 = vpop.trf.xlu0
    %v5573 = vpop.trf.xlu0
    %v5574 = vpop.trf.xlu0
    %v5575 = vpop.trf.xlu0
    %v5576 = vpop.trf.xlu0
    %v5577 = vpop.trf.xlu0
    %v5578 = vpop.trf.xlu0
    %5579 = vxpose.xlu0.b32.start [1/16] %v3231, 128
    %5580 = vxpose.xlu0.b32.cont [2/16] 0.0, 128
    %5581 = vxpose.xlu0.b32.cont [3/16] 0.0, 128
    %5582 = vxpose.xlu0.b32.cont [4/16] 0.0, 128
    %5583 = vxpose.xlu0.b32.cont [5/16] 0.0, 128
    %5584 = vxpose.xlu0.b32.cont [6/16] 0.0, 128
    %5585 = vxpose.xlu0.b32.cont [7/16] 0.0, 128
    %5586 = vxpose.xlu0.b32.cont [8/16] 0.0, 128
    %5587 = vxpose.xlu0.b32.cont [9/16] 0.0, 128
    %5588 = vxpose.xlu0.b32.cont [10/16] 0.0, 128
    %5589 = vxpose.xlu0.b32.cont [11/16] 0.0, 128
    %5590 = vxpose.xlu0.b32.cont [12/16] 0.0, 128
    %5591 = vxpose.xlu0.b32.cont [13/16] 0.0, 128
    %5592 = vxpose.xlu0.b32.cont [14/16] 0.0, 128
    %5593 = vxpose.xlu0.b32.cont [15/16] 0.0, 128
    %5594 = vxpose.xlu0.b32.end [16/16] 0.0, 128
    %v5595 = vpop.trf.xlu0
    %v5596 = vpop.trf.xlu0
    %v5597 = vpop.trf.xlu0
    %v5598 = vpop.trf.xlu0
    %v5599 = vpop.trf.xlu0
    %v5600 = vpop.trf.xlu0
    %v5601 = vpop.trf.xlu0
    %v5602 = vpop.trf.xlu0
    %v5603 = vpop.trf.xlu0
    %v5604 = vpop.trf.xlu0
    %v5605 = vpop.trf.xlu0
    %v5606 = vpop.trf.xlu0
    %v5607 = vpop.trf.xlu0
    %v5608 = vpop.trf.xlu0
    %v5609 = vpop.trf.xlu0
    %v5610 = vpop.trf.xlu0
    %5611 = vxpose.xlu0.b32.start [1/16] %v3255, 128
    %5612 = vxpose.xlu0.b32.cont [2/16] 0.0, 128
    %5613 = vxpose.xlu0.b32.cont [3/16] 0.0, 128
    %5614 = vxpose.xlu0.b32.cont [4/16] 0.0, 128
    %5615 = vxpose.xlu0.b32.cont [5/16] 0.0, 128
    %5616 = vxpose.xlu0.b32.cont [6/16] 0.0, 128
    %5617 = vxpose.xlu0.b32.cont [7/16] 0.0, 128
    %5618 = vxpose.xlu0.b32.cont [8/16] 0.0, 128
    %5619 = vxpose.xlu0.b32.cont [9/16] 0.0, 128
    %5620 = vxpose.xlu0.b32.cont [10/16] 0.0, 128
    %5621 = vxpose.xlu0.b32.cont [11/16] 0.0, 128
    %5622 = vxpose.xlu0.b32.cont [12/16] 0.0, 128
    %5623 = vxpose.xlu0.b32.cont [13/16] 0.0, 128
    %5624 = vxpose.xlu0.b32.cont [14/16] 0.0, 128
    %5625 = vxpose.xlu0.b32.cont [15/16] 0.0, 128
    %5626 = vxpose.xlu0.b32.end [16/16] 0.0, 128
    %v5627 = vpop.trf.xlu0
    %v5628 = vpop.trf.xlu0
    %v5629 = vpop.trf.xlu0
    %v5630 = vpop.trf.xlu0
    %v5631 = vpop.trf.xlu0
    %v5632 = vpop.trf.xlu0
    %v5633 = vpop.trf.xlu0
    %v5634 = vpop.trf.xlu0
    %v5635 = vpop.trf.xlu0
    %v5636 = vpop.trf.xlu0
    %v5637 = vpop.trf.xlu0
    %v5638 = vpop.trf.xlu0
    %v5639 = vpop.trf.xlu0
    %v5640 = vpop.trf.xlu0
    %v5641 = vpop.trf.xlu0
    %v5642 = vpop.trf.xlu0
    %5643 = vxpose.xlu0.b32.start [1/16] %v3238, 128
    %5644 = vxpose.xlu0.b32.cont [2/16] 0.0, 128
    %5645 = vxpose.xlu0.b32.cont [3/16] 0.0, 128
    %5646 = vxpose.xlu0.b32.cont [4/16] 0.0, 128
    %5647 = vxpose.xlu0.b32.cont [5/16] 0.0, 128
    %5648 = vxpose.xlu0.b32.cont [6/16] 0.0, 128
    %5649 = vxpose.xlu0.b32.cont [7/16] 0.0, 128
    %5650 = vxpose.xlu0.b32.cont [8/16] 0.0, 128
    %5651 = vxpose.xlu0.b32.cont [9/16] 0.0, 128
    %5652 = vxpose.xlu0.b32.cont [10/16] 0.0, 128
    %5653 = vxpose.xlu0.b32.cont [11/16] 0.0, 128
    %5654 = vxpose.xlu0.b32.cont [12/16] 0.0, 128
    %5655 = vxpose.xlu0.b32.cont [13/16] 0.0, 128
    %5656 = vxpose.xlu0.b32.cont [14/16] 0.0, 128
    %5657 = vxpose.xlu0.b32.cont [15/16] 0.0, 128
    %5658 = vxpose.xlu0.b32.end [16/16] 0.0, 128
    %v5659 = vpop.trf.xlu0
    %v5660 = vpop.trf.xlu0
    %v5661 = vpop.trf.xlu0
    %v5662 = vpop.trf.xlu0
    %v5663 = vpop.trf.xlu0
    %v5664 = vpop.trf.xlu0
    %v5665 = vpop.trf.xlu0
    %v5666 = vpop.trf.xlu0
    %v5667 = vpop.trf.xlu0
    %v5668 = vpop.trf.xlu0
    %v5669 = vpop.trf.xlu0
    %v5670 = vpop.trf.xlu0
    %v5671 = vpop.trf.xlu0
    %v5672 = vpop.trf.xlu0
    %v5673 = vpop.trf.xlu0
    %v5674 = vpop.trf.xlu0
    %5675 = vxpose.xlu0.b32.start [1/16] %v3256, 128
    %5676 = vxpose.xlu0.b32.cont [2/16] 0.0, 128
    %5677 = vxpose.xlu0.b32.cont [3/16] 0.0, 128
    %5678 = vxpose.xlu0.b32.cont [4/16] 0.0, 128
    %5679 = vxpose.xlu0.b32.cont [5/16] 0.0, 128
    %5680 = vxpose.xlu0.b32.cont [6/16] 0.0, 128
    %5681 = vxpose.xlu0.b32.cont [7/16] 0.0, 128
    %5682 = vxpose.xlu0.b32.cont [8/16] 0.0, 128
    %5683 = vxpose.xlu0.b32.cont [9/16] 0.0, 128
    %5684 = vxpose.xlu0.b32.cont [10/16] 0.0, 128
    %5685 = vxpose.xlu0.b32.cont [11/16] 0.0, 128
    %5686 = vxpose.xlu0.b32.cont [12/16] 0.0, 128
    %5687 = vxpose.xlu0.b32.cont [13/16] 0.0, 128
    %5688 = vxpose.xlu0.b32.cont [14/16] 0.0, 128
    %5689 = vxpose.xlu0.b32.cont [15/16] 0.0, 128
    %5690 = vxpose.xlu0.b32.end [16/16] 0.0, 128
    %v5691 = vpop.trf.xlu0
    %v5692 = vpop.trf.xlu0
    %v5693 = vpop.trf.xlu0
    %v5694 = vpop.trf.xlu0
    %v5695 = vpop.trf.xlu0
    %v5696 = vpop.trf.xlu0
    %v5697 = vpop.trf.xlu0
    %v5698 = vpop.trf.xlu0
    %v5699 = vpop.trf.xlu0
    %v5700 = vpop.trf.xlu0
    %v5701 = vpop.trf.xlu0
    %v5702 = vpop.trf.xlu0
    %v5703 = vpop.trf.xlu0
    %v5704 = vpop.trf.xlu0
    %v5705 = vpop.trf.xlu0
    %v5706 = vpop.trf.xlu0
    %5707 = vxpose.xlu0.b32.start [1/16] %v3247, 128
    %5708 = vxpose.xlu0.b32.cont [2/16] 0.0, 128
    %5709 = vxpose.xlu0.b32.cont [3/16] 0.0, 128
    %5710 = vxpose.xlu0.b32.cont [4/16] 0.0, 128
    %5711 = vxpose.xlu0.b32.cont [5/16] 0.0, 128
    %5712 = vxpose.xlu0.b32.cont [6/16] 0.0, 128
    %5713 = vxpose.xlu0.b32.cont [7/16] 0.0, 128
    %5714 = vxpose.xlu0.b32.cont [8/16] 0.0, 128
    %5715 = vxpose.xlu0.b32.cont [9/16] 0.0, 128
    %5716 = vxpose.xlu0.b32.cont [10/16] 0.0, 128
    %5717 = vxpose.xlu0.b32.cont [11/16] 0.0, 128
    %5718 = vxpose.xlu0.b32.cont [12/16] 0.0, 128
    %5719 = vxpose.xlu0.b32.cont [13/16] 0.0, 128
    %5720 = vxpose.xlu0.b32.cont [14/16] 0.0, 128
    %5721 = vxpose.xlu0.b32.cont [15/16] 0.0, 128
    %5722 = vxpose.xlu0.b32.end [16/16] 0.0, 128
    %v5723 = vpop.trf.xlu0
    %v5724 = vpop.trf.xlu0
    %v5725 = vpop.trf.xlu0
    %v5726 = vpop.trf.xlu0
    %v5727 = vpop.trf.xlu0
    %v5728 = vpop.trf.xlu0
    %v5729 = vpop.trf.xlu0
    %v5730 = vpop.trf.xlu0
    %v5731 = vpop.trf.xlu0
    %v5732 = vpop.trf.xlu0
    %v5733 = vpop.trf.xlu0
    %v5734 = vpop.trf.xlu0
    %v5735 = vpop.trf.xlu0
    %v5736 = vpop.trf.xlu0
    %v5737 = vpop.trf.xlu0
    %v5738 = vpop.trf.xlu0
    %5739 = vxpose.xlu0.b32.start [1/16] %v3257, 128
    %5740 = vxpose.xlu0.b32.cont [2/16] 0.0, 128
    %5741 = vxpose.xlu0.b32.cont [3/16] 0.0, 128
    %5742 = vxpose.xlu0.b32.cont [4/16] 0.0, 128
    %5743 = vxpose.xlu0.b32.cont [5/16] 0.0, 128
    %5744 = vxpose.xlu0.b32.cont [6/16] 0.0, 128
    %5745 = vxpose.xlu0.b32.cont [7/16] 0.0, 128
    %5746 = vxpose.xlu0.b32.cont [8/16] 0.0, 128
    %5747 = vxpose.xlu0.b32.cont [9/16] 0.0, 128
    %5748 = vxpose.xlu0.b32.cont [10/16] 0.0, 128
    %5749 = vxpose.xlu0.b32.cont [11/16] 0.0, 128
    %5750 = vxpose.xlu0.b32.cont [12/16] 0.0, 128
    %5751 = vxpose.xlu0.b32.cont [13/16] 0.0, 128
    %5752 = vxpose.xlu0.b32.cont [14/16] 0.0, 128
    %5753 = vxpose.xlu0.b32.cont [15/16] 0.0, 128
    %5754 = vxpose.xlu0.b32.end [16/16] 0.0, 128
    %v5755 = vpop.trf.xlu0
    %v5756 = vpop.trf.xlu0
    %v5757 = vpop.trf.xlu0
    %v5758 = vpop.trf.xlu0
    %v5759 = vpop.trf.xlu0
    %v5760 = vpop.trf.xlu0
    %v5761 = vpop.trf.xlu0
    %v5762 = vpop.trf.xlu0
    %v5763 = vpop.trf.xlu0
    %v5764 = vpop.trf.xlu0
    %v5765 = vpop.trf.xlu0
    %v5766 = vpop.trf.xlu0
    %v5767 = vpop.trf.xlu0
    %v5768 = vpop.trf.xlu0
    %v5769 = vpop.trf.xlu0
    %v5770 = vpop.trf.xlu0
    %5771 = vxpose.xlu0.b32.start [1/16] %v3254, 128
    %5772 = vxpose.xlu0.b32.cont [2/16] 0.0, 128
    %5773 = vxpose.xlu0.b32.cont [3/16] 0.0, 128
    %5774 = vxpose.xlu0.b32.cont [4/16] 0.0, 128
    %5775 = vxpose.xlu0.b32.cont [5/16] 0.0, 128
    %5776 = vxpose.xlu0.b32.cont [6/16] 0.0, 128
    %5777 = vxpose.xlu0.b32.cont [7/16] 0.0, 128
    %5778 = vxpose.xlu0.b32.cont [8/16] 0.0, 128
    %5779 = vxpose.xlu0.b32.cont [9/16] 0.0, 128
    %5780 = vxpose.xlu0.b32.cont [10/16] 0.0, 128
    %5781 = vxpose.xlu0.b32.cont [11/16] 0.0, 128
    %5782 = vxpose.xlu0.b32.cont [12/16] 0.0, 128
    %5783 = vxpose.xlu0.b32.cont [13/16] 0.0, 128
    %5784 = vxpose.xlu0.b32.cont [14/16] 0.0, 128
    %5785 = vxpose.xlu0.b32.cont [15/16] 0.0, 128
    %5786 = vxpose.xlu0.b32.end [16/16] 0.0, 128
    %v5787 = vpop.trf.xlu0
    %v5788 = vpop.trf.xlu0
    %v5789 = vpop.trf.xlu0
    %v5790 = vpop.trf.xlu0
    %v5791 = vpop.trf.xlu0
    %v5792 = vpop.trf.xlu0
    %v5793 = vpop.trf.xlu0
    %v5794 = vpop.trf.xlu0
    %v5795 = vpop.trf.xlu0
    %v5796 = vpop.trf.xlu0
    %v5797 = vpop.trf.xlu0
    %v5798 = vpop.trf.xlu0
    %v5799 = vpop.trf.xlu0
    %v5800 = vpop.trf.xlu0
    %v5801 = vpop.trf.xlu0
    %v5802 = vpop.trf.xlu0
    %5803 = vxpose.xlu0.b32.start [1/16] %v3258, 128
    %5804 = vxpose.xlu0.b32.cont [2/16] 0.0, 128
    %5805 = vxpose.xlu0.b32.cont [3/16] 0.0, 128
    %5806 = vxpose.xlu0.b32.cont [4/16] 0.0, 128
    %5807 = vxpose.xlu0.b32.cont [5/16] 0.0, 128
    %5808 = vxpose.xlu0.b32.cont [6/16] 0.0, 128
    %5809 = vxpose.xlu0.b32.cont [7/16] 0.0, 128
    %5810 = vxpose.xlu0.b32.cont [8/16] 0.0, 128
    %5811 = vxpose.xlu0.b32.cont [9/16] 0.0, 128
    %5812 = vxpose.xlu0.b32.cont [10/16] 0.0, 128
    %5813 = vxpose.xlu0.b32.cont [11/16] 0.0, 128
    %5814 = vxpose.xlu0.b32.cont [12/16] 0.0, 128
    %5815 = vxpose.xlu0.b32.cont [13/16] 0.0, 128
    %5816 = vxpose.xlu0.b32.cont [14/16] 0.0, 128
    %5817 = vxpose.xlu0.b32.cont [15/16] 0.0, 128
    %5818 = vxpose.xlu0.b32.end [16/16] 0.0, 128
    %v5819 = vpop.trf.xlu0
    %v5820 = vpop.trf.xlu0
    %v5821 = vpop.trf.xlu0
    %v5822 = vpop.trf.xlu0
    %v5823 = vpop.trf.xlu0
    %v5824 = vpop.trf.xlu0
    %v5825 = vpop.trf.xlu0
    %v5826 = vpop.trf.xlu0
    %v5827 = vpop.trf.xlu0
    %v5828 = vpop.trf.xlu0
    %v5829 = vpop.trf.xlu0
    %v5830 = vpop.trf.xlu0
    %v5831 = vpop.trf.xlu0
    %v5832 = vpop.trf.xlu0
    %v5833 = vpop.trf.xlu0
    %v5834 = vpop.trf.xlu0
    %5835 = vxpose.xlu0.b32.start [1/16] %v3297, 128
    %5836 = vxpose.xlu0.b32.cont [2/16] 0.0, 128
    %5837 = vxpose.xlu0.b32.cont [3/16] 0.0, 128
    %5838 = vxpose.xlu0.b32.cont [4/16] 0.0, 128
    %5839 = vxpose.xlu0.b32.cont [5/16] 0.0, 128
    %5840 = vxpose.xlu0.b32.cont [6/16] 0.0, 128
    %5841 = vxpose.xlu0.b32.cont [7/16] 0.0, 128
    %5842 = vxpose.xlu0.b32.cont [8/16] 0.0, 128
    %5843 = vxpose.xlu0.b32.cont [9/16] 0.0, 128
    %5844 = vxpose.xlu0.b32.cont [10/16] 0.0, 128
    %5845 = vxpose.xlu0.b32.cont [11/16] 0.0, 128
    %5846 = vxpose.xlu0.b32.cont [12/16] 0.0, 128
    %5847 = vxpose.xlu0.b32.cont [13/16] 0.0, 128
    %5848 = vxpose.xlu0.b32.cont [14/16] 0.0, 128
    %5849 = vxpose.xlu0.b32.cont [15/16] 0.0, 128
    %5850 = vxpose.xlu0.b32.end [16/16] 0.0, 128
    %v5851 = vpop.trf.xlu0
    %v5852 = vpop.trf.xlu0
    %v5853 = vpop.trf.xlu0
    %v5854 = vpop.trf.xlu0
    %v5855 = vpop.trf.xlu0
    %v5856 = vpop.trf.xlu0
    %v5857 = vpop.trf.xlu0
    %v5858 = vpop.trf.xlu0
    %v5859 = vpop.trf.xlu0
    %v5860 = vpop.trf.xlu0
    %v5861 = vpop.trf.xlu0
    %v5862 = vpop.trf.xlu0
    %v5863 = vpop.trf.xlu0
    %v5864 = vpop.trf.xlu0
    %v5865 = vpop.trf.xlu0
    %v5866 = vpop.trf.xlu0
    %5867 = vxpose.xlu0.b32.start [1/16] %v3321, 128
    %5868 = vxpose.xlu0.b32.cont [2/16] 0.0, 128
    %5869 = vxpose.xlu0.b32.cont [3/16] 0.0, 128
    %5870 = vxpose.xlu0.b32.cont [4/16] 0.0, 128
    %5871 = vxpose.xlu0.b32.cont [5/16] 0.0, 128
    %5872 = vxpose.xlu0.b32.cont [6/16] 0.0, 128
    %5873 = vxpose.xlu0.b32.cont [7/16] 0.0, 128
    %5874 = vxpose.xlu0.b32.cont [8/16] 0.0, 128
    %5875 = vxpose.xlu0.b32.cont [9/16] 0.0, 128
    %5876 = vxpose.xlu0.b32.cont [10/16] 0.0, 128
    %5877 = vxpose.xlu0.b32.cont [11/16] 0.0, 128
    %5878 = vxpose.xlu0.b32.cont [12/16] 0.0, 128
    %5879 = vxpose.xlu0.b32.cont [13/16] 0.0, 128
    %5880 = vxpose.xlu0.b32.cont [14/16] 0.0, 128
    %5881 = vxpose.xlu0.b32.cont [15/16] 0.0, 128
    %5882 = vxpose.xlu0.b32.end [16/16] 0.0, 128
    %v5883 = vpop.trf.xlu0
    %v5884 = vpop.trf.xlu0
    %v5885 = vpop.trf.xlu0
    %v5886 = vpop.trf.xlu0
    %v5887 = vpop.trf.xlu0
    %v5888 = vpop.trf.xlu0
    %v5889 = vpop.trf.xlu0
    %v5890 = vpop.trf.xlu0
    %v5891 = vpop.trf.xlu0
    %v5892 = vpop.trf.xlu0
    %v5893 = vpop.trf.xlu0
    %v5894 = vpop.trf.xlu0
    %v5895 = vpop.trf.xlu0
    %v5896 = vpop.trf.xlu0
    %v5897 = vpop.trf.xlu0
    %v5898 = vpop.trf.xlu0
    %5899 = vxpose.xlu0.b32.start [1/16] %v3304, 128
    %5900 = vxpose.xlu0.b32.cont [2/16] 0.0, 128
    %5901 = vxpose.xlu0.b32.cont [3/16] 0.0, 128
    %5902 = vxpose.xlu0.b32.cont [4/16] 0.0, 128
    %5903 = vxpose.xlu0.b32.cont [5/16] 0.0, 128
    %5904 = vxpose.xlu0.b32.cont [6/16] 0.0, 128
    %5905 = vxpose.xlu0.b32.cont [7/16] 0.0, 128
    %5906 = vxpose.xlu0.b32.cont [8/16] 0.0, 128
    %5907 = vxpose.xlu0.b32.cont [9/16] 0.0, 128
    %5908 = vxpose.xlu0.b32.cont [10/16] 0.0, 128
    %5909 = vxpose.xlu0.b32.cont [11/16] 0.0, 128
    %5910 = vxpose.xlu0.b32.cont [12/16] 0.0, 128
    %5911 = vxpose.xlu0.b32.cont [13/16] 0.0, 128
    %5912 = vxpose.xlu0.b32.cont [14/16] 0.0, 128
    %5913 = vxpose.xlu0.b32.cont [15/16] 0.0, 128
    %5914 = vxpose.xlu0.b32.end [16/16] 0.0, 128
    %v5915 = vpop.trf.xlu0
    %v5916 = vpop.trf.xlu0
    %v5917 = vpop.trf.xlu0
    %v5918 = vpop.trf.xlu0
    %v5919 = vpop.trf.xlu0
    %v5920 = vpop.trf.xlu0
    %v5921 = vpop.trf.xlu0
    %v5922 = vpop.trf.xlu0
    %v5923 = vpop.trf.xlu0
    %v5924 = vpop.trf.xlu0
    %v5925 = vpop.trf.xlu0
    %v5926 = vpop.trf.xlu0
    %v5927 = vpop.trf.xlu0
    %v5928 = vpop.trf.xlu0
    %v5929 = vpop.trf.xlu0
    %v5930 = vpop.trf.xlu0
    %5931 = vxpose.xlu0.b32.start [1/16] %v3322, 128
    %5932 = vxpose.xlu0.b32.cont [2/16] 0.0, 128
    %5933 = vxpose.xlu0.b32.cont [3/16] 0.0, 128
    %5934 = vxpose.xlu0.b32.cont [4/16] 0.0, 128
    %5935 = vxpose.xlu0.b32.cont [5/16] 0.0, 128
    %5936 = vxpose.xlu0.b32.cont [6/16] 0.0, 128
    %5937 = vxpose.xlu0.b32.cont [7/16] 0.0, 128
    %5938 = vxpose.xlu0.b32.cont [8/16] 0.0, 128
    %5939 = vxpose.xlu0.b32.cont [9/16] 0.0, 128
    %5940 = vxpose.xlu0.b32.cont [10/16] 0.0, 128
    %5941 = vxpose.xlu0.b32.cont [11/16] 0.0, 128
    %5942 = vxpose.xlu0.b32.cont [12/16] 0.0, 128
    %5943 = vxpose.xlu0.b32.cont [13/16] 0.0, 128
    %5944 = vxpose.xlu0.b32.cont [14/16] 0.0, 128
    %5945 = vxpose.xlu0.b32.cont [15/16] 0.0, 128
    %5946 = vxpose.xlu0.b32.end [16/16] 0.0, 128
    %v5947 = vpop.trf.xlu0
    %v5948 = vpop.trf.xlu0
    %v5949 = vpop.trf.xlu0
    %v5950 = vpop.trf.xlu0
    %v5951 = vpop.trf.xlu0
    %v5952 = vpop.trf.xlu0
    %v5953 = vpop.trf.xlu0
    %v5954 = vpop.trf.xlu0
    %v5955 = vpop.trf.xlu0
    %v5956 = vpop.trf.xlu0
    %v5957 = vpop.trf.xlu0
    %v5958 = vpop.trf.xlu0
    %v5959 = vpop.trf.xlu0
    %v5960 = vpop.trf.xlu0
    %v5961 = vpop.trf.xlu0
    %v5962 = vpop.trf.xlu0
    %5963 = vxpose.xlu0.b32.start [1/16] %v3313, 128
    %5964 = vxpose.xlu0.b32.cont [2/16] 0.0, 128
    %5965 = vxpose.xlu0.b32.cont [3/16] 0.0, 128
    %5966 = vxpose.xlu0.b32.cont [4/16] 0.0, 128
    %5967 = vxpose.xlu0.b32.cont [5/16] 0.0, 128
    %5968 = vxpose.xlu0.b32.cont [6/16] 0.0, 128
    %5969 = vxpose.xlu0.b32.cont [7/16] 0.0, 128
    %5970 = vxpose.xlu0.b32.cont [8/16] 0.0, 128
    %5971 = vxpose.xlu0.b32.cont [9/16] 0.0, 128
    %5972 = vxpose.xlu0.b32.cont [10/16] 0.0, 128
    %5973 = vxpose.xlu0.b32.cont [11/16] 0.0, 128
    %5974 = vxpose.xlu0.b32.cont [12/16] 0.0, 128
    %5975 = vxpose.xlu0.b32.cont [13/16] 0.0, 128
    %5976 = vxpose.xlu0.b32.cont [14/16] 0.0, 128
    %5977 = vxpose.xlu0.b32.cont [15/16] 0.0, 128
    %5978 = vxpose.xlu0.b32.end [16/16] 0.0, 128
    %v5979 = vpop.trf.xlu0
    %v5980 = vpop.trf.xlu0
    %v5981 = vpop.trf.xlu0
    %v5982 = vpop.trf.xlu0
    %v5983 = vpop.trf.xlu0
    %v5984 = vpop.trf.xlu0
    %v5985 = vpop.trf.xlu0
    %v5986 = vpop.trf.xlu0
    %v5987 = vpop.trf.xlu0
    %v5988 = vpop.trf.xlu0
    %v5989 = vpop.trf.xlu0
    %v5990 = vpop.trf.xlu0
    %v5991 = vpop.trf.xlu0
    %v5992 = vpop.trf.xlu0
    %v5993 = vpop.trf.xlu0
    %v5994 = vpop.trf.xlu0
    %5995 = vxpose.xlu0.b32.start [1/16] %v3323, 128
    %5996 = vxpose.xlu0.b32.cont [2/16] 0.0, 128
    %5997 = vxpose.xlu0.b32.cont [3/16] 0.0, 128
    %5998 = vxpose.xlu0.b32.cont [4/16] 0.0, 128
    %5999 = vxpose.xlu0.b32.cont [5/16] 0.0, 128
    %6000 = vxpose.xlu0.b32.cont [6/16] 0.0, 128
    %6001 = vxpose.xlu0.b32.cont [7/16] 0.0, 128
    %6002 = vxpose.xlu0.b32.cont [8/16] 0.0, 128
    %6003 = vxpose.xlu0.b32.cont [9/16] 0.0, 128
    %6004 = vxpose.xlu0.b32.cont [10/16] 0.0, 128
    %6005 = vxpose.xlu0.b32.cont [11/16] 0.0, 128
    %6006 = vxpose.xlu0.b32.cont [12/16] 0.0, 128
    %6007 = vxpose.xlu0.b32.cont [13/16] 0.0, 128
    %6008 = vxpose.xlu0.b32.cont [14/16] 0.0, 128
    %6009 = vxpose.xlu0.b32.cont [15/16] 0.0, 128
    %6010 = vxpose.xlu0.b32.end [16/16] 0.0, 128
    %v6011 = vpop.trf.xlu0
    %v6012 = vpop.trf.xlu0
    %v6013 = vpop.trf.xlu0
    %v6014 = vpop.trf.xlu0
    %v6015 = vpop.trf.xlu0
    %v6016 = vpop.trf.xlu0
    %v6017 = vpop.trf.xlu0
    %v6018 = vpop.trf.xlu0
    %v6019 = vpop.trf.xlu0
    %v6020 = vpop.trf.xlu0
    %v6021 = vpop.trf.xlu0
    %v6022 = vpop.trf.xlu0
    %v6023 = vpop.trf.xlu0
    %v6024 = vpop.trf.xlu0
    %v6025 = vpop.trf.xlu0
    %v6026 = vpop.trf.xlu0
    %6027 = vxpose.xlu0.b32.start [1/16] %v3320, 128
    %6028 = vxpose.xlu0.b32.cont [2/16] 0.0, 128
    %6029 = vxpose.xlu0.b32.cont [3/16] 0.0, 128
    %6030 = vxpose.xlu0.b32.cont [4/16] 0.0, 128
    %6031 = vxpose.xlu0.b32.cont [5/16] 0.0, 128
    %6032 = vxpose.xlu0.b32.cont [6/16] 0.0, 128
    %6033 = vxpose.xlu0.b32.cont [7/16] 0.0, 128
    %6034 = vxpose.xlu0.b32.cont [8/16] 0.0, 128
    %6035 = vxpose.xlu0.b32.cont [9/16] 0.0, 128
    %6036 = vxpose.xlu0.b32.cont [10/16] 0.0, 128
    %6037 = vxpose.xlu0.b32.cont [11/16] 0.0, 128
    %6038 = vxpose.xlu0.b32.cont [12/16] 0.0, 128
    %6039 = vxpose.xlu0.b32.cont [13/16] 0.0, 128
    %6040 = vxpose.xlu0.b32.cont [14/16] 0.0, 128
    %6041 = vxpose.xlu0.b32.cont [15/16] 0.0, 128
    %6042 = vxpose.xlu0.b32.end [16/16] 0.0, 128
    %v6043 = vpop.trf.xlu0
    %v6044 = vpop.trf.xlu0
    %v6045 = vpop.trf.xlu0
    %v6046 = vpop.trf.xlu0
    %v6047 = vpop.trf.xlu0
    %v6048 = vpop.trf.xlu0
    %v6049 = vpop.trf.xlu0
    %v6050 = vpop.trf.xlu0
    %v6051 = vpop.trf.xlu0
    %v6052 = vpop.trf.xlu0
    %v6053 = vpop.trf.xlu0
    %v6054 = vpop.trf.xlu0
    %v6055 = vpop.trf.xlu0
    %v6056 = vpop.trf.xlu0
    %v6057 = vpop.trf.xlu0
    %v6058 = vpop.trf.xlu0
    %6059 = vxpose.xlu0.b32.start [1/16] %v3324, 128
    %6060 = vxpose.xlu0.b32.cont [2/16] 0.0, 128
    %6061 = vxpose.xlu0.b32.cont [3/16] 0.0, 128
    %6062 = vxpose.xlu0.b32.cont [4/16] 0.0, 128
    %6063 = vxpose.xlu0.b32.cont [5/16] 0.0, 128
    %6064 = vxpose.xlu0.b32.cont [6/16] 0.0, 128
    %6065 = vxpose.xlu0.b32.cont [7/16] 0.0, 128
    %6066 = vxpose.xlu0.b32.cont [8/16] 0.0, 128
    %6067 = vxpose.xlu0.b32.cont [9/16] 0.0, 128
    %6068 = vxpose.xlu0.b32.cont [10/16] 0.0, 128
    %6069 = vxpose.xlu0.b32.cont [11/16] 0.0, 128
    %6070 = vxpose.xlu0.b32.cont [12/16] 0.0, 128
    %6071 = vxpose.xlu0.b32.cont [13/16] 0.0, 128
    %6072 = vxpose.xlu0.b32.cont [14/16] 0.0, 128
    %6073 = vxpose.xlu0.b32.cont [15/16] 0.0, 128
    %6074 = vxpose.xlu0.b32.end [16/16] 0.0, 128
    %v6075 = vpop.trf.xlu0
    %v6076 = vpop.trf.xlu0
    %v6077 = vpop.trf.xlu0
    %v6078 = vpop.trf.xlu0
    %v6079 = vpop.trf.xlu0
    %v6080 = vpop.trf.xlu0
    %v6081 = vpop.trf.xlu0
    %v6082 = vpop.trf.xlu0
    %v6083 = vpop.trf.xlu0
    %v6084 = vpop.trf.xlu0
    %v6085 = vpop.trf.xlu0
    %v6086 = vpop.trf.xlu0
    %v6087 = vpop.trf.xlu0
    %v6088 = vpop.trf.xlu0
    %v6089 = vpop.trf.xlu0
    %v6090 = vpop.trf.xlu0
    %6091 = vxpose.xlu0.b32.start [1/16] %v3363, 128
    %6092 = vxpose.xlu0.b32.cont [2/16] 0.0, 128
    %6093 = vxpose.xlu0.b32.cont [3/16] 0.0, 128
    %6094 = vxpose.xlu0.b32.cont [4/16] 0.0, 128
    %6095 = vxpose.xlu0.b32.cont [5/16] 0.0, 128
    %6096 = vxpose.xlu0.b32.cont [6/16] 0.0, 128
    %6097 = vxpose.xlu0.b32.cont [7/16] 0.0, 128
    %6098 = vxpose.xlu0.b32.cont [8/16] 0.0, 128
    %6099 = vxpose.xlu0.b32.cont [9/16] 0.0, 128
    %6100 = vxpose.xlu0.b32.cont [10/16] 0.0, 128
    %6101 = vxpose.xlu0.b32.cont [11/16] 0.0, 128
    %6102 = vxpose.xlu0.b32.cont [12/16] 0.0, 128
    %6103 = vxpose.xlu0.b32.cont [13/16] 0.0, 128
    %6104 = vxpose.xlu0.b32.cont [14/16] 0.0, 128
    %6105 = vxpose.xlu0.b32.cont [15/16] 0.0, 128
    %6106 = vxpose.xlu0.b32.end [16/16] 0.0, 128
    %v6107 = vpop.trf.xlu0
    %v6108 = vpop.trf.xlu0
    %v6109 = vpop.trf.xlu0
    %v6110 = vpop.trf.xlu0
    %v6111 = vpop.trf.xlu0
    %v6112 = vpop.trf.xlu0
    %v6113 = vpop.trf.xlu0
    %v6114 = vpop.trf.xlu0
    %v6115 = vpop.trf.xlu0
    %v6116 = vpop.trf.xlu0
    %v6117 = vpop.trf.xlu0
    %v6118 = vpop.trf.xlu0
    %v6119 = vpop.trf.xlu0
    %v6120 = vpop.trf.xlu0
    %v6121 = vpop.trf.xlu0
    %v6122 = vpop.trf.xlu0
    %6123 = vxpose.xlu0.b32.start [1/16] %v3387, 128
    %6124 = vxpose.xlu0.b32.cont [2/16] 0.0, 128
    %6125 = vxpose.xlu0.b32.cont [3/16] 0.0, 128
    %6126 = vxpose.xlu0.b32.cont [4/16] 0.0, 128
    %6127 = vxpose.xlu0.b32.cont [5/16] 0.0, 128
    %6128 = vxpose.xlu0.b32.cont [6/16] 0.0, 128
    %6129 = vxpose.xlu0.b32.cont [7/16] 0.0, 128
    %6130 = vxpose.xlu0.b32.cont [8/16] 0.0, 128
    %6131 = vxpose.xlu0.b32.cont [9/16] 0.0, 128
    %6132 = vxpose.xlu0.b32.cont [10/16] 0.0, 128
    %6133 = vxpose.xlu0.b32.cont [11/16] 0.0, 128
    %6134 = vxpose.xlu0.b32.cont [12/16] 0.0, 128
    %6135 = vxpose.xlu0.b32.cont [13/16] 0.0, 128
    %6136 = vxpose.xlu0.b32.cont [14/16] 0.0, 128
    %6137 = vxpose.xlu0.b32.cont [15/16] 0.0, 128
    %6138 = vxpose.xlu0.b32.end [16/16] 0.0, 128
    %v6139 = vpop.trf.xlu0
    %v6140 = vpop.trf.xlu0
    %v6141 = vpop.trf.xlu0
    %v6142 = vpop.trf.xlu0
    %v6143 = vpop.trf.xlu0
    %v6144 = vpop.trf.xlu0
    %v6145 = vpop.trf.xlu0
    %v6146 = vpop.trf.xlu0
    %v6147 = vpop.trf.xlu0
    %v6148 = vpop.trf.xlu0
    %v6149 = vpop.trf.xlu0
    %v6150 = vpop.trf.xlu0
    %v6151 = vpop.trf.xlu0
    %v6152 = vpop.trf.xlu0
    %v6153 = vpop.trf.xlu0
    %v6154 = vpop.trf.xlu0
    %6155 = vxpose.xlu0.b32.start [1/16] %v3370, 128
    %6156 = vxpose.xlu0.b32.cont [2/16] 0.0, 128
    %6157 = vxpose.xlu0.b32.cont [3/16] 0.0, 128
    %6158 = vxpose.xlu0.b32.cont [4/16] 0.0, 128
    %6159 = vxpose.xlu0.b32.cont [5/16] 0.0, 128
    %6160 = vxpose.xlu0.b32.cont [6/16] 0.0, 128
    %6161 = vxpose.xlu0.b32.cont [7/16] 0.0, 128
    %6162 = vxpose.xlu0.b32.cont [8/16] 0.0, 128
    %6163 = vxpose.xlu0.b32.cont [9/16] 0.0, 128
    %6164 = vxpose.xlu0.b32.cont [10/16] 0.0, 128
    %6165 = vxpose.xlu0.b32.cont [11/16] 0.0, 128
    %6166 = vxpose.xlu0.b32.cont [12/16] 0.0, 128
    %6167 = vxpose.xlu0.b32.cont [13/16] 0.0, 128
    %6168 = vxpose.xlu0.b32.cont [14/16] 0.0, 128
    %6169 = vxpose.xlu0.b32.cont [15/16] 0.0, 128
    %6170 = vxpose.xlu0.b32.end [16/16] 0.0, 128
    %v6171 = vpop.trf.xlu0
    %v6172 = vpop.trf.xlu0
    %v6173 = vpop.trf.xlu0
    %v6174 = vpop.trf.xlu0
    %v6175 = vpop.trf.xlu0
    %v6176 = vpop.trf.xlu0
    %v6177 = vpop.trf.xlu0
    %v6178 = vpop.trf.xlu0
    %v6179 = vpop.trf.xlu0
    %v6180 = vpop.trf.xlu0
    %v6181 = vpop.trf.xlu0
    %v6182 = vpop.trf.xlu0
    %v6183 = vpop.trf.xlu0
    %v6184 = vpop.trf.xlu0
    %v6185 = vpop.trf.xlu0
    %v6186 = vpop.trf.xlu0
    %6187 = vxpose.xlu0.b32.start [1/16] %v3388, 128
    %6188 = vxpose.xlu0.b32.cont [2/16] 0.0, 128
    %6189 = vxpose.xlu0.b32.cont [3/16] 0.0, 128
    %6190 = vxpose.xlu0.b32.cont [4/16] 0.0, 128
    %6191 = vxpose.xlu0.b32.cont [5/16] 0.0, 128
    %6192 = vxpose.xlu0.b32.cont [6/16] 0.0, 128
    %6193 = vxpose.xlu0.b32.cont [7/16] 0.0, 128
    %6194 = vxpose.xlu0.b32.cont [8/16] 0.0, 128
    %6195 = vxpose.xlu0.b32.cont [9/16] 0.0, 128
    %6196 = vxpose.xlu0.b32.cont [10/16] 0.0, 128
    %6197 = vxpose.xlu0.b32.cont [11/16] 0.0, 128
    %6198 = vxpose.xlu0.b32.cont [12/16] 0.0, 128
    %6199 = vxpose.xlu0.b32.cont [13/16] 0.0, 128
    %6200 = vxpose.xlu0.b32.cont [14/16] 0.0, 128
    %6201 = vxpose.xlu0.b32.cont [15/16] 0.0, 128
    %6202 = vxpose.xlu0.b32.end [16/16] 0.0, 128
    %v6203 = vpop.trf.xlu0
    %v6204 = vpop.trf.xlu0
    %v6205 = vpop.trf.xlu0
    %v6206 = vpop.trf.xlu0
    %v6207 = vpop.trf.xlu0
    %v6208 = vpop.trf.xlu0
    %v6209 = vpop.trf.xlu0
    %v6210 = vpop.trf.xlu0
    %v6211 = vpop.trf.xlu0
    %v6212 = vpop.trf.xlu0
    %v6213 = vpop.trf.xlu0
    %v6214 = vpop.trf.xlu0
    %v6215 = vpop.trf.xlu0
    %v6216 = vpop.trf.xlu0
    %v6217 = vpop.trf.xlu0
    %v6218 = vpop.trf.xlu0
    %6219 = vxpose.xlu0.b32.start [1/16] %v3379, 128
    %6220 = vxpose.xlu0.b32.cont [2/16] 0.0, 128
    %6221 = vxpose.xlu0.b32.cont [3/16] 0.0, 128
    %6222 = vxpose.xlu0.b32.cont [4/16] 0.0, 128
    %6223 = vxpose.xlu0.b32.cont [5/16] 0.0, 128
    %6224 = vxpose.xlu0.b32.cont [6/16] 0.0, 128
    %6225 = vxpose.xlu0.b32.cont [7/16] 0.0, 128
    %6226 = vxpose.xlu0.b32.cont [8/16] 0.0, 128
    %6227 = vxpose.xlu0.b32.cont [9/16] 0.0, 128
    %6228 = vxpose.xlu0.b32.cont [10/16] 0.0, 128
    %6229 = vxpose.xlu0.b32.cont [11/16] 0.0, 128
    %6230 = vxpose.xlu0.b32.cont [12/16] 0.0, 128
    %6231 = vxpose.xlu0.b32.cont [13/16] 0.0, 128
    %6232 = vxpose.xlu0.b32.cont [14/16] 0.0, 128
    %6233 = vxpose.xlu0.b32.cont [15/16] 0.0, 128
    %6234 = vxpose.xlu0.b32.end [16/16] 0.0, 128
    %v6235 = vpop.trf.xlu0
    %v6236 = vpop.trf.xlu0
    %v6237 = vpop.trf.xlu0
    %v6238 = vpop.trf.xlu0
    %v6239 = vpop.trf.xlu0
    %v6240 = vpop.trf.xlu0
    %v6241 = vpop.trf.xlu0
    %v6242 = vpop.trf.xlu0
    %v6243 = vpop.trf.xlu0
    %v6244 = vpop.trf.xlu0
    %v6245 = vpop.trf.xlu0
    %v6246 = vpop.trf.xlu0
    %v6247 = vpop.trf.xlu0
    %v6248 = vpop.trf.xlu0
    %v6249 = vpop.trf.xlu0
    %v6250 = vpop.trf.xlu0
    %6251 = vxpose.xlu0.b32.start [1/16] %v3389, 128
    %6252 = vxpose.xlu0.b32.cont [2/16] 0.0, 128
    %6253 = vxpose.xlu0.b32.cont [3/16] 0.0, 128
    %6254 = vxpose.xlu0.b32.cont [4/16] 0.0, 128
    %6255 = vxpose.xlu0.b32.cont [5/16] 0.0, 128
    %6256 = vxpose.xlu0.b32.cont [6/16] 0.0, 128
    %6257 = vxpose.xlu0.b32.cont [7/16] 0.0, 128
    %6258 = vxpose.xlu0.b32.cont [8/16] 0.0, 128
    %6259 = vxpose.xlu0.b32.cont [9/16] 0.0, 128
    %6260 = vxpose.xlu0.b32.cont [10/16] 0.0, 128
    %6261 = vxpose.xlu0.b32.cont [11/16] 0.0, 128
    %6262 = vxpose.xlu0.b32.cont [12/16] 0.0, 128
    %6263 = vxpose.xlu0.b32.cont [13/16] 0.0, 128
    %6264 = vxpose.xlu0.b32.cont [14/16] 0.0, 128
    %6265 = vxpose.xlu0.b32.cont [15/16] 0.0, 128
    %6266 = vxpose.xlu0.b32.end [16/16] 0.0, 128
    %v6267 = vpop.trf.xlu0
    %v6268 = vpop.trf.xlu0
    %v6269 = vpop.trf.xlu0
    %v6270 = vpop.trf.xlu0
    %v6271 = vpop.trf.xlu0
    %v6272 = vpop.trf.xlu0
    %v6273 = vpop.trf.xlu0
    %v6274 = vpop.trf.xlu0
    %v6275 = vpop.trf.xlu0
    %v6276 = vpop.trf.xlu0
    %v6277 = vpop.trf.xlu0
    %v6278 = vpop.trf.xlu0
    %v6279 = vpop.trf.xlu0
    %v6280 = vpop.trf.xlu0
    %v6281 = vpop.trf.xlu0
    %v6282 = vpop.trf.xlu0
    %6283 = vxpose.xlu0.b32.start [1/16] %v3386, 128
    %6284 = vxpose.xlu0.b32.cont [2/16] 0.0, 128
    %6285 = vxpose.xlu0.b32.cont [3/16] 0.0, 128
    %6286 = vxpose.xlu0.b32.cont [4/16] 0.0, 128
    %6287 = vxpose.xlu0.b32.cont [5/16] 0.0, 128
    %6288 = vxpose.xlu0.b32.cont [6/16] 0.0, 128
    %6289 = vxpose.xlu0.b32.cont [7/16] 0.0, 128
    %6290 = vxpose.xlu0.b32.cont [8/16] 0.0, 128
    %6291 = vxpose.xlu0.b32.cont [9/16] 0.0, 128
    %6292 = vxpose.xlu0.b32.cont [10/16] 0.0, 128
    %6293 = vxpose.xlu0.b32.cont [11/16] 0.0, 128
    %6294 = vxpose.xlu0.b32.cont [12/16] 0.0, 128
    %6295 = vxpose.xlu0.b32.cont [13/16] 0.0, 128
    %6296 = vxpose.xlu0.b32.cont [14/16] 0.0, 128
    %6297 = vxpose.xlu0.b32.cont [15/16] 0.0, 128
    %6298 = vxpose.xlu0.b32.end [16/16] 0.0, 128
    %v6299 = vpop.trf.xlu0
    %v6300 = vpop.trf.xlu0
    %v6301 = vpop.trf.xlu0
    %v6302 = vpop.trf.xlu0
    %v6303 = vpop.trf.xlu0
    %v6304 = vpop.trf.xlu0
    %v6305 = vpop.trf.xlu0
    %v6306 = vpop.trf.xlu0
    %v6307 = vpop.trf.xlu0
    %v6308 = vpop.trf.xlu0
    %v6309 = vpop.trf.xlu0
    %v6310 = vpop.trf.xlu0
    %v6311 = vpop.trf.xlu0
    %v6312 = vpop.trf.xlu0
    %v6313 = vpop.trf.xlu0
    %v6314 = vpop.trf.xlu0
    %6315 = vxpose.xlu0.b32.start [1/16] %v3390, 128
    %6316 = vxpose.xlu0.b32.cont [2/16] 0.0, 128
    %6317 = vxpose.xlu0.b32.cont [3/16] 0.0, 128
    %6318 = vxpose.xlu0.b32.cont [4/16] 0.0, 128
    %6319 = vxpose.xlu0.b32.cont [5/16] 0.0, 128
    %6320 = vxpose.xlu0.b32.cont [6/16] 0.0, 128
    %6321 = vxpose.xlu0.b32.cont [7/16] 0.0, 128
    %6322 = vxpose.xlu0.b32.cont [8/16] 0.0, 128
    %6323 = vxpose.xlu0.b32.cont [9/16] 0.0, 128
    %6324 = vxpose.xlu0.b32.cont [10/16] 0.0, 128
    %6325 = vxpose.xlu0.b32.cont [11/16] 0.0, 128
    %6326 = vxpose.xlu0.b32.cont [12/16] 0.0, 128
    %6327 = vxpose.xlu0.b32.cont [13/16] 0.0, 128
    %6328 = vxpose.xlu0.b32.cont [14/16] 0.0, 128
    %6329 = vxpose.xlu0.b32.cont [15/16] 0.0, 128
    %6330 = vxpose.xlu0.b32.end [16/16] 0.0, 128
    %v6331 = vpop.trf.xlu0
    %v6332 = vpop.trf.xlu0
    %v6333 = vpop.trf.xlu0
    %v6334 = vpop.trf.xlu0
    %v6335 = vpop.trf.xlu0
    %v6336 = vpop.trf.xlu0
    %v6337 = vpop.trf.xlu0
    %v6338 = vpop.trf.xlu0
    %v6339 = vpop.trf.xlu0
    %v6340 = vpop.trf.xlu0
    %v6341 = vpop.trf.xlu0
    %v6342 = vpop.trf.xlu0
    %v6343 = vpop.trf.xlu0
    %v6344 = vpop.trf.xlu0
    %v6345 = vpop.trf.xlu0
    %v6346 = vpop.trf.xlu0
    %6347 = vxpose.xlu0.b32.start [1/16] %v3429, 128
    %6348 = vxpose.xlu0.b32.cont [2/16] 0.0, 128
    %6349 = vxpose.xlu0.b32.cont [3/16] 0.0, 128
    %6350 = vxpose.xlu0.b32.cont [4/16] 0.0, 128
    %6351 = vxpose.xlu0.b32.cont [5/16] 0.0, 128
    %6352 = vxpose.xlu0.b32.cont [6/16] 0.0, 128
    %6353 = vxpose.xlu0.b32.cont [7/16] 0.0, 128
    %6354 = vxpose.xlu0.b32.cont [8/16] 0.0, 128
    %6355 = vxpose.xlu0.b32.cont [9/16] 0.0, 128
    %6356 = vxpose.xlu0.b32.cont [10/16] 0.0, 128
    %6357 = vxpose.xlu0.b32.cont [11/16] 0.0, 128
    %6358 = vxpose.xlu0.b32.cont [12/16] 0.0, 128
    %6359 = vxpose.xlu0.b32.cont [13/16] 0.0, 128
    %6360 = vxpose.xlu0.b32.cont [14/16] 0.0, 128
    %6361 = vxpose.xlu0.b32.cont [15/16] 0.0, 128
    %6362 = vxpose.xlu0.b32.end [16/16] 0.0, 128
    %v6363 = vpop.trf.xlu0
    %v6364 = vpop.trf.xlu0
    %v6365 = vpop.trf.xlu0
    %v6366 = vpop.trf.xlu0
    %v6367 = vpop.trf.xlu0
    %v6368 = vpop.trf.xlu0
    %v6369 = vpop.trf.xlu0
    %v6370 = vpop.trf.xlu0
    %v6371 = vpop.trf.xlu0
    %v6372 = vpop.trf.xlu0
    %v6373 = vpop.trf.xlu0
    %v6374 = vpop.trf.xlu0
    %v6375 = vpop.trf.xlu0
    %v6376 = vpop.trf.xlu0
    %v6377 = vpop.trf.xlu0
    %v6378 = vpop.trf.xlu0
    %6379 = vxpose.xlu0.b32.start [1/16] %v3453, 128
    %6380 = vxpose.xlu0.b32.cont [2/16] 0.0, 128
    %6381 = vxpose.xlu0.b32.cont [3/16] 0.0, 128
    %6382 = vxpose.xlu0.b32.cont [4/16] 0.0, 128
    %6383 = vxpose.xlu0.b32.cont [5/16] 0.0, 128
    %6384 = vxpose.xlu0.b32.cont [6/16] 0.0, 128
    %6385 = vxpose.xlu0.b32.cont [7/16] 0.0, 128
    %6386 = vxpose.xlu0.b32.cont [8/16] 0.0, 128
    %6387 = vxpose.xlu0.b32.cont [9/16] 0.0, 128
    %6388 = vxpose.xlu0.b32.cont [10/16] 0.0, 128
    %6389 = vxpose.xlu0.b32.cont [11/16] 0.0, 128
    %6390 = vxpose.xlu0.b32.cont [12/16] 0.0, 128
    %6391 = vxpose.xlu0.b32.cont [13/16] 0.0, 128
    %6392 = vxpose.xlu0.b32.cont [14/16] 0.0, 128
    %6393 = vxpose.xlu0.b32.cont [15/16] 0.0, 128
    %6394 = vxpose.xlu0.b32.end [16/16] 0.0, 128
    %v6395 = vpop.trf.xlu0
    %v6396 = vpop.trf.xlu0
    %v6397 = vpop.trf.xlu0
    %v6398 = vpop.trf.xlu0
    %v6399 = vpop.trf.xlu0
    %v6400 = vpop.trf.xlu0
    %v6401 = vpop.trf.xlu0
    %v6402 = vpop.trf.xlu0
    %v6403 = vpop.trf.xlu0
    %v6404 = vpop.trf.xlu0
    %v6405 = vpop.trf.xlu0
    %v6406 = vpop.trf.xlu0
    %v6407 = vpop.trf.xlu0
    %v6408 = vpop.trf.xlu0
    %v6409 = vpop.trf.xlu0
    %v6410 = vpop.trf.xlu0
    %6411 = vxpose.xlu0.b32.start [1/16] %v3436, 128
    %6412 = vxpose.xlu0.b32.cont [2/16] 0.0, 128
    %6413 = vxpose.xlu0.b32.cont [3/16] 0.0, 128
    %6414 = vxpose.xlu0.b32.cont [4/16] 0.0, 128
    %6415 = vxpose.xlu0.b32.cont [5/16] 0.0, 128
    %6416 = vxpose.xlu0.b32.cont [6/16] 0.0, 128
    %6417 = vxpose.xlu0.b32.cont [7/16] 0.0, 128
    %6418 = vxpose.xlu0.b32.cont [8/16] 0.0, 128
    %6419 = vxpose.xlu0.b32.cont [9/16] 0.0, 128
    %6420 = vxpose.xlu0.b32.cont [10/16] 0.0, 128
    %6421 = vxpose.xlu0.b32.cont [11/16] 0.0, 128
    %6422 = vxpose.xlu0.b32.cont [12/16] 0.0, 128
    %6423 = vxpose.xlu0.b32.cont [13/16] 0.0, 128
    %6424 = vxpose.xlu0.b32.cont [14/16] 0.0, 128
    %6425 = vxpose.xlu0.b32.cont [15/16] 0.0, 128
    %6426 = vxpose.xlu0.b32.end [16/16] 0.0, 128
    %v6427 = vpop.trf.xlu0
    %v6428 = vpop.trf.xlu0
    %v6429 = vpop.trf.xlu0
    %v6430 = vpop.trf.xlu0
    %v6431 = vpop.trf.xlu0
    %v6432 = vpop.trf.xlu0
    %v6433 = vpop.trf.xlu0
    %v6434 = vpop.trf.xlu0
    %v6435 = vpop.trf.xlu0
    %v6436 = vpop.trf.xlu0
    %v6437 = vpop.trf.xlu0
    %v6438 = vpop.trf.xlu0
    %v6439 = vpop.trf.xlu0
    %v6440 = vpop.trf.xlu0
    %v6441 = vpop.trf.xlu0
    %v6442 = vpop.trf.xlu0
    %6443 = vxpose.xlu0.b32.start [1/16] %v3454, 128
    %6444 = vxpose.xlu0.b32.cont [2/16] 0.0, 128
    %6445 = vxpose.xlu0.b32.cont [3/16] 0.0, 128
    %6446 = vxpose.xlu0.b32.cont [4/16] 0.0, 128
    %6447 = vxpose.xlu0.b32.cont [5/16] 0.0, 128
    %6448 = vxpose.xlu0.b32.cont [6/16] 0.0, 128
    %6449 = vxpose.xlu0.b32.cont [7/16] 0.0, 128
    %6450 = vxpose.xlu0.b32.cont [8/16] 0.0, 128
    %6451 = vxpose.xlu0.b32.cont [9/16] 0.0, 128
    %6452 = vxpose.xlu0.b32.cont [10/16] 0.0, 128
    %6453 = vxpose.xlu0.b32.cont [11/16] 0.0, 128
    %6454 = vxpose.xlu0.b32.cont [12/16] 0.0, 128
    %6455 = vxpose.xlu0.b32.cont [13/16] 0.0, 128
    %6456 = vxpose.xlu0.b32.cont [14/16] 0.0, 128
    %6457 = vxpose.xlu0.b32.cont [15/16] 0.0, 128
    %6458 = vxpose.xlu0.b32.end [16/16] 0.0, 128
    %v6459 = vpop.trf.xlu0
    %v6460 = vpop.trf.xlu0
    %v6461 = vpop.trf.xlu0
    %v6462 = vpop.trf.xlu0
    %v6463 = vpop.trf.xlu0
    %v6464 = vpop.trf.xlu0
    %v6465 = vpop.trf.xlu0
    %v6466 = vpop.trf.xlu0
    %v6467 = vpop.trf.xlu0
    %v6468 = vpop.trf.xlu0
    %v6469 = vpop.trf.xlu0
    %v6470 = vpop.trf.xlu0
    %v6471 = vpop.trf.xlu0
    %v6472 = vpop.trf.xlu0
    %v6473 = vpop.trf.xlu0
    %v6474 = vpop.trf.xlu0
    %6475 = vxpose.xlu0.b32.start [1/16] %v3445, 128
    %6476 = vxpose.xlu0.b32.cont [2/16] 0.0, 128
    %6477 = vxpose.xlu0.b32.cont [3/16] 0.0, 128
    %6478 = vxpose.xlu0.b32.cont [4/16] 0.0, 128
    %6479 = vxpose.xlu0.b32.cont [5/16] 0.0, 128
    %6480 = vxpose.xlu0.b32.cont [6/16] 0.0, 128
    %6481 = vxpose.xlu0.b32.cont [7/16] 0.0, 128
    %6482 = vxpose.xlu0.b32.cont [8/16] 0.0, 128
    %6483 = vxpose.xlu0.b32.cont [9/16] 0.0, 128
    %6484 = vxpose.xlu0.b32.cont [10/16] 0.0, 128
    %6485 = vxpose.xlu0.b32.cont [11/16] 0.0, 128
    %6486 = vxpose.xlu0.b32.cont [12/16] 0.0, 128
    %6487 = vxpose.xlu0.b32.cont [13/16] 0.0, 128
    %6488 = vxpose.xlu0.b32.cont [14/16] 0.0, 128
    %6489 = vxpose.xlu0.b32.cont [15/16] 0.0, 128
    %6490 = vxpose.xlu0.b32.end [16/16] 0.0, 128
    %v6491 = vpop.trf.xlu0
    %v6492 = vpop.trf.xlu0
    %v6493 = vpop.trf.xlu0
    %v6494 = vpop.trf.xlu0
    %v6495 = vpop.trf.xlu0
    %v6496 = vpop.trf.xlu0
    %v6497 = vpop.trf.xlu0
    %v6498 = vpop.trf.xlu0
    %v6499 = vpop.trf.xlu0
    %v6500 = vpop.trf.xlu0
    %v6501 = vpop.trf.xlu0
    %v6502 = vpop.trf.xlu0
    %v6503 = vpop.trf.xlu0
    %v6504 = vpop.trf.xlu0
    %v6505 = vpop.trf.xlu0
    %v6506 = vpop.trf.xlu0
    %6507 = vxpose.xlu0.b32.start [1/16] %v3455, 128
    %6508 = vxpose.xlu0.b32.cont [2/16] 0.0, 128
    %6509 = vxpose.xlu0.b32.cont [3/16] 0.0, 128
    %6510 = vxpose.xlu0.b32.cont [4/16] 0.0, 128
    %6511 = vxpose.xlu0.b32.cont [5/16] 0.0, 128
    %6512 = vxpose.xlu0.b32.cont [6/16] 0.0, 128
    %6513 = vxpose.xlu0.b32.cont [7/16] 0.0, 128
    %6514 = vxpose.xlu0.b32.cont [8/16] 0.0, 128
    %6515 = vxpose.xlu0.b32.cont [9/16] 0.0, 128
    %6516 = vxpose.xlu0.b32.cont [10/16] 0.0, 128
    %6517 = vxpose.xlu0.b32.cont [11/16] 0.0, 128
    %6518 = vxpose.xlu0.b32.cont [12/16] 0.0, 128
    %6519 = vxpose.xlu0.b32.cont [13/16] 0.0, 128
    %6520 = vxpose.xlu0.b32.cont [14/16] 0.0, 128
    %6521 = vxpose.xlu0.b32.cont [15/16] 0.0, 128
    %6522 = vxpose.xlu0.b32.end [16/16] 0.0, 128
    %v6523 = vpop.trf.xlu0
    %v6524 = vpop.trf.xlu0
    %v6525 = vpop.trf.xlu0
    %v6526 = vpop.trf.xlu0
    %v6527 = vpop.trf.xlu0
    %v6528 = vpop.trf.xlu0
    %v6529 = vpop.trf.xlu0
    %v6530 = vpop.trf.xlu0
    %v6531 = vpop.trf.xlu0
    %v6532 = vpop.trf.xlu0
    %v6533 = vpop.trf.xlu0
    %v6534 = vpop.trf.xlu0
    %v6535 = vpop.trf.xlu0
    %v6536 = vpop.trf.xlu0
    %v6537 = vpop.trf.xlu0
    %v6538 = vpop.trf.xlu0
    %6539 = vxpose.xlu0.b32.start [1/16] %v3452, 128
    %6540 = vxpose.xlu0.b32.cont [2/16] 0.0, 128
    %6541 = vxpose.xlu0.b32.cont [3/16] 0.0, 128
    %6542 = vxpose.xlu0.b32.cont [4/16] 0.0, 128
    %6543 = vxpose.xlu0.b32.cont [5/16] 0.0, 128
    %6544 = vxpose.xlu0.b32.cont [6/16] 0.0, 128
    %6545 = vxpose.xlu0.b32.cont [7/16] 0.0, 128
    %6546 = vxpose.xlu0.b32.cont [8/16] 0.0, 128
    %6547 = vxpose.xlu0.b32.cont [9/16] 0.0, 128
    %6548 = vxpose.xlu0.b32.cont [10/16] 0.0, 128
    %6549 = vxpose.xlu0.b32.cont [11/16] 0.0, 128
    %6550 = vxpose.xlu0.b32.cont [12/16] 0.0, 128
    %6551 = vxpose.xlu0.b32.cont [13/16] 0.0, 128
    %6552 = vxpose.xlu0.b32.cont [14/16] 0.0, 128
    %6553 = vxpose.xlu0.b32.cont [15/16] 0.0, 128
    %6554 = vxpose.xlu0.b32.end [16/16] 0.0, 128
    %v6555 = vpop.trf.xlu0
    %v6556 = vpop.trf.xlu0
    %v6557 = vpop.trf.xlu0
    %v6558 = vpop.trf.xlu0
    %v6559 = vpop.trf.xlu0
    %v6560 = vpop.trf.xlu0
    %v6561 = vpop.trf.xlu0
    %v6562 = vpop.trf.xlu0
    %v6563 = vpop.trf.xlu0
    %v6564 = vpop.trf.xlu0
    %v6565 = vpop.trf.xlu0
    %v6566 = vpop.trf.xlu0
    %v6567 = vpop.trf.xlu0
    %v6568 = vpop.trf.xlu0
    %v6569 = vpop.trf.xlu0
    %v6570 = vpop.trf.xlu0
    %6571 = vxpose.xlu0.b32.start [1/16] %v3456, 128
    %6572 = vxpose.xlu0.b32.cont [2/16] 0.0, 128
    %6573 = vxpose.xlu0.b32.cont [3/16] 0.0, 128
    %6574 = vxpose.xlu0.b32.cont [4/16] 0.0, 128
    %6575 = vxpose.xlu0.b32.cont [5/16] 0.0, 128
    %6576 = vxpose.xlu0.b32.cont [6/16] 0.0, 128
    %6577 = vxpose.xlu0.b32.cont [7/16] 0.0, 128
    %6578 = vxpose.xlu0.b32.cont [8/16] 0.0, 128
    %6579 = vxpose.xlu0.b32.cont [9/16] 0.0, 128
    %6580 = vxpose.xlu0.b32.cont [10/16] 0.0, 128
    %6581 = vxpose.xlu0.b32.cont [11/16] 0.0, 128
    %6582 = vxpose.xlu0.b32.cont [12/16] 0.0, 128
    %6583 = vxpose.xlu0.b32.cont [13/16] 0.0, 128
    %6584 = vxpose.xlu0.b32.cont [14/16] 0.0, 128
    %6585 = vxpose.xlu0.b32.cont [15/16] 0.0, 128
    %6586 = vxpose.xlu0.b32.end [16/16] 0.0, 128
    %v6587 = vpop.trf.xlu0
    %v6588 = vpop.trf.xlu0
    %v6589 = vpop.trf.xlu0
    %v6590 = vpop.trf.xlu0
    %v6591 = vpop.trf.xlu0
    %v6592 = vpop.trf.xlu0
    %v6593 = vpop.trf.xlu0
    %v6594 = vpop.trf.xlu0
    %v6595 = vpop.trf.xlu0
    %v6596 = vpop.trf.xlu0
    %v6597 = vpop.trf.xlu0
    %v6598 = vpop.trf.xlu0
    %v6599 = vpop.trf.xlu0
    %v6600 = vpop.trf.xlu0
    %v6601 = vpop.trf.xlu0
    %v6602 = vpop.trf.xlu0
    %6603 = vxpose.xlu0.b32.start [1/16] %v3495, 128
    %6604 = vxpose.xlu0.b32.cont [2/16] 0.0, 128
    %6605 = vxpose.xlu0.b32.cont [3/16] 0.0, 128
    %6606 = vxpose.xlu0.b32.cont [4/16] 0.0, 128
    %6607 = vxpose.xlu0.b32.cont [5/16] 0.0, 128
    %6608 = vxpose.xlu0.b32.cont [6/16] 0.0, 128
    %6609 = vxpose.xlu0.b32.cont [7/16] 0.0, 128
    %6610 = vxpose.xlu0.b32.cont [8/16] 0.0, 128
    %6611 = vxpose.xlu0.b32.cont [9/16] 0.0, 128
    %6612 = vxpose.xlu0.b32.cont [10/16] 0.0, 128
    %6613 = vxpose.xlu0.b32.cont [11/16] 0.0, 128
    %6614 = vxpose.xlu0.b32.cont [12/16] 0.0, 128
    %6615 = vxpose.xlu0.b32.cont [13/16] 0.0, 128
    %6616 = vxpose.xlu0.b32.cont [14/16] 0.0, 128
    %6617 = vxpose.xlu0.b32.cont [15/16] 0.0, 128
    %6618 = vxpose.xlu0.b32.end [16/16] 0.0, 128
    %v6619 = vpop.trf.xlu0
    %v6620 = vpop.trf.xlu0
    %v6621 = vpop.trf.xlu0
    %v6622 = vpop.trf.xlu0
    %v6623 = vpop.trf.xlu0
    %v6624 = vpop.trf.xlu0
    %v6625 = vpop.trf.xlu0
    %v6626 = vpop.trf.xlu0
    %v6627 = vpop.trf.xlu0
    %v6628 = vpop.trf.xlu0
    %v6629 = vpop.trf.xlu0
    %v6630 = vpop.trf.xlu0
    %v6631 = vpop.trf.xlu0
    %v6632 = vpop.trf.xlu0
    %v6633 = vpop.trf.xlu0
    %v6634 = vpop.trf.xlu0
    %6635 = vxpose.xlu0.b32.start [1/16] %v3519, 128
    %6636 = vxpose.xlu0.b32.cont [2/16] 0.0, 128
    %6637 = vxpose.xlu0.b32.cont [3/16] 0.0, 128
    %6638 = vxpose.xlu0.b32.cont [4/16] 0.0, 128
    %6639 = vxpose.xlu0.b32.cont [5/16] 0.0, 128
    %6640 = vxpose.xlu0.b32.cont [6/16] 0.0, 128
    %6641 = vxpose.xlu0.b32.cont [7/16] 0.0, 128
    %6642 = vxpose.xlu0.b32.cont [8/16] 0.0, 128
    %6643 = vxpose.xlu0.b32.cont [9/16] 0.0, 128
    %6644 = vxpose.xlu0.b32.cont [10/16] 0.0, 128
    %6645 = vxpose.xlu0.b32.cont [11/16] 0.0, 128
    %6646 = vxpose.xlu0.b32.cont [12/16] 0.0, 128
    %6647 = vxpose.xlu0.b32.cont [13/16] 0.0, 128
    %6648 = vxpose.xlu0.b32.cont [14/16] 0.0, 128
    %6649 = vxpose.xlu0.b32.cont [15/16] 0.0, 128
    %6650 = vxpose.xlu0.b32.end [16/16] 0.0, 128
    %v6651 = vpop.trf.xlu0
    %v6652 = vpop.trf.xlu0
    %v6653 = vpop.trf.xlu0
    %v6654 = vpop.trf.xlu0
    %v6655 = vpop.trf.xlu0
    %v6656 = vpop.trf.xlu0
    %v6657 = vpop.trf.xlu0
    %v6658 = vpop.trf.xlu0
    %v6659 = vpop.trf.xlu0
    %v6660 = vpop.trf.xlu0
    %v6661 = vpop.trf.xlu0
    %v6662 = vpop.trf.xlu0
    %v6663 = vpop.trf.xlu0
    %v6664 = vpop.trf.xlu0
    %v6665 = vpop.trf.xlu0
    %v6666 = vpop.trf.xlu0
    %6667 = vxpose.xlu0.b32.start [1/16] %v3502, 128
    %6668 = vxpose.xlu0.b32.cont [2/16] 0.0, 128
    %6669 = vxpose.xlu0.b32.cont [3/16] 0.0, 128
    %6670 = vxpose.xlu0.b32.cont [4/16] 0.0, 128
    %6671 = vxpose.xlu0.b32.cont [5/16] 0.0, 128
    %6672 = vxpose.xlu0.b32.cont [6/16] 0.0, 128
    %6673 = vxpose.xlu0.b32.cont [7/16] 0.0, 128
    %6674 = vxpose.xlu0.b32.cont [8/16] 0.0, 128
    %6675 = vxpose.xlu0.b32.cont [9/16] 0.0, 128
    %6676 = vxpose.xlu0.b32.cont [10/16] 0.0, 128
    %6677 = vxpose.xlu0.b32.cont [11/16] 0.0, 128
    %6678 = vxpose.xlu0.b32.cont [12/16] 0.0, 128
    %6679 = vxpose.xlu0.b32.cont [13/16] 0.0, 128
    %6680 = vxpose.xlu0.b32.cont [14/16] 0.0, 128
    %6681 = vxpose.xlu0.b32.cont [15/16] 0.0, 128
    %6682 = vxpose.xlu0.b32.end [16/16] 0.0, 128
    %v6683 = vpop.trf.xlu0
    %v6684 = vpop.trf.xlu0
    %v6685 = vpop.trf.xlu0
    %v6686 = vpop.trf.xlu0
    %v6687 = vpop.trf.xlu0
    %v6688 = vpop.trf.xlu0
    %v6689 = vpop.trf.xlu0
    %v6690 = vpop.trf.xlu0
    %v6691 = vpop.trf.xlu0
    %v6692 = vpop.trf.xlu0
    %v6693 = vpop.trf.xlu0
    %v6694 = vpop.trf.xlu0
    %v6695 = vpop.trf.xlu0
    %v6696 = vpop.trf.xlu0
    %v6697 = vpop.trf.xlu0
    %v6698 = vpop.trf.xlu0
    %6699 = vxpose.xlu0.b32.start [1/16] %v3520, 128
    %6700 = vxpose.xlu0.b32.cont [2/16] 0.0, 128
    %6701 = vxpose.xlu0.b32.cont [3/16] 0.0, 128
    %6702 = vxpose.xlu0.b32.cont [4/16] 0.0, 128
    %6703 = vxpose.xlu0.b32.cont [5/16] 0.0, 128
    %6704 = vxpose.xlu0.b32.cont [6/16] 0.0, 128
    %6705 = vxpose.xlu0.b32.cont [7/16] 0.0, 128
    %6706 = vxpose.xlu0.b32.cont [8/16] 0.0, 128
    %6707 = vxpose.xlu0.b32.cont [9/16] 0.0, 128
    %6708 = vxpose.xlu0.b32.cont [10/16] 0.0, 128
    %6709 = vxpose.xlu0.b32.cont [11/16] 0.0, 128
    %6710 = vxpose.xlu0.b32.cont [12/16] 0.0, 128
    %6711 = vxpose.xlu0.b32.cont [13/16] 0.0, 128
    %6712 = vxpose.xlu0.b32.cont [14/16] 0.0, 128
    %6713 = vxpose.xlu0.b32.cont [15/16] 0.0, 128
    %6714 = vxpose.xlu0.b32.end [16/16] 0.0, 128
    %v6715 = vpop.trf.xlu0
    %v6716 = vpop.trf.xlu0
    %v6717 = vpop.trf.xlu0
    %v6718 = vpop.trf.xlu0
    %v6719 = vpop.trf.xlu0
    %v6720 = vpop.trf.xlu0
    %v6721 = vpop.trf.xlu0
    %v6722 = vpop.trf.xlu0
    %v6723 = vpop.trf.xlu0
    %v6724 = vpop.trf.xlu0
    %v6725 = vpop.trf.xlu0
    %v6726 = vpop.trf.xlu0
    %v6727 = vpop.trf.xlu0
    %v6728 = vpop.trf.xlu0
    %v6729 = vpop.trf.xlu0
    %v6730 = vpop.trf.xlu0
    %6731 = vxpose.xlu0.b32.start [1/16] %v3511, 128
    %6732 = vxpose.xlu0.b32.cont [2/16] 0.0, 128
    %6733 = vxpose.xlu0.b32.cont [3/16] 0.0, 128
    %6734 = vxpose.xlu0.b32.cont [4/16] 0.0, 128
    %6735 = vxpose.xlu0.b32.cont [5/16] 0.0, 128
    %6736 = vxpose.xlu0.b32.cont [6/16] 0.0, 128
    %6737 = vxpose.xlu0.b32.cont [7/16] 0.0, 128
    %6738 = vxpose.xlu0.b32.cont [8/16] 0.0, 128
    %6739 = vxpose.xlu0.b32.cont [9/16] 0.0, 128
    %6740 = vxpose.xlu0.b32.cont [10/16] 0.0, 128
    %6741 = vxpose.xlu0.b32.cont [11/16] 0.0, 128
    %6742 = vxpose.xlu0.b32.cont [12/16] 0.0, 128
    %6743 = vxpose.xlu0.b32.cont [13/16] 0.0, 128
    %6744 = vxpose.xlu0.b32.cont [14/16] 0.0, 128
    %6745 = vxpose.xlu0.b32.cont [15/16] 0.0, 128
    %6746 = vxpose.xlu0.b32.end [16/16] 0.0, 128
    %v6747 = vpop.trf.xlu0
    %v6748 = vpop.trf.xlu0
    %v6749 = vpop.trf.xlu0
    %v6750 = vpop.trf.xlu0
    %v6751 = vpop.trf.xlu0
    %v6752 = vpop.trf.xlu0
    %v6753 = vpop.trf.xlu0
    %v6754 = vpop.trf.xlu0
    %v6755 = vpop.trf.xlu0
    %v6756 = vpop.trf.xlu0
    %v6757 = vpop.trf.xlu0
    %v6758 = vpop.trf.xlu0
    %v6759 = vpop.trf.xlu0
    %v6760 = vpop.trf.xlu0
    %v6761 = vpop.trf.xlu0
    %v6762 = vpop.trf.xlu0
    %6763 = vxpose.xlu0.b32.start [1/16] %v3521, 128
    %6764 = vxpose.xlu0.b32.cont [2/16] 0.0, 128
    %6765 = vxpose.xlu0.b32.cont [3/16] 0.0, 128
    %6766 = vxpose.xlu0.b32.cont [4/16] 0.0, 128
    %6767 = vxpose.xlu0.b32.cont [5/16] 0.0, 128
    %6768 = vxpose.xlu0.b32.cont [6/16] 0.0, 128
    %6769 = vxpose.xlu0.b32.cont [7/16] 0.0, 128
    %6770 = vxpose.xlu0.b32.cont [8/16] 0.0, 128
    %6771 = vxpose.xlu0.b32.cont [9/16] 0.0, 128
    %6772 = vxpose.xlu0.b32.cont [10/16] 0.0, 128
    %6773 = vxpose.xlu0.b32.cont [11/16] 0.0, 128
    %6774 = vxpose.xlu0.b32.cont [12/16] 0.0, 128
    %6775 = vxpose.xlu0.b32.cont [13/16] 0.0, 128
    %6776 = vxpose.xlu0.b32.cont [14/16] 0.0, 128
    %6777 = vxpose.xlu0.b32.cont [15/16] 0.0, 128
    %6778 = vxpose.xlu0.b32.end [16/16] 0.0, 128
    %v6779 = vpop.trf.xlu0
    %v6780 = vpop.trf.xlu0
    %v6781 = vpop.trf.xlu0
    %v6782 = vpop.trf.xlu0
    %v6783 = vpop.trf.xlu0
    %v6784 = vpop.trf.xlu0
    %v6785 = vpop.trf.xlu0
    %v6786 = vpop.trf.xlu0
    %v6787 = vpop.trf.xlu0
    %v6788 = vpop.trf.xlu0
    %v6789 = vpop.trf.xlu0
    %v6790 = vpop.trf.xlu0
    %v6791 = vpop.trf.xlu0
    %v6792 = vpop.trf.xlu0
    %v6793 = vpop.trf.xlu0
    %v6794 = vpop.trf.xlu0
    %6795 = vxpose.xlu0.b32.start [1/16] %v3518, 128
    %6796 = vxpose.xlu0.b32.cont [2/16] 0.0, 128
    %6797 = vxpose.xlu0.b32.cont [3/16] 0.0, 128
    %6798 = vxpose.xlu0.b32.cont [4/16] 0.0, 128
    %6799 = vxpose.xlu0.b32.cont [5/16] 0.0, 128
    %6800 = vxpose.xlu0.b32.cont [6/16] 0.0, 128
    %6801 = vxpose.xlu0.b32.cont [7/16] 0.0, 128
    %6802 = vxpose.xlu0.b32.cont [8/16] 0.0, 128
    %6803 = vxpose.xlu0.b32.cont [9/16] 0.0, 128
    %6804 = vxpose.xlu0.b32.cont [10/16] 0.0, 128
    %6805 = vxpose.xlu0.b32.cont [11/16] 0.0, 128
    %6806 = vxpose.xlu0.b32.cont [12/16] 0.0, 128
    %6807 = vxpose.xlu0.b32.cont [13/16] 0.0, 128
    %6808 = vxpose.xlu0.b32.cont [14/16] 0.0, 128
    %6809 = vxpose.xlu0.b32.cont [15/16] 0.0, 128
    %6810 = vxpose.xlu0.b32.end [16/16] 0.0, 128
    %v6811 = vpop.trf.xlu0
    %v6812 = vpop.trf.xlu0
    %v6813 = vpop.trf.xlu0
    %v6814 = vpop.trf.xlu0
    %v6815 = vpop.trf.xlu0
    %v6816 = vpop.trf.xlu0
    %v6817 = vpop.trf.xlu0
    %v6818 = vpop.trf.xlu0
    %v6819 = vpop.trf.xlu0
    %v6820 = vpop.trf.xlu0
    %v6821 = vpop.trf.xlu0
    %v6822 = vpop.trf.xlu0
    %v6823 = vpop.trf.xlu0
    %v6824 = vpop.trf.xlu0
    %v6825 = vpop.trf.xlu0
    %v6826 = vpop.trf.xlu0
    %6827 = vxpose.xlu0.b32.start [1/16] %v3522, 128
    %6828 = vxpose.xlu0.b32.cont [2/16] 0.0, 128
    %6829 = vxpose.xlu0.b32.cont [3/16] 0.0, 128
    %6830 = vxpose.xlu0.b32.cont [4/16] 0.0, 128
    %6831 = vxpose.xlu0.b32.cont [5/16] 0.0, 128
    %6832 = vxpose.xlu0.b32.cont [6/16] 0.0, 128
    %6833 = vxpose.xlu0.b32.cont [7/16] 0.0, 128
    %6834 = vxpose.xlu0.b32.cont [8/16] 0.0, 128
    %6835 = vxpose.xlu0.b32.cont [9/16] 0.0, 128
    %6836 = vxpose.xlu0.b32.cont [10/16] 0.0, 128
    %6837 = vxpose.xlu0.b32.cont [11/16] 0.0, 128
    %6838 = vxpose.xlu0.b32.cont [12/16] 0.0, 128
    %6839 = vxpose.xlu0.b32.cont [13/16] 0.0, 128
    %6840 = vxpose.xlu0.b32.cont [14/16] 0.0, 128
    %6841 = vxpose.xlu0.b32.cont [15/16] 0.0, 128
    %6842 = vxpose.xlu0.b32.end [16/16] 0.0, 128
    %v6843 = vpop.trf.xlu0
    %v6844 = vpop.trf.xlu0
    %v6845 = vpop.trf.xlu0
    %v6846 = vpop.trf.xlu0
    %v6847 = vpop.trf.xlu0
    %v6848 = vpop.trf.xlu0
    %v6849 = vpop.trf.xlu0
    %v6850 = vpop.trf.xlu0
    %v6851 = vpop.trf.xlu0
    %v6852 = vpop.trf.xlu0
    %v6853 = vpop.trf.xlu0
    %v6854 = vpop.trf.xlu0
    %v6855 = vpop.trf.xlu0
    %v6856 = vpop.trf.xlu0
    %v6857 = vpop.trf.xlu0
    %v6858 = vpop.trf.xlu0
    %6859 = vxpose.xlu0.b32.start [1/16] %v3561, 128
    %6860 = vxpose.xlu0.b32.cont [2/16] 0.0, 128
    %6861 = vxpose.xlu0.b32.cont [3/16] 0.0, 128
    %6862 = vxpose.xlu0.b32.cont [4/16] 0.0, 128
    %6863 = vxpose.xlu0.b32.cont [5/16] 0.0, 128
    %6864 = vxpose.xlu0.b32.cont [6/16] 0.0, 128
    %6865 = vxpose.xlu0.b32.cont [7/16] 0.0, 128
    %6866 = vxpose.xlu0.b32.cont [8/16] 0.0, 128
    %6867 = vxpose.xlu0.b32.cont [9/16] 0.0, 128
    %6868 = vxpose.xlu0.b32.cont [10/16] 0.0, 128
    %6869 = vxpose.xlu0.b32.cont [11/16] 0.0, 128
    %6870 = vxpose.xlu0.b32.cont [12/16] 0.0, 128
    %6871 = vxpose.xlu0.b32.cont [13/16] 0.0, 128
    %6872 = vxpose.xlu0.b32.cont [14/16] 0.0, 128
    %6873 = vxpose.xlu0.b32.cont [15/16] 0.0, 128
    %6874 = vxpose.xlu0.b32.end [16/16] 0.0, 128
    %v6875 = vpop.trf.xlu0
    %v6876 = vpop.trf.xlu0
    %v6877 = vpop.trf.xlu0
    %v6878 = vpop.trf.xlu0
    %v6879 = vpop.trf.xlu0
    %v6880 = vpop.trf.xlu0
    %v6881 = vpop.trf.xlu0
    %v6882 = vpop.trf.xlu0
    %v6883 = vpop.trf.xlu0
    %v6884 = vpop.trf.xlu0
    %v6885 = vpop.trf.xlu0
    %v6886 = vpop.trf.xlu0
    %v6887 = vpop.trf.xlu0
    %v6888 = vpop.trf.xlu0
    %v6889 = vpop.trf.xlu0
    %v6890 = vpop.trf.xlu0
    %6891 = vxpose.xlu0.b32.start [1/16] %v3585, 128
    %6892 = vxpose.xlu0.b32.cont [2/16] 0.0, 128
    %6893 = vxpose.xlu0.b32.cont [3/16] 0.0, 128
    %6894 = vxpose.xlu0.b32.cont [4/16] 0.0, 128
    %6895 = vxpose.xlu0.b32.cont [5/16] 0.0, 128
    %6896 = vxpose.xlu0.b32.cont [6/16] 0.0, 128
    %6897 = vxpose.xlu0.b32.cont [7/16] 0.0, 128
    %6898 = vxpose.xlu0.b32.cont [8/16] 0.0, 128
    %6899 = vxpose.xlu0.b32.cont [9/16] 0.0, 128
    %6900 = vxpose.xlu0.b32.cont [10/16] 0.0, 128
    %6901 = vxpose.xlu0.b32.cont [11/16] 0.0, 128
    %6902 = vxpose.xlu0.b32.cont [12/16] 0.0, 128
    %6903 = vxpose.xlu0.b32.cont [13/16] 0.0, 128
    %6904 = vxpose.xlu0.b32.cont [14/16] 0.0, 128
    %6905 = vxpose.xlu0.b32.cont [15/16] 0.0, 128
    %6906 = vxpose.xlu0.b32.end [16/16] 0.0, 128
    %v6907 = vpop.trf.xlu0
    %v6908 = vpop.trf.xlu0
    %v6909 = vpop.trf.xlu0
    %v6910 = vpop.trf.xlu0
    %v6911 = vpop.trf.xlu0
    %v6912 = vpop.trf.xlu0
    %v6913 = vpop.trf.xlu0
    %v6914 = vpop.trf.xlu0
    %v6915 = vpop.trf.xlu0
    %v6916 = vpop.trf.xlu0
    %v6917 = vpop.trf.xlu0
    %v6918 = vpop.trf.xlu0
    %v6919 = vpop.trf.xlu0
    %v6920 = vpop.trf.xlu0
    %v6921 = vpop.trf.xlu0
    %v6922 = vpop.trf.xlu0
    %6923 = vxpose.xlu0.b32.start [1/16] %v3568, 128
    %6924 = vxpose.xlu0.b32.cont [2/16] 0.0, 128
    %6925 = vxpose.xlu0.b32.cont [3/16] 0.0, 128
    %6926 = vxpose.xlu0.b32.cont [4/16] 0.0, 128
    %6927 = vxpose.xlu0.b32.cont [5/16] 0.0, 128
    %6928 = vxpose.xlu0.b32.cont [6/16] 0.0, 128
    %6929 = vxpose.xlu0.b32.cont [7/16] 0.0, 128
    %6930 = vxpose.xlu0.b32.cont [8/16] 0.0, 128
    %6931 = vxpose.xlu0.b32.cont [9/16] 0.0, 128
    %6932 = vxpose.xlu0.b32.cont [10/16] 0.0, 128
    %6933 = vxpose.xlu0.b32.cont [11/16] 0.0, 128
    %6934 = vxpose.xlu0.b32.cont [12/16] 0.0, 128
    %6935 = vxpose.xlu0.b32.cont [13/16] 0.0, 128
    %6936 = vxpose.xlu0.b32.cont [14/16] 0.0, 128
    %6937 = vxpose.xlu0.b32.cont [15/16] 0.0, 128
    %6938 = vxpose.xlu0.b32.end [16/16] 0.0, 128
    %v6939 = vpop.trf.xlu0
    %v6940 = vpop.trf.xlu0
    %v6941 = vpop.trf.xlu0
    %v6942 = vpop.trf.xlu0
    %v6943 = vpop.trf.xlu0
    %v6944 = vpop.trf.xlu0
    %v6945 = vpop.trf.xlu0
    %v6946 = vpop.trf.xlu0
    %v6947 = vpop.trf.xlu0
    %v6948 = vpop.trf.xlu0
    %v6949 = vpop.trf.xlu0
    %v6950 = vpop.trf.xlu0
    %v6951 = vpop.trf.xlu0
    %v6952 = vpop.trf.xlu0
    %v6953 = vpop.trf.xlu0
    %v6954 = vpop.trf.xlu0
    %6955 = vxpose.xlu0.b32.start [1/16] %v3586, 128
    %6956 = vxpose.xlu0.b32.cont [2/16] 0.0, 128
    %6957 = vxpose.xlu0.b32.cont [3/16] 0.0, 128
    %6958 = vxpose.xlu0.b32.cont [4/16] 0.0, 128
    %6959 = vxpose.xlu0.b32.cont [5/16] 0.0, 128
    %6960 = vxpose.xlu0.b32.cont [6/16] 0.0, 128
    %6961 = vxpose.xlu0.b32.cont [7/16] 0.0, 128
    %6962 = vxpose.xlu0.b32.cont [8/16] 0.0, 128
    %6963 = vxpose.xlu0.b32.cont [9/16] 0.0, 128
    %6964 = vxpose.xlu0.b32.cont [10/16] 0.0, 128
    %6965 = vxpose.xlu0.b32.cont [11/16] 0.0, 128
    %6966 = vxpose.xlu0.b32.cont [12/16] 0.0, 128
    %6967 = vxpose.xlu0.b32.cont [13/16] 0.0, 128
    %6968 = vxpose.xlu0.b32.cont [14/16] 0.0, 128
    %6969 = vxpose.xlu0.b32.cont [15/16] 0.0, 128
    %6970 = vxpose.xlu0.b32.end [16/16] 0.0, 128
    %v6971 = vpop.trf.xlu0
    %v6972 = vpop.trf.xlu0
    %v6973 = vpop.trf.xlu0
    %v6974 = vpop.trf.xlu0
    %v6975 = vpop.trf.xlu0
    %v6976 = vpop.trf.xlu0
    %v6977 = vpop.trf.xlu0
    %v6978 = vpop.trf.xlu0
    %v6979 = vpop.trf.xlu0
    %v6980 = vpop.trf.xlu0
    %v6981 = vpop.trf.xlu0
    %v6982 = vpop.trf.xlu0
    %v6983 = vpop.trf.xlu0
    %v6984 = vpop.trf.xlu0
    %v6985 = vpop.trf.xlu0
    %v6986 = vpop.trf.xlu0
    %6987 = vxpose.xlu0.b32.start [1/16] %v3577, 128
    %6988 = vxpose.xlu0.b32.cont [2/16] 0.0, 128
    %6989 = vxpose.xlu0.b32.cont [3/16] 0.0, 128
    %6990 = vxpose.xlu0.b32.cont [4/16] 0.0, 128
    %6991 = vxpose.xlu0.b32.cont [5/16] 0.0, 128
    %6992 = vxpose.xlu0.b32.cont [6/16] 0.0, 128
    %6993 = vxpose.xlu0.b32.cont [7/16] 0.0, 128
    %6994 = vxpose.xlu0.b32.cont [8/16] 0.0, 128
    %6995 = vxpose.xlu0.b32.cont [9/16] 0.0, 128
    %6996 = vxpose.xlu0.b32.cont [10/16] 0.0, 128
    %6997 = vxpose.xlu0.b32.cont [11/16] 0.0, 128
    %6998 = vxpose.xlu0.b32.cont [12/16] 0.0, 128
    %6999 = vxpose.xlu0.b32.cont [13/16] 0.0, 128
    %7000 = vxpose.xlu0.b32.cont [14/16] 0.0, 128
    %7001 = vxpose.xlu0.b32.cont [15/16] 0.0, 128
    %7002 = vxpose.xlu0.b32.end [16/16] 0.0, 128
    %v7003 = vpop.trf.xlu0
    %v7004 = vpop.trf.xlu0
    %v7005 = vpop.trf.xlu0
    %v7006 = vpop.trf.xlu0
    %v7007 = vpop.trf.xlu0
    %v7008 = vpop.trf.xlu0
    %v7009 = vpop.trf.xlu0
    %v7010 = vpop.trf.xlu0
    %v7011 = vpop.trf.xlu0
    %v7012 = vpop.trf.xlu0
    %v7013 = vpop.trf.xlu0
    %v7014 = vpop.trf.xlu0
    %v7015 = vpop.trf.xlu0
    %v7016 = vpop.trf.xlu0
    %v7017 = vpop.trf.xlu0
    %v7018 = vpop.trf.xlu0
    %7019 = vxpose.xlu0.b32.start [1/16] %v3587, 128
    %7020 = vxpose.xlu0.b32.cont [2/16] 0.0, 128
    %7021 = vxpose.xlu0.b32.cont [3/16] 0.0, 128
    %7022 = vxpose.xlu0.b32.cont [4/16] 0.0, 128
    %7023 = vxpose.xlu0.b32.cont [5/16] 0.0, 128
    %7024 = vxpose.xlu0.b32.cont [6/16] 0.0, 128
    %7025 = vxpose.xlu0.b32.cont [7/16] 0.0, 128
    %7026 = vxpose.xlu0.b32.cont [8/16] 0.0, 128
    %7027 = vxpose.xlu0.b32.cont [9/16] 0.0, 128
    %7028 = vxpose.xlu0.b32.cont [10/16] 0.0, 128
    %7029 = vxpose.xlu0.b32.cont [11/16] 0.0, 128
    %7030 = vxpose.xlu0.b32.cont [12/16] 0.0, 128
    %7031 = vxpose.xlu0.b32.cont [13/16] 0.0, 128
    %7032 = vxpose.xlu0.b32.cont [14/16] 0.0, 128
    %7033 = vxpose.xlu0.b32.cont [15/16] 0.0, 128
    %7034 = vxpose.xlu0.b32.end [16/16] 0.0, 128
    %v7035 = vpop.trf.xlu0
    %v7036 = vpop.trf.xlu0
    %v7037 = vpop.trf.xlu0
    %v7038 = vpop.trf.xlu0
    %v7039 = vpop.trf.xlu0
    %v7040 = vpop.trf.xlu0
    %v7041 = vpop.trf.xlu0
    %v7042 = vpop.trf.xlu0
    %v7043 = vpop.trf.xlu0
    %v7044 = vpop.trf.xlu0
    %v7045 = vpop.trf.xlu0
    %v7046 = vpop.trf.xlu0
    %v7047 = vpop.trf.xlu0
    %v7048 = vpop.trf.xlu0
    %v7049 = vpop.trf.xlu0
    %v7050 = vpop.trf.xlu0
    %7051 = vxpose.xlu0.b32.start [1/16] %v3584, 128
    %7052 = vxpose.xlu0.b32.cont [2/16] 0.0, 128
    %7053 = vxpose.xlu0.b32.cont [3/16] 0.0, 128
    %7054 = vxpose.xlu0.b32.cont [4/16] 0.0, 128
    %7055 = vxpose.xlu0.b32.cont [5/16] 0.0, 128
    %7056 = vxpose.xlu0.b32.cont [6/16] 0.0, 128
    %7057 = vxpose.xlu0.b32.cont [7/16] 0.0, 128
    %7058 = vxpose.xlu0.b32.cont [8/16] 0.0, 128
    %7059 = vxpose.xlu0.b32.cont [9/16] 0.0, 128
    %7060 = vxpose.xlu0.b32.cont [10/16] 0.0, 128
    %7061 = vxpose.xlu0.b32.cont [11/16] 0.0, 128
    %7062 = vxpose.xlu0.b32.cont [12/16] 0.0, 128
    %7063 = vxpose.xlu0.b32.cont [13/16] 0.0, 128
    %7064 = vxpose.xlu0.b32.cont [14/16] 0.0, 128
    %7065 = vxpose.xlu0.b32.cont [15/16] 0.0, 128
    %7066 = vxpose.xlu0.b32.end [16/16] 0.0, 128
    %v7067 = vpop.trf.xlu0
    %v7068 = vpop.trf.xlu0
    %v7069 = vpop.trf.xlu0
    %v7070 = vpop.trf.xlu0
    %v7071 = vpop.trf.xlu0
    %v7072 = vpop.trf.xlu0
    %v7073 = vpop.trf.xlu0
    %v7074 = vpop.trf.xlu0
    %v7075 = vpop.trf.xlu0
    %v7076 = vpop.trf.xlu0
    %v7077 = vpop.trf.xlu0
    %v7078 = vpop.trf.xlu0
    %v7079 = vpop.trf.xlu0
    %v7080 = vpop.trf.xlu0
    %v7081 = vpop.trf.xlu0
    %v7082 = vpop.trf.xlu0
    %7083 = vxpose.xlu0.b32.start [1/16] %v3588, 128
    %7084 = vxpose.xlu0.b32.cont [2/16] 0.0, 128
    %7085 = vxpose.xlu0.b32.cont [3/16] 0.0, 128
    %7086 = vxpose.xlu0.b32.cont [4/16] 0.0, 128
    %7087 = vxpose.xlu0.b32.cont [5/16] 0.0, 128
    %7088 = vxpose.xlu0.b32.cont [6/16] 0.0, 128
    %7089 = vxpose.xlu0.b32.cont [7/16] 0.0, 128
    %7090 = vxpose.xlu0.b32.cont [8/16] 0.0, 128
    %7091 = vxpose.xlu0.b32.cont [9/16] 0.0, 128
    %7092 = vxpose.xlu0.b32.cont [10/16] 0.0, 128
    %7093 = vxpose.xlu0.b32.cont [11/16] 0.0, 128
    %7094 = vxpose.xlu0.b32.cont [12/16] 0.0, 128
    %7095 = vxpose.xlu0.b32.cont [13/16] 0.0, 128
    %7096 = vxpose.xlu0.b32.cont [14/16] 0.0, 128
    %7097 = vxpose.xlu0.b32.cont [15/16] 0.0, 128
    %7098 = vxpose.xlu0.b32.end [16/16] 0.0, 128
    %v7099 = vpop.trf.xlu0
    %v7100 = vpop.trf.xlu0
    %v7101 = vpop.trf.xlu0
    %v7102 = vpop.trf.xlu0
    %v7103 = vpop.trf.xlu0
    %v7104 = vpop.trf.xlu0
    %v7105 = vpop.trf.xlu0
    %v7106 = vpop.trf.xlu0
    %v7107 = vpop.trf.xlu0
    %v7108 = vpop.trf.xlu0
    %v7109 = vpop.trf.xlu0
    %v7110 = vpop.trf.xlu0
    %v7111 = vpop.trf.xlu0
    %v7112 = vpop.trf.xlu0
    %v7113 = vpop.trf.xlu0
    %v7114 = vpop.trf.xlu0
    %7115 = vxpose.xlu0.b32.start [1/16] %v3627, 128
    %7116 = vxpose.xlu0.b32.cont [2/16] 0.0, 128
    %7117 = vxpose.xlu0.b32.cont [3/16] 0.0, 128
    %7118 = vxpose.xlu0.b32.cont [4/16] 0.0, 128
    %7119 = vxpose.xlu0.b32.cont [5/16] 0.0, 128
    %7120 = vxpose.xlu0.b32.cont [6/16] 0.0, 128
    %7121 = vxpose.xlu0.b32.cont [7/16] 0.0, 128
    %7122 = vxpose.xlu0.b32.cont [8/16] 0.0, 128
    %7123 = vxpose.xlu0.b32.cont [9/16] 0.0, 128
    %7124 = vxpose.xlu0.b32.cont [10/16] 0.0, 128
    %7125 = vxpose.xlu0.b32.cont [11/16] 0.0, 128
    %7126 = vxpose.xlu0.b32.cont [12/16] 0.0, 128
    %7127 = vxpose.xlu0.b32.cont [13/16] 0.0, 128
    %7128 = vxpose.xlu0.b32.cont [14/16] 0.0, 128
    %7129 = vxpose.xlu0.b32.cont [15/16] 0.0, 128
    %7130 = vxpose.xlu0.b32.end [16/16] 0.0, 128
    %v7131 = vpop.trf.xlu0
    %v7132 = vpop.trf.xlu0
    %v7133 = vpop.trf.xlu0
    %v7134 = vpop.trf.xlu0
    %v7135 = vpop.trf.xlu0
    %v7136 = vpop.trf.xlu0
    %v7137 = vpop.trf.xlu0
    %v7138 = vpop.trf.xlu0
    %v7139 = vpop.trf.xlu0
    %v7140 = vpop.trf.xlu0
    %v7141 = vpop.trf.xlu0
    %v7142 = vpop.trf.xlu0
    %v7143 = vpop.trf.xlu0
    %v7144 = vpop.trf.xlu0
    %v7145 = vpop.trf.xlu0
    %v7146 = vpop.trf.xlu0
    %7147 = vxpose.xlu0.b32.start [1/16] %v3651, 128
    %7148 = vxpose.xlu0.b32.cont [2/16] 0.0, 128
    %7149 = vxpose.xlu0.b32.cont [3/16] 0.0, 128
    %7150 = vxpose.xlu0.b32.cont [4/16] 0.0, 128
    %7151 = vxpose.xlu0.b32.cont [5/16] 0.0, 128
    %7152 = vxpose.xlu0.b32.cont [6/16] 0.0, 128
    %7153 = vxpose.xlu0.b32.cont [7/16] 0.0, 128
    %7154 = vxpose.xlu0.b32.cont [8/16] 0.0, 128
    %7155 = vxpose.xlu0.b32.cont [9/16] 0.0, 128
    %7156 = vxpose.xlu0.b32.cont [10/16] 0.0, 128
    %7157 = vxpose.xlu0.b32.cont [11/16] 0.0, 128
    %7158 = vxpose.xlu0.b32.cont [12/16] 0.0, 128
    %7159 = vxpose.xlu0.b32.cont [13/16] 0.0, 128
    %7160 = vxpose.xlu0.b32.cont [14/16] 0.0, 128
    %7161 = vxpose.xlu0.b32.cont [15/16] 0.0, 128
    %7162 = vxpose.xlu0.b32.end [16/16] 0.0, 128
    %v7163 = vpop.trf.xlu0
    %v7164 = vpop.trf.xlu0
    %v7165 = vpop.trf.xlu0
    %v7166 = vpop.trf.xlu0
    %v7167 = vpop.trf.xlu0
    %v7168 = vpop.trf.xlu0
    %v7169 = vpop.trf.xlu0
    %v7170 = vpop.trf.xlu0
    %v7171 = vpop.trf.xlu0
    %v7172 = vpop.trf.xlu0
    %v7173 = vpop.trf.xlu0
    %v7174 = vpop.trf.xlu0
    %v7175 = vpop.trf.xlu0
    %v7176 = vpop.trf.xlu0
    %v7177 = vpop.trf.xlu0
    %v7178 = vpop.trf.xlu0
    %7179 = vxpose.xlu0.b32.start [1/16] %v3634, 128
    %7180 = vxpose.xlu0.b32.cont [2/16] 0.0, 128
    %7181 = vxpose.xlu0.b32.cont [3/16] 0.0, 128
    %7182 = vxpose.xlu0.b32.cont [4/16] 0.0, 128
    %7183 = vxpose.xlu0.b32.cont [5/16] 0.0, 128
    %7184 = vxpose.xlu0.b32.cont [6/16] 0.0, 128
    %7185 = vxpose.xlu0.b32.cont [7/16] 0.0, 128
    %7186 = vxpose.xlu0.b32.cont [8/16] 0.0, 128
    %7187 = vxpose.xlu0.b32.cont [9/16] 0.0, 128
    %7188 = vxpose.xlu0.b32.cont [10/16] 0.0, 128
    %7189 = vxpose.xlu0.b32.cont [11/16] 0.0, 128
    %7190 = vxpose.xlu0.b32.cont [12/16] 0.0, 128
    %7191 = vxpose.xlu0.b32.cont [13/16] 0.0, 128
    %7192 = vxpose.xlu0.b32.cont [14/16] 0.0, 128
    %7193 = vxpose.xlu0.b32.cont [15/16] 0.0, 128
    %7194 = vxpose.xlu0.b32.end [16/16] 0.0, 128
    %v7195 = vpop.trf.xlu0
    %v7196 = vpop.trf.xlu0
    %v7197 = vpop.trf.xlu0
    %v7198 = vpop.trf.xlu0
    %v7199 = vpop.trf.xlu0
    %v7200 = vpop.trf.xlu0
    %v7201 = vpop.trf.xlu0
    %v7202 = vpop.trf.xlu0
    %v7203 = vpop.trf.xlu0
    %v7204 = vpop.trf.xlu0
    %v7205 = vpop.trf.xlu0
    %v7206 = vpop.trf.xlu0
    %v7207 = vpop.trf.xlu0
    %v7208 = vpop.trf.xlu0
    %v7209 = vpop.trf.xlu0
    %v7210 = vpop.trf.xlu0
    %7211 = vxpose.xlu0.b32.start [1/16] %v3652, 128
    %7212 = vxpose.xlu0.b32.cont [2/16] 0.0, 128
    %7213 = vxpose.xlu0.b32.cont [3/16] 0.0, 128
    %7214 = vxpose.xlu0.b32.cont [4/16] 0.0, 128
    %7215 = vxpose.xlu0.b32.cont [5/16] 0.0, 128
    %7216 = vxpose.xlu0.b32.cont [6/16] 0.0, 128
    %7217 = vxpose.xlu0.b32.cont [7/16] 0.0, 128
    %7218 = vxpose.xlu0.b32.cont [8/16] 0.0, 128
    %7219 = vxpose.xlu0.b32.cont [9/16] 0.0, 128
    %7220 = vxpose.xlu0.b32.cont [10/16] 0.0, 128
    %7221 = vxpose.xlu0.b32.cont [11/16] 0.0, 128
    %7222 = vxpose.xlu0.b32.cont [12/16] 0.0, 128
    %7223 = vxpose.xlu0.b32.cont [13/16] 0.0, 128
    %7224 = vxpose.xlu0.b32.cont [14/16] 0.0, 128
    %7225 = vxpose.xlu0.b32.cont [15/16] 0.0, 128
    %7226 = vxpose.xlu0.b32.end [16/16] 0.0, 128
    %v7227 = vpop.trf.xlu0
    %v7228 = vpop.trf.xlu0
    %v7229 = vpop.trf.xlu0
    %v7230 = vpop.trf.xlu0
    %v7231 = vpop.trf.xlu0
    %v7232 = vpop.trf.xlu0
    %v7233 = vpop.trf.xlu0
    %v7234 = vpop.trf.xlu0
    %v7235 = vpop.trf.xlu0
    %v7236 = vpop.trf.xlu0
    %v7237 = vpop.trf.xlu0
    %v7238 = vpop.trf.xlu0
    %v7239 = vpop.trf.xlu0
    %v7240 = vpop.trf.xlu0
    %v7241 = vpop.trf.xlu0
    %v7242 = vpop.trf.xlu0
    %7243 = vxpose.xlu0.b32.start [1/16] %v3643, 128
    %7244 = vxpose.xlu0.b32.cont [2/16] 0.0, 128
    %7245 = vxpose.xlu0.b32.cont [3/16] 0.0, 128
    %7246 = vxpose.xlu0.b32.cont [4/16] 0.0, 128
    %7247 = vxpose.xlu0.b32.cont [5/16] 0.0, 128
    %7248 = vxpose.xlu0.b32.cont [6/16] 0.0, 128
    %7249 = vxpose.xlu0.b32.cont [7/16] 0.0, 128
    %7250 = vxpose.xlu0.b32.cont [8/16] 0.0, 128
    %7251 = vxpose.xlu0.b32.cont [9/16] 0.0, 128
    %7252 = vxpose.xlu0.b32.cont [10/16] 0.0, 128
    %7253 = vxpose.xlu0.b32.cont [11/16] 0.0, 128
    %7254 = vxpose.xlu0.b32.cont [12/16] 0.0, 128
    %7255 = vxpose.xlu0.b32.cont [13/16] 0.0, 128
    %7256 = vxpose.xlu0.b32.cont [14/16] 0.0, 128
    %7257 = vxpose.xlu0.b32.cont [15/16] 0.0, 128
    %7258 = vxpose.xlu0.b32.end [16/16] 0.0, 128
    %v7259 = vpop.trf.xlu0
    %v7260 = vpop.trf.xlu0
    %v7261 = vpop.trf.xlu0
    %v7262 = vpop.trf.xlu0
    %v7263 = vpop.trf.xlu0
    %v7264 = vpop.trf.xlu0
    %v7265 = vpop.trf.xlu0
    %v7266 = vpop.trf.xlu0
    %v7267 = vpop.trf.xlu0
    %v7268 = vpop.trf.xlu0
    %v7269 = vpop.trf.xlu0
    %v7270 = vpop.trf.xlu0
    %v7271 = vpop.trf.xlu0
    %v7272 = vpop.trf.xlu0
    %v7273 = vpop.trf.xlu0
    %v7274 = vpop.trf.xlu0
    %7275 = vxpose.xlu0.b32.start [1/16] %v3653, 128
    %7276 = vxpose.xlu0.b32.cont [2/16] 0.0, 128
    %7277 = vxpose.xlu0.b32.cont [3/16] 0.0, 128
    %7278 = vxpose.xlu0.b32.cont [4/16] 0.0, 128
    %7279 = vxpose.xlu0.b32.cont [5/16] 0.0, 128
    %7280 = vxpose.xlu0.b32.cont [6/16] 0.0, 128
    %7281 = vxpose.xlu0.b32.cont [7/16] 0.0, 128
    %7282 = vxpose.xlu0.b32.cont [8/16] 0.0, 128
    %7283 = vxpose.xlu0.b32.cont [9/16] 0.0, 128
    %7284 = vxpose.xlu0.b32.cont [10/16] 0.0, 128
    %7285 = vxpose.xlu0.b32.cont [11/16] 0.0, 128
    %7286 = vxpose.xlu0.b32.cont [12/16] 0.0, 128
    %7287 = vxpose.xlu0.b32.cont [13/16] 0.0, 128
    %7288 = vxpose.xlu0.b32.cont [14/16] 0.0, 128
    %7289 = vxpose.xlu0.b32.cont [15/16] 0.0, 128
    %7290 = vxpose.xlu0.b32.end [16/16] 0.0, 128
    %v7291 = vpop.trf.xlu0
    %v7292 = vpop.trf.xlu0
    %v7293 = vpop.trf.xlu0
    %v7294 = vpop.trf.xlu0
    %v7295 = vpop.trf.xlu0
    %v7296 = vpop.trf.xlu0
    %v7297 = vpop.trf.xlu0
    %v7298 = vpop.trf.xlu0
    %v7299 = vpop.trf.xlu0
    %v7300 = vpop.trf.xlu0
    %v7301 = vpop.trf.xlu0
    %v7302 = vpop.trf.xlu0
    %v7303 = vpop.trf.xlu0
    %v7304 = vpop.trf.xlu0
    %v7305 = vpop.trf.xlu0
    %v7306 = vpop.trf.xlu0
    %7307 = vxpose.xlu0.b32.start [1/16] %v3650, 128
    %7308 = vxpose.xlu0.b32.cont [2/16] 0.0, 128
    %7309 = vxpose.xlu0.b32.cont [3/16] 0.0, 128
    %7310 = vxpose.xlu0.b32.cont [4/16] 0.0, 128
    %7311 = vxpose.xlu0.b32.cont [5/16] 0.0, 128
    %7312 = vxpose.xlu0.b32.cont [6/16] 0.0, 128
    %7313 = vxpose.xlu0.b32.cont [7/16] 0.0, 128
    %7314 = vxpose.xlu0.b32.cont [8/16] 0.0, 128
    %7315 = vxpose.xlu0.b32.cont [9/16] 0.0, 128
    %7316 = vxpose.xlu0.b32.cont [10/16] 0.0, 128
    %7317 = vxpose.xlu0.b32.cont [11/16] 0.0, 128
    %7318 = vxpose.xlu0.b32.cont [12/16] 0.0, 128
    %7319 = vxpose.xlu0.b32.cont [13/16] 0.0, 128
    %7320 = vxpose.xlu0.b32.cont [14/16] 0.0, 128
    %7321 = vxpose.xlu0.b32.cont [15/16] 0.0, 128
    %7322 = vxpose.xlu0.b32.end [16/16] 0.0, 128
    %v7323 = vpop.trf.xlu0
    %v7324 = vpop.trf.xlu0
    %v7325 = vpop.trf.xlu0
    %v7326 = vpop.trf.xlu0
    %v7327 = vpop.trf.xlu0
    %v7328 = vpop.trf.xlu0
    %v7329 = vpop.trf.xlu0
    %v7330 = vpop.trf.xlu0
    %v7331 = vpop.trf.xlu0
    %v7332 = vpop.trf.xlu0
    %v7333 = vpop.trf.xlu0
    %v7334 = vpop.trf.xlu0
    %v7335 = vpop.trf.xlu0
    %v7336 = vpop.trf.xlu0
    %v7337 = vpop.trf.xlu0
    %v7338 = vpop.trf.xlu0
    %7339 = vxpose.xlu0.b32.start [1/16] %v3654, 128
    %7340 = vxpose.xlu0.b32.cont [2/16] 0.0, 128
    %7341 = vxpose.xlu0.b32.cont [3/16] 0.0, 128
    %7342 = vxpose.xlu0.b32.cont [4/16] 0.0, 128
    %7343 = vxpose.xlu0.b32.cont [5/16] 0.0, 128
    %7344 = vxpose.xlu0.b32.cont [6/16] 0.0, 128
    %7345 = vxpose.xlu0.b32.cont [7/16] 0.0, 128
    %7346 = vxpose.xlu0.b32.cont [8/16] 0.0, 128
    %7347 = vxpose.xlu0.b32.cont [9/16] 0.0, 128
    %7348 = vxpose.xlu0.b32.cont [10/16] 0.0, 128
    %7349 = vxpose.xlu0.b32.cont [11/16] 0.0, 128
    %7350 = vxpose.xlu0.b32.cont [12/16] 0.0, 128
    %7351 = vxpose.xlu0.b32.cont [13/16] 0.0, 128
    %7352 = vxpose.xlu0.b32.cont [14/16] 0.0, 128
    %7353 = vxpose.xlu0.b32.cont [15/16] 0.0, 128
    %7354 = vxpose.xlu0.b32.end [16/16] 0.0, 128
    %v7355 = vpop.trf.xlu0
    %v7356 = vpop.trf.xlu0
    %v7357 = vpop.trf.xlu0
    %v7358 = vpop.trf.xlu0
    %v7359 = vpop.trf.xlu0
    %v7360 = vpop.trf.xlu0
    %v7361 = vpop.trf.xlu0
    %v7362 = vpop.trf.xlu0
    %v7363 = vpop.trf.xlu0
    %v7364 = vpop.trf.xlu0
    %v7365 = vpop.trf.xlu0
    %v7366 = vpop.trf.xlu0
    %v7367 = vpop.trf.xlu0
    %v7368 = vpop.trf.xlu0
    %v7369 = vpop.trf.xlu0
    %v7370 = vpop.trf.xlu0
    %7371 = vxpose.xlu0.b32.start [1/16] %v3693, 128
    %7372 = vxpose.xlu0.b32.cont [2/16] 0.0, 128
    %7373 = vxpose.xlu0.b32.cont [3/16] 0.0, 128
    %7374 = vxpose.xlu0.b32.cont [4/16] 0.0, 128
    %7375 = vxpose.xlu0.b32.cont [5/16] 0.0, 128
    %7376 = vxpose.xlu0.b32.cont [6/16] 0.0, 128
    %7377 = vxpose.xlu0.b32.cont [7/16] 0.0, 128
    %7378 = vxpose.xlu0.b32.cont [8/16] 0.0, 128
    %7379 = vxpose.xlu0.b32.cont [9/16] 0.0, 128
    %7380 = vxpose.xlu0.b32.cont [10/16] 0.0, 128
    %7381 = vxpose.xlu0.b32.cont [11/16] 0.0, 128
    %7382 = vxpose.xlu0.b32.cont [12/16] 0.0, 128
    %7383 = vxpose.xlu0.b32.cont [13/16] 0.0, 128
    %7384 = vxpose.xlu0.b32.cont [14/16] 0.0, 128
    %7385 = vxpose.xlu0.b32.cont [15/16] 0.0, 128
    %7386 = vxpose.xlu0.b32.end [16/16] 0.0, 128
    %v7387 = vpop.trf.xlu0
    %v7388 = vpop.trf.xlu0
    %v7389 = vpop.trf.xlu0
    %v7390 = vpop.trf.xlu0
    %v7391 = vpop.trf.xlu0
    %v7392 = vpop.trf.xlu0
    %v7393 = vpop.trf.xlu0
    %v7394 = vpop.trf.xlu0
    %v7395 = vpop.trf.xlu0
    %v7396 = vpop.trf.xlu0
    %v7397 = vpop.trf.xlu0
    %v7398 = vpop.trf.xlu0
    %v7399 = vpop.trf.xlu0
    %v7400 = vpop.trf.xlu0
    %v7401 = vpop.trf.xlu0
    %v7402 = vpop.trf.xlu0
    %7403 = vxpose.xlu0.b32.start [1/16] %v3717, 128
    %7404 = vxpose.xlu0.b32.cont [2/16] 0.0, 128
    %7405 = vxpose.xlu0.b32.cont [3/16] 0.0, 128
    %7406 = vxpose.xlu0.b32.cont [4/16] 0.0, 128
    %7407 = vxpose.xlu0.b32.cont [5/16] 0.0, 128
    %7408 = vxpose.xlu0.b32.cont [6/16] 0.0, 128
    %7409 = vxpose.xlu0.b32.cont [7/16] 0.0, 128
    %7410 = vxpose.xlu0.b32.cont [8/16] 0.0, 128
    %7411 = vxpose.xlu0.b32.cont [9/16] 0.0, 128
    %7412 = vxpose.xlu0.b32.cont [10/16] 0.0, 128
    %7413 = vxpose.xlu0.b32.cont [11/16] 0.0, 128
    %7414 = vxpose.xlu0.b32.cont [12/16] 0.0, 128
    %7415 = vxpose.xlu0.b32.cont [13/16] 0.0, 128
    %7416 = vxpose.xlu0.b32.cont [14/16] 0.0, 128
    %7417 = vxpose.xlu0.b32.cont [15/16] 0.0, 128
    %7418 = vxpose.xlu0.b32.end [16/16] 0.0, 128
    %v7419 = vpop.trf.xlu0
    %v7420 = vpop.trf.xlu0
    %v7421 = vpop.trf.xlu0
    %v7422 = vpop.trf.xlu0
    %v7423 = vpop.trf.xlu0
    %v7424 = vpop.trf.xlu0
    %v7425 = vpop.trf.xlu0
    %v7426 = vpop.trf.xlu0
    %v7427 = vpop.trf.xlu0
    %v7428 = vpop.trf.xlu0
    %v7429 = vpop.trf.xlu0
    %v7430 = vpop.trf.xlu0
    %v7431 = vpop.trf.xlu0
    %v7432 = vpop.trf.xlu0
    %v7433 = vpop.trf.xlu0
    %v7434 = vpop.trf.xlu0
    %7435 = vxpose.xlu0.b32.start [1/16] %v3700, 128
    %7436 = vxpose.xlu0.b32.cont [2/16] 0.0, 128
    %7437 = vxpose.xlu0.b32.cont [3/16] 0.0, 128
    %7438 = vxpose.xlu0.b32.cont [4/16] 0.0, 128
    %7439 = vxpose.xlu0.b32.cont [5/16] 0.0, 128
    %7440 = vxpose.xlu0.b32.cont [6/16] 0.0, 128
    %7441 = vxpose.xlu0.b32.cont [7/16] 0.0, 128
    %7442 = vxpose.xlu0.b32.cont [8/16] 0.0, 128
    %7443 = vxpose.xlu0.b32.cont [9/16] 0.0, 128
    %7444 = vxpose.xlu0.b32.cont [10/16] 0.0, 128
    %7445 = vxpose.xlu0.b32.cont [11/16] 0.0, 128
    %7446 = vxpose.xlu0.b32.cont [12/16] 0.0, 128
    %7447 = vxpose.xlu0.b32.cont [13/16] 0.0, 128
    %7448 = vxpose.xlu0.b32.cont [14/16] 0.0, 128
    %7449 = vxpose.xlu0.b32.cont [15/16] 0.0, 128
    %7450 = vxpose.xlu0.b32.end [16/16] 0.0, 128
    %v7451 = vpop.trf.xlu0
    %v7452 = vpop.trf.xlu0
    %v7453 = vpop.trf.xlu0
    %v7454 = vpop.trf.xlu0
    %v7455 = vpop.trf.xlu0
    %v7456 = vpop.trf.xlu0
    %v7457 = vpop.trf.xlu0
    %v7458 = vpop.trf.xlu0
    %v7459 = vpop.trf.xlu0
    %v7460 = vpop.trf.xlu0
    %v7461 = vpop.trf.xlu0
    %v7462 = vpop.trf.xlu0
    %v7463 = vpop.trf.xlu0
    %v7464 = vpop.trf.xlu0
    %v7465 = vpop.trf.xlu0
    %v7466 = vpop.trf.xlu0
    %7467 = vxpose.xlu0.b32.start [1/16] %v3718, 128
    %7468 = vxpose.xlu0.b32.cont [2/16] 0.0, 128
    %7469 = vxpose.xlu0.b32.cont [3/16] 0.0, 128
    %7470 = vxpose.xlu0.b32.cont [4/16] 0.0, 128
    %7471 = vxpose.xlu0.b32.cont [5/16] 0.0, 128
    %7472 = vxpose.xlu0.b32.cont [6/16] 0.0, 128
    %7473 = vxpose.xlu0.b32.cont [7/16] 0.0, 128
    %7474 = vxpose.xlu0.b32.cont [8/16] 0.0, 128
    %7475 = vxpose.xlu0.b32.cont [9/16] 0.0, 128
    %7476 = vxpose.xlu0.b32.cont [10/16] 0.0, 128
    %7477 = vxpose.xlu0.b32.cont [11/16] 0.0, 128
    %7478 = vxpose.xlu0.b32.cont [12/16] 0.0, 128
    %7479 = vxpose.xlu0.b32.cont [13/16] 0.0, 128
    %7480 = vxpose.xlu0.b32.cont [14/16] 0.0, 128
    %7481 = vxpose.xlu0.b32.cont [15/16] 0.0, 128
    %7482 = vxpose.xlu0.b32.end [16/16] 0.0, 128
    %v7483 = vpop.trf.xlu0
    %v7484 = vpop.trf.xlu0
    %v7485 = vpop.trf.xlu0
    %v7486 = vpop.trf.xlu0
    %v7487 = vpop.trf.xlu0
    %v7488 = vpop.trf.xlu0
    %v7489 = vpop.trf.xlu0
    %v7490 = vpop.trf.xlu0
    %v7491 = vpop.trf.xlu0
    %v7492 = vpop.trf.xlu0
    %v7493 = vpop.trf.xlu0
    %v7494 = vpop.trf.xlu0
    %v7495 = vpop.trf.xlu0
    %v7496 = vpop.trf.xlu0
    %v7497 = vpop.trf.xlu0
    %v7498 = vpop.trf.xlu0
    %7499 = vxpose.xlu0.b32.start [1/16] %v3709, 128
    %7500 = vxpose.xlu0.b32.cont [2/16] 0.0, 128
    %7501 = vxpose.xlu0.b32.cont [3/16] 0.0, 128
    %7502 = vxpose.xlu0.b32.cont [4/16] 0.0, 128
    %7503 = vxpose.xlu0.b32.cont [5/16] 0.0, 128
    %7504 = vxpose.xlu0.b32.cont [6/16] 0.0, 128
    %7505 = vxpose.xlu0.b32.cont [7/16] 0.0, 128
    %7506 = vxpose.xlu0.b32.cont [8/16] 0.0, 128
    %7507 = vxpose.xlu0.b32.cont [9/16] 0.0, 128
    %7508 = vxpose.xlu0.b32.cont [10/16] 0.0, 128
    %7509 = vxpose.xlu0.b32.cont [11/16] 0.0, 128
    %7510 = vxpose.xlu0.b32.cont [12/16] 0.0, 128
    %7511 = vxpose.xlu0.b32.cont [13/16] 0.0, 128
    %7512 = vxpose.xlu0.b32.cont [14/16] 0.0, 128
    %7513 = vxpose.xlu0.b32.cont [15/16] 0.0, 128
    %7514 = vxpose.xlu0.b32.end [16/16] 0.0, 128
    %v7515 = vpop.trf.xlu0
    %v7516 = vpop.trf.xlu0
    %v7517 = vpop.trf.xlu0
    %v7518 = vpop.trf.xlu0
    %v7519 = vpop.trf.xlu0
    %v7520 = vpop.trf.xlu0
    %v7521 = vpop.trf.xlu0
    %v7522 = vpop.trf.xlu0
    %v7523 = vpop.trf.xlu0
    %v7524 = vpop.trf.xlu0
    %v7525 = vpop.trf.xlu0
    %v7526 = vpop.trf.xlu0
    %v7527 = vpop.trf.xlu0
    %v7528 = vpop.trf.xlu0
    %v7529 = vpop.trf.xlu0
    %v7530 = vpop.trf.xlu0
    %7531 = vxpose.xlu0.b32.start [1/16] %v3719, 128
    %7532 = vxpose.xlu0.b32.cont [2/16] 0.0, 128
    %7533 = vxpose.xlu0.b32.cont [3/16] 0.0, 128
    %7534 = vxpose.xlu0.b32.cont [4/16] 0.0, 128
    %7535 = vxpose.xlu0.b32.cont [5/16] 0.0, 128
    %7536 = vxpose.xlu0.b32.cont [6/16] 0.0, 128
    %7537 = vxpose.xlu0.b32.cont [7/16] 0.0, 128
    %7538 = vxpose.xlu0.b32.cont [8/16] 0.0, 128
    %7539 = vxpose.xlu0.b32.cont [9/16] 0.0, 128
    %7540 = vxpose.xlu0.b32.cont [10/16] 0.0, 128
    %7541 = vxpose.xlu0.b32.cont [11/16] 0.0, 128
    %7542 = vxpose.xlu0.b32.cont [12/16] 0.0, 128
    %7543 = vxpose.xlu0.b32.cont [13/16] 0.0, 128
    %7544 = vxpose.xlu0.b32.cont [14/16] 0.0, 128
    %7545 = vxpose.xlu0.b32.cont [15/16] 0.0, 128
    %7546 = vxpose.xlu0.b32.end [16/16] 0.0, 128
    %v7547 = vpop.trf.xlu0
    %v7548 = vpop.trf.xlu0
    %v7549 = vpop.trf.xlu0
    %v7550 = vpop.trf.xlu0
    %v7551 = vpop.trf.xlu0
    %v7552 = vpop.trf.xlu0
    %v7553 = vpop.trf.xlu0
    %v7554 = vpop.trf.xlu0
    %v7555 = vpop.trf.xlu0
    %v7556 = vpop.trf.xlu0
    %v7557 = vpop.trf.xlu0
    %v7558 = vpop.trf.xlu0
    %v7559 = vpop.trf.xlu0
    %v7560 = vpop.trf.xlu0
    %v7561 = vpop.trf.xlu0
    %v7562 = vpop.trf.xlu0
    %7563 = vxpose.xlu0.b32.start [1/16] %v3716, 128
    %7564 = vxpose.xlu0.b32.cont [2/16] 0.0, 128
    %7565 = vxpose.xlu0.b32.cont [3/16] 0.0, 128
    %7566 = vxpose.xlu0.b32.cont [4/16] 0.0, 128
    %7567 = vxpose.xlu0.b32.cont [5/16] 0.0, 128
    %7568 = vxpose.xlu0.b32.cont [6/16] 0.0, 128
    %7569 = vxpose.xlu0.b32.cont [7/16] 0.0, 128
    %7570 = vxpose.xlu0.b32.cont [8/16] 0.0, 128
    %7571 = vxpose.xlu0.b32.cont [9/16] 0.0, 128
    %7572 = vxpose.xlu0.b32.cont [10/16] 0.0, 128
    %7573 = vxpose.xlu0.b32.cont [11/16] 0.0, 128
    %7574 = vxpose.xlu0.b32.cont [12/16] 0.0, 128
    %7575 = vxpose.xlu0.b32.cont [13/16] 0.0, 128
    %7576 = vxpose.xlu0.b32.cont [14/16] 0.0, 128
    %7577 = vxpose.xlu0.b32.cont [15/16] 0.0, 128
    %7578 = vxpose.xlu0.b32.end [16/16] 0.0, 128
    %v7579 = vpop.trf.xlu0
    %v7580 = vpop.trf.xlu0
    %v7581 = vpop.trf.xlu0
    %v7582 = vpop.trf.xlu0
    %v7583 = vpop.trf.xlu0
    %v7584 = vpop.trf.xlu0
    %v7585 = vpop.trf.xlu0
    %v7586 = vpop.trf.xlu0
    %v7587 = vpop.trf.xlu0
    %v7588 = vpop.trf.xlu0
    %v7589 = vpop.trf.xlu0
    %v7590 = vpop.trf.xlu0
    %v7591 = vpop.trf.xlu0
    %v7592 = vpop.trf.xlu0
    %v7593 = vpop.trf.xlu0
    %v7594 = vpop.trf.xlu0
    %7595 = vxpose.xlu0.b32.start [1/16] %v3720, 128
    %7596 = vxpose.xlu0.b32.cont [2/16] 0.0, 128
    %7597 = vxpose.xlu0.b32.cont [3/16] 0.0, 128
    %7598 = vxpose.xlu0.b32.cont [4/16] 0.0, 128
    %7599 = vxpose.xlu0.b32.cont [5/16] 0.0, 128
    %7600 = vxpose.xlu0.b32.cont [6/16] 0.0, 128
    %7601 = vxpose.xlu0.b32.cont [7/16] 0.0, 128
    %7602 = vxpose.xlu0.b32.cont [8/16] 0.0, 128
    %7603 = vxpose.xlu0.b32.cont [9/16] 0.0, 128
    %7604 = vxpose.xlu0.b32.cont [10/16] 0.0, 128
    %7605 = vxpose.xlu0.b32.cont [11/16] 0.0, 128
    %7606 = vxpose.xlu0.b32.cont [12/16] 0.0, 128
    %7607 = vxpose.xlu0.b32.cont [13/16] 0.0, 128
    %7608 = vxpose.xlu0.b32.cont [14/16] 0.0, 128
    %7609 = vxpose.xlu0.b32.cont [15/16] 0.0, 128
    %7610 = vxpose.xlu0.b32.end [16/16] 0.0, 128
    %v7611 = vpop.trf.xlu0
    %v7612 = vpop.trf.xlu0
    %v7613 = vpop.trf.xlu0
    %v7614 = vpop.trf.xlu0
    %v7615 = vpop.trf.xlu0
    %v7616 = vpop.trf.xlu0
    %v7617 = vpop.trf.xlu0
    %v7618 = vpop.trf.xlu0
    %v7619 = vpop.trf.xlu0
    %v7620 = vpop.trf.xlu0
    %v7621 = vpop.trf.xlu0
    %v7622 = vpop.trf.xlu0
    %v7623 = vpop.trf.xlu0
    %v7624 = vpop.trf.xlu0
    %v7625 = vpop.trf.xlu0
    %v7626 = vpop.trf.xlu0
    %7627 = vxpose.xlu0.b32.start [1/16] %v3759, 128
    %7628 = vxpose.xlu0.b32.cont [2/16] 0.0, 128
    %7629 = vxpose.xlu0.b32.cont [3/16] 0.0, 128
    %7630 = vxpose.xlu0.b32.cont [4/16] 0.0, 128
    %7631 = vxpose.xlu0.b32.cont [5/16] 0.0, 128
    %7632 = vxpose.xlu0.b32.cont [6/16] 0.0, 128
    %7633 = vxpose.xlu0.b32.cont [7/16] 0.0, 128
    %7634 = vxpose.xlu0.b32.cont [8/16] 0.0, 128
    %7635 = vxpose.xlu0.b32.cont [9/16] 0.0, 128
    %7636 = vxpose.xlu0.b32.cont [10/16] 0.0, 128
    %7637 = vxpose.xlu0.b32.cont [11/16] 0.0, 128
    %7638 = vxpose.xlu0.b32.cont [12/16] 0.0, 128
    %7639 = vxpose.xlu0.b32.cont [13/16] 0.0, 128
    %7640 = vxpose.xlu0.b32.cont [14/16] 0.0, 128
    %7641 = vxpose.xlu0.b32.cont [15/16] 0.0, 128
    %7642 = vxpose.xlu0.b32.end [16/16] 0.0, 128
    %v7643 = vpop.trf.xlu0
    %v7644 = vpop.trf.xlu0
    %v7645 = vpop.trf.xlu0
    %v7646 = vpop.trf.xlu0
    %v7647 = vpop.trf.xlu0
    %v7648 = vpop.trf.xlu0
    %v7649 = vpop.trf.xlu0
    %v7650 = vpop.trf.xlu0
    %v7651 = vpop.trf.xlu0
    %v7652 = vpop.trf.xlu0
    %v7653 = vpop.trf.xlu0
    %v7654 = vpop.trf.xlu0
    %v7655 = vpop.trf.xlu0
    %v7656 = vpop.trf.xlu0
    %v7657 = vpop.trf.xlu0
    %v7658 = vpop.trf.xlu0
    %7659 = vxpose.xlu0.b32.start [1/16] %v3783, 128
    %7660 = vxpose.xlu0.b32.cont [2/16] 0.0, 128
    %7661 = vxpose.xlu0.b32.cont [3/16] 0.0, 128
    %7662 = vxpose.xlu0.b32.cont [4/16] 0.0, 128
    %7663 = vxpose.xlu0.b32.cont [5/16] 0.0, 128
    %7664 = vxpose.xlu0.b32.cont [6/16] 0.0, 128
    %7665 = vxpose.xlu0.b32.cont [7/16] 0.0, 128
    %7666 = vxpose.xlu0.b32.cont [8/16] 0.0, 128
    %7667 = vxpose.xlu0.b32.cont [9/16] 0.0, 128
    %7668 = vxpose.xlu0.b32.cont [10/16] 0.0, 128
    %7669 = vxpose.xlu0.b32.cont [11/16] 0.0, 128
    %7670 = vxpose.xlu0.b32.cont [12/16] 0.0, 128
    %7671 = vxpose.xlu0.b32.cont [13/16] 0.0, 128
    %7672 = vxpose.xlu0.b32.cont [14/16] 0.0, 128
    %7673 = vxpose.xlu0.b32.cont [15/16] 0.0, 128
    %7674 = vxpose.xlu0.b32.end [16/16] 0.0, 128
    %v7675 = vpop.trf.xlu0
    %v7676 = vpop.trf.xlu0
    %v7677 = vpop.trf.xlu0
    %v7678 = vpop.trf.xlu0
    %v7679 = vpop.trf.xlu0
    %v7680 = vpop.trf.xlu0
    %v7681 = vpop.trf.xlu0
    %v7682 = vpop.trf.xlu0
    %v7683 = vpop.trf.xlu0
    %v7684 = vpop.trf.xlu0
    %v7685 = vpop.trf.xlu0
    %v7686 = vpop.trf.xlu0
    %v7687 = vpop.trf.xlu0
    %v7688 = vpop.trf.xlu0
    %v7689 = vpop.trf.xlu0
    %v7690 = vpop.trf.xlu0
    %7691 = vxpose.xlu0.b32.start [1/16] %v3766, 128
    %7692 = vxpose.xlu0.b32.cont [2/16] 0.0, 128
    %7693 = vxpose.xlu0.b32.cont [3/16] 0.0, 128
    %7694 = vxpose.xlu0.b32.cont [4/16] 0.0, 128
    %7695 = vxpose.xlu0.b32.cont [5/16] 0.0, 128
    %7696 = vxpose.xlu0.b32.cont [6/16] 0.0, 128
    %7697 = vxpose.xlu0.b32.cont [7/16] 0.0, 128
    %7698 = vxpose.xlu0.b32.cont [8/16] 0.0, 128
    %7699 = vxpose.xlu0.b32.cont [9/16] 0.0, 128
    %7700 = vxpose.xlu0.b32.cont [10/16] 0.0, 128
    %7701 = vxpose.xlu0.b32.cont [11/16] 0.0, 128
    %7702 = vxpose.xlu0.b32.cont [12/16] 0.0, 128
    %7703 = vxpose.xlu0.b32.cont [13/16] 0.0, 128
    %7704 = vxpose.xlu0.b32.cont [14/16] 0.0, 128
    %7705 = vxpose.xlu0.b32.cont [15/16] 0.0, 128
    %7706 = vxpose.xlu0.b32.end [16/16] 0.0, 128
    %v7707 = vpop.trf.xlu0
    %v7708 = vpop.trf.xlu0
    %v7709 = vpop.trf.xlu0
    %v7710 = vpop.trf.xlu0
    %v7711 = vpop.trf.xlu0
    %v7712 = vpop.trf.xlu0
    %v7713 = vpop.trf.xlu0
    %v7714 = vpop.trf.xlu0
    %v7715 = vpop.trf.xlu0
    %v7716 = vpop.trf.xlu0
    %v7717 = vpop.trf.xlu0
    %v7718 = vpop.trf.xlu0
    %v7719 = vpop.trf.xlu0
    %v7720 = vpop.trf.xlu0
    %v7721 = vpop.trf.xlu0
    %v7722 = vpop.trf.xlu0
    %7723 = vxpose.xlu0.b32.start [1/16] %v3784, 128
    %7724 = vxpose.xlu0.b32.cont [2/16] 0.0, 128
    %7725 = vxpose.xlu0.b32.cont [3/16] 0.0, 128
    %7726 = vxpose.xlu0.b32.cont [4/16] 0.0, 128
    %7727 = vxpose.xlu0.b32.cont [5/16] 0.0, 128
    %7728 = vxpose.xlu0.b32.cont [6/16] 0.0, 128
    %7729 = vxpose.xlu0.b32.cont [7/16] 0.0, 128
    %7730 = vxpose.xlu0.b32.cont [8/16] 0.0, 128
    %7731 = vxpose.xlu0.b32.cont [9/16] 0.0, 128
    %7732 = vxpose.xlu0.b32.cont [10/16] 0.0, 128
    %7733 = vxpose.xlu0.b32.cont [11/16] 0.0, 128
    %7734 = vxpose.xlu0.b32.cont [12/16] 0.0, 128
    %7735 = vxpose.xlu0.b32.cont [13/16] 0.0, 128
    %7736 = vxpose.xlu0.b32.cont [14/16] 0.0, 128
    %7737 = vxpose.xlu0.b32.cont [15/16] 0.0, 128
    %7738 = vxpose.xlu0.b32.end [16/16] 0.0, 128
    %v7739 = vpop.trf.xlu0
    %v7740 = vpop.trf.xlu0
    %v7741 = vpop.trf.xlu0
    %v7742 = vpop.trf.xlu0
    %v7743 = vpop.trf.xlu0
    %v7744 = vpop.trf.xlu0
    %v7745 = vpop.trf.xlu0
    %v7746 = vpop.trf.xlu0
    %v7747 = vpop.trf.xlu0
    %v7748 = vpop.trf.xlu0
    %v7749 = vpop.trf.xlu0
    %v7750 = vpop.trf.xlu0
    %v7751 = vpop.trf.xlu0
    %v7752 = vpop.trf.xlu0
    %v7753 = vpop.trf.xlu0
    %v7754 = vpop.trf.xlu0
    %7755 = vxpose.xlu0.b32.start [1/16] %v3775, 128
    %7756 = vxpose.xlu0.b32.cont [2/16] 0.0, 128
    %7757 = vxpose.xlu0.b32.cont [3/16] 0.0, 128
    %7758 = vxpose.xlu0.b32.cont [4/16] 0.0, 128
    %7759 = vxpose.xlu0.b32.cont [5/16] 0.0, 128
    %7760 = vxpose.xlu0.b32.cont [6/16] 0.0, 128
    %7761 = vxpose.xlu0.b32.cont [7/16] 0.0, 128
    %7762 = vxpose.xlu0.b32.cont [8/16] 0.0, 128
    %7763 = vxpose.xlu0.b32.cont [9/16] 0.0, 128
    %7764 = vxpose.xlu0.b32.cont [10/16] 0.0, 128
    %7765 = vxpose.xlu0.b32.cont [11/16] 0.0, 128
    %7766 = vxpose.xlu0.b32.cont [12/16] 0.0, 128
    %7767 = vxpose.xlu0.b32.cont [13/16] 0.0, 128
    %7768 = vxpose.xlu0.b32.cont [14/16] 0.0, 128
    %7769 = vxpose.xlu0.b32.cont [15/16] 0.0, 128
    %7770 = vxpose.xlu0.b32.end [16/16] 0.0, 128
    %v7771 = vpop.trf.xlu0
    %v7772 = vpop.trf.xlu0
    %v7773 = vpop.trf.xlu0
    %v7774 = vpop.trf.xlu0
    %v7775 = vpop.trf.xlu0
    %v7776 = vpop.trf.xlu0
    %v7777 = vpop.trf.xlu0
    %v7778 = vpop.trf.xlu0
    %v7779 = vpop.trf.xlu0
    %v7780 = vpop.trf.xlu0
    %v7781 = vpop.trf.xlu0
    %v7782 = vpop.trf.xlu0
    %v7783 = vpop.trf.xlu0
    %v7784 = vpop.trf.xlu0
    %v7785 = vpop.trf.xlu0
    %v7786 = vpop.trf.xlu0
    %7787 = vxpose.xlu0.b32.start [1/16] %v3785, 128
    %7788 = vxpose.xlu0.b32.cont [2/16] 0.0, 128
    %7789 = vxpose.xlu0.b32.cont [3/16] 0.0, 128
    %7790 = vxpose.xlu0.b32.cont [4/16] 0.0, 128
    %7791 = vxpose.xlu0.b32.cont [5/16] 0.0, 128
    %7792 = vxpose.xlu0.b32.cont [6/16] 0.0, 128
    %7793 = vxpose.xlu0.b32.cont [7/16] 0.0, 128
    %7794 = vxpose.xlu0.b32.cont [8/16] 0.0, 128
    %7795 = vxpose.xlu0.b32.cont [9/16] 0.0, 128
    %7796 = vxpose.xlu0.b32.cont [10/16] 0.0, 128
    %7797 = vxpose.xlu0.b32.cont [11/16] 0.0, 128
    %7798 = vxpose.xlu0.b32.cont [12/16] 0.0, 128
    %7799 = vxpose.xlu0.b32.cont [13/16] 0.0, 128
    %7800 = vxpose.xlu0.b32.cont [14/16] 0.0, 128
    %7801 = vxpose.xlu0.b32.cont [15/16] 0.0, 128
    %7802 = vxpose.xlu0.b32.end [16/16] 0.0, 128
    %v7803 = vpop.trf.xlu0
    %v7804 = vpop.trf.xlu0
    %v7805 = vpop.trf.xlu0
    %v7806 = vpop.trf.xlu0
    %v7807 = vpop.trf.xlu0
    %v7808 = vpop.trf.xlu0
    %v7809 = vpop.trf.xlu0
    %v7810 = vpop.trf.xlu0
    %v7811 = vpop.trf.xlu0
    %v7812 = vpop.trf.xlu0
    %v7813 = vpop.trf.xlu0
    %v7814 = vpop.trf.xlu0
    %v7815 = vpop.trf.xlu0
    %v7816 = vpop.trf.xlu0
    %v7817 = vpop.trf.xlu0
    %v7818 = vpop.trf.xlu0
    %7819 = vxpose.xlu0.b32.start [1/16] %v3782, 128
    %7820 = vxpose.xlu0.b32.cont [2/16] 0.0, 128
    %7821 = vxpose.xlu0.b32.cont [3/16] 0.0, 128
    %7822 = vxpose.xlu0.b32.cont [4/16] 0.0, 128
    %7823 = vxpose.xlu0.b32.cont [5/16] 0.0, 128
    %7824 = vxpose.xlu0.b32.cont [6/16] 0.0, 128
    %7825 = vxpose.xlu0.b32.cont [7/16] 0.0, 128
    %7826 = vxpose.xlu0.b32.cont [8/16] 0.0, 128
    %7827 = vxpose.xlu0.b32.cont [9/16] 0.0, 128
    %7828 = vxpose.xlu0.b32.cont [10/16] 0.0, 128
    %7829 = vxpose.xlu0.b32.cont [11/16] 0.0, 128
    %7830 = vxpose.xlu0.b32.cont [12/16] 0.0, 128
    %7831 = vxpose.xlu0.b32.cont [13/16] 0.0, 128
    %7832 = vxpose.xlu0.b32.cont [14/16] 0.0, 128
    %7833 = vxpose.xlu0.b32.cont [15/16] 0.0, 128
    %7834 = vxpose.xlu0.b32.end [16/16] 0.0, 128
    %v7835 = vpop.trf.xlu0
    %v7836 = vpop.trf.xlu0
    %v7837 = vpop.trf.xlu0
    %v7838 = vpop.trf.xlu0
    %v7839 = vpop.trf.xlu0
    %v7840 = vpop.trf.xlu0
    %v7841 = vpop.trf.xlu0
    %v7842 = vpop.trf.xlu0
    %v7843 = vpop.trf.xlu0
    %v7844 = vpop.trf.xlu0
    %v7845 = vpop.trf.xlu0
    %v7846 = vpop.trf.xlu0
    %v7847 = vpop.trf.xlu0
    %v7848 = vpop.trf.xlu0
    %v7849 = vpop.trf.xlu0
    %v7850 = vpop.trf.xlu0
    %7851 = vxpose.xlu0.b32.start [1/16] %v3786, 128
    %7852 = vxpose.xlu0.b32.cont [2/16] 0.0, 128
    %7853 = vxpose.xlu0.b32.cont [3/16] 0.0, 128
    %7854 = vxpose.xlu0.b32.cont [4/16] 0.0, 128
    %7855 = vxpose.xlu0.b32.cont [5/16] 0.0, 128
    %7856 = vxpose.xlu0.b32.cont [6/16] 0.0, 128
    %7857 = vxpose.xlu0.b32.cont [7/16] 0.0, 128
    %7858 = vxpose.xlu0.b32.cont [8/16] 0.0, 128
    %7859 = vxpose.xlu0.b32.cont [9/16] 0.0, 128
    %7860 = vxpose.xlu0.b32.cont [10/16] 0.0, 128
    %7861 = vxpose.xlu0.b32.cont [11/16] 0.0, 128
    %7862 = vxpose.xlu0.b32.cont [12/16] 0.0, 128
    %7863 = vxpose.xlu0.b32.cont [13/16] 0.0, 128
    %7864 = vxpose.xlu0.b32.cont [14/16] 0.0, 128
    %7865 = vxpose.xlu0.b32.cont [15/16] 0.0, 128
    %7866 = vxpose.xlu0.b32.end [16/16] 0.0, 128
    %v7867 = vpop.trf.xlu0
    %v7868 = vpop.trf.xlu0
    %v7869 = vpop.trf.xlu0
    %v7870 = vpop.trf.xlu0
    %v7871 = vpop.trf.xlu0
    %v7872 = vpop.trf.xlu0
    %v7873 = vpop.trf.xlu0
    %v7874 = vpop.trf.xlu0
    %v7875 = vpop.trf.xlu0
    %v7876 = vpop.trf.xlu0
    %v7877 = vpop.trf.xlu0
    %v7878 = vpop.trf.xlu0
    %v7879 = vpop.trf.xlu0
    %v7880 = vpop.trf.xlu0
    %v7881 = vpop.trf.xlu0
    %v7882 = vpop.trf.xlu0
    %v7883 = vcombine.low %v3803, %v3867
    %v7884 = vcombine.high %v3803, %v3867
    %v7886 = vunpack.c.l.s4 1983009808
    %v7887 = vunpack.c.0.s8 %v7886
    %v7888 = vlaneseq
    %v7889 = vshrl.u32 %v7888, 7
    %v7890 = vsub.s32 %v7887, %v7889
    %v7891 = vrot.slane %v7883, %v7890
    %v7893 = vunpack.c.l.s4 1983009808
    %v7894 = vunpack.c.0.s8 %v7893
    %v7895 = vlaneseq
    %v7896 = vshrl.u32 %v7895, 7
    %v7897 = vsub.s32 %v7894, %v7896
    %v7898 = vrot.slane %v7884, %v7897
    %v7899 = vcombine.low %v3835, %v3899
    %v7900 = vcombine.high %v3835, %v3899
    %v7902 = vunpack.c.l.s4 1983009808
    %v7903 = vunpack.c.0.s8 %v7902
    %v7904 = vlaneseq
    %v7905 = vshrl.u32 %v7904, 7
    %v7906 = vsub.s32 %v7903, %v7905
    %v7907 = vrot.slane %v7899, %v7906
    %v7909 = vunpack.c.l.s4 1983009808
    %v7910 = vunpack.c.0.s8 %v7909
    %v7911 = vlaneseq
    %v7912 = vshrl.u32 %v7911, 7
    %v7913 = vsub.s32 %v7910, %v7912
    %v7914 = vrot.slane %v7900, %v7913
    %v7915 = vcombine.low %v3931, %v3995
    %v7916 = vcombine.high %v3931, %v3995
    %v7918 = vunpack.c.l.s4 1983009808
    %v7919 = vunpack.c.0.s8 %v7918
    %v7920 = vlaneseq
    %v7921 = vshrl.u32 %v7920, 7
    %v7922 = vsub.s32 %v7919, %v7921
    %v7923 = vrot.slane %v7915, %v7922
    %v7925 = vunpack.c.l.s4 1983009808
    %v7926 = vunpack.c.0.s8 %v7925
    %v7927 = vlaneseq
    %v7928 = vshrl.u32 %v7927, 7
    %v7929 = vsub.s32 %v7926, %v7928
    %v7930 = vrot.slane %v7916, %v7929
    %v7931 = vcombine.low %v3963, %v4027
    %v7932 = vcombine.high %v3963, %v4027
    %v7934 = vunpack.c.l.s4 1983009808
    %v7935 = vunpack.c.0.s8 %v7934
    %v7936 = vlaneseq
    %v7937 = vshrl.u32 %v7936, 7
    %v7938 = vsub.s32 %v7935, %v7937
    %v7939 = vrot.slane %v7931, %v7938
    %v7941 = vunpack.c.l.s4 1983009808
    %v7942 = vunpack.c.0.s8 %v7941
    %v7943 = vlaneseq
    %v7944 = vshrl.u32 %v7943, 7
    %v7945 = vsub.s32 %v7942, %v7944
    %v7946 = vrot.slane %v7932, %v7945
    %v7947 = vcombine.low %v7891, %v7907
    %v7948 = vcombine.high %v7891, %v7907
    %v7950 = vunpack.c.l.s4 1934713408
    %v7951 = vunpack.c.0.s8 %v7950
    %v7952 = vlaneseq
    %v7953 = vshrl.u32 %v7952, 7
    %v7954 = vsub.s32 %v7951, %v7953
    %v7955 = vrot.slane %v7947, %v7954
    %v7957 = vunpack.c.l.s4 1934713408
    %v7958 = vunpack.c.0.s8 %v7957
    %v7959 = vlaneseq
    %v7960 = vshrl.u32 %v7959, 7
    %v7961 = vsub.s32 %v7958, %v7960
    %v7962 = vrot.slane %v7948, %v7961
    %v7963 = vcombine.low %v7898, %v7914
    %v7964 = vcombine.high %v7898, %v7914
    %v7966 = vunpack.c.l.s4 1934713408
    %v7967 = vunpack.c.0.s8 %v7966
    %v7968 = vlaneseq
    %v7969 = vshrl.u32 %v7968, 7
    %v7970 = vsub.s32 %v7967, %v7969
    %v7971 = vrot.slane %v7963, %v7970
    %v7973 = vunpack.c.l.s4 1934713408
    %v7974 = vunpack.c.0.s8 %v7973
    %v7975 = vlaneseq
    %v7976 = vshrl.u32 %v7975, 7
    %v7977 = vsub.s32 %v7974, %v7976
    %v7978 = vrot.slane %v7964, %v7977
    %v7979 = vcombine.low %v7923, %v7939
    %v7980 = vcombine.high %v7923, %v7939
    %v7982 = vunpack.c.l.s4 1934713408
    %v7983 = vunpack.c.0.s8 %v7982
    %v7984 = vlaneseq
    %v7985 = vshrl.u32 %v7984, 7
    %v7986 = vsub.s32 %v7983, %v7985
    %v7987 = vrot.slane %v7979, %v7986
    %v7989 = vunpack.c.l.s4 1934713408
    %v7990 = vunpack.c.0.s8 %v7989
    %v7991 = vlaneseq
    %v7992 = vshrl.u32 %v7991, 7
    %v7993 = vsub.s32 %v7990, %v7992
    %v7994 = vrot.slane %v7980, %v7993
    %v7995 = vcombine.low %v7930, %v7946
    %v7996 = vcombine.high %v7930, %v7946
    %v7998 = vunpack.c.l.s4 1934713408
    %v7999 = vunpack.c.0.s8 %v7998
    %v8000 = vlaneseq
    %v8001 = vshrl.u32 %v8000, 7
    %v8002 = vsub.s32 %v7999, %v8001
    %v8003 = vrot.slane %v7995, %v8002
    %v8005 = vunpack.c.l.s4 1934713408
    %v8006 = vunpack.c.0.s8 %v8005
    %v8007 = vlaneseq
    %v8008 = vshrl.u32 %v8007, 7
    %v8009 = vsub.s32 %v8006, %v8008
    %v8010 = vrot.slane %v7996, %v8009
    %v8011 = vcombine.low %v7955, %v7987
    %v8012 = vcombine.high %v7955, %v7987
    %v8013 = vcombine.low %v7962, %v7994
    %v8014 = vcombine.high %v7962, %v7994
    %v8015 = vcombine.low %v7971, %v8003
    %v8016 = vcombine.high %v7971, %v8003
    %v8017 = vcombine.low %v7978, %v8010
    %v8018 = vcombine.high %v7978, %v8010
    %v8019 = vcombine.low %v4059, %v4123
    %v8020 = vcombine.high %v4059, %v4123
    %v8022 = vunpack.c.l.s4 1983009808
    %v8023 = vunpack.c.0.s8 %v8022
    %v8024 = vlaneseq
    %v8025 = vshrl.u32 %v8024, 7
    %v8026 = vsub.s32 %v8023, %v8025
    %v8027 = vrot.slane %v8019, %v8026
    %v8029 = vunpack.c.l.s4 1983009808
    %v8030 = vunpack.c.0.s8 %v8029
    %v8031 = vlaneseq
    %v8032 = vshrl.u32 %v8031, 7
    %v8033 = vsub.s32 %v8030, %v8032
    %v8034 = vrot.slane %v8020, %v8033
    %v8035 = vcombine.low %v4091, %v4155
    %v8036 = vcombine.high %v4091, %v4155
    %v8038 = vunpack.c.l.s4 1983009808
    %v8039 = vunpack.c.0.s8 %v8038
    %v8040 = vlaneseq
    %v8041 = vshrl.u32 %v8040, 7
    %v8042 = vsub.s32 %v8039, %v8041
    %v8043 = vrot.slane %v8035, %v8042
    %v8045 = vunpack.c.l.s4 1983009808
    %v8046 = vunpack.c.0.s8 %v8045
    %v8047 = vlaneseq
    %v8048 = vshrl.u32 %v8047, 7
    %v8049 = vsub.s32 %v8046, %v8048
    %v8050 = vrot.slane %v8036, %v8049
    %v8051 = vcombine.low %v4187, %v4251
    %v8052 = vcombine.high %v4187, %v4251
    %v8054 = vunpack.c.l.s4 1983009808
    %v8055 = vunpack.c.0.s8 %v8054
    %v8056 = vlaneseq
    %v8057 = vshrl.u32 %v8056, 7
    %v8058 = vsub.s32 %v8055, %v8057
    %v8059 = vrot.slane %v8051, %v8058
    %v8061 = vunpack.c.l.s4 1983009808
    %v8062 = vunpack.c.0.s8 %v8061
    %v8063 = vlaneseq
    %v8064 = vshrl.u32 %v8063, 7
    %v8065 = vsub.s32 %v8062, %v8064
    %v8066 = vrot.slane %v8052, %v8065
    %v8067 = vcombine.low %v4219, %v4283
    %v8068 = vcombine.high %v4219, %v4283
    %v8070 = vunpack.c.l.s4 1983009808
    %v8071 = vunpack.c.0.s8 %v8070
    %v8072 = vlaneseq
    %v8073 = vshrl.u32 %v8072, 7
    %v8074 = vsub.s32 %v8071, %v8073
    %v8075 = vrot.slane %v8067, %v8074
    %v8077 = vunpack.c.l.s4 1983009808
    %v8078 = vunpack.c.0.s8 %v8077
    %v8079 = vlaneseq
    %v8080 = vshrl.u32 %v8079, 7
    %v8081 = vsub.s32 %v8078, %v8080
    %v8082 = vrot.slane %v8068, %v8081
    %v8083 = vcombine.low %v8027, %v8043
    %v8084 = vcombine.high %v8027, %v8043
    %v8086 = vunpack.c.l.s4 1934713408
    %v8087 = vunpack.c.0.s8 %v8086
    %v8088 = vlaneseq
    %v8089 = vshrl.u32 %v8088, 7
    %v8090 = vsub.s32 %v8087, %v8089
    %v8091 = vrot.slane %v8083, %v8090
    %v8093 = vunpack.c.l.s4 1934713408
    %v8094 = vunpack.c.0.s8 %v8093
    %v8095 = vlaneseq
    %v8096 = vshrl.u32 %v8095, 7
    %v8097 = vsub.s32 %v8094, %v8096
    %v8098 = vrot.slane %v8084, %v8097
    %v8099 = vcombine.low %v8034, %v8050
    %v8100 = vcombine.high %v8034, %v8050
    %v8102 = vunpack.c.l.s4 1934713408
    %v8103 = vunpack.c.0.s8 %v8102
    %v8104 = vlaneseq
    %v8105 = vshrl.u32 %v8104, 7
    %v8106 = vsub.s32 %v8103, %v8105
    %v8107 = vrot.slane %v8099, %v8106
    %v8109 = vunpack.c.l.s4 1934713408
    %v8110 = vunpack.c.0.s8 %v8109
    %v8111 = vlaneseq
    %v8112 = vshrl.u32 %v8111, 7
    %v8113 = vsub.s32 %v8110, %v8112
    %v8114 = vrot.slane %v8100, %v8113
    %v8115 = vcombine.low %v8059, %v8075
    %v8116 = vcombine.high %v8059, %v8075
    %v8118 = vunpack.c.l.s4 1934713408
    %v8119 = vunpack.c.0.s8 %v8118
    %v8120 = vlaneseq
    %v8121 = vshrl.u32 %v8120, 7
    %v8122 = vsub.s32 %v8119, %v8121
    %v8123 = vrot.slane %v8115, %v8122
    %v8125 = vunpack.c.l.s4 1934713408
    %v8126 = vunpack.c.0.s8 %v8125
    %v8127 = vlaneseq
    %v8128 = vshrl.u32 %v8127, 7
    %v8129 = vsub.s32 %v8126, %v8128
    %v8130 = vrot.slane %v8116, %v8129
    %v8131 = vcombine.low %v8066, %v8082
    %v8132 = vcombine.high %v8066, %v8082
    %v8134 = vunpack.c.l.s4 1934713408
    %v8135 = vunpack.c.0.s8 %v8134
    %v8136 = vlaneseq
    %v8137 = vshrl.u32 %v8136, 7
    %v8138 = vsub.s32 %v8135, %v8137
    %v8139 = vrot.slane %v8131, %v8138
    %v8141 = vunpack.c.l.s4 1934713408
    %v8142 = vunpack.c.0.s8 %v8141
    %v8143 = vlaneseq
    %v8144 = vshrl.u32 %v8143, 7
    %v8145 = vsub.s32 %v8142, %v8144
    %v8146 = vrot.slane %v8132, %v8145
    %v8147 = vcombine.low %v8091, %v8123
    %v8148 = vcombine.high %v8091, %v8123
    %v8149 = vcombine.low %v8098, %v8130
    %v8150 = vcombine.high %v8098, %v8130
    %v8151 = vcombine.low %v8107, %v8139
    %v8152 = vcombine.high %v8107, %v8139
    %v8153 = vcombine.low %v8114, %v8146
    %v8154 = vcombine.high %v8114, %v8146
    %v8155 = vcombine.low %v4315, %v4379
    %v8156 = vcombine.high %v4315, %v4379
    %v8158 = vunpack.c.l.s4 1983009808
    %v8159 = vunpack.c.0.s8 %v8158
    %v8160 = vlaneseq
    %v8161 = vshrl.u32 %v8160, 7
    %v8162 = vsub.s32 %v8159, %v8161
    %v8163 = vrot.slane %v8155, %v8162
    %v8165 = vunpack.c.l.s4 1983009808
    %v8166 = vunpack.c.0.s8 %v8165
    %v8167 = vlaneseq
    %v8168 = vshrl.u32 %v8167, 7
    %v8169 = vsub.s32 %v8166, %v8168
    %v8170 = vrot.slane %v8156, %v8169
    %v8171 = vcombine.low %v4347, %v4411
    %v8172 = vcombine.high %v4347, %v4411
    %v8174 = vunpack.c.l.s4 1983009808
    %v8175 = vunpack.c.0.s8 %v8174
    %v8176 = vlaneseq
    %v8177 = vshrl.u32 %v8176, 7
    %v8178 = vsub.s32 %v8175, %v8177
    %v8179 = vrot.slane %v8171, %v8178
    %v8181 = vunpack.c.l.s4 1983009808
    %v8182 = vunpack.c.0.s8 %v8181
    %v8183 = vlaneseq
    %v8184 = vshrl.u32 %v8183, 7
    %v8185 = vsub.s32 %v8182, %v8184
    %v8186 = vrot.slane %v8172, %v8185
    %v8187 = vcombine.low %v4443, %v4507
    %v8188 = vcombine.high %v4443, %v4507
    %v8190 = vunpack.c.l.s4 1983009808
    %v8191 = vunpack.c.0.s8 %v8190
    %v8192 = vlaneseq
    %v8193 = vshrl.u32 %v8192, 7
    %v8194 = vsub.s32 %v8191, %v8193
    %v8195 = vrot.slane %v8187, %v8194
    %v8197 = vunpack.c.l.s4 1983009808
    %v8198 = vunpack.c.0.s8 %v8197
    %v8199 = vlaneseq
    %v8200 = vshrl.u32 %v8199, 7
    %v8201 = vsub.s32 %v8198, %v8200
    %v8202 = vrot.slane %v8188, %v8201
    %v8203 = vcombine.low %v4475, %v4539
    %v8204 = vcombine.high %v4475, %v4539
    %v8206 = vunpack.c.l.s4 1983009808
    %v8207 = vunpack.c.0.s8 %v8206
    %v8208 = vlaneseq
    %v8209 = vshrl.u32 %v8208, 7
    %v8210 = vsub.s32 %v8207, %v8209
    %v8211 = vrot.slane %v8203, %v8210
    %v8213 = vunpack.c.l.s4 1983009808
    %v8214 = vunpack.c.0.s8 %v8213
    %v8215 = vlaneseq
    %v8216 = vshrl.u32 %v8215, 7
    %v8217 = vsub.s32 %v8214, %v8216
    %v8218 = vrot.slane %v8204, %v8217
    %v8219 = vcombine.low %v8163, %v8179
    %v8220 = vcombine.high %v8163, %v8179
    %v8222 = vunpack.c.l.s4 1934713408
    %v8223 = vunpack.c.0.s8 %v8222
    %v8224 = vlaneseq
    %v8225 = vshrl.u32 %v8224, 7
    %v8226 = vsub.s32 %v8223, %v8225
    %v8227 = vrot.slane %v8219, %v8226
    %v8229 = vunpack.c.l.s4 1934713408
    %v8230 = vunpack.c.0.s8 %v8229
    %v8231 = vlaneseq
    %v8232 = vshrl.u32 %v8231, 7
    %v8233 = vsub.s32 %v8230, %v8232
    %v8234 = vrot.slane %v8220, %v8233
    %v8235 = vcombine.low %v8170, %v8186
    %v8236 = vcombine.high %v8170, %v8186
    %v8238 = vunpack.c.l.s4 1934713408
    %v8239 = vunpack.c.0.s8 %v8238
    %v8240 = vlaneseq
    %v8241 = vshrl.u32 %v8240, 7
    %v8242 = vsub.s32 %v8239, %v8241
    %v8243 = vrot.slane %v8235, %v8242
    %v8245 = vunpack.c.l.s4 1934713408
    %v8246 = vunpack.c.0.s8 %v8245
    %v8247 = vlaneseq
    %v8248 = vshrl.u32 %v8247, 7
    %v8249 = vsub.s32 %v8246, %v8248
    %v8250 = vrot.slane %v8236, %v8249
    %v8251 = vcombine.low %v8195, %v8211
    %v8252 = vcombine.high %v8195, %v8211
    %v8254 = vunpack.c.l.s4 1934713408
    %v8255 = vunpack.c.0.s8 %v8254
    %v8256 = vlaneseq
    %v8257 = vshrl.u32 %v8256, 7
    %v8258 = vsub.s32 %v8255, %v8257
    %v8259 = vrot.slane %v8251, %v8258
    %v8261 = vunpack.c.l.s4 1934713408
    %v8262 = vunpack.c.0.s8 %v8261
    %v8263 = vlaneseq
    %v8264 = vshrl.u32 %v8263, 7
    %v8265 = vsub.s32 %v8262, %v8264
    %v8266 = vrot.slane %v8252, %v8265
    %v8267 = vcombine.low %v8202, %v8218
    %v8268 = vcombine.high %v8202, %v8218
    %v8270 = vunpack.c.l.s4 1934713408
    %v8271 = vunpack.c.0.s8 %v8270
    %v8272 = vlaneseq
    %v8273 = vshrl.u32 %v8272, 7
    %v8274 = vsub.s32 %v8271, %v8273
    %v8275 = vrot.slane %v8267, %v8274
    %v8277 = vunpack.c.l.s4 1934713408
    %v8278 = vunpack.c.0.s8 %v8277
    %v8279 = vlaneseq
    %v8280 = vshrl.u32 %v8279, 7
    %v8281 = vsub.s32 %v8278, %v8280
    %v8282 = vrot.slane %v8268, %v8281
    %v8283 = vcombine.low %v8227, %v8259
    %v8284 = vcombine.high %v8227, %v8259
    %v8285 = vcombine.low %v8234, %v8266
    %v8286 = vcombine.high %v8234, %v8266
    %v8287 = vcombine.low %v8243, %v8275
    %v8288 = vcombine.high %v8243, %v8275
    %v8289 = vcombine.low %v8250, %v8282
    %v8290 = vcombine.high %v8250, %v8282
    %v8291 = vcombine.low %v4571, %v4635
    %v8292 = vcombine.high %v4571, %v4635
    %v8294 = vunpack.c.l.s4 1983009808
    %v8295 = vunpack.c.0.s8 %v8294
    %v8296 = vlaneseq
    %v8297 = vshrl.u32 %v8296, 7
    %v8298 = vsub.s32 %v8295, %v8297
    %v8299 = vrot.slane %v8291, %v8298
    %v8301 = vunpack.c.l.s4 1983009808
    %v8302 = vunpack.c.0.s8 %v8301
    %v8303 = vlaneseq
    %v8304 = vshrl.u32 %v8303, 7
    %v8305 = vsub.s32 %v8302, %v8304
    %v8306 = vrot.slane %v8292, %v8305
    %v8307 = vcombine.low %v4603, %v4667
    %v8308 = vcombine.high %v4603, %v4667
    %v8310 = vunpack.c.l.s4 1983009808
    %v8311 = vunpack.c.0.s8 %v8310
    %v8312 = vlaneseq
    %v8313 = vshrl.u32 %v8312, 7
    %v8314 = vsub.s32 %v8311, %v8313
    %v8315 = vrot.slane %v8307, %v8314
    %v8317 = vunpack.c.l.s4 1983009808
    %v8318 = vunpack.c.0.s8 %v8317
    %v8319 = vlaneseq
    %v8320 = vshrl.u32 %v8319, 7
    %v8321 = vsub.s32 %v8318, %v8320
    %v8322 = vrot.slane %v8308, %v8321
    %v8323 = vcombine.low %v4699, %v4763
    %v8324 = vcombine.high %v4699, %v4763
    %v8326 = vunpack.c.l.s4 1983009808
    %v8327 = vunpack.c.0.s8 %v8326
    %v8328 = vlaneseq
    %v8329 = vshrl.u32 %v8328, 7
    %v8330 = vsub.s32 %v8327, %v8329
    %v8331 = vrot.slane %v8323, %v8330
    %v8333 = vunpack.c.l.s4 1983009808
    %v8334 = vunpack.c.0.s8 %v8333
    %v8335 = vlaneseq
    %v8336 = vshrl.u32 %v8335, 7
    %v8337 = vsub.s32 %v8334, %v8336
    %v8338 = vrot.slane %v8324, %v8337
    %v8339 = vcombine.low %v4731, %v4795
    %v8340 = vcombine.high %v4731, %v4795
    %v8342 = vunpack.c.l.s4 1983009808
    %v8343 = vunpack.c.0.s8 %v8342
    %v8344 = vlaneseq
    %v8345 = vshrl.u32 %v8344, 7
    %v8346 = vsub.s32 %v8343, %v8345
    %v8347 = vrot.slane %v8339, %v8346
    %v8349 = vunpack.c.l.s4 1983009808
    %v8350 = vunpack.c.0.s8 %v8349
    %v8351 = vlaneseq
    %v8352 = vshrl.u32 %v8351, 7
    %v8353 = vsub.s32 %v8350, %v8352
    %v8354 = vrot.slane %v8340, %v8353
    %v8355 = vcombine.low %v8299, %v8315
    %v8356 = vcombine.high %v8299, %v8315
    %v8358 = vunpack.c.l.s4 1934713408
    %v8359 = vunpack.c.0.s8 %v8358
    %v8360 = vlaneseq
    %v8361 = vshrl.u32 %v8360, 7
    %v8362 = vsub.s32 %v8359, %v8361
    %v8363 = vrot.slane %v8355, %v8362
    %v8365 = vunpack.c.l.s4 1934713408
    %v8366 = vunpack.c.0.s8 %v8365
    %v8367 = vlaneseq
    %v8368 = vshrl.u32 %v8367, 7
    %v8369 = vsub.s32 %v8366, %v8368
    %v8370 = vrot.slane %v8356, %v8369
    %v8371 = vcombine.low %v8306, %v8322
    %v8372 = vcombine.high %v8306, %v8322
    %v8374 = vunpack.c.l.s4 1934713408
    %v8375 = vunpack.c.0.s8 %v8374
    %v8376 = vlaneseq
    %v8377 = vshrl.u32 %v8376, 7
    %v8378 = vsub.s32 %v8375, %v8377
    %v8379 = vrot.slane %v8371, %v8378
    %v8381 = vunpack.c.l.s4 1934713408
    %v8382 = vunpack.c.0.s8 %v8381
    %v8383 = vlaneseq
    %v8384 = vshrl.u32 %v8383, 7
    %v8385 = vsub.s32 %v8382, %v8384
    %v8386 = vrot.slane %v8372, %v8385
    %v8387 = vcombine.low %v8331, %v8347
    %v8388 = vcombine.high %v8331, %v8347
    %v8390 = vunpack.c.l.s4 1934713408
    %v8391 = vunpack.c.0.s8 %v8390
    %v8392 = vlaneseq
    %v8393 = vshrl.u32 %v8392, 7
    %v8394 = vsub.s32 %v8391, %v8393
    %v8395 = vrot.slane %v8387, %v8394
    %v8397 = vunpack.c.l.s4 1934713408
    %v8398 = vunpack.c.0.s8 %v8397
    %v8399 = vlaneseq
    %v8400 = vshrl.u32 %v8399, 7
    %v8401 = vsub.s32 %v8398, %v8400
    %v8402 = vrot.slane %v8388, %v8401
    %v8403 = vcombine.low %v8338, %v8354
    %v8404 = vcombine.high %v8338, %v8354
    %v8406 = vunpack.c.l.s4 1934713408
    %v8407 = vunpack.c.0.s8 %v8406
    %v8408 = vlaneseq
    %v8409 = vshrl.u32 %v8408, 7
    %v8410 = vsub.s32 %v8407, %v8409
    %v8411 = vrot.slane %v8403, %v8410
    %v8413 = vunpack.c.l.s4 1934713408
    %v8414 = vunpack.c.0.s8 %v8413
    %v8415 = vlaneseq
    %v8416 = vshrl.u32 %v8415, 7
    %v8417 = vsub.s32 %v8414, %v8416
    %v8418 = vrot.slane %v8404, %v8417
    %v8419 = vcombine.low %v8363, %v8395
    %v8420 = vcombine.high %v8363, %v8395
    %v8421 = vcombine.low %v8370, %v8402
    %v8422 = vcombine.high %v8370, %v8402
    %v8423 = vcombine.low %v8379, %v8411
    %v8424 = vcombine.high %v8379, %v8411
    %v8425 = vcombine.low %v8386, %v8418
    %v8426 = vcombine.high %v8386, %v8418
    %v8427 = vcombine.low %v4827, %v4891
    %v8428 = vcombine.high %v4827, %v4891
    %v8430 = vunpack.c.l.s4 1983009808
    %v8431 = vunpack.c.0.s8 %v8430
    %v8432 = vlaneseq
    %v8433 = vshrl.u32 %v8432, 7
    %v8434 = vsub.s32 %v8431, %v8433
    %v8435 = vrot.slane %v8427, %v8434
    %v8437 = vunpack.c.l.s4 1983009808
    %v8438 = vunpack.c.0.s8 %v8437
    %v8439 = vlaneseq
    %v8440 = vshrl.u32 %v8439, 7
    %v8441 = vsub.s32 %v8438, %v8440
    %v8442 = vrot.slane %v8428, %v8441
    %v8443 = vcombine.low %v4859, %v4923
    %v8444 = vcombine.high %v4859, %v4923
    %v8446 = vunpack.c.l.s4 1983009808
    %v8447 = vunpack.c.0.s8 %v8446
    %v8448 = vlaneseq
    %v8449 = vshrl.u32 %v8448, 7
    %v8450 = vsub.s32 %v8447, %v8449
    %v8451 = vrot.slane %v8443, %v8450
    %v8453 = vunpack.c.l.s4 1983009808
    %v8454 = vunpack.c.0.s8 %v8453
    %v8455 = vlaneseq
    %v8456 = vshrl.u32 %v8455, 7
    %v8457 = vsub.s32 %v8454, %v8456
    %v8458 = vrot.slane %v8444, %v8457
    %v8459 = vcombine.low %v4955, %v5019
    %v8460 = vcombine.high %v4955, %v5019
    %v8462 = vunpack.c.l.s4 1983009808
    %v8463 = vunpack.c.0.s8 %v8462
    %v8464 = vlaneseq
    %v8465 = vshrl.u32 %v8464, 7
    %v8466 = vsub.s32 %v8463, %v8465
    %v8467 = vrot.slane %v8459, %v8466
    %v8469 = vunpack.c.l.s4 1983009808
    %v8470 = vunpack.c.0.s8 %v8469
    %v8471 = vlaneseq
    %v8472 = vshrl.u32 %v8471, 7
    %v8473 = vsub.s32 %v8470, %v8472
    %v8474 = vrot.slane %v8460, %v8473
    %v8475 = vcombine.low %v4987, %v5051
    %v8476 = vcombine.high %v4987, %v5051
    %v8478 = vunpack.c.l.s4 1983009808
    %v8479 = vunpack.c.0.s8 %v8478
    %v8480 = vlaneseq
    %v8481 = vshrl.u32 %v8480, 7
    %v8482 = vsub.s32 %v8479, %v8481
    %v8483 = vrot.slane %v8475, %v8482
    %v8485 = vunpack.c.l.s4 1983009808
    %v8486 = vunpack.c.0.s8 %v8485
    %v8487 = vlaneseq
    %v8488 = vshrl.u32 %v8487, 7
    %v8489 = vsub.s32 %v8486, %v8488
    %v8490 = vrot.slane %v8476, %v8489
    %v8491 = vcombine.low %v8435, %v8451
    %v8492 = vcombine.high %v8435, %v8451
    %v8494 = vunpack.c.l.s4 1934713408
    %v8495 = vunpack.c.0.s8 %v8494
    %v8496 = vlaneseq
    %v8497 = vshrl.u32 %v8496, 7
    %v8498 = vsub.s32 %v8495, %v8497
    %v8499 = vrot.slane %v8491, %v8498
    %v8501 = vunpack.c.l.s4 1934713408
    %v8502 = vunpack.c.0.s8 %v8501
    %v8503 = vlaneseq
    %v8504 = vshrl.u32 %v8503, 7
    %v8505 = vsub.s32 %v8502, %v8504
    %v8506 = vrot.slane %v8492, %v8505
    %v8507 = vcombine.low %v8442, %v8458
    %v8508 = vcombine.high %v8442, %v8458
    %v8510 = vunpack.c.l.s4 1934713408
    %v8511 = vunpack.c.0.s8 %v8510
    %v8512 = vlaneseq
    %v8513 = vshrl.u32 %v8512, 7
    %v8514 = vsub.s32 %v8511, %v8513
    %v8515 = vrot.slane %v8507, %v8514
    %v8517 = vunpack.c.l.s4 1934713408
    %v8518 = vunpack.c.0.s8 %v8517
    %v8519 = vlaneseq
    %v8520 = vshrl.u32 %v8519, 7
    %v8521 = vsub.s32 %v8518, %v8520
    %v8522 = vrot.slane %v8508, %v8521
    %v8523 = vcombine.low %v8467, %v8483
    %v8524 = vcombine.high %v8467, %v8483
    %v8526 = vunpack.c.l.s4 1934713408
    %v8527 = vunpack.c.0.s8 %v8526
    %v8528 = vlaneseq
    %v8529 = vshrl.u32 %v8528, 7
    %v8530 = vsub.s32 %v8527, %v8529
    %v8531 = vrot.slane %v8523, %v8530
    %v8533 = vunpack.c.l.s4 1934713408
    %v8534 = vunpack.c.0.s8 %v8533
    %v8535 = vlaneseq
    %v8536 = vshrl.u32 %v8535, 7
    %v8537 = vsub.s32 %v8534, %v8536
    %v8538 = vrot.slane %v8524, %v8537
    %v8539 = vcombine.low %v8474, %v8490
    %v8540 = vcombine.high %v8474, %v8490
    %v8542 = vunpack.c.l.s4 1934713408
    %v8543 = vunpack.c.0.s8 %v8542
    %v8544 = vlaneseq
    %v8545 = vshrl.u32 %v8544, 7
    %v8546 = vsub.s32 %v8543, %v8545
    %v8547 = vrot.slane %v8539, %v8546
    %v8549 = vunpack.c.l.s4 1934713408
    %v8550 = vunpack.c.0.s8 %v8549
    %v8551 = vlaneseq
    %v8552 = vshrl.u32 %v8551, 7
    %v8553 = vsub.s32 %v8550, %v8552
    %v8554 = vrot.slane %v8540, %v8553
    %v8555 = vcombine.low %v8499, %v8531
    %v8556 = vcombine.high %v8499, %v8531
    %v8557 = vcombine.low %v8506, %v8538
    %v8558 = vcombine.high %v8506, %v8538
    %v8559 = vcombine.low %v8515, %v8547
    %v8560 = vcombine.high %v8515, %v8547
    %v8561 = vcombine.low %v8522, %v8554
    %v8562 = vcombine.high %v8522, %v8554
    %v8563 = vcombine.low %v5083, %v5147
    %v8564 = vcombine.high %v5083, %v5147
    %v8566 = vunpack.c.l.s4 1983009808
    %v8567 = vunpack.c.0.s8 %v8566
    %v8568 = vlaneseq
    %v8569 = vshrl.u32 %v8568, 7
    %v8570 = vsub.s32 %v8567, %v8569
    %v8571 = vrot.slane %v8563, %v8570
    %v8573 = vunpack.c.l.s4 1983009808
    %v8574 = vunpack.c.0.s8 %v8573
    %v8575 = vlaneseq
    %v8576 = vshrl.u32 %v8575, 7
    %v8577 = vsub.s32 %v8574, %v8576
    %v8578 = vrot.slane %v8564, %v8577
    %v8579 = vcombine.low %v5115, %v5179
    %v8580 = vcombine.high %v5115, %v5179
    %v8582 = vunpack.c.l.s4 1983009808
    %v8583 = vunpack.c.0.s8 %v8582
    %v8584 = vlaneseq
    %v8585 = vshrl.u32 %v8584, 7
    %v8586 = vsub.s32 %v8583, %v8585
    %v8587 = vrot.slane %v8579, %v8586
    %v8589 = vunpack.c.l.s4 1983009808
    %v8590 = vunpack.c.0.s8 %v8589
    %v8591 = vlaneseq
    %v8592 = vshrl.u32 %v8591, 7
    %v8593 = vsub.s32 %v8590, %v8592
    %v8594 = vrot.slane %v8580, %v8593
    %v8595 = vcombine.low %v5211, %v5275
    %v8596 = vcombine.high %v5211, %v5275
    %v8598 = vunpack.c.l.s4 1983009808
    %v8599 = vunpack.c.0.s8 %v8598
    %v8600 = vlaneseq
    %v8601 = vshrl.u32 %v8600, 7
    %v8602 = vsub.s32 %v8599, %v8601
    %v8603 = vrot.slane %v8595, %v8602
    %v8605 = vunpack.c.l.s4 1983009808
    %v8606 = vunpack.c.0.s8 %v8605
    %v8607 = vlaneseq
    %v8608 = vshrl.u32 %v8607, 7
    %v8609 = vsub.s32 %v8606, %v8608
    %v8610 = vrot.slane %v8596, %v8609
    %v8611 = vcombine.low %v5243, %v5307
    %v8612 = vcombine.high %v5243, %v5307
    %v8614 = vunpack.c.l.s4 1983009808
    %v8615 = vunpack.c.0.s8 %v8614
    %v8616 = vlaneseq
    %v8617 = vshrl.u32 %v8616, 7
    %v8618 = vsub.s32 %v8615, %v8617
    %v8619 = vrot.slane %v8611, %v8618
    %v8621 = vunpack.c.l.s4 1983009808
    %v8622 = vunpack.c.0.s8 %v8621
    %v8623 = vlaneseq
    %v8624 = vshrl.u32 %v8623, 7
    %v8625 = vsub.s32 %v8622, %v8624
    %v8626 = vrot.slane %v8612, %v8625
    %v8627 = vcombine.low %v8571, %v8587
    %v8628 = vcombine.high %v8571, %v8587
    %v8630 = vunpack.c.l.s4 1934713408
    %v8631 = vunpack.c.0.s8 %v8630
    %v8632 = vlaneseq
    %v8633 = vshrl.u32 %v8632, 7
    %v8634 = vsub.s32 %v8631, %v8633
    %v8635 = vrot.slane %v8627, %v8634
    %v8637 = vunpack.c.l.s4 1934713408
    %v8638 = vunpack.c.0.s8 %v8637
    %v8639 = vlaneseq
    %v8640 = vshrl.u32 %v8639, 7
    %v8641 = vsub.s32 %v8638, %v8640
    %v8642 = vrot.slane %v8628, %v8641
    %v8643 = vcombine.low %v8578, %v8594
    %v8644 = vcombine.high %v8578, %v8594
    %v8646 = vunpack.c.l.s4 1934713408
    %v8647 = vunpack.c.0.s8 %v8646
    %v8648 = vlaneseq
    %v8649 = vshrl.u32 %v8648, 7
    %v8650 = vsub.s32 %v8647, %v8649
    %v8651 = vrot.slane %v8643, %v8650
    %v8653 = vunpack.c.l.s4 1934713408
    %v8654 = vunpack.c.0.s8 %v8653
    %v8655 = vlaneseq
    %v8656 = vshrl.u32 %v8655, 7
    %v8657 = vsub.s32 %v8654, %v8656
    %v8658 = vrot.slane %v8644, %v8657
    %v8659 = vcombine.low %v8603, %v8619
    %v8660 = vcombine.high %v8603, %v8619
    %v8662 = vunpack.c.l.s4 1934713408
    %v8663 = vunpack.c.0.s8 %v8662
    %v8664 = vlaneseq
    %v8665 = vshrl.u32 %v8664, 7
    %v8666 = vsub.s32 %v8663, %v8665
    %v8667 = vrot.slane %v8659, %v8666
    %v8669 = vunpack.c.l.s4 1934713408
    %v8670 = vunpack.c.0.s8 %v8669
    %v8671 = vlaneseq
    %v8672 = vshrl.u32 %v8671, 7
    %v8673 = vsub.s32 %v8670, %v8672
    %v8674 = vrot.slane %v8660, %v8673
    %v8675 = vcombine.low %v8610, %v8626
    %v8676 = vcombine.high %v8610, %v8626
    %v8678 = vunpack.c.l.s4 1934713408
    %v8679 = vunpack.c.0.s8 %v8678
    %v8680 = vlaneseq
    %v8681 = vshrl.u32 %v8680, 7
    %v8682 = vsub.s32 %v8679, %v8681
    %v8683 = vrot.slane %v8675, %v8682
    %v8685 = vunpack.c.l.s4 1934713408
    %v8686 = vunpack.c.0.s8 %v8685
    %v8687 = vlaneseq
    %v8688 = vshrl.u32 %v8687, 7
    %v8689 = vsub.s32 %v8686, %v8688
    %v8690 = vrot.slane %v8676, %v8689
    %v8691 = vcombine.low %v8635, %v8667
    %v8692 = vcombine.high %v8635, %v8667
    %v8693 = vcombine.low %v8642, %v8674
    %v8694 = vcombine.high %v8642, %v8674
    %v8695 = vcombine.low %v8651, %v8683
    %v8696 = vcombine.high %v8651, %v8683
    %v8697 = vcombine.low %v8658, %v8690
    %v8698 = vcombine.high %v8658, %v8690
    %v8699 = vcombine.low %v5339, %v5403
    %v8700 = vcombine.high %v5339, %v5403
    %v8702 = vunpack.c.l.s4 1983009808
    %v8703 = vunpack.c.0.s8 %v8702
    %v8704 = vlaneseq
    %v8705 = vshrl.u32 %v8704, 7
    %v8706 = vsub.s32 %v8703, %v8705
    %v8707 = vrot.slane %v8699, %v8706
    %v8709 = vunpack.c.l.s4 1983009808
    %v8710 = vunpack.c.0.s8 %v8709
    %v8711 = vlaneseq
    %v8712 = vshrl.u32 %v8711, 7
    %v8713 = vsub.s32 %v8710, %v8712
    %v8714 = vrot.slane %v8700, %v8713
    %v8715 = vcombine.low %v5371, %v5435
    %v8716 = vcombine.high %v5371, %v5435
    %v8718 = vunpack.c.l.s4 1983009808
    %v8719 = vunpack.c.0.s8 %v8718
    %v8720 = vlaneseq
    %v8721 = vshrl.u32 %v8720, 7
    %v8722 = vsub.s32 %v8719, %v8721
    %v8723 = vrot.slane %v8715, %v8722
    %v8725 = vunpack.c.l.s4 1983009808
    %v8726 = vunpack.c.0.s8 %v8725
    %v8727 = vlaneseq
    %v8728 = vshrl.u32 %v8727, 7
    %v8729 = vsub.s32 %v8726, %v8728
    %v8730 = vrot.slane %v8716, %v8729
    %v8731 = vcombine.low %v5467, %v5531
    %v8732 = vcombine.high %v5467, %v5531
    %v8734 = vunpack.c.l.s4 1983009808
    %v8735 = vunpack.c.0.s8 %v8734
    %v8736 = vlaneseq
    %v8737 = vshrl.u32 %v8736, 7
    %v8738 = vsub.s32 %v8735, %v8737
    %v8739 = vrot.slane %v8731, %v8738
    %v8741 = vunpack.c.l.s4 1983009808
    %v8742 = vunpack.c.0.s8 %v8741
    %v8743 = vlaneseq
    %v8744 = vshrl.u32 %v8743, 7
    %v8745 = vsub.s32 %v8742, %v8744
    %v8746 = vrot.slane %v8732, %v8745
    %v8747 = vcombine.low %v5499, %v5563
    %v8748 = vcombine.high %v5499, %v5563
    %v8750 = vunpack.c.l.s4 1983009808
    %v8751 = vunpack.c.0.s8 %v8750
    %v8752 = vlaneseq
    %v8753 = vshrl.u32 %v8752, 7
    %v8754 = vsub.s32 %v8751, %v8753
    %v8755 = vrot.slane %v8747, %v8754
    %v8757 = vunpack.c.l.s4 1983009808
    %v8758 = vunpack.c.0.s8 %v8757
    %v8759 = vlaneseq
    %v8760 = vshrl.u32 %v8759, 7
    %v8761 = vsub.s32 %v8758, %v8760
    %v8762 = vrot.slane %v8748, %v8761
    %v8763 = vcombine.low %v8707, %v8723
    %v8764 = vcombine.high %v8707, %v8723
    %v8766 = vunpack.c.l.s4 1934713408
    %v8767 = vunpack.c.0.s8 %v8766
    %v8768 = vlaneseq
    %v8769 = vshrl.u32 %v8768, 7
    %v8770 = vsub.s32 %v8767, %v8769
    %v8771 = vrot.slane %v8763, %v8770
    %v8773 = vunpack.c.l.s4 1934713408
    %v8774 = vunpack.c.0.s8 %v8773
    %v8775 = vlaneseq
    %v8776 = vshrl.u32 %v8775, 7
    %v8777 = vsub.s32 %v8774, %v8776
    %v8778 = vrot.slane %v8764, %v8777
    %v8779 = vcombine.low %v8714, %v8730
    %v8780 = vcombine.high %v8714, %v8730
    %v8782 = vunpack.c.l.s4 1934713408
    %v8783 = vunpack.c.0.s8 %v8782
    %v8784 = vlaneseq
    %v8785 = vshrl.u32 %v8784, 7
    %v8786 = vsub.s32 %v8783, %v8785
    %v8787 = vrot.slane %v8779, %v8786
    %v8789 = vunpack.c.l.s4 1934713408
    %v8790 = vunpack.c.0.s8 %v8789
    %v8791 = vlaneseq
    %v8792 = vshrl.u32 %v8791, 7
    %v8793 = vsub.s32 %v8790, %v8792
    %v8794 = vrot.slane %v8780, %v8793
    %v8795 = vcombine.low %v8739, %v8755
    %v8796 = vcombine.high %v8739, %v8755
    %v8798 = vunpack.c.l.s4 1934713408
    %v8799 = vunpack.c.0.s8 %v8798
    %v8800 = vlaneseq
    %v8801 = vshrl.u32 %v8800, 7
    %v8802 = vsub.s32 %v8799, %v8801
    %v8803 = vrot.slane %v8795, %v8802
    %v8805 = vunpack.c.l.s4 1934713408
    %v8806 = vunpack.c.0.s8 %v8805
    %v8807 = vlaneseq
    %v8808 = vshrl.u32 %v8807, 7
    %v8809 = vsub.s32 %v8806, %v8808
    %v8810 = vrot.slane %v8796, %v8809
    %v8811 = vcombine.low %v8746, %v8762
    %v8812 = vcombine.high %v8746, %v8762
    %v8814 = vunpack.c.l.s4 1934713408
    %v8815 = vunpack.c.0.s8 %v8814
    %v8816 = vlaneseq
    %v8817 = vshrl.u32 %v8816, 7
    %v8818 = vsub.s32 %v8815, %v8817
    %v8819 = vrot.slane %v8811, %v8818
    %v8821 = vunpack.c.l.s4 1934713408
    %v8822 = vunpack.c.0.s8 %v8821
    %v8823 = vlaneseq
    %v8824 = vshrl.u32 %v8823, 7
    %v8825 = vsub.s32 %v8822, %v8824
    %v8826 = vrot.slane %v8812, %v8825
    %v8827 = vcombine.low %v8771, %v8803
    %v8828 = vcombine.high %v8771, %v8803
    %v8829 = vcombine.low %v8778, %v8810
    %v8830 = vcombine.high %v8778, %v8810
    %v8831 = vcombine.low %v8787, %v8819
    %v8832 = vcombine.high %v8787, %v8819
    %v8833 = vcombine.low %v8794, %v8826
    %v8834 = vcombine.high %v8794, %v8826
    %v8835 = vcombine.low %v5595, %v5659
    %v8836 = vcombine.high %v5595, %v5659
    %v8838 = vunpack.c.l.s4 1983009808
    %v8839 = vunpack.c.0.s8 %v8838
    %v8840 = vlaneseq
    %v8841 = vshrl.u32 %v8840, 7
    %v8842 = vsub.s32 %v8839, %v8841
    %v8843 = vrot.slane %v8835, %v8842
    %v8845 = vunpack.c.l.s4 1983009808
    %v8846 = vunpack.c.0.s8 %v8845
    %v8847 = vlaneseq
    %v8848 = vshrl.u32 %v8847, 7
    %v8849 = vsub.s32 %v8846, %v8848
    %v8850 = vrot.slane %v8836, %v8849
    %v8851 = vcombine.low %v5627, %v5691
    %v8852 = vcombine.high %v5627, %v5691
    %v8854 = vunpack.c.l.s4 1983009808
    %v8855 = vunpack.c.0.s8 %v8854
    %v8856 = vlaneseq
    %v8857 = vshrl.u32 %v8856, 7
    %v8858 = vsub.s32 %v8855, %v8857
    %v8859 = vrot.slane %v8851, %v8858
    %v8861 = vunpack.c.l.s4 1983009808
    %v8862 = vunpack.c.0.s8 %v8861
    %v8863 = vlaneseq
    %v8864 = vshrl.u32 %v8863, 7
    %v8865 = vsub.s32 %v8862, %v8864
    %v8866 = vrot.slane %v8852, %v8865
    %v8867 = vcombine.low %v5723, %v5787
    %v8868 = vcombine.high %v5723, %v5787
    %v8870 = vunpack.c.l.s4 1983009808
    %v8871 = vunpack.c.0.s8 %v8870
    %v8872 = vlaneseq
    %v8873 = vshrl.u32 %v8872, 7
    %v8874 = vsub.s32 %v8871, %v8873
    %v8875 = vrot.slane %v8867, %v8874
    %v8877 = vunpack.c.l.s4 1983009808
    %v8878 = vunpack.c.0.s8 %v8877
    %v8879 = vlaneseq
    %v8880 = vshrl.u32 %v8879, 7
    %v8881 = vsub.s32 %v8878, %v8880
    %v8882 = vrot.slane %v8868, %v8881
    %v8883 = vcombine.low %v5755, %v5819
    %v8884 = vcombine.high %v5755, %v5819
    %v8886 = vunpack.c.l.s4 1983009808
    %v8887 = vunpack.c.0.s8 %v8886
    %v8888 = vlaneseq
    %v8889 = vshrl.u32 %v8888, 7
    %v8890 = vsub.s32 %v8887, %v8889
    %v8891 = vrot.slane %v8883, %v8890
    %v8893 = vunpack.c.l.s4 1983009808
    %v8894 = vunpack.c.0.s8 %v8893
    %v8895 = vlaneseq
    %v8896 = vshrl.u32 %v8895, 7
    %v8897 = vsub.s32 %v8894, %v8896
    %v8898 = vrot.slane %v8884, %v8897
    %v8899 = vcombine.low %v8843, %v8859
    %v8900 = vcombine.high %v8843, %v8859
    %v8902 = vunpack.c.l.s4 1934713408
    %v8903 = vunpack.c.0.s8 %v8902
    %v8904 = vlaneseq
    %v8905 = vshrl.u32 %v8904, 7
    %v8906 = vsub.s32 %v8903, %v8905
    %v8907 = vrot.slane %v8899, %v8906
    %v8909 = vunpack.c.l.s4 1934713408
    %v8910 = vunpack.c.0.s8 %v8909
    %v8911 = vlaneseq
    %v8912 = vshrl.u32 %v8911, 7
    %v8913 = vsub.s32 %v8910, %v8912
    %v8914 = vrot.slane %v8900, %v8913
    %v8915 = vcombine.low %v8850, %v8866
    %v8916 = vcombine.high %v8850, %v8866
    %v8918 = vunpack.c.l.s4 1934713408
    %v8919 = vunpack.c.0.s8 %v8918
    %v8920 = vlaneseq
    %v8921 = vshrl.u32 %v8920, 7
    %v8922 = vsub.s32 %v8919, %v8921
    %v8923 = vrot.slane %v8915, %v8922
    %v8925 = vunpack.c.l.s4 1934713408
    %v8926 = vunpack.c.0.s8 %v8925
    %v8927 = vlaneseq
    %v8928 = vshrl.u32 %v8927, 7
    %v8929 = vsub.s32 %v8926, %v8928
    %v8930 = vrot.slane %v8916, %v8929
    %v8931 = vcombine.low %v8875, %v8891
    %v8932 = vcombine.high %v8875, %v8891
    %v8934 = vunpack.c.l.s4 1934713408
    %v8935 = vunpack.c.0.s8 %v8934
    %v8936 = vlaneseq
    %v8937 = vshrl.u32 %v8936, 7
    %v8938 = vsub.s32 %v8935, %v8937
    %v8939 = vrot.slane %v8931, %v8938
    %v8941 = vunpack.c.l.s4 1934713408
    %v8942 = vunpack.c.0.s8 %v8941
    %v8943 = vlaneseq
    %v8944 = vshrl.u32 %v8943, 7
    %v8945 = vsub.s32 %v8942, %v8944
    %v8946 = vrot.slane %v8932, %v8945
    %v8947 = vcombine.low %v8882, %v8898
    %v8948 = vcombine.high %v8882, %v8898
    %v8950 = vunpack.c.l.s4 1934713408
    %v8951 = vunpack.c.0.s8 %v8950
    %v8952 = vlaneseq
    %v8953 = vshrl.u32 %v8952, 7
    %v8954 = vsub.s32 %v8951, %v8953
    %v8955 = vrot.slane %v8947, %v8954
    %v8957 = vunpack.c.l.s4 1934713408
    %v8958 = vunpack.c.0.s8 %v8957
    %v8959 = vlaneseq
    %v8960 = vshrl.u32 %v8959, 7
    %v8961 = vsub.s32 %v8958, %v8960
    %v8962 = vrot.slane %v8948, %v8961
    %v8963 = vcombine.low %v8907, %v8939
    %v8964 = vcombine.high %v8907, %v8939
    %v8965 = vcombine.low %v8914, %v8946
    %v8966 = vcombine.high %v8914, %v8946
    %v8967 = vcombine.low %v8923, %v8955
    %v8968 = vcombine.high %v8923, %v8955
    %v8969 = vcombine.low %v8930, %v8962
    %v8970 = vcombine.high %v8930, %v8962
    %v8971 = vcombine.low %v5851, %v5915
    %v8972 = vcombine.high %v5851, %v5915
    %v8974 = vunpack.c.l.s4 1983009808
    %v8975 = vunpack.c.0.s8 %v8974
    %v8976 = vlaneseq
    %v8977 = vshrl.u32 %v8976, 7
    %v8978 = vsub.s32 %v8975, %v8977
    %v8979 = vrot.slane %v8971, %v8978
    %v8981 = vunpack.c.l.s4 1983009808
    %v8982 = vunpack.c.0.s8 %v8981
    %v8983 = vlaneseq
    %v8984 = vshrl.u32 %v8983, 7
    %v8985 = vsub.s32 %v8982, %v8984
    %v8986 = vrot.slane %v8972, %v8985
    %v8987 = vcombine.low %v5883, %v5947
    %v8988 = vcombine.high %v5883, %v5947
    %v8990 = vunpack.c.l.s4 1983009808
    %v8991 = vunpack.c.0.s8 %v8990
    %v8992 = vlaneseq
    %v8993 = vshrl.u32 %v8992, 7
    %v8994 = vsub.s32 %v8991, %v8993
    %v8995 = vrot.slane %v8987, %v8994
    %v8997 = vunpack.c.l.s4 1983009808
    %v8998 = vunpack.c.0.s8 %v8997
    %v8999 = vlaneseq
    %v9000 = vshrl.u32 %v8999, 7
    %v9001 = vsub.s32 %v8998, %v9000
    %v9002 = vrot.slane %v8988, %v9001
    %v9003 = vcombine.low %v5979, %v6043
    %v9004 = vcombine.high %v5979, %v6043
    %v9006 = vunpack.c.l.s4 1983009808
    %v9007 = vunpack.c.0.s8 %v9006
    %v9008 = vlaneseq
    %v9009 = vshrl.u32 %v9008, 7
    %v9010 = vsub.s32 %v9007, %v9009
    %v9011 = vrot.slane %v9003, %v9010
    %v9013 = vunpack.c.l.s4 1983009808
    %v9014 = vunpack.c.0.s8 %v9013
    %v9015 = vlaneseq
    %v9016 = vshrl.u32 %v9015, 7
    %v9017 = vsub.s32 %v9014, %v9016
    %v9018 = vrot.slane %v9004, %v9017
    %v9019 = vcombine.low %v6011, %v6075
    %v9020 = vcombine.high %v6011, %v6075
    %v9022 = vunpack.c.l.s4 1983009808
    %v9023 = vunpack.c.0.s8 %v9022
    %v9024 = vlaneseq
    %v9025 = vshrl.u32 %v9024, 7
    %v9026 = vsub.s32 %v9023, %v9025
    %v9027 = vrot.slane %v9019, %v9026
    %v9029 = vunpack.c.l.s4 1983009808
    %v9030 = vunpack.c.0.s8 %v9029
    %v9031 = vlaneseq
    %v9032 = vshrl.u32 %v9031, 7
    %v9033 = vsub.s32 %v9030, %v9032
    %v9034 = vrot.slane %v9020, %v9033
    %v9035 = vcombine.low %v8979, %v8995
    %v9036 = vcombine.high %v8979, %v8995
    %v9038 = vunpack.c.l.s4 1934713408
    %v9039 = vunpack.c.0.s8 %v9038
    %v9040 = vlaneseq
    %v9041 = vshrl.u32 %v9040, 7
    %v9042 = vsub.s32 %v9039, %v9041
    %v9043 = vrot.slane %v9035, %v9042
    %v9045 = vunpack.c.l.s4 1934713408
    %v9046 = vunpack.c.0.s8 %v9045
    %v9047 = vlaneseq
    %v9048 = vshrl.u32 %v9047, 7
    %v9049 = vsub.s32 %v9046, %v9048
    %v9050 = vrot.slane %v9036, %v9049
    %v9051 = vcombine.low %v8986, %v9002
    %v9052 = vcombine.high %v8986, %v9002
    %v9054 = vunpack.c.l.s4 1934713408
    %v9055 = vunpack.c.0.s8 %v9054
    %v9056 = vlaneseq
    %v9057 = vshrl.u32 %v9056, 7
    %v9058 = vsub.s32 %v9055, %v9057
    %v9059 = vrot.slane %v9051, %v9058
    %v9061 = vunpack.c.l.s4 1934713408
    %v9062 = vunpack.c.0.s8 %v9061
    %v9063 = vlaneseq
    %v9064 = vshrl.u32 %v9063, 7
    %v9065 = vsub.s32 %v9062, %v9064
    %v9066 = vrot.slane %v9052, %v9065
    %v9067 = vcombine.low %v9011, %v9027
    %v9068 = vcombine.high %v9011, %v9027
    %v9070 = vunpack.c.l.s4 1934713408
    %v9071 = vunpack.c.0.s8 %v9070
    %v9072 = vlaneseq
    %v9073 = vshrl.u32 %v9072, 7
    %v9074 = vsub.s32 %v9071, %v9073
    %v9075 = vrot.slane %v9067, %v9074
    %v9077 = vunpack.c.l.s4 1934713408
    %v9078 = vunpack.c.0.s8 %v9077
    %v9079 = vlaneseq
    %v9080 = vshrl.u32 %v9079, 7
    %v9081 = vsub.s32 %v9078, %v9080
    %v9082 = vrot.slane %v9068, %v9081
    %v9083 = vcombine.low %v9018, %v9034
    %v9084 = vcombine.high %v9018, %v9034
    %v9086 = vunpack.c.l.s4 1934713408
    %v9087 = vunpack.c.0.s8 %v9086
    %v9088 = vlaneseq
    %v9089 = vshrl.u32 %v9088, 7
    %v9090 = vsub.s32 %v9087, %v9089
    %v9091 = vrot.slane %v9083, %v9090
    %v9093 = vunpack.c.l.s4 1934713408
    %v9094 = vunpack.c.0.s8 %v9093
    %v9095 = vlaneseq
    %v9096 = vshrl.u32 %v9095, 7
    %v9097 = vsub.s32 %v9094, %v9096
    %v9098 = vrot.slane %v9084, %v9097
    %v9099 = vcombine.low %v9043, %v9075
    %v9100 = vcombine.high %v9043, %v9075
    %v9101 = vcombine.low %v9050, %v9082
    %v9102 = vcombine.high %v9050, %v9082
    %v9103 = vcombine.low %v9059, %v9091
    %v9104 = vcombine.high %v9059, %v9091
    %v9105 = vcombine.low %v9066, %v9098
    %v9106 = vcombine.high %v9066, %v9098
    %v9107 = vcombine.low %v6107, %v6171
    %v9108 = vcombine.high %v6107, %v6171
    %v9110 = vunpack.c.l.s4 1983009808
    %v9111 = vunpack.c.0.s8 %v9110
    %v9112 = vlaneseq
    %v9113 = vshrl.u32 %v9112, 7
    %v9114 = vsub.s32 %v9111, %v9113
    %v9115 = vrot.slane %v9107, %v9114
    %v9117 = vunpack.c.l.s4 1983009808
    %v9118 = vunpack.c.0.s8 %v9117
    %v9119 = vlaneseq
    %v9120 = vshrl.u32 %v9119, 7
    %v9121 = vsub.s32 %v9118, %v9120
    %v9122 = vrot.slane %v9108, %v9121
    %v9123 = vcombine.low %v6139, %v6203
    %v9124 = vcombine.high %v6139, %v6203
    %v9126 = vunpack.c.l.s4 1983009808
    %v9127 = vunpack.c.0.s8 %v9126
    %v9128 = vlaneseq
    %v9129 = vshrl.u32 %v9128, 7
    %v9130 = vsub.s32 %v9127, %v9129
    %v9131 = vrot.slane %v9123, %v9130
    %v9133 = vunpack.c.l.s4 1983009808
    %v9134 = vunpack.c.0.s8 %v9133
    %v9135 = vlaneseq
    %v9136 = vshrl.u32 %v9135, 7
    %v9137 = vsub.s32 %v9134, %v9136
    %v9138 = vrot.slane %v9124, %v9137
    %v9139 = vcombine.low %v6235, %v6299
    %v9140 = vcombine.high %v6235, %v6299
    %v9142 = vunpack.c.l.s4 1983009808
    %v9143 = vunpack.c.0.s8 %v9142
    %v9144 = vlaneseq
    %v9145 = vshrl.u32 %v9144, 7
    %v9146 = vsub.s32 %v9143, %v9145
    %v9147 = vrot.slane %v9139, %v9146
    %v9149 = vunpack.c.l.s4 1983009808
    %v9150 = vunpack.c.0.s8 %v9149
    %v9151 = vlaneseq
    %v9152 = vshrl.u32 %v9151, 7
    %v9153 = vsub.s32 %v9150, %v9152
    %v9154 = vrot.slane %v9140, %v9153
    %v9155 = vcombine.low %v6267, %v6331
    %v9156 = vcombine.high %v6267, %v6331
    %v9158 = vunpack.c.l.s4 1983009808
    %v9159 = vunpack.c.0.s8 %v9158
    %v9160 = vlaneseq
    %v9161 = vshrl.u32 %v9160, 7
    %v9162 = vsub.s32 %v9159, %v9161
    %v9163 = vrot.slane %v9155, %v9162
    %v9165 = vunpack.c.l.s4 1983009808
    %v9166 = vunpack.c.0.s8 %v9165
    %v9167 = vlaneseq
    %v9168 = vshrl.u32 %v9167, 7
    %v9169 = vsub.s32 %v9166, %v9168
    %v9170 = vrot.slane %v9156, %v9169
    %v9171 = vcombine.low %v9115, %v9131
    %v9172 = vcombine.high %v9115, %v9131
    %v9174 = vunpack.c.l.s4 1934713408
    %v9175 = vunpack.c.0.s8 %v9174
    %v9176 = vlaneseq
    %v9177 = vshrl.u32 %v9176, 7
    %v9178 = vsub.s32 %v9175, %v9177
    %v9179 = vrot.slane %v9171, %v9178
    %v9181 = vunpack.c.l.s4 1934713408
    %v9182 = vunpack.c.0.s8 %v9181
    %v9183 = vlaneseq
    %v9184 = vshrl.u32 %v9183, 7
    %v9185 = vsub.s32 %v9182, %v9184
    %v9186 = vrot.slane %v9172, %v9185
    %v9187 = vcombine.low %v9122, %v9138
    %v9188 = vcombine.high %v9122, %v9138
    %v9190 = vunpack.c.l.s4 1934713408
    %v9191 = vunpack.c.0.s8 %v9190
    %v9192 = vlaneseq
    %v9193 = vshrl.u32 %v9192, 7
    %v9194 = vsub.s32 %v9191, %v9193
    %v9195 = vrot.slane %v9187, %v9194
    %v9197 = vunpack.c.l.s4 1934713408
    %v9198 = vunpack.c.0.s8 %v9197
    %v9199 = vlaneseq
    %v9200 = vshrl.u32 %v9199, 7
    %v9201 = vsub.s32 %v9198, %v9200
    %v9202 = vrot.slane %v9188, %v9201
    %v9203 = vcombine.low %v9147, %v9163
    %v9204 = vcombine.high %v9147, %v9163
    %v9206 = vunpack.c.l.s4 1934713408
    %v9207 = vunpack.c.0.s8 %v9206
    %v9208 = vlaneseq
    %v9209 = vshrl.u32 %v9208, 7
    %v9210 = vsub.s32 %v9207, %v9209
    %v9211 = vrot.slane %v9203, %v9210
    %v9213 = vunpack.c.l.s4 1934713408
    %v9214 = vunpack.c.0.s8 %v9213
    %v9215 = vlaneseq
    %v9216 = vshrl.u32 %v9215, 7
    %v9217 = vsub.s32 %v9214, %v9216
    %v9218 = vrot.slane %v9204, %v9217
    %v9219 = vcombine.low %v9154, %v9170
    %v9220 = vcombine.high %v9154, %v9170
    %v9222 = vunpack.c.l.s4 1934713408
    %v9223 = vunpack.c.0.s8 %v9222
    %v9224 = vlaneseq
    %v9225 = vshrl.u32 %v9224, 7
    %v9226 = vsub.s32 %v9223, %v9225
    %v9227 = vrot.slane %v9219, %v9226
    %v9229 = vunpack.c.l.s4 1934713408
    %v9230 = vunpack.c.0.s8 %v9229
    %v9231 = vlaneseq
    %v9232 = vshrl.u32 %v9231, 7
    %v9233 = vsub.s32 %v9230, %v9232
    %v9234 = vrot.slane %v9220, %v9233
    %v9235 = vcombine.low %v9179, %v9211
    %v9236 = vcombine.high %v9179, %v9211
    %v9237 = vcombine.low %v9186, %v9218
    %v9238 = vcombine.high %v9186, %v9218
    %v9239 = vcombine.low %v9195, %v9227
    %v9240 = vcombine.high %v9195, %v9227
    %v9241 = vcombine.low %v9202, %v9234
    %v9242 = vcombine.high %v9202, %v9234
    %v9243 = vcombine.low %v6363, %v6427
    %v9244 = vcombine.high %v6363, %v6427
    %v9246 = vunpack.c.l.s4 1983009808
    %v9247 = vunpack.c.0.s8 %v9246
    %v9248 = vlaneseq
    %v9249 = vshrl.u32 %v9248, 7
    %v9250 = vsub.s32 %v9247, %v9249
    %v9251 = vrot.slane %v9243, %v9250
    %v9253 = vunpack.c.l.s4 1983009808
    %v9254 = vunpack.c.0.s8 %v9253
    %v9255 = vlaneseq
    %v9256 = vshrl.u32 %v9255, 7
    %v9257 = vsub.s32 %v9254, %v9256
    %v9258 = vrot.slane %v9244, %v9257
    %v9259 = vcombine.low %v6395, %v6459
    %v9260 = vcombine.high %v6395, %v6459
    %v9262 = vunpack.c.l.s4 1983009808
    %v9263 = vunpack.c.0.s8 %v9262
    %v9264 = vlaneseq
    %v9265 = vshrl.u32 %v9264, 7
    %v9266 = vsub.s32 %v9263, %v9265
    %v9267 = vrot.slane %v9259, %v9266
    %v9269 = vunpack.c.l.s4 1983009808
    %v9270 = vunpack.c.0.s8 %v9269
    %v9271 = vlaneseq
    %v9272 = vshrl.u32 %v9271, 7
    %v9273 = vsub.s32 %v9270, %v9272
    %v9274 = vrot.slane %v9260, %v9273
    %v9275 = vcombine.low %v6491, %v6555
    %v9276 = vcombine.high %v6491, %v6555
    %v9278 = vunpack.c.l.s4 1983009808
    %v9279 = vunpack.c.0.s8 %v9278
    %v9280 = vlaneseq
    %v9281 = vshrl.u32 %v9280, 7
    %v9282 = vsub.s32 %v9279, %v9281
    %v9283 = vrot.slane %v9275, %v9282
    %v9285 = vunpack.c.l.s4 1983009808
    %v9286 = vunpack.c.0.s8 %v9285
    %v9287 = vlaneseq
    %v9288 = vshrl.u32 %v9287, 7
    %v9289 = vsub.s32 %v9286, %v9288
    %v9290 = vrot.slane %v9276, %v9289
    %v9291 = vcombine.low %v6523, %v6587
    %v9292 = vcombine.high %v6523, %v6587
    %v9294 = vunpack.c.l.s4 1983009808
    %v9295 = vunpack.c.0.s8 %v9294
    %v9296 = vlaneseq
    %v9297 = vshrl.u32 %v9296, 7
    %v9298 = vsub.s32 %v9295, %v9297
    %v9299 = vrot.slane %v9291, %v9298
    %v9301 = vunpack.c.l.s4 1983009808
    %v9302 = vunpack.c.0.s8 %v9301
    %v9303 = vlaneseq
    %v9304 = vshrl.u32 %v9303, 7
    %v9305 = vsub.s32 %v9302, %v9304
    %v9306 = vrot.slane %v9292, %v9305
    %v9307 = vcombine.low %v9251, %v9267
    %v9308 = vcombine.high %v9251, %v9267
    %v9310 = vunpack.c.l.s4 1934713408
    %v9311 = vunpack.c.0.s8 %v9310
    %v9312 = vlaneseq
    %v9313 = vshrl.u32 %v9312, 7
    %v9314 = vsub.s32 %v9311, %v9313
    %v9315 = vrot.slane %v9307, %v9314
    %v9317 = vunpack.c.l.s4 1934713408
    %v9318 = vunpack.c.0.s8 %v9317
    %v9319 = vlaneseq
    %v9320 = vshrl.u32 %v9319, 7
    %v9321 = vsub.s32 %v9318, %v9320
    %v9322 = vrot.slane %v9308, %v9321
    %v9323 = vcombine.low %v9258, %v9274
    %v9324 = vcombine.high %v9258, %v9274
    %v9326 = vunpack.c.l.s4 1934713408
    %v9327 = vunpack.c.0.s8 %v9326
    %v9328 = vlaneseq
    %v9329 = vshrl.u32 %v9328, 7
    %v9330 = vsub.s32 %v9327, %v9329
    %v9331 = vrot.slane %v9323, %v9330
    %v9333 = vunpack.c.l.s4 1934713408
    %v9334 = vunpack.c.0.s8 %v9333
    %v9335 = vlaneseq
    %v9336 = vshrl.u32 %v9335, 7
    %v9337 = vsub.s32 %v9334, %v9336
    %v9338 = vrot.slane %v9324, %v9337
    %v9339 = vcombine.low %v9283, %v9299
    %v9340 = vcombine.high %v9283, %v9299
    %v9342 = vunpack.c.l.s4 1934713408
    %v9343 = vunpack.c.0.s8 %v9342
    %v9344 = vlaneseq
    %v9345 = vshrl.u32 %v9344, 7
    %v9346 = vsub.s32 %v9343, %v9345
    %v9347 = vrot.slane %v9339, %v9346
    %v9349 = vunpack.c.l.s4 1934713408
    %v9350 = vunpack.c.0.s8 %v9349
    %v9351 = vlaneseq
    %v9352 = vshrl.u32 %v9351, 7
    %v9353 = vsub.s32 %v9350, %v9352
    %v9354 = vrot.slane %v9340, %v9353
    %v9355 = vcombine.low %v9290, %v9306
    %v9356 = vcombine.high %v9290, %v9306
    %v9358 = vunpack.c.l.s4 1934713408
    %v9359 = vunpack.c.0.s8 %v9358
    %v9360 = vlaneseq
    %v9361 = vshrl.u32 %v9360, 7
    %v9362 = vsub.s32 %v9359, %v9361
    %v9363 = vrot.slane %v9355, %v9362
    %v9365 = vunpack.c.l.s4 1934713408
    %v9366 = vunpack.c.0.s8 %v9365
    %v9367 = vlaneseq
    %v9368 = vshrl.u32 %v9367, 7
    %v9369 = vsub.s32 %v9366, %v9368
    %v9370 = vrot.slane %v9356, %v9369
    %v9371 = vcombine.low %v9315, %v9347
    %v9372 = vcombine.high %v9315, %v9347
    %v9373 = vcombine.low %v9322, %v9354
    %v9374 = vcombine.high %v9322, %v9354
    %v9375 = vcombine.low %v9331, %v9363
    %v9376 = vcombine.high %v9331, %v9363
    %v9377 = vcombine.low %v9338, %v9370
    %v9378 = vcombine.high %v9338, %v9370
    %v9379 = vcombine.low %v6619, %v6683
    %v9380 = vcombine.high %v6619, %v6683
    %v9382 = vunpack.c.l.s4 1983009808
    %v9383 = vunpack.c.0.s8 %v9382
    %v9384 = vlaneseq
    %v9385 = vshrl.u32 %v9384, 7
    %v9386 = vsub.s32 %v9383, %v9385
    %v9387 = vrot.slane %v9379, %v9386
    %v9389 = vunpack.c.l.s4 1983009808
    %v9390 = vunpack.c.0.s8 %v9389
    %v9391 = vlaneseq
    %v9392 = vshrl.u32 %v9391, 7
    %v9393 = vsub.s32 %v9390, %v9392
    %v9394 = vrot.slane %v9380, %v9393
    %v9395 = vcombine.low %v6651, %v6715
    %v9396 = vcombine.high %v6651, %v6715
    %v9398 = vunpack.c.l.s4 1983009808
    %v9399 = vunpack.c.0.s8 %v9398
    %v9400 = vlaneseq
    %v9401 = vshrl.u32 %v9400, 7
    %v9402 = vsub.s32 %v9399, %v9401
    %v9403 = vrot.slane %v9395, %v9402
    %v9405 = vunpack.c.l.s4 1983009808
    %v9406 = vunpack.c.0.s8 %v9405
    %v9407 = vlaneseq
    %v9408 = vshrl.u32 %v9407, 7
    %v9409 = vsub.s32 %v9406, %v9408
    %v9410 = vrot.slane %v9396, %v9409
    %v9411 = vcombine.low %v6747, %v6811
    %v9412 = vcombine.high %v6747, %v6811
    %v9414 = vunpack.c.l.s4 1983009808
    %v9415 = vunpack.c.0.s8 %v9414
    %v9416 = vlaneseq
    %v9417 = vshrl.u32 %v9416, 7
    %v9418 = vsub.s32 %v9415, %v9417
    %v9419 = vrot.slane %v9411, %v9418
    %v9421 = vunpack.c.l.s4 1983009808
    %v9422 = vunpack.c.0.s8 %v9421
    %v9423 = vlaneseq
    %v9424 = vshrl.u32 %v9423, 7
    %v9425 = vsub.s32 %v9422, %v9424
    %v9426 = vrot.slane %v9412, %v9425
    %v9427 = vcombine.low %v6779, %v6843
    %v9428 = vcombine.high %v6779, %v6843
    %v9430 = vunpack.c.l.s4 1983009808
    %v9431 = vunpack.c.0.s8 %v9430
    %v9432 = vlaneseq
    %v9433 = vshrl.u32 %v9432, 7
    %v9434 = vsub.s32 %v9431, %v9433
    %v9435 = vrot.slane %v9427, %v9434
    %v9437 = vunpack.c.l.s4 1983009808
    %v9438 = vunpack.c.0.s8 %v9437
    %v9439 = vlaneseq
    %v9440 = vshrl.u32 %v9439, 7
    %v9441 = vsub.s32 %v9438, %v9440
    %v9442 = vrot.slane %v9428, %v9441
    %v9443 = vcombine.low %v9387, %v9403
    %v9444 = vcombine.high %v9387, %v9403
    %v9446 = vunpack.c.l.s4 1934713408
    %v9447 = vunpack.c.0.s8 %v9446
    %v9448 = vlaneseq
    %v9449 = vshrl.u32 %v9448, 7
    %v9450 = vsub.s32 %v9447, %v9449
    %v9451 = vrot.slane %v9443, %v9450
    %v9453 = vunpack.c.l.s4 1934713408
    %v9454 = vunpack.c.0.s8 %v9453
    %v9455 = vlaneseq
    %v9456 = vshrl.u32 %v9455, 7
    %v9457 = vsub.s32 %v9454, %v9456
    %v9458 = vrot.slane %v9444, %v9457
    %v9459 = vcombine.low %v9394, %v9410
    %v9460 = vcombine.high %v9394, %v9410
    %v9462 = vunpack.c.l.s4 1934713408
    %v9463 = vunpack.c.0.s8 %v9462
    %v9464 = vlaneseq
    %v9465 = vshrl.u32 %v9464, 7
    %v9466 = vsub.s32 %v9463, %v9465
    %v9467 = vrot.slane %v9459, %v9466
    %v9469 = vunpack.c.l.s4 1934713408
    %v9470 = vunpack.c.0.s8 %v9469
    %v9471 = vlaneseq
    %v9472 = vshrl.u32 %v9471, 7
    %v9473 = vsub.s32 %v9470, %v9472
    %v9474 = vrot.slane %v9460, %v9473
    %v9475 = vcombine.low %v9419, %v9435
    %v9476 = vcombine.high %v9419, %v9435
    %v9478 = vunpack.c.l.s4 1934713408
    %v9479 = vunpack.c.0.s8 %v9478
    %v9480 = vlaneseq
    %v9481 = vshrl.u32 %v9480, 7
    %v9482 = vsub.s32 %v9479, %v9481
    %v9483 = vrot.slane %v9475, %v9482
    %v9485 = vunpack.c.l.s4 1934713408
    %v9486 = vunpack.c.0.s8 %v9485
    %v9487 = vlaneseq
    %v9488 = vshrl.u32 %v9487, 7
    %v9489 = vsub.s32 %v9486, %v9488
    %v9490 = vrot.slane %v9476, %v9489
    %v9491 = vcombine.low %v9426, %v9442
    %v9492 = vcombine.high %v9426, %v9442
    %v9494 = vunpack.c.l.s4 1934713408
    %v9495 = vunpack.c.0.s8 %v9494
    %v9496 = vlaneseq
    %v9497 = vshrl.u32 %v9496, 7
    %v9498 = vsub.s32 %v9495, %v9497
    %v9499 = vrot.slane %v9491, %v9498
    %v9501 = vunpack.c.l.s4 1934713408
    %v9502 = vunpack.c.0.s8 %v9501
    %v9503 = vlaneseq
    %v9504 = vshrl.u32 %v9503, 7
    %v9505 = vsub.s32 %v9502, %v9504
    %v9506 = vrot.slane %v9492, %v9505
    %v9507 = vcombine.low %v9451, %v9483
    %v9508 = vcombine.high %v9451, %v9483
    %v9509 = vcombine.low %v9458, %v9490
    %v9510 = vcombine.high %v9458, %v9490
    %v9511 = vcombine.low %v9467, %v9499
    %v9512 = vcombine.high %v9467, %v9499
    %v9513 = vcombine.low %v9474, %v9506
    %v9514 = vcombine.high %v9474, %v9506
    %v9515 = vcombine.low %v6875, %v6939
    %v9516 = vcombine.high %v6875, %v6939
    %v9518 = vunpack.c.l.s4 1983009808
    %v9519 = vunpack.c.0.s8 %v9518
    %v9520 = vlaneseq
    %v9521 = vshrl.u32 %v9520, 7
    %v9522 = vsub.s32 %v9519, %v9521
    %v9523 = vrot.slane %v9515, %v9522
    %v9525 = vunpack.c.l.s4 1983009808
    %v9526 = vunpack.c.0.s8 %v9525
    %v9527 = vlaneseq
    %v9528 = vshrl.u32 %v9527, 7
    %v9529 = vsub.s32 %v9526, %v9528
    %v9530 = vrot.slane %v9516, %v9529
    %v9531 = vcombine.low %v6907, %v6971
    %v9532 = vcombine.high %v6907, %v6971
    %v9534 = vunpack.c.l.s4 1983009808
    %v9535 = vunpack.c.0.s8 %v9534
    %v9536 = vlaneseq
    %v9537 = vshrl.u32 %v9536, 7
    %v9538 = vsub.s32 %v9535, %v9537
    %v9539 = vrot.slane %v9531, %v9538
    %v9541 = vunpack.c.l.s4 1983009808
    %v9542 = vunpack.c.0.s8 %v9541
    %v9543 = vlaneseq
    %v9544 = vshrl.u32 %v9543, 7
    %v9545 = vsub.s32 %v9542, %v9544
    %v9546 = vrot.slane %v9532, %v9545
    %v9547 = vcombine.low %v7003, %v7067
    %v9548 = vcombine.high %v7003, %v7067
    %v9550 = vunpack.c.l.s4 1983009808
    %v9551 = vunpack.c.0.s8 %v9550
    %v9552 = vlaneseq
    %v9553 = vshrl.u32 %v9552, 7
    %v9554 = vsub.s32 %v9551, %v9553
    %v9555 = vrot.slane %v9547, %v9554
    %v9557 = vunpack.c.l.s4 1983009808
    %v9558 = vunpack.c.0.s8 %v9557
    %v9559 = vlaneseq
    %v9560 = vshrl.u32 %v9559, 7
    %v9561 = vsub.s32 %v9558, %v9560
    %v9562 = vrot.slane %v9548, %v9561
    %v9563 = vcombine.low %v7035, %v7099
    %v9564 = vcombine.high %v7035, %v7099
    %v9566 = vunpack.c.l.s4 1983009808
    %v9567 = vunpack.c.0.s8 %v9566
    %v9568 = vlaneseq
    %v9569 = vshrl.u32 %v9568, 7
    %v9570 = vsub.s32 %v9567, %v9569
    %v9571 = vrot.slane %v9563, %v9570
    %v9573 = vunpack.c.l.s4 1983009808
    %v9574 = vunpack.c.0.s8 %v9573
    %v9575 = vlaneseq
    %v9576 = vshrl.u32 %v9575, 7
    %v9577 = vsub.s32 %v9574, %v9576
    %v9578 = vrot.slane %v9564, %v9577
    %v9579 = vcombine.low %v9523, %v9539
    %v9580 = vcombine.high %v9523, %v9539
    %v9582 = vunpack.c.l.s4 1934713408
    %v9583 = vunpack.c.0.s8 %v9582
    %v9584 = vlaneseq
    %v9585 = vshrl.u32 %v9584, 7
    %v9586 = vsub.s32 %v9583, %v9585
    %v9587 = vrot.slane %v9579, %v9586
    %v9589 = vunpack.c.l.s4 1934713408
    %v9590 = vunpack.c.0.s8 %v9589
    %v9591 = vlaneseq
    %v9592 = vshrl.u32 %v9591, 7
    %v9593 = vsub.s32 %v9590, %v9592
    %v9594 = vrot.slane %v9580, %v9593
    %v9595 = vcombine.low %v9530, %v9546
    %v9596 = vcombine.high %v9530, %v9546
    %v9598 = vunpack.c.l.s4 1934713408
    %v9599 = vunpack.c.0.s8 %v9598
    %v9600 = vlaneseq
    %v9601 = vshrl.u32 %v9600, 7
    %v9602 = vsub.s32 %v9599, %v9601
    %v9603 = vrot.slane %v9595, %v9602
    %v9605 = vunpack.c.l.s4 1934713408
    %v9606 = vunpack.c.0.s8 %v9605
    %v9607 = vlaneseq
    %v9608 = vshrl.u32 %v9607, 7
    %v9609 = vsub.s32 %v9606, %v9608
    %v9610 = vrot.slane %v9596, %v9609
    %v9611 = vcombine.low %v9555, %v9571
    %v9612 = vcombine.high %v9555, %v9571
    %v9614 = vunpack.c.l.s4 1934713408
    %v9615 = vunpack.c.0.s8 %v9614
    %v9616 = vlaneseq
    %v9617 = vshrl.u32 %v9616, 7
    %v9618 = vsub.s32 %v9615, %v9617
    %v9619 = vrot.slane %v9611, %v9618
    %v9621 = vunpack.c.l.s4 1934713408
    %v9622 = vunpack.c.0.s8 %v9621
    %v9623 = vlaneseq
    %v9624 = vshrl.u32 %v9623, 7
    %v9625 = vsub.s32 %v9622, %v9624
    %v9626 = vrot.slane %v9612, %v9625
    %v9627 = vcombine.low %v9562, %v9578
    %v9628 = vcombine.high %v9562, %v9578
    %v9630 = vunpack.c.l.s4 1934713408
    %v9631 = vunpack.c.0.s8 %v9630
    %v9632 = vlaneseq
    %v9633 = vshrl.u32 %v9632, 7
    %v9634 = vsub.s32 %v9631, %v9633
    %v9635 = vrot.slane %v9627, %v9634
    %v9637 = vunpack.c.l.s4 1934713408
    %v9638 = vunpack.c.0.s8 %v9637
    %v9639 = vlaneseq
    %v9640 = vshrl.u32 %v9639, 7
    %v9641 = vsub.s32 %v9638, %v9640
    %v9642 = vrot.slane %v9628, %v9641
    %v9643 = vcombine.low %v9587, %v9619
    %v9644 = vcombine.high %v9587, %v9619
    %v9645 = vcombine.low %v9594, %v9626
    %v9646 = vcombine.high %v9594, %v9626
    %v9647 = vcombine.low %v9603, %v9635
    %v9648 = vcombine.high %v9603, %v9635
    %v9649 = vcombine.low %v9610, %v9642
    %v9650 = vcombine.high %v9610, %v9642
    %v9651 = vcombine.low %v7131, %v7195
    %v9652 = vcombine.high %v7131, %v7195
    %v9654 = vunpack.c.l.s4 1983009808
    %v9655 = vunpack.c.0.s8 %v9654
    %v9656 = vlaneseq
    %v9657 = vshrl.u32 %v9656, 7
    %v9658 = vsub.s32 %v9655, %v9657
    %v9659 = vrot.slane %v9651, %v9658
    %v9661 = vunpack.c.l.s4 1983009808
    %v9662 = vunpack.c.0.s8 %v9661
    %v9663 = vlaneseq
    %v9664 = vshrl.u32 %v9663, 7
    %v9665 = vsub.s32 %v9662, %v9664
    %v9666 = vrot.slane %v9652, %v9665
    %v9667 = vcombine.low %v7163, %v7227
    %v9668 = vcombine.high %v7163, %v7227
    %v9670 = vunpack.c.l.s4 1983009808
    %v9671 = vunpack.c.0.s8 %v9670
    %v9672 = vlaneseq
    %v9673 = vshrl.u32 %v9672, 7
    %v9674 = vsub.s32 %v9671, %v9673
    %v9675 = vrot.slane %v9667, %v9674
    %v9677 = vunpack.c.l.s4 1983009808
    %v9678 = vunpack.c.0.s8 %v9677
    %v9679 = vlaneseq
    %v9680 = vshrl.u32 %v9679, 7
    %v9681 = vsub.s32 %v9678, %v9680
    %v9682 = vrot.slane %v9668, %v9681
    %v9683 = vcombine.low %v7259, %v7323
    %v9684 = vcombine.high %v7259, %v7323
    %v9686 = vunpack.c.l.s4 1983009808
    %v9687 = vunpack.c.0.s8 %v9686
    %v9688 = vlaneseq
    %v9689 = vshrl.u32 %v9688, 7
    %v9690 = vsub.s32 %v9687, %v9689
    %v9691 = vrot.slane %v9683, %v9690
    %v9693 = vunpack.c.l.s4 1983009808
    %v9694 = vunpack.c.0.s8 %v9693
    %v9695 = vlaneseq
    %v9696 = vshrl.u32 %v9695, 7
    %v9697 = vsub.s32 %v9694, %v9696
    %v9698 = vrot.slane %v9684, %v9697
    %v9699 = vcombine.low %v7291, %v7355
    %v9700 = vcombine.high %v7291, %v7355
    %v9702 = vunpack.c.l.s4 1983009808
    %v9703 = vunpack.c.0.s8 %v9702
    %v9704 = vlaneseq
    %v9705 = vshrl.u32 %v9704, 7
    %v9706 = vsub.s32 %v9703, %v9705
    %v9707 = vrot.slane %v9699, %v9706
    %v9709 = vunpack.c.l.s4 1983009808
    %v9710 = vunpack.c.0.s8 %v9709
    %v9711 = vlaneseq
    %v9712 = vshrl.u32 %v9711, 7
    %v9713 = vsub.s32 %v9710, %v9712
    %v9714 = vrot.slane %v9700, %v9713
    %v9715 = vcombine.low %v9659, %v9675
    %v9716 = vcombine.high %v9659, %v9675
    %v9718 = vunpack.c.l.s4 1934713408
    %v9719 = vunpack.c.0.s8 %v9718
    %v9720 = vlaneseq
    %v9721 = vshrl.u32 %v9720, 7
    %v9722 = vsub.s32 %v9719, %v9721
    %v9723 = vrot.slane %v9715, %v9722
    %v9725 = vunpack.c.l.s4 1934713408
    %v9726 = vunpack.c.0.s8 %v9725
    %v9727 = vlaneseq
    %v9728 = vshrl.u32 %v9727, 7
    %v9729 = vsub.s32 %v9726, %v9728
    %v9730 = vrot.slane %v9716, %v9729
    %v9731 = vcombine.low %v9666, %v9682
    %v9732 = vcombine.high %v9666, %v9682
    %v9734 = vunpack.c.l.s4 1934713408
    %v9735 = vunpack.c.0.s8 %v9734
    %v9736 = vlaneseq
    %v9737 = vshrl.u32 %v9736, 7
    %v9738 = vsub.s32 %v9735, %v9737
    %v9739 = vrot.slane %v9731, %v9738
    %v9741 = vunpack.c.l.s4 1934713408
    %v9742 = vunpack.c.0.s8 %v9741
    %v9743 = vlaneseq
    %v9744 = vshrl.u32 %v9743, 7
    %v9745 = vsub.s32 %v9742, %v9744
    %v9746 = vrot.slane %v9732, %v9745
    %v9747 = vcombine.low %v9691, %v9707
    %v9748 = vcombine.high %v9691, %v9707
    %v9750 = vunpack.c.l.s4 1934713408
    %v9751 = vunpack.c.0.s8 %v9750
    %v9752 = vlaneseq
    %v9753 = vshrl.u32 %v9752, 7
    %v9754 = vsub.s32 %v9751, %v9753
    %v9755 = vrot.slane %v9747, %v9754
    %v9757 = vunpack.c.l.s4 1934713408
    %v9758 = vunpack.c.0.s8 %v9757
    %v9759 = vlaneseq
    %v9760 = vshrl.u32 %v9759, 7
    %v9761 = vsub.s32 %v9758, %v9760
    %v9762 = vrot.slane %v9748, %v9761
    %v9763 = vcombine.low %v9698, %v9714
    %v9764 = vcombine.high %v9698, %v9714
    %v9766 = vunpack.c.l.s4 1934713408
    %v9767 = vunpack.c.0.s8 %v9766
    %v9768 = vlaneseq
    %v9769 = vshrl.u32 %v9768, 7
    %v9770 = vsub.s32 %v9767, %v9769
    %v9771 = vrot.slane %v9763, %v9770
    %v9773 = vunpack.c.l.s4 1934713408
    %v9774 = vunpack.c.0.s8 %v9773
    %v9775 = vlaneseq
    %v9776 = vshrl.u32 %v9775, 7
    %v9777 = vsub.s32 %v9774, %v9776
    %v9778 = vrot.slane %v9764, %v9777
    %v9779 = vcombine.low %v9723, %v9755
    %v9780 = vcombine.high %v9723, %v9755
    %v9781 = vcombine.low %v9730, %v9762
    %v9782 = vcombine.high %v9730, %v9762
    %v9783 = vcombine.low %v9739, %v9771
    %v9784 = vcombine.high %v9739, %v9771
    %v9785 = vcombine.low %v9746, %v9778
    %v9786 = vcombine.high %v9746, %v9778
    %v9787 = vcombine.low %v7387, %v7451
    %v9788 = vcombine.high %v7387, %v7451
    %v9790 = vunpack.c.l.s4 1983009808
    %v9791 = vunpack.c.0.s8 %v9790
    %v9792 = vlaneseq
    %v9793 = vshrl.u32 %v9792, 7
    %v9794 = vsub.s32 %v9791, %v9793
    %v9795 = vrot.slane %v9787, %v9794
    %v9797 = vunpack.c.l.s4 1983009808
    %v9798 = vunpack.c.0.s8 %v9797
    %v9799 = vlaneseq
    %v9800 = vshrl.u32 %v9799, 7
    %v9801 = vsub.s32 %v9798, %v9800
    %v9802 = vrot.slane %v9788, %v9801
    %v9803 = vcombine.low %v7419, %v7483
    %v9804 = vcombine.high %v7419, %v7483
    %v9806 = vunpack.c.l.s4 1983009808
    %v9807 = vunpack.c.0.s8 %v9806
    %v9808 = vlaneseq
    %v9809 = vshrl.u32 %v9808, 7
    %v9810 = vsub.s32 %v9807, %v9809
    %v9811 = vrot.slane %v9803, %v9810
    %v9813 = vunpack.c.l.s4 1983009808
    %v9814 = vunpack.c.0.s8 %v9813
    %v9815 = vlaneseq
    %v9816 = vshrl.u32 %v9815, 7
    %v9817 = vsub.s32 %v9814, %v9816
    %v9818 = vrot.slane %v9804, %v9817
    %v9819 = vcombine.low %v7515, %v7579
    %v9820 = vcombine.high %v7515, %v7579
    %v9822 = vunpack.c.l.s4 1983009808
    %v9823 = vunpack.c.0.s8 %v9822
    %v9824 = vlaneseq
    %v9825 = vshrl.u32 %v9824, 7
    %v9826 = vsub.s32 %v9823, %v9825
    %v9827 = vrot.slane %v9819, %v9826
    %v9829 = vunpack.c.l.s4 1983009808
    %v9830 = vunpack.c.0.s8 %v9829
    %v9831 = vlaneseq
    %v9832 = vshrl.u32 %v9831, 7
    %v9833 = vsub.s32 %v9830, %v9832
    %v9834 = vrot.slane %v9820, %v9833
    %v9835 = vcombine.low %v7547, %v7611
    %v9836 = vcombine.high %v7547, %v7611
    %v9838 = vunpack.c.l.s4 1983009808
    %v9839 = vunpack.c.0.s8 %v9838
    %v9840 = vlaneseq
    %v9841 = vshrl.u32 %v9840, 7
    %v9842 = vsub.s32 %v9839, %v9841
    %v9843 = vrot.slane %v9835, %v9842
    %v9845 = vunpack.c.l.s4 1983009808
    %v9846 = vunpack.c.0.s8 %v9845
    %v9847 = vlaneseq
    %v9848 = vshrl.u32 %v9847, 7
    %v9849 = vsub.s32 %v9846, %v9848
    %v9850 = vrot.slane %v9836, %v9849
    %v9851 = vcombine.low %v9795, %v9811
    %v9852 = vcombine.high %v9795, %v9811
    %v9854 = vunpack.c.l.s4 1934713408
    %v9855 = vunpack.c.0.s8 %v9854
    %v9856 = vlaneseq
    %v9857 = vshrl.u32 %v9856, 7
    %v9858 = vsub.s32 %v9855, %v9857
    %v9859 = vrot.slane %v9851, %v9858
    %v9861 = vunpack.c.l.s4 1934713408
    %v9862 = vunpack.c.0.s8 %v9861
    %v9863 = vlaneseq
    %v9864 = vshrl.u32 %v9863, 7
    %v9865 = vsub.s32 %v9862, %v9864
    %v9866 = vrot.slane %v9852, %v9865
    %v9867 = vcombine.low %v9802, %v9818
    %v9868 = vcombine.high %v9802, %v9818
    %v9870 = vunpack.c.l.s4 1934713408
    %v9871 = vunpack.c.0.s8 %v9870
    %v9872 = vlaneseq
    %v9873 = vshrl.u32 %v9872, 7
    %v9874 = vsub.s32 %v9871, %v9873
    %v9875 = vrot.slane %v9867, %v9874
    %v9877 = vunpack.c.l.s4 1934713408
    %v9878 = vunpack.c.0.s8 %v9877
    %v9879 = vlaneseq
    %v9880 = vshrl.u32 %v9879, 7
    %v9881 = vsub.s32 %v9878, %v9880
    %v9882 = vrot.slane %v9868, %v9881
    %v9883 = vcombine.low %v9827, %v9843
    %v9884 = vcombine.high %v9827, %v9843
    %v9886 = vunpack.c.l.s4 1934713408
    %v9887 = vunpack.c.0.s8 %v9886
    %v9888 = vlaneseq
    %v9889 = vshrl.u32 %v9888, 7
    %v9890 = vsub.s32 %v9887, %v9889
    %v9891 = vrot.slane %v9883, %v9890
    %v9893 = vunpack.c.l.s4 1934713408
    %v9894 = vunpack.c.0.s8 %v9893
    %v9895 = vlaneseq
    %v9896 = vshrl.u32 %v9895, 7
    %v9897 = vsub.s32 %v9894, %v9896
    %v9898 = vrot.slane %v9884, %v9897
    %v9899 = vcombine.low %v9834, %v9850
    %v9900 = vcombine.high %v9834, %v9850
    %v9902 = vunpack.c.l.s4 1934713408
    %v9903 = vunpack.c.0.s8 %v9902
    %v9904 = vlaneseq
    %v9905 = vshrl.u32 %v9904, 7
    %v9906 = vsub.s32 %v9903, %v9905
    %v9907 = vrot.slane %v9899, %v9906
    %v9909 = vunpack.c.l.s4 1934713408
    %v9910 = vunpack.c.0.s8 %v9909
    %v9911 = vlaneseq
    %v9912 = vshrl.u32 %v9911, 7
    %v9913 = vsub.s32 %v9910, %v9912
    %v9914 = vrot.slane %v9900, %v9913
    %v9915 = vcombine.low %v9859, %v9891
    %v9916 = vcombine.high %v9859, %v9891
    %v9917 = vcombine.low %v9866, %v9898
    %v9918 = vcombine.high %v9866, %v9898
    %v9919 = vcombine.low %v9875, %v9907
    %v9920 = vcombine.high %v9875, %v9907
    %v9921 = vcombine.low %v9882, %v9914
    %v9922 = vcombine.high %v9882, %v9914
    %v9923 = vcombine.low %v7643, %v7707
    %v9924 = vcombine.high %v7643, %v7707
    %v9926 = vunpack.c.l.s4 1983009808
    %v9927 = vunpack.c.0.s8 %v9926
    %v9928 = vlaneseq
    %v9929 = vshrl.u32 %v9928, 7
    %v9930 = vsub.s32 %v9927, %v9929
    %v9931 = vrot.slane %v9923, %v9930
    %v9933 = vunpack.c.l.s4 1983009808
    %v9934 = vunpack.c.0.s8 %v9933
    %v9935 = vlaneseq
    %v9936 = vshrl.u32 %v9935, 7
    %v9937 = vsub.s32 %v9934, %v9936
    %v9938 = vrot.slane %v9924, %v9937
    %v9939 = vcombine.low %v7675, %v7739
    %v9940 = vcombine.high %v7675, %v7739
    %v9942 = vunpack.c.l.s4 1983009808
    %v9943 = vunpack.c.0.s8 %v9942
    %v9944 = vlaneseq
    %v9945 = vshrl.u32 %v9944, 7
    %v9946 = vsub.s32 %v9943, %v9945
    %v9947 = vrot.slane %v9939, %v9946
    %v9949 = vunpack.c.l.s4 1983009808
    %v9950 = vunpack.c.0.s8 %v9949
    %v9951 = vlaneseq
    %v9952 = vshrl.u32 %v9951, 7
    %v9953 = vsub.s32 %v9950, %v9952
    %v9954 = vrot.slane %v9940, %v9953
    %v9955 = vcombine.low %v7771, %v7835
    %v9956 = vcombine.high %v7771, %v7835
    %v9958 = vunpack.c.l.s4 1983009808
    %v9959 = vunpack.c.0.s8 %v9958
    %v9960 = vlaneseq
    %v9961 = vshrl.u32 %v9960, 7
    %v9962 = vsub.s32 %v9959, %v9961
    %v9963 = vrot.slane %v9955, %v9962
    %v9965 = vunpack.c.l.s4 1983009808
    %v9966 = vunpack.c.0.s8 %v9965
    %v9967 = vlaneseq
    %v9968 = vshrl.u32 %v9967, 7
    %v9969 = vsub.s32 %v9966, %v9968
    %v9970 = vrot.slane %v9956, %v9969
    %v9971 = vcombine.low %v7803, %v7867
    %v9972 = vcombine.high %v7803, %v7867
    %v9974 = vunpack.c.l.s4 1983009808
    %v9975 = vunpack.c.0.s8 %v9974
    %v9976 = vlaneseq
    %v9977 = vshrl.u32 %v9976, 7
    %v9978 = vsub.s32 %v9975, %v9977
    %v9979 = vrot.slane %v9971, %v9978
    %v9981 = vunpack.c.l.s4 1983009808
    %v9982 = vunpack.c.0.s8 %v9981
    %v9983 = vlaneseq
    %v9984 = vshrl.u32 %v9983, 7
    %v9985 = vsub.s32 %v9982, %v9984
    %v9986 = vrot.slane %v9972, %v9985
    %v9987 = vcombine.low %v9931, %v9947
    %v9988 = vcombine.high %v9931, %v9947
    %v9990 = vunpack.c.l.s4 1934713408
    %v9991 = vunpack.c.0.s8 %v9990
    %v9992 = vlaneseq
    %v9993 = vshrl.u32 %v9992, 7
    %v9994 = vsub.s32 %v9991, %v9993
    %v9995 = vrot.slane %v9987, %v9994
    %v9997 = vunpack.c.l.s4 1934713408
    %v9998 = vunpack.c.0.s8 %v9997
    %v9999 = vlaneseq
    %v10000 = vshrl.u32 %v9999, 7
    %v10001 = vsub.s32 %v9998, %v10000
    %v10002 = vrot.slane %v9988, %v10001
    %v10003 = vcombine.low %v9938, %v9954
    %v10004 = vcombine.high %v9938, %v9954
    %v10006 = vunpack.c.l.s4 1934713408
    %v10007 = vunpack.c.0.s8 %v10006
    %v10008 = vlaneseq
    %v10009 = vshrl.u32 %v10008, 7
    %v10010 = vsub.s32 %v10007, %v10009
    %v10011 = vrot.slane %v10003, %v10010
    %v10013 = vunpack.c.l.s4 1934713408
    %v10014 = vunpack.c.0.s8 %v10013
    %v10015 = vlaneseq
    %v10016 = vshrl.u32 %v10015, 7
    %v10017 = vsub.s32 %v10014, %v10016
    %v10018 = vrot.slane %v10004, %v10017
    %v10019 = vcombine.low %v9963, %v9979
    %v10020 = vcombine.high %v9963, %v9979
    %v10022 = vunpack.c.l.s4 1934713408
    %v10023 = vunpack.c.0.s8 %v10022
    %v10024 = vlaneseq
    %v10025 = vshrl.u32 %v10024, 7
    %v10026 = vsub.s32 %v10023, %v10025
    %v10027 = vrot.slane %v10019, %v10026
    %v10029 = vunpack.c.l.s4 1934713408
    %v10030 = vunpack.c.0.s8 %v10029
    %v10031 = vlaneseq
    %v10032 = vshrl.u32 %v10031, 7
    %v10033 = vsub.s32 %v10030, %v10032
    %v10034 = vrot.slane %v10020, %v10033
    %v10035 = vcombine.low %v9970, %v9986
    %v10036 = vcombine.high %v9970, %v9986
    %v10038 = vunpack.c.l.s4 1934713408
    %v10039 = vunpack.c.0.s8 %v10038
    %v10040 = vlaneseq
    %v10041 = vshrl.u32 %v10040, 7
    %v10042 = vsub.s32 %v10039, %v10041
    %v10043 = vrot.slane %v10035, %v10042
    %v10045 = vunpack.c.l.s4 1934713408
    %v10046 = vunpack.c.0.s8 %v10045
    %v10047 = vlaneseq
    %v10048 = vshrl.u32 %v10047, 7
    %v10049 = vsub.s32 %v10046, %v10048
    %v10050 = vrot.slane %v10036, %v10049
    %v10051 = vcombine.low %v9995, %v10027
    %v10052 = vcombine.high %v9995, %v10027
    %v10053 = vcombine.low %v10002, %v10034
    %v10054 = vcombine.high %v10002, %v10034
    %v10055 = vcombine.low %v10011, %v10043
    %v10056 = vcombine.high %v10011, %v10043
    %v10057 = vcombine.low %v10018, %v10050
    %v10058 = vcombine.high %v10018, %v10050
    %10059 = vxpose.xlu0.b32.start [1/16] %v8011, 128
    %10060 = vxpose.xlu0.b32.cont [2/16] %v8147, 128
    %10061 = vxpose.xlu0.b32.cont [3/16] %v8283, 128
    %10062 = vxpose.xlu0.b32.cont [4/16] %v8419, 128
    %10063 = vxpose.xlu0.b32.cont [5/16] 0.0, 128
    %10064 = vxpose.xlu0.b32.cont [6/16] 0.0, 128
    %10065 = vxpose.xlu0.b32.cont [7/16] 0.0, 128
    %10066 = vxpose.xlu0.b32.cont [8/16] 0.0, 128
    %10067 = vxpose.xlu0.b32.cont [9/16] 0.0, 128
    %10068 = vxpose.xlu0.b32.cont [10/16] 0.0, 128
    %10069 = vxpose.xlu0.b32.cont [11/16] 0.0, 128
    %10070 = vxpose.xlu0.b32.cont [12/16] 0.0, 128
    %10071 = vxpose.xlu0.b32.cont [13/16] 0.0, 128
    %10072 = vxpose.xlu0.b32.cont [14/16] 0.0, 128
    %10073 = vxpose.xlu0.b32.cont [15/16] 0.0, 128
    %10074 = vxpose.xlu0.b32.end [16/16] 0.0, 128
    %v10075 = vpop.trf.xlu0
    %v10076 = vpop.trf.xlu0
    %v10077 = vpop.trf.xlu0
    %v10078 = vpop.trf.xlu0
    %v10079 = vpop.trf.xlu0
    %v10080 = vpop.trf.xlu0
    %v10081 = vpop.trf.xlu0
    %v10082 = vpop.trf.xlu0
    %v10083 = vpop.trf.xlu0
    %v10084 = vpop.trf.xlu0
    %v10085 = vpop.trf.xlu0
    %v10086 = vpop.trf.xlu0
    %v10087 = vpop.trf.xlu0
    %v10088 = vpop.trf.xlu0
    %v10089 = vpop.trf.xlu0
    %v10090 = vpop.trf.xlu0
    %10091 = vxpose.xlu0.b32.start [1/16] %v8012, 128
    %10092 = vxpose.xlu0.b32.cont [2/16] %v8148, 128
    %10093 = vxpose.xlu0.b32.cont [3/16] %v8284, 128
    %10094 = vxpose.xlu0.b32.cont [4/16] %v8420, 128
    %10095 = vxpose.xlu0.b32.cont [5/16] 0.0, 128
    %10096 = vxpose.xlu0.b32.cont [6/16] 0.0, 128
    %10097 = vxpose.xlu0.b32.cont [7/16] 0.0, 128
    %10098 = vxpose.xlu0.b32.cont [8/16] 0.0, 128
    %10099 = vxpose.xlu0.b32.cont [9/16] 0.0, 128
    %10100 = vxpose.xlu0.b32.cont [10/16] 0.0, 128
    %10101 = vxpose.xlu0.b32.cont [11/16] 0.0, 128
    %10102 = vxpose.xlu0.b32.cont [12/16] 0.0, 128
    %10103 = vxpose.xlu0.b32.cont [13/16] 0.0, 128
    %10104 = vxpose.xlu0.b32.cont [14/16] 0.0, 128
    %10105 = vxpose.xlu0.b32.cont [15/16] 0.0, 128
    %10106 = vxpose.xlu0.b32.end [16/16] 0.0, 128
    %v10107 = vpop.trf.xlu0
    %v10108 = vpop.trf.xlu0
    %v10109 = vpop.trf.xlu0
    %v10110 = vpop.trf.xlu0
    %v10111 = vpop.trf.xlu0
    %v10112 = vpop.trf.xlu0
    %v10113 = vpop.trf.xlu0
    %v10114 = vpop.trf.xlu0
    %v10115 = vpop.trf.xlu0
    %v10116 = vpop.trf.xlu0
    %v10117 = vpop.trf.xlu0
    %v10118 = vpop.trf.xlu0
    %v10119 = vpop.trf.xlu0
    %v10120 = vpop.trf.xlu0
    %v10121 = vpop.trf.xlu0
    %v10122 = vpop.trf.xlu0
    %10123 = vxpose.xlu0.b32.start [1/16] %v8013, 128
    %10124 = vxpose.xlu0.b32.cont [2/16] %v8149, 128
    %10125 = vxpose.xlu0.b32.cont [3/16] %v8285, 128
    %10126 = vxpose.xlu0.b32.cont [4/16] %v8421, 128
    %10127 = vxpose.xlu0.b32.cont [5/16] 0.0, 128
    %10128 = vxpose.xlu0.b32.cont [6/16] 0.0, 128
    %10129 = vxpose.xlu0.b32.cont [7/16] 0.0, 128
    %10130 = vxpose.xlu0.b32.cont [8/16] 0.0, 128
    %10131 = vxpose.xlu0.b32.cont [9/16] 0.0, 128
    %10132 = vxpose.xlu0.b32.cont [10/16] 0.0, 128
    %10133 = vxpose.xlu0.b32.cont [11/16] 0.0, 128
    %10134 = vxpose.xlu0.b32.cont [12/16] 0.0, 128
    %10135 = vxpose.xlu0.b32.cont [13/16] 0.0, 128
    %10136 = vxpose.xlu0.b32.cont [14/16] 0.0, 128
    %10137 = vxpose.xlu0.b32.cont [15/16] 0.0, 128
    %10138 = vxpose.xlu0.b32.end [16/16] 0.0, 128
    %v10139 = vpop.trf.xlu0
    %v10140 = vpop.trf.xlu0
    %v10141 = vpop.trf.xlu0
    %v10142 = vpop.trf.xlu0
    %v10143 = vpop.trf.xlu0
    %v10144 = vpop.trf.xlu0
    %v10145 = vpop.trf.xlu0
    %v10146 = vpop.trf.xlu0
    %v10147 = vpop.trf.xlu0
    %v10148 = vpop.trf.xlu0
    %v10149 = vpop.trf.xlu0
    %v10150 = vpop.trf.xlu0
    %v10151 = vpop.trf.xlu0
    %v10152 = vpop.trf.xlu0
    %v10153 = vpop.trf.xlu0
    %v10154 = vpop.trf.xlu0
    %10155 = vxpose.xlu0.b32.start [1/16] %v8014, 128
    %10156 = vxpose.xlu0.b32.cont [2/16] %v8150, 128
    %10157 = vxpose.xlu0.b32.cont [3/16] %v8286, 128
    %10158 = vxpose.xlu0.b32.cont [4/16] %v8422, 128
    %10159 = vxpose.xlu0.b32.cont [5/16] 0.0, 128
    %10160 = vxpose.xlu0.b32.cont [6/16] 0.0, 128
    %10161 = vxpose.xlu0.b32.cont [7/16] 0.0, 128
    %10162 = vxpose.xlu0.b32.cont [8/16] 0.0, 128
    %10163 = vxpose.xlu0.b32.cont [9/16] 0.0, 128
    %10164 = vxpose.xlu0.b32.cont [10/16] 0.0, 128
    %10165 = vxpose.xlu0.b32.cont [11/16] 0.0, 128
    %10166 = vxpose.xlu0.b32.cont [12/16] 0.0, 128
    %10167 = vxpose.xlu0.b32.cont [13/16] 0.0, 128
    %10168 = vxpose.xlu0.b32.cont [14/16] 0.0, 128
    %10169 = vxpose.xlu0.b32.cont [15/16] 0.0, 128
    %10170 = vxpose.xlu0.b32.end [16/16] 0.0, 128
    %v10171 = vpop.trf.xlu0
    %v10172 = vpop.trf.xlu0
    %v10173 = vpop.trf.xlu0
    %v10174 = vpop.trf.xlu0
    %v10175 = vpop.trf.xlu0
    %v10176 = vpop.trf.xlu0
    %v10177 = vpop.trf.xlu0
    %v10178 = vpop.trf.xlu0
    %v10179 = vpop.trf.xlu0
    %v10180 = vpop.trf.xlu0
    %v10181 = vpop.trf.xlu0
    %v10182 = vpop.trf.xlu0
    %v10183 = vpop.trf.xlu0
    %v10184 = vpop.trf.xlu0
    %v10185 = vpop.trf.xlu0
    %v10186 = vpop.trf.xlu0
    %10187 = vxpose.xlu0.b32.start [1/16] %v8015, 128
    %10188 = vxpose.xlu0.b32.cont [2/16] %v8151, 128
    %10189 = vxpose.xlu0.b32.cont [3/16] %v8287, 128
    %10190 = vxpose.xlu0.b32.cont [4/16] %v8423, 128
    %10191 = vxpose.xlu0.b32.cont [5/16] 0.0, 128
    %10192 = vxpose.xlu0.b32.cont [6/16] 0.0, 128
    %10193 = vxpose.xlu0.b32.cont [7/16] 0.0, 128
    %10194 = vxpose.xlu0.b32.cont [8/16] 0.0, 128
    %10195 = vxpose.xlu0.b32.cont [9/16] 0.0, 128
    %10196 = vxpose.xlu0.b32.cont [10/16] 0.0, 128
    %10197 = vxpose.xlu0.b32.cont [11/16] 0.0, 128
    %10198 = vxpose.xlu0.b32.cont [12/16] 0.0, 128
    %10199 = vxpose.xlu0.b32.cont [13/16] 0.0, 128
    %10200 = vxpose.xlu0.b32.cont [14/16] 0.0, 128
    %10201 = vxpose.xlu0.b32.cont [15/16] 0.0, 128
    %10202 = vxpose.xlu0.b32.end [16/16] 0.0, 128
    %v10203 = vpop.trf.xlu0
    %v10204 = vpop.trf.xlu0
    %v10205 = vpop.trf.xlu0
    %v10206 = vpop.trf.xlu0
    %v10207 = vpop.trf.xlu0
    %v10208 = vpop.trf.xlu0
    %v10209 = vpop.trf.xlu0
    %v10210 = vpop.trf.xlu0
    %v10211 = vpop.trf.xlu0
    %v10212 = vpop.trf.xlu0
    %v10213 = vpop.trf.xlu0
    %v10214 = vpop.trf.xlu0
    %v10215 = vpop.trf.xlu0
    %v10216 = vpop.trf.xlu0
    %v10217 = vpop.trf.xlu0
    %v10218 = vpop.trf.xlu0
    %10219 = vxpose.xlu0.b32.start [1/16] %v8016, 128
    %10220 = vxpose.xlu0.b32.cont [2/16] %v8152, 128
    %10221 = vxpose.xlu0.b32.cont [3/16] %v8288, 128
    %10222 = vxpose.xlu0.b32.cont [4/16] %v8424, 128
    %10223 = vxpose.xlu0.b32.cont [5/16] 0.0, 128
    %10224 = vxpose.xlu0.b32.cont [6/16] 0.0, 128
    %10225 = vxpose.xlu0.b32.cont [7/16] 0.0, 128
    %10226 = vxpose.xlu0.b32.cont [8/16] 0.0, 128
    %10227 = vxpose.xlu0.b32.cont [9/16] 0.0, 128
    %10228 = vxpose.xlu0.b32.cont [10/16] 0.0, 128
    %10229 = vxpose.xlu0.b32.cont [11/16] 0.0, 128
    %10230 = vxpose.xlu0.b32.cont [12/16] 0.0, 128
    %10231 = vxpose.xlu0.b32.cont [13/16] 0.0, 128
    %10232 = vxpose.xlu0.b32.cont [14/16] 0.0, 128
    %10233 = vxpose.xlu0.b32.cont [15/16] 0.0, 128
    %10234 = vxpose.xlu0.b32.end [16/16] 0.0, 128
    %v10235 = vpop.trf.xlu0
    %v10236 = vpop.trf.xlu0
    %v10237 = vpop.trf.xlu0
    %v10238 = vpop.trf.xlu0
    %v10239 = vpop.trf.xlu0
    %v10240 = vpop.trf.xlu0
    %v10241 = vpop.trf.xlu0
    %v10242 = vpop.trf.xlu0
    %v10243 = vpop.trf.xlu0
    %v10244 = vpop.trf.xlu0
    %v10245 = vpop.trf.xlu0
    %v10246 = vpop.trf.xlu0
    %v10247 = vpop.trf.xlu0
    %v10248 = vpop.trf.xlu0
    %v10249 = vpop.trf.xlu0
    %v10250 = vpop.trf.xlu0
    %10251 = vxpose.xlu0.b32.start [1/16] %v8017, 128
    %10252 = vxpose.xlu0.b32.cont [2/16] %v8153, 128
    %10253 = vxpose.xlu0.b32.cont [3/16] %v8289, 128
    %10254 = vxpose.xlu0.b32.cont [4/16] %v8425, 128
    %10255 = vxpose.xlu0.b32.cont [5/16] 0.0, 128
    %10256 = vxpose.xlu0.b32.cont [6/16] 0.0, 128
    %10257 = vxpose.xlu0.b32.cont [7/16] 0.0, 128
    %10258 = vxpose.xlu0.b32.cont [8/16] 0.0, 128
    %10259 = vxpose.xlu0.b32.cont [9/16] 0.0, 128
    %10260 = vxpose.xlu0.b32.cont [10/16] 0.0, 128
    %10261 = vxpose.xlu0.b32.cont [11/16] 0.0, 128
    %10262 = vxpose.xlu0.b32.cont [12/16] 0.0, 128
    %10263 = vxpose.xlu0.b32.cont [13/16] 0.0, 128
    %10264 = vxpose.xlu0.b32.cont [14/16] 0.0, 128
    %10265 = vxpose.xlu0.b32.cont [15/16] 0.0, 128
    %10266 = vxpose.xlu0.b32.end [16/16] 0.0, 128
    %v10267 = vpop.trf.xlu0
    %v10268 = vpop.trf.xlu0
    %v10269 = vpop.trf.xlu0
    %v10270 = vpop.trf.xlu0
    %v10271 = vpop.trf.xlu0
    %v10272 = vpop.trf.xlu0
    %v10273 = vpop.trf.xlu0
    %v10274 = vpop.trf.xlu0
    %v10275 = vpop.trf.xlu0
    %v10276 = vpop.trf.xlu0
    %v10277 = vpop.trf.xlu0
    %v10278 = vpop.trf.xlu0
    %v10279 = vpop.trf.xlu0
    %v10280 = vpop.trf.xlu0
    %v10281 = vpop.trf.xlu0
    %v10282 = vpop.trf.xlu0
    %10283 = vxpose.xlu0.b32.start [1/16] %v8018, 128
    %10284 = vxpose.xlu0.b32.cont [2/16] %v8154, 128
    %10285 = vxpose.xlu0.b32.cont [3/16] %v8290, 128
    %10286 = vxpose.xlu0.b32.cont [4/16] %v8426, 128
    %10287 = vxpose.xlu0.b32.cont [5/16] 0.0, 128
    %10288 = vxpose.xlu0.b32.cont [6/16] 0.0, 128
    %10289 = vxpose.xlu0.b32.cont [7/16] 0.0, 128
    %10290 = vxpose.xlu0.b32.cont [8/16] 0.0, 128
    %10291 = vxpose.xlu0.b32.cont [9/16] 0.0, 128
    %10292 = vxpose.xlu0.b32.cont [10/16] 0.0, 128
    %10293 = vxpose.xlu0.b32.cont [11/16] 0.0, 128
    %10294 = vxpose.xlu0.b32.cont [12/16] 0.0, 128
    %10295 = vxpose.xlu0.b32.cont [13/16] 0.0, 128
    %10296 = vxpose.xlu0.b32.cont [14/16] 0.0, 128
    %10297 = vxpose.xlu0.b32.cont [15/16] 0.0, 128
    %10298 = vxpose.xlu0.b32.end [16/16] 0.0, 128
    %v10299 = vpop.trf.xlu0
    %v10300 = vpop.trf.xlu0
    %v10301 = vpop.trf.xlu0
    %v10302 = vpop.trf.xlu0
    %v10303 = vpop.trf.xlu0
    %v10304 = vpop.trf.xlu0
    %v10305 = vpop.trf.xlu0
    %v10306 = vpop.trf.xlu0
    %v10307 = vpop.trf.xlu0
    %v10308 = vpop.trf.xlu0
    %v10309 = vpop.trf.xlu0
    %v10310 = vpop.trf.xlu0
    %v10311 = vpop.trf.xlu0
    %v10312 = vpop.trf.xlu0
    %v10313 = vpop.trf.xlu0
    %v10314 = vpop.trf.xlu0
    %10315 = vxpose.xlu0.b32.start [1/16] %v8555, 128
    %10316 = vxpose.xlu0.b32.cont [2/16] %v8691, 128
    %10317 = vxpose.xlu0.b32.cont [3/16] %v8827, 128
    %10318 = vxpose.xlu0.b32.cont [4/16] %v8963, 128
    %10319 = vxpose.xlu0.b32.cont [5/16] 0.0, 128
    %10320 = vxpose.xlu0.b32.cont [6/16] 0.0, 128
    %10321 = vxpose.xlu0.b32.cont [7/16] 0.0, 128
    %10322 = vxpose.xlu0.b32.cont [8/16] 0.0, 128
    %10323 = vxpose.xlu0.b32.cont [9/16] 0.0, 128
    %10324 = vxpose.xlu0.b32.cont [10/16] 0.0, 128
    %10325 = vxpose.xlu0.b32.cont [11/16] 0.0, 128
    %10326 = vxpose.xlu0.b32.cont [12/16] 0.0, 128
    %10327 = vxpose.xlu0.b32.cont [13/16] 0.0, 128
    %10328 = vxpose.xlu0.b32.cont [14/16] 0.0, 128
    %10329 = vxpose.xlu0.b32.cont [15/16] 0.0, 128
    %10330 = vxpose.xlu0.b32.end [16/16] 0.0, 128
    %v10331 = vpop.trf.xlu0
    %v10332 = vpop.trf.xlu0
    %v10333 = vpop.trf.xlu0
    %v10334 = vpop.trf.xlu0
    %v10335 = vpop.trf.xlu0
    %v10336 = vpop.trf.xlu0
    %v10337 = vpop.trf.xlu0
    %v10338 = vpop.trf.xlu0
    %v10339 = vpop.trf.xlu0
    %v10340 = vpop.trf.xlu0
    %v10341 = vpop.trf.xlu0
    %v10342 = vpop.trf.xlu0
    %v10343 = vpop.trf.xlu0
    %v10344 = vpop.trf.xlu0
    %v10345 = vpop.trf.xlu0
    %v10346 = vpop.trf.xlu0
    %10347 = vxpose.xlu0.b32.start [1/16] %v8556, 128
    %10348 = vxpose.xlu0.b32.cont [2/16] %v8692, 128
    %10349 = vxpose.xlu0.b32.cont [3/16] %v8828, 128
    %10350 = vxpose.xlu0.b32.cont [4/16] %v8964, 128
    %10351 = vxpose.xlu0.b32.cont [5/16] 0.0, 128
    %10352 = vxpose.xlu0.b32.cont [6/16] 0.0, 128
    %10353 = vxpose.xlu0.b32.cont [7/16] 0.0, 128
    %10354 = vxpose.xlu0.b32.cont [8/16] 0.0, 128
    %10355 = vxpose.xlu0.b32.cont [9/16] 0.0, 128
    %10356 = vxpose.xlu0.b32.cont [10/16] 0.0, 128
    %10357 = vxpose.xlu0.b32.cont [11/16] 0.0, 128
    %10358 = vxpose.xlu0.b32.cont [12/16] 0.0, 128
    %10359 = vxpose.xlu0.b32.cont [13/16] 0.0, 128
    %10360 = vxpose.xlu0.b32.cont [14/16] 0.0, 128
    %10361 = vxpose.xlu0.b32.cont [15/16] 0.0, 128
    %10362 = vxpose.xlu0.b32.end [16/16] 0.0, 128
    %v10363 = vpop.trf.xlu0
    %v10364 = vpop.trf.xlu0
    %v10365 = vpop.trf.xlu0
    %v10366 = vpop.trf.xlu0
    %v10367 = vpop.trf.xlu0
    %v10368 = vpop.trf.xlu0
    %v10369 = vpop.trf.xlu0
    %v10370 = vpop.trf.xlu0
    %v10371 = vpop.trf.xlu0
    %v10372 = vpop.trf.xlu0
    %v10373 = vpop.trf.xlu0
    %v10374 = vpop.trf.xlu0
    %v10375 = vpop.trf.xlu0
    %v10376 = vpop.trf.xlu0
    %v10377 = vpop.trf.xlu0
    %v10378 = vpop.trf.xlu0
    %10379 = vxpose.xlu0.b32.start [1/16] %v8557, 128
    %10380 = vxpose.xlu0.b32.cont [2/16] %v8693, 128
    %10381 = vxpose.xlu0.b32.cont [3/16] %v8829, 128
    %10382 = vxpose.xlu0.b32.cont [4/16] %v8965, 128
    %10383 = vxpose.xlu0.b32.cont [5/16] 0.0, 128
    %10384 = vxpose.xlu0.b32.cont [6/16] 0.0, 128
    %10385 = vxpose.xlu0.b32.cont [7/16] 0.0, 128
    %10386 = vxpose.xlu0.b32.cont [8/16] 0.0, 128
    %10387 = vxpose.xlu0.b32.cont [9/16] 0.0, 128
    %10388 = vxpose.xlu0.b32.cont [10/16] 0.0, 128
    %10389 = vxpose.xlu0.b32.cont [11/16] 0.0, 128
    %10390 = vxpose.xlu0.b32.cont [12/16] 0.0, 128
    %10391 = vxpose.xlu0.b32.cont [13/16] 0.0, 128
    %10392 = vxpose.xlu0.b32.cont [14/16] 0.0, 128
    %10393 = vxpose.xlu0.b32.cont [15/16] 0.0, 128
    %10394 = vxpose.xlu0.b32.end [16/16] 0.0, 128
    %v10395 = vpop.trf.xlu0
    %v10396 = vpop.trf.xlu0
    %v10397 = vpop.trf.xlu0
    %v10398 = vpop.trf.xlu0
    %v10399 = vpop.trf.xlu0
    %v10400 = vpop.trf.xlu0
    %v10401 = vpop.trf.xlu0
    %v10402 = vpop.trf.xlu0
    %v10403 = vpop.trf.xlu0
    %v10404 = vpop.trf.xlu0
    %v10405 = vpop.trf.xlu0
    %v10406 = vpop.trf.xlu0
    %v10407 = vpop.trf.xlu0
    %v10408 = vpop.trf.xlu0
    %v10409 = vpop.trf.xlu0
    %v10410 = vpop.trf.xlu0
    %10411 = vxpose.xlu0.b32.start [1/16] %v8558, 128
    %10412 = vxpose.xlu0.b32.cont [2/16] %v8694, 128
    %10413 = vxpose.xlu0.b32.cont [3/16] %v8830, 128
    %10414 = vxpose.xlu0.b32.cont [4/16] %v8966, 128
    %10415 = vxpose.xlu0.b32.cont [5/16] 0.0, 128
    %10416 = vxpose.xlu0.b32.cont [6/16] 0.0, 128
    %10417 = vxpose.xlu0.b32.cont [7/16] 0.0, 128
    %10418 = vxpose.xlu0.b32.cont [8/16] 0.0, 128
    %10419 = vxpose.xlu0.b32.cont [9/16] 0.0, 128
    %10420 = vxpose.xlu0.b32.cont [10/16] 0.0, 128
    %10421 = vxpose.xlu0.b32.cont [11/16] 0.0, 128
    %10422 = vxpose.xlu0.b32.cont [12/16] 0.0, 128
    %10423 = vxpose.xlu0.b32.cont [13/16] 0.0, 128
    %10424 = vxpose.xlu0.b32.cont [14/16] 0.0, 128
    %10425 = vxpose.xlu0.b32.cont [15/16] 0.0, 128
    %10426 = vxpose.xlu0.b32.end [16/16] 0.0, 128
    %v10427 = vpop.trf.xlu0
    %v10428 = vpop.trf.xlu0
    %v10429 = vpop.trf.xlu0
    %v10430 = vpop.trf.xlu0
    %v10431 = vpop.trf.xlu0
    %v10432 = vpop.trf.xlu0
    %v10433 = vpop.trf.xlu0
    %v10434 = vpop.trf.xlu0
    %v10435 = vpop.trf.xlu0
    %v10436 = vpop.trf.xlu0
    %v10437 = vpop.trf.xlu0
    %v10438 = vpop.trf.xlu0
    %v10439 = vpop.trf.xlu0
    %v10440 = vpop.trf.xlu0
    %v10441 = vpop.trf.xlu0
    %v10442 = vpop.trf.xlu0
    %10443 = vxpose.xlu0.b32.start [1/16] %v8559, 128
    %10444 = vxpose.xlu0.b32.cont [2/16] %v8695, 128
    %10445 = vxpose.xlu0.b32.cont [3/16] %v8831, 128
    %10446 = vxpose.xlu0.b32.cont [4/16] %v8967, 128
    %10447 = vxpose.xlu0.b32.cont [5/16] 0.0, 128
    %10448 = vxpose.xlu0.b32.cont [6/16] 0.0, 128
    %10449 = vxpose.xlu0.b32.cont [7/16] 0.0, 128
    %10450 = vxpose.xlu0.b32.cont [8/16] 0.0, 128
    %10451 = vxpose.xlu0.b32.cont [9/16] 0.0, 128
    %10452 = vxpose.xlu0.b32.cont [10/16] 0.0, 128
    %10453 = vxpose.xlu0.b32.cont [11/16] 0.0, 128
    %10454 = vxpose.xlu0.b32.cont [12/16] 0.0, 128
    %10455 = vxpose.xlu0.b32.cont [13/16] 0.0, 128
    %10456 = vxpose.xlu0.b32.cont [14/16] 0.0, 128
    %10457 = vxpose.xlu0.b32.cont [15/16] 0.0, 128
    %10458 = vxpose.xlu0.b32.end [16/16] 0.0, 128
    %v10459 = vpop.trf.xlu0
    %v10460 = vpop.trf.xlu0
    %v10461 = vpop.trf.xlu0
    %v10462 = vpop.trf.xlu0
    %v10463 = vpop.trf.xlu0
    %v10464 = vpop.trf.xlu0
    %v10465 = vpop.trf.xlu0
    %v10466 = vpop.trf.xlu0
    %v10467 = vpop.trf.xlu0
    %v10468 = vpop.trf.xlu0
    %v10469 = vpop.trf.xlu0
    %v10470 = vpop.trf.xlu0
    %v10471 = vpop.trf.xlu0
    %v10472 = vpop.trf.xlu0
    %v10473 = vpop.trf.xlu0
    %v10474 = vpop.trf.xlu0
    %10475 = vxpose.xlu0.b32.start [1/16] %v8560, 128
    %10476 = vxpose.xlu0.b32.cont [2/16] %v8696, 128
    %10477 = vxpose.xlu0.b32.cont [3/16] %v8832, 128
    %10478 = vxpose.xlu0.b32.cont [4/16] %v8968, 128
    %10479 = vxpose.xlu0.b32.cont [5/16] 0.0, 128
    %10480 = vxpose.xlu0.b32.cont [6/16] 0.0, 128
    %10481 = vxpose.xlu0.b32.cont [7/16] 0.0, 128
    %10482 = vxpose.xlu0.b32.cont [8/16] 0.0, 128
    %10483 = vxpose.xlu0.b32.cont [9/16] 0.0, 128
    %10484 = vxpose.xlu0.b32.cont [10/16] 0.0, 128
    %10485 = vxpose.xlu0.b32.cont [11/16] 0.0, 128
    %10486 = vxpose.xlu0.b32.cont [12/16] 0.0, 128
    %10487 = vxpose.xlu0.b32.cont [13/16] 0.0, 128
    %10488 = vxpose.xlu0.b32.cont [14/16] 0.0, 128
    %10489 = vxpose.xlu0.b32.cont [15/16] 0.0, 128
    %10490 = vxpose.xlu0.b32.end [16/16] 0.0, 128
    %v10491 = vpop.trf.xlu0
    %v10492 = vpop.trf.xlu0
    %v10493 = vpop.trf.xlu0
    %v10494 = vpop.trf.xlu0
    %v10495 = vpop.trf.xlu0
    %v10496 = vpop.trf.xlu0
    %v10497 = vpop.trf.xlu0
    %v10498 = vpop.trf.xlu0
    %v10499 = vpop.trf.xlu0
    %v10500 = vpop.trf.xlu0
    %v10501 = vpop.trf.xlu0
    %v10502 = vpop.trf.xlu0
    %v10503 = vpop.trf.xlu0
    %v10504 = vpop.trf.xlu0
    %v10505 = vpop.trf.xlu0
    %v10506 = vpop.trf.xlu0
    %10507 = vxpose.xlu0.b32.start [1/16] %v8561, 128
    %10508 = vxpose.xlu0.b32.cont [2/16] %v8697, 128
    %10509 = vxpose.xlu0.b32.cont [3/16] %v8833, 128
    %10510 = vxpose.xlu0.b32.cont [4/16] %v8969, 128
    %10511 = vxpose.xlu0.b32.cont [5/16] 0.0, 128
    %10512 = vxpose.xlu0.b32.cont [6/16] 0.0, 128
    %10513 = vxpose.xlu0.b32.cont [7/16] 0.0, 128
    %10514 = vxpose.xlu0.b32.cont [8/16] 0.0, 128
    %10515 = vxpose.xlu0.b32.cont [9/16] 0.0, 128
    %10516 = vxpose.xlu0.b32.cont [10/16] 0.0, 128
    %10517 = vxpose.xlu0.b32.cont [11/16] 0.0, 128
    %10518 = vxpose.xlu0.b32.cont [12/16] 0.0, 128
    %10519 = vxpose.xlu0.b32.cont [13/16] 0.0, 128
    %10520 = vxpose.xlu0.b32.cont [14/16] 0.0, 128
    %10521 = vxpose.xlu0.b32.cont [15/16] 0.0, 128
    %10522 = vxpose.xlu0.b32.end [16/16] 0.0, 128
    %v10523 = vpop.trf.xlu0
    %v10524 = vpop.trf.xlu0
    %v10525 = vpop.trf.xlu0
    %v10526 = vpop.trf.xlu0
    %v10527 = vpop.trf.xlu0
    %v10528 = vpop.trf.xlu0
    %v10529 = vpop.trf.xlu0
    %v10530 = vpop.trf.xlu0
    %v10531 = vpop.trf.xlu0
    %v10532 = vpop.trf.xlu0
    %v10533 = vpop.trf.xlu0
    %v10534 = vpop.trf.xlu0
    %v10535 = vpop.trf.xlu0
    %v10536 = vpop.trf.xlu0
    %v10537 = vpop.trf.xlu0
    %v10538 = vpop.trf.xlu0
    %10539 = vxpose.xlu0.b32.start [1/16] %v8562, 128
    %10540 = vxpose.xlu0.b32.cont [2/16] %v8698, 128
    %10541 = vxpose.xlu0.b32.cont [3/16] %v8834, 128
    %10542 = vxpose.xlu0.b32.cont [4/16] %v8970, 128
    %10543 = vxpose.xlu0.b32.cont [5/16] 0.0, 128
    %10544 = vxpose.xlu0.b32.cont [6/16] 0.0, 128
    %10545 = vxpose.xlu0.b32.cont [7/16] 0.0, 128
    %10546 = vxpose.xlu0.b32.cont [8/16] 0.0, 128
    %10547 = vxpose.xlu0.b32.cont [9/16] 0.0, 128
    %10548 = vxpose.xlu0.b32.cont [10/16] 0.0, 128
    %10549 = vxpose.xlu0.b32.cont [11/16] 0.0, 128
    %10550 = vxpose.xlu0.b32.cont [12/16] 0.0, 128
    %10551 = vxpose.xlu0.b32.cont [13/16] 0.0, 128
    %10552 = vxpose.xlu0.b32.cont [14/16] 0.0, 128
    %10553 = vxpose.xlu0.b32.cont [15/16] 0.0, 128
    %10554 = vxpose.xlu0.b32.end [16/16] 0.0, 128
    %v10555 = vpop.trf.xlu0
    %v10556 = vpop.trf.xlu0
    %v10557 = vpop.trf.xlu0
    %v10558 = vpop.trf.xlu0
    %v10559 = vpop.trf.xlu0
    %v10560 = vpop.trf.xlu0
    %v10561 = vpop.trf.xlu0
    %v10562 = vpop.trf.xlu0
    %v10563 = vpop.trf.xlu0
    %v10564 = vpop.trf.xlu0
    %v10565 = vpop.trf.xlu0
    %v10566 = vpop.trf.xlu0
    %v10567 = vpop.trf.xlu0
    %v10568 = vpop.trf.xlu0
    %v10569 = vpop.trf.xlu0
    %v10570 = vpop.trf.xlu0
    %10571 = vxpose.xlu0.b32.start [1/16] %v9099, 128
    %10572 = vxpose.xlu0.b32.cont [2/16] %v9235, 128
    %10573 = vxpose.xlu0.b32.cont [3/16] %v9371, 128
    %10574 = vxpose.xlu0.b32.cont [4/16] %v9507, 128
    %10575 = vxpose.xlu0.b32.cont [5/16] 0.0, 128
    %10576 = vxpose.xlu0.b32.cont [6/16] 0.0, 128
    %10577 = vxpose.xlu0.b32.cont [7/16] 0.0, 128
    %10578 = vxpose.xlu0.b32.cont [8/16] 0.0, 128
    %10579 = vxpose.xlu0.b32.cont [9/16] 0.0, 128
    %10580 = vxpose.xlu0.b32.cont [10/16] 0.0, 128
    %10581 = vxpose.xlu0.b32.cont [11/16] 0.0, 128
    %10582 = vxpose.xlu0.b32.cont [12/16] 0.0, 128
    %10583 = vxpose.xlu0.b32.cont [13/16] 0.0, 128
    %10584 = vxpose.xlu0.b32.cont [14/16] 0.0, 128
    %10585 = vxpose.xlu0.b32.cont [15/16] 0.0, 128
    %10586 = vxpose.xlu0.b32.end [16/16] 0.0, 128
    %v10587 = vpop.trf.xlu0
    %v10588 = vpop.trf.xlu0
    %v10589 = vpop.trf.xlu0
    %v10590 = vpop.trf.xlu0
    %v10591 = vpop.trf.xlu0
    %v10592 = vpop.trf.xlu0
    %v10593 = vpop.trf.xlu0
    %v10594 = vpop.trf.xlu0
    %v10595 = vpop.trf.xlu0
    %v10596 = vpop.trf.xlu0
    %v10597 = vpop.trf.xlu0
    %v10598 = vpop.trf.xlu0
    %v10599 = vpop.trf.xlu0
    %v10600 = vpop.trf.xlu0
    %v10601 = vpop.trf.xlu0
    %v10602 = vpop.trf.xlu0
    %10603 = vxpose.xlu0.b32.start [1/16] %v9100, 128
    %10604 = vxpose.xlu0.b32.cont [2/16] %v9236, 128
    %10605 = vxpose.xlu0.b32.cont [3/16] %v9372, 128
    %10606 = vxpose.xlu0.b32.cont [4/16] %v9508, 128
    %10607 = vxpose.xlu0.b32.cont [5/16] 0.0, 128
    %10608 = vxpose.xlu0.b32.cont [6/16] 0.0, 128
    %10609 = vxpose.xlu0.b32.cont [7/16] 0.0, 128
    %10610 = vxpose.xlu0.b32.cont [8/16] 0.0, 128
    %10611 = vxpose.xlu0.b32.cont [9/16] 0.0, 128
    %10612 = vxpose.xlu0.b32.cont [10/16] 0.0, 128
    %10613 = vxpose.xlu0.b32.cont [11/16] 0.0, 128
    %10614 = vxpose.xlu0.b32.cont [12/16] 0.0, 128
    %10615 = vxpose.xlu0.b32.cont [13/16] 0.0, 128
    %10616 = vxpose.xlu0.b32.cont [14/16] 0.0, 128
    %10617 = vxpose.xlu0.b32.cont [15/16] 0.0, 128
    %10618 = vxpose.xlu0.b32.end [16/16] 0.0, 128
    %v10619 = vpop.trf.xlu0
    %v10620 = vpop.trf.xlu0
    %v10621 = vpop.trf.xlu0
    %v10622 = vpop.trf.xlu0
    %v10623 = vpop.trf.xlu0
    %v10624 = vpop.trf.xlu0
    %v10625 = vpop.trf.xlu0
    %v10626 = vpop.trf.xlu0
    %v10627 = vpop.trf.xlu0
    %v10628 = vpop.trf.xlu0
    %v10629 = vpop.trf.xlu0
    %v10630 = vpop.trf.xlu0
    %v10631 = vpop.trf.xlu0
    %v10632 = vpop.trf.xlu0
    %v10633 = vpop.trf.xlu0
    %v10634 = vpop.trf.xlu0
    %10635 = vxpose.xlu0.b32.start [1/16] %v9101, 128
    %10636 = vxpose.xlu0.b32.cont [2/16] %v9237, 128
    %10637 = vxpose.xlu0.b32.cont [3/16] %v9373, 128
    %10638 = vxpose.xlu0.b32.cont [4/16] %v9509, 128
    %10639 = vxpose.xlu0.b32.cont [5/16] 0.0, 128
    %10640 = vxpose.xlu0.b32.cont [6/16] 0.0, 128
    %10641 = vxpose.xlu0.b32.cont [7/16] 0.0, 128
    %10642 = vxpose.xlu0.b32.cont [8/16] 0.0, 128
    %10643 = vxpose.xlu0.b32.cont [9/16] 0.0, 128
    %10644 = vxpose.xlu0.b32.cont [10/16] 0.0, 128
    %10645 = vxpose.xlu0.b32.cont [11/16] 0.0, 128
    %10646 = vxpose.xlu0.b32.cont [12/16] 0.0, 128
    %10647 = vxpose.xlu0.b32.cont [13/16] 0.0, 128
    %10648 = vxpose.xlu0.b32.cont [14/16] 0.0, 128
    %10649 = vxpose.xlu0.b32.cont [15/16] 0.0, 128
    %10650 = vxpose.xlu0.b32.end [16/16] 0.0, 128
    %v10651 = vpop.trf.xlu0
    %v10652 = vpop.trf.xlu0
    %v10653 = vpop.trf.xlu0
    %v10654 = vpop.trf.xlu0
    %v10655 = vpop.trf.xlu0
    %v10656 = vpop.trf.xlu0
    %v10657 = vpop.trf.xlu0
    %v10658 = vpop.trf.xlu0
    %v10659 = vpop.trf.xlu0
    %v10660 = vpop.trf.xlu0
    %v10661 = vpop.trf.xlu0
    %v10662 = vpop.trf.xlu0
    %v10663 = vpop.trf.xlu0
    %v10664 = vpop.trf.xlu0
    %v10665 = vpop.trf.xlu0
    %v10666 = vpop.trf.xlu0
    %10667 = vxpose.xlu0.b32.start [1/16] %v9102, 128
    %10668 = vxpose.xlu0.b32.cont [2/16] %v9238, 128
    %10669 = vxpose.xlu0.b32.cont [3/16] %v9374, 128
    %10670 = vxpose.xlu0.b32.cont [4/16] %v9510, 128
    %10671 = vxpose.xlu0.b32.cont [5/16] 0.0, 128
    %10672 = vxpose.xlu0.b32.cont [6/16] 0.0, 128
    %10673 = vxpose.xlu0.b32.cont [7/16] 0.0, 128
    %10674 = vxpose.xlu0.b32.cont [8/16] 0.0, 128
    %10675 = vxpose.xlu0.b32.cont [9/16] 0.0, 128
    %10676 = vxpose.xlu0.b32.cont [10/16] 0.0, 128
    %10677 = vxpose.xlu0.b32.cont [11/16] 0.0, 128
    %10678 = vxpose.xlu0.b32.cont [12/16] 0.0, 128
    %10679 = vxpose.xlu0.b32.cont [13/16] 0.0, 128
    %10680 = vxpose.xlu0.b32.cont [14/16] 0.0, 128
    %10681 = vxpose.xlu0.b32.cont [15/16] 0.0, 128
    %10682 = vxpose.xlu0.b32.end [16/16] 0.0, 128
    %v10683 = vpop.trf.xlu0
    %v10684 = vpop.trf.xlu0
    %v10685 = vpop.trf.xlu0
    %v10686 = vpop.trf.xlu0
    %v10687 = vpop.trf.xlu0
    %v10688 = vpop.trf.xlu0
    %v10689 = vpop.trf.xlu0
    %v10690 = vpop.trf.xlu0
    %v10691 = vpop.trf.xlu0
    %v10692 = vpop.trf.xlu0
    %v10693 = vpop.trf.xlu0
    %v10694 = vpop.trf.xlu0
    %v10695 = vpop.trf.xlu0
    %v10696 = vpop.trf.xlu0
    %v10697 = vpop.trf.xlu0
    %v10698 = vpop.trf.xlu0
    %10699 = vxpose.xlu0.b32.start [1/16] %v9103, 128
    %10700 = vxpose.xlu0.b32.cont [2/16] %v9239, 128
    %10701 = vxpose.xlu0.b32.cont [3/16] %v9375, 128
    %10702 = vxpose.xlu0.b32.cont [4/16] %v9511, 128
    %10703 = vxpose.xlu0.b32.cont [5/16] 0.0, 128
    %10704 = vxpose.xlu0.b32.cont [6/16] 0.0, 128
    %10705 = vxpose.xlu0.b32.cont [7/16] 0.0, 128
    %10706 = vxpose.xlu0.b32.cont [8/16] 0.0, 128
    %10707 = vxpose.xlu0.b32.cont [9/16] 0.0, 128
    %10708 = vxpose.xlu0.b32.cont [10/16] 0.0, 128
    %10709 = vxpose.xlu0.b32.cont [11/16] 0.0, 128
    %10710 = vxpose.xlu0.b32.cont [12/16] 0.0, 128
    %10711 = vxpose.xlu0.b32.cont [13/16] 0.0, 128
    %10712 = vxpose.xlu0.b32.cont [14/16] 0.0, 128
    %10713 = vxpose.xlu0.b32.cont [15/16] 0.0, 128
    %10714 = vxpose.xlu0.b32.end [16/16] 0.0, 128
    %v10715 = vpop.trf.xlu0
    %v10716 = vpop.trf.xlu0
    %v10717 = vpop.trf.xlu0
    %v10718 = vpop.trf.xlu0
    %v10719 = vpop.trf.xlu0
    %v10720 = vpop.trf.xlu0
    %v10721 = vpop.trf.xlu0
    %v10722 = vpop.trf.xlu0
    %v10723 = vpop.trf.xlu0
    %v10724 = vpop.trf.xlu0
    %v10725 = vpop.trf.xlu0
    %v10726 = vpop.trf.xlu0
    %v10727 = vpop.trf.xlu0
    %v10728 = vpop.trf.xlu0
    %v10729 = vpop.trf.xlu0
    %v10730 = vpop.trf.xlu0
    %10731 = vxpose.xlu0.b32.start [1/16] %v9104, 128
    %10732 = vxpose.xlu0.b32.cont [2/16] %v9240, 128
    %10733 = vxpose.xlu0.b32.cont [3/16] %v9376, 128
    %10734 = vxpose.xlu0.b32.cont [4/16] %v9512, 128
    %10735 = vxpose.xlu0.b32.cont [5/16] 0.0, 128
    %10736 = vxpose.xlu0.b32.cont [6/16] 0.0, 128
    %10737 = vxpose.xlu0.b32.cont [7/16] 0.0, 128
    %10738 = vxpose.xlu0.b32.cont [8/16] 0.0, 128
    %10739 = vxpose.xlu0.b32.cont [9/16] 0.0, 128
    %10740 = vxpose.xlu0.b32.cont [10/16] 0.0, 128
    %10741 = vxpose.xlu0.b32.cont [11/16] 0.0, 128
    %10742 = vxpose.xlu0.b32.cont [12/16] 0.0, 128
    %10743 = vxpose.xlu0.b32.cont [13/16] 0.0, 128
    %10744 = vxpose.xlu0.b32.cont [14/16] 0.0, 128
    %10745 = vxpose.xlu0.b32.cont [15/16] 0.0, 128
    %10746 = vxpose.xlu0.b32.end [16/16] 0.0, 128
    %v10747 = vpop.trf.xlu0
    %v10748 = vpop.trf.xlu0
    %v10749 = vpop.trf.xlu0
    %v10750 = vpop.trf.xlu0
    %v10751 = vpop.trf.xlu0
    %v10752 = vpop.trf.xlu0
    %v10753 = vpop.trf.xlu0
    %v10754 = vpop.trf.xlu0
    %v10755 = vpop.trf.xlu0
    %v10756 = vpop.trf.xlu0
    %v10757 = vpop.trf.xlu0
    %v10758 = vpop.trf.xlu0
    %v10759 = vpop.trf.xlu0
    %v10760 = vpop.trf.xlu0
    %v10761 = vpop.trf.xlu0
    %v10762 = vpop.trf.xlu0
    %10763 = vxpose.xlu0.b32.start [1/16] %v9105, 128
    %10764 = vxpose.xlu0.b32.cont [2/16] %v9241, 128
    %10765 = vxpose.xlu0.b32.cont [3/16] %v9377, 128
    %10766 = vxpose.xlu0.b32.cont [4/16] %v9513, 128
    %10767 = vxpose.xlu0.b32.cont [5/16] 0.0, 128
    %10768 = vxpose.xlu0.b32.cont [6/16] 0.0, 128
    %10769 = vxpose.xlu0.b32.cont [7/16] 0.0, 128
    %10770 = vxpose.xlu0.b32.cont [8/16] 0.0, 128
    %10771 = vxpose.xlu0.b32.cont [9/16] 0.0, 128
    %10772 = vxpose.xlu0.b32.cont [10/16] 0.0, 128
    %10773 = vxpose.xlu0.b32.cont [11/16] 0.0, 128
    %10774 = vxpose.xlu0.b32.cont [12/16] 0.0, 128
    %10775 = vxpose.xlu0.b32.cont [13/16] 0.0, 128
    %10776 = vxpose.xlu0.b32.cont [14/16] 0.0, 128
    %10777 = vxpose.xlu0.b32.cont [15/16] 0.0, 128
    %10778 = vxpose.xlu0.b32.end [16/16] 0.0, 128
    %v10779 = vpop.trf.xlu0
    %v10780 = vpop.trf.xlu0
    %v10781 = vpop.trf.xlu0
    %v10782 = vpop.trf.xlu0
    %v10783 = vpop.trf.xlu0
    %v10784 = vpop.trf.xlu0
    %v10785 = vpop.trf.xlu0
    %v10786 = vpop.trf.xlu0
    %v10787 = vpop.trf.xlu0
    %v10788 = vpop.trf.xlu0
    %v10789 = vpop.trf.xlu0
    %v10790 = vpop.trf.xlu0
    %v10791 = vpop.trf.xlu0
    %v10792 = vpop.trf.xlu0
    %v10793 = vpop.trf.xlu0
    %v10794 = vpop.trf.xlu0
    %10795 = vxpose.xlu0.b32.start [1/16] %v9106, 128
    %10796 = vxpose.xlu0.b32.cont [2/16] %v9242, 128
    %10797 = vxpose.xlu0.b32.cont [3/16] %v9378, 128
    %10798 = vxpose.xlu0.b32.cont [4/16] %v9514, 128
    %10799 = vxpose.xlu0.b32.cont [5/16] 0.0, 128
    %10800 = vxpose.xlu0.b32.cont [6/16] 0.0, 128
    %10801 = vxpose.xlu0.b32.cont [7/16] 0.0, 128
    %10802 = vxpose.xlu0.b32.cont [8/16] 0.0, 128
    %10803 = vxpose.xlu0.b32.cont [9/16] 0.0, 128
    %10804 = vxpose.xlu0.b32.cont [10/16] 0.0, 128
    %10805 = vxpose.xlu0.b32.cont [11/16] 0.0, 128
    %10806 = vxpose.xlu0.b32.cont [12/16] 0.0, 128
    %10807 = vxpose.xlu0.b32.cont [13/16] 0.0, 128
    %10808 = vxpose.xlu0.b32.cont [14/16] 0.0, 128
    %10809 = vxpose.xlu0.b32.cont [15/16] 0.0, 128
    %10810 = vxpose.xlu0.b32.end [16/16] 0.0, 128
    %v10811 = vpop.trf.xlu0
    %v10812 = vpop.trf.xlu0
    %v10813 = vpop.trf.xlu0
    %v10814 = vpop.trf.xlu0
    %v10815 = vpop.trf.xlu0
    %v10816 = vpop.trf.xlu0
    %v10817 = vpop.trf.xlu0
    %v10818 = vpop.trf.xlu0
    %v10819 = vpop.trf.xlu0
    %v10820 = vpop.trf.xlu0
    %v10821 = vpop.trf.xlu0
    %v10822 = vpop.trf.xlu0
    %v10823 = vpop.trf.xlu0
    %v10824 = vpop.trf.xlu0
    %v10825 = vpop.trf.xlu0
    %v10826 = vpop.trf.xlu0
    %10827 = vxpose.xlu0.b32.start [1/16] %v9643, 128
    %10828 = vxpose.xlu0.b32.cont [2/16] %v9779, 128
    %10829 = vxpose.xlu0.b32.cont [3/16] %v9915, 128
    %10830 = vxpose.xlu0.b32.cont [4/16] %v10051, 128
    %10831 = vxpose.xlu0.b32.cont [5/16] 0.0, 128
    %10832 = vxpose.xlu0.b32.cont [6/16] 0.0, 128
    %10833 = vxpose.xlu0.b32.cont [7/16] 0.0, 128
    %10834 = vxpose.xlu0.b32.cont [8/16] 0.0, 128
    %10835 = vxpose.xlu0.b32.cont [9/16] 0.0, 128
    %10836 = vxpose.xlu0.b32.cont [10/16] 0.0, 128
    %10837 = vxpose.xlu0.b32.cont [11/16] 0.0, 128
    %10838 = vxpose.xlu0.b32.cont [12/16] 0.0, 128
    %10839 = vxpose.xlu0.b32.cont [13/16] 0.0, 128
    %10840 = vxpose.xlu0.b32.cont [14/16] 0.0, 128
    %10841 = vxpose.xlu0.b32.cont [15/16] 0.0, 128
    %10842 = vxpose.xlu0.b32.end [16/16] 0.0, 128
    %v10843 = vpop.trf.xlu0
    %v10844 = vpop.trf.xlu0
    %v10845 = vpop.trf.xlu0
    %v10846 = vpop.trf.xlu0
    %v10847 = vpop.trf.xlu0
    %v10848 = vpop.trf.xlu0
    %v10849 = vpop.trf.xlu0
    %v10850 = vpop.trf.xlu0
    %v10851 = vpop.trf.xlu0
    %v10852 = vpop.trf.xlu0
    %v10853 = vpop.trf.xlu0
    %v10854 = vpop.trf.xlu0
    %v10855 = vpop.trf.xlu0
    %v10856 = vpop.trf.xlu0
    %v10857 = vpop.trf.xlu0
    %v10858 = vpop.trf.xlu0
    %10859 = vxpose.xlu0.b32.start [1/16] %v9644, 128
    %10860 = vxpose.xlu0.b32.cont [2/16] %v9780, 128
    %10861 = vxpose.xlu0.b32.cont [3/16] %v9916, 128
    %10862 = vxpose.xlu0.b32.cont [4/16] %v10052, 128
    %10863 = vxpose.xlu0.b32.cont [5/16] 0.0, 128
    %10864 = vxpose.xlu0.b32.cont [6/16] 0.0, 128
    %10865 = vxpose.xlu0.b32.cont [7/16] 0.0, 128
    %10866 = vxpose.xlu0.b32.cont [8/16] 0.0, 128
    %10867 = vxpose.xlu0.b32.cont [9/16] 0.0, 128
    %10868 = vxpose.xlu0.b32.cont [10/16] 0.0, 128
    %10869 = vxpose.xlu0.b32.cont [11/16] 0.0, 128
    %10870 = vxpose.xlu0.b32.cont [12/16] 0.0, 128
    %10871 = vxpose.xlu0.b32.cont [13/16] 0.0, 128
    %10872 = vxpose.xlu0.b32.cont [14/16] 0.0, 128
    %10873 = vxpose.xlu0.b32.cont [15/16] 0.0, 128
    %10874 = vxpose.xlu0.b32.end [16/16] 0.0, 128
    %v10875 = vpop.trf.xlu0
    %v10876 = vpop.trf.xlu0
    %v10877 = vpop.trf.xlu0
    %v10878 = vpop.trf.xlu0
    %v10879 = vpop.trf.xlu0
    %v10880 = vpop.trf.xlu0
    %v10881 = vpop.trf.xlu0
    %v10882 = vpop.trf.xlu0
    %v10883 = vpop.trf.xlu0
    %v10884 = vpop.trf.xlu0
    %v10885 = vpop.trf.xlu0
    %v10886 = vpop.trf.xlu0
    %v10887 = vpop.trf.xlu0
    %v10888 = vpop.trf.xlu0
    %v10889 = vpop.trf.xlu0
    %v10890 = vpop.trf.xlu0
    %10891 = vxpose.xlu0.b32.start [1/16] %v9645, 128
    %10892 = vxpose.xlu0.b32.cont [2/16] %v9781, 128
    %10893 = vxpose.xlu0.b32.cont [3/16] %v9917, 128
    %10894 = vxpose.xlu0.b32.cont [4/16] %v10053, 128
    %10895 = vxpose.xlu0.b32.cont [5/16] 0.0, 128
    %10896 = vxpose.xlu0.b32.cont [6/16] 0.0, 128
    %10897 = vxpose.xlu0.b32.cont [7/16] 0.0, 128
    %10898 = vxpose.xlu0.b32.cont [8/16] 0.0, 128
    %10899 = vxpose.xlu0.b32.cont [9/16] 0.0, 128
    %10900 = vxpose.xlu0.b32.cont [10/16] 0.0, 128
    %10901 = vxpose.xlu0.b32.cont [11/16] 0.0, 128
    %10902 = vxpose.xlu0.b32.cont [12/16] 0.0, 128
    %10903 = vxpose.xlu0.b32.cont [13/16] 0.0, 128
    %10904 = vxpose.xlu0.b32.cont [14/16] 0.0, 128
    %10905 = vxpose.xlu0.b32.cont [15/16] 0.0, 128
    %10906 = vxpose.xlu0.b32.end [16/16] 0.0, 128
    %v10907 = vpop.trf.xlu0
    %v10908 = vpop.trf.xlu0
    %v10909 = vpop.trf.xlu0
    %v10910 = vpop.trf.xlu0
    %v10911 = vpop.trf.xlu0
    %v10912 = vpop.trf.xlu0
    %v10913 = vpop.trf.xlu0
    %v10914 = vpop.trf.xlu0
    %v10915 = vpop.trf.xlu0
    %v10916 = vpop.trf.xlu0
    %v10917 = vpop.trf.xlu0
    %v10918 = vpop.trf.xlu0
    %v10919 = vpop.trf.xlu0
    %v10920 = vpop.trf.xlu0
    %v10921 = vpop.trf.xlu0
    %v10922 = vpop.trf.xlu0
    %10923 = vxpose.xlu0.b32.start [1/16] %v9646, 128
    %10924 = vxpose.xlu0.b32.cont [2/16] %v9782, 128
    %10925 = vxpose.xlu0.b32.cont [3/16] %v9918, 128
    %10926 = vxpose.xlu0.b32.cont [4/16] %v10054, 128
    %10927 = vxpose.xlu0.b32.cont [5/16] 0.0, 128
    %10928 = vxpose.xlu0.b32.cont [6/16] 0.0, 128
    %10929 = vxpose.xlu0.b32.cont [7/16] 0.0, 128
    %10930 = vxpose.xlu0.b32.cont [8/16] 0.0, 128
    %10931 = vxpose.xlu0.b32.cont [9/16] 0.0, 128
    %10932 = vxpose.xlu0.b32.cont [10/16] 0.0, 128
    %10933 = vxpose.xlu0.b32.cont [11/16] 0.0, 128
    %10934 = vxpose.xlu0.b32.cont [12/16] 0.0, 128
    %10935 = vxpose.xlu0.b32.cont [13/16] 0.0, 128
    %10936 = vxpose.xlu0.b32.cont [14/16] 0.0, 128
    %10937 = vxpose.xlu0.b32.cont [15/16] 0.0, 128
    %10938 = vxpose.xlu0.b32.end [16/16] 0.0, 128
    %v10939 = vpop.trf.xlu0
    %v10940 = vpop.trf.xlu0
    %v10941 = vpop.trf.xlu0
    %v10942 = vpop.trf.xlu0
    %v10943 = vpop.trf.xlu0
    %v10944 = vpop.trf.xlu0
    %v10945 = vpop.trf.xlu0
    %v10946 = vpop.trf.xlu0
    %v10947 = vpop.trf.xlu0
    %v10948 = vpop.trf.xlu0
    %v10949 = vpop.trf.xlu0
    %v10950 = vpop.trf.xlu0
    %v10951 = vpop.trf.xlu0
    %v10952 = vpop.trf.xlu0
    %v10953 = vpop.trf.xlu0
    %v10954 = vpop.trf.xlu0
    %10955 = vxpose.xlu0.b32.start [1/16] %v9647, 128
    %10956 = vxpose.xlu0.b32.cont [2/16] %v9783, 128
    %10957 = vxpose.xlu0.b32.cont [3/16] %v9919, 128
    %10958 = vxpose.xlu0.b32.cont [4/16] %v10055, 128
    %10959 = vxpose.xlu0.b32.cont [5/16] 0.0, 128
    %10960 = vxpose.xlu0.b32.cont [6/16] 0.0, 128
    %10961 = vxpose.xlu0.b32.cont [7/16] 0.0, 128
    %10962 = vxpose.xlu0.b32.cont [8/16] 0.0, 128
    %10963 = vxpose.xlu0.b32.cont [9/16] 0.0, 128
    %10964 = vxpose.xlu0.b32.cont [10/16] 0.0, 128
    %10965 = vxpose.xlu0.b32.cont [11/16] 0.0, 128
    %10966 = vxpose.xlu0.b32.cont [12/16] 0.0, 128
    %10967 = vxpose.xlu0.b32.cont [13/16] 0.0, 128
    %10968 = vxpose.xlu0.b32.cont [14/16] 0.0, 128
    %10969 = vxpose.xlu0.b32.cont [15/16] 0.0, 128
    %10970 = vxpose.xlu0.b32.end [16/16] 0.0, 128
    %v10971 = vpop.trf.xlu0
    %v10972 = vpop.trf.xlu0
    %v10973 = vpop.trf.xlu0
    %v10974 = vpop.trf.xlu0
    %v10975 = vpop.trf.xlu0
    %v10976 = vpop.trf.xlu0
    %v10977 = vpop.trf.xlu0
    %v10978 = vpop.trf.xlu0
    %v10979 = vpop.trf.xlu0
    %v10980 = vpop.trf.xlu0
    %v10981 = vpop.trf.xlu0
    %v10982 = vpop.trf.xlu0
    %v10983 = vpop.trf.xlu0
    %v10984 = vpop.trf.xlu0
    %v10985 = vpop.trf.xlu0
    %v10986 = vpop.trf.xlu0
    %10987 = vxpose.xlu0.b32.start [1/16] %v9648, 128
    %10988 = vxpose.xlu0.b32.cont [2/16] %v9784, 128
    %10989 = vxpose.xlu0.b32.cont [3/16] %v9920, 128
    %10990 = vxpose.xlu0.b32.cont [4/16] %v10056, 128
    %10991 = vxpose.xlu0.b32.cont [5/16] 0.0, 128
    %10992 = vxpose.xlu0.b32.cont [6/16] 0.0, 128
    %10993 = vxpose.xlu0.b32.cont [7/16] 0.0, 128
    %10994 = vxpose.xlu0.b32.cont [8/16] 0.0, 128
    %10995 = vxpose.xlu0.b32.cont [9/16] 0.0, 128
    %10996 = vxpose.xlu0.b32.cont [10/16] 0.0, 128
    %10997 = vxpose.xlu0.b32.cont [11/16] 0.0, 128
    %10998 = vxpose.xlu0.b32.cont [12/16] 0.0, 128
    %10999 = vxpose.xlu0.b32.cont [13/16] 0.0, 128
    %11000 = vxpose.xlu0.b32.cont [14/16] 0.0, 128
    %11001 = vxpose.xlu0.b32.cont [15/16] 0.0, 128
    %11002 = vxpose.xlu0.b32.end [16/16] 0.0, 128
    %v11003 = vpop.trf.xlu0
    %v11004 = vpop.trf.xlu0
    %v11005 = vpop.trf.xlu0
    %v11006 = vpop.trf.xlu0
    %v11007 = vpop.trf.xlu0
    %v11008 = vpop.trf.xlu0
    %v11009 = vpop.trf.xlu0
    %v11010 = vpop.trf.xlu0
    %v11011 = vpop.trf.xlu0
    %v11012 = vpop.trf.xlu0
    %v11013 = vpop.trf.xlu0
    %v11014 = vpop.trf.xlu0
    %v11015 = vpop.trf.xlu0
    %v11016 = vpop.trf.xlu0
    %v11017 = vpop.trf.xlu0
    %v11018 = vpop.trf.xlu0
    %11019 = vxpose.xlu0.b32.start [1/16] %v9649, 128
    %11020 = vxpose.xlu0.b32.cont [2/16] %v9785, 128
    %11021 = vxpose.xlu0.b32.cont [3/16] %v9921, 128
    %11022 = vxpose.xlu0.b32.cont [4/16] %v10057, 128
    %11023 = vxpose.xlu0.b32.cont [5/16] 0.0, 128
    %11024 = vxpose.xlu0.b32.cont [6/16] 0.0, 128
    %11025 = vxpose.xlu0.b32.cont [7/16] 0.0, 128
    %11026 = vxpose.xlu0.b32.cont [8/16] 0.0, 128
    %11027 = vxpose.xlu0.b32.cont [9/16] 0.0, 128
    %11028 = vxpose.xlu0.b32.cont [10/16] 0.0, 128
    %11029 = vxpose.xlu0.b32.cont [11/16] 0.0, 128
    %11030 = vxpose.xlu0.b32.cont [12/16] 0.0, 128
    %11031 = vxpose.xlu0.b32.cont [13/16] 0.0, 128
    %11032 = vxpose.xlu0.b32.cont [14/16] 0.0, 128
    %11033 = vxpose.xlu0.b32.cont [15/16] 0.0, 128
    %11034 = vxpose.xlu0.b32.end [16/16] 0.0, 128
    %v11035 = vpop.trf.xlu0
    %v11036 = vpop.trf.xlu0
    %v11037 = vpop.trf.xlu0
    %v11038 = vpop.trf.xlu0
    %v11039 = vpop.trf.xlu0
    %v11040 = vpop.trf.xlu0
    %v11041 = vpop.trf.xlu0
    %v11042 = vpop.trf.xlu0
    %v11043 = vpop.trf.xlu0
    %v11044 = vpop.trf.xlu0
    %v11045 = vpop.trf.xlu0
    %v11046 = vpop.trf.xlu0
    %v11047 = vpop.trf.xlu0
    %v11048 = vpop.trf.xlu0
    %v11049 = vpop.trf.xlu0
    %v11050 = vpop.trf.xlu0
    %11051 = vxpose.xlu0.b32.start [1/16] %v9650, 128
    %11052 = vxpose.xlu0.b32.cont [2/16] %v9786, 128
    %11053 = vxpose.xlu0.b32.cont [3/16] %v9922, 128
    %11054 = vxpose.xlu0.b32.cont [4/16] %v10058, 128
    %11055 = vxpose.xlu0.b32.cont [5/16] 0.0, 128
    %11056 = vxpose.xlu0.b32.cont [6/16] 0.0, 128
    %11057 = vxpose.xlu0.b32.cont [7/16] 0.0, 128
    %11058 = vxpose.xlu0.b32.cont [8/16] 0.0, 128
    %11059 = vxpose.xlu0.b32.cont [9/16] 0.0, 128
    %11060 = vxpose.xlu0.b32.cont [10/16] 0.0, 128
    %11061 = vxpose.xlu0.b32.cont [11/16] 0.0, 128
    %11062 = vxpose.xlu0.b32.cont [12/16] 0.0, 128
    %11063 = vxpose.xlu0.b32.cont [13/16] 0.0, 128
    %11064 = vxpose.xlu0.b32.cont [14/16] 0.0, 128
    %11065 = vxpose.xlu0.b32.cont [15/16] 0.0, 128
    %11066 = vxpose.xlu0.b32.end [16/16] 0.0, 128
    %v11067 = vpop.trf.xlu0
    %v11068 = vpop.trf.xlu0
    %v11069 = vpop.trf.xlu0
    %v11070 = vpop.trf.xlu0
    %v11071 = vpop.trf.xlu0
    %v11072 = vpop.trf.xlu0
    %v11073 = vpop.trf.xlu0
    %v11074 = vpop.trf.xlu0
    %v11075 = vpop.trf.xlu0
    %v11076 = vpop.trf.xlu0
    %v11077 = vpop.trf.xlu0
    %v11078 = vpop.trf.xlu0
    %v11079 = vpop.trf.xlu0
    %v11080 = vpop.trf.xlu0
    %v11081 = vpop.trf.xlu0
    %v11082 = vpop.trf.xlu0
    %v11083 = vcombine.low %v10075, %v10139
    %v11085 = vunpack.c.l.s4 1983009808
    %v11086 = vunpack.c.0.s8 %v11085
    %v11087 = vlaneseq
    %v11088 = vshrl.u32 %v11087, 7
    %v11089 = vsub.s32 %v11086, %v11088
    %v11090 = vrot.slane %v11083, %v11089
    %v11091 = vcombine.low %v10107, %v10171
    %v11093 = vunpack.c.l.s4 1983009808
    %v11094 = vunpack.c.0.s8 %v11093
    %v11095 = vlaneseq
    %v11096 = vshrl.u32 %v11095, 7
    %v11097 = vsub.s32 %v11094, %v11096
    %v11098 = vrot.slane %v11091, %v11097
    %v11099 = vcombine.low %v10203, %v10267
    %v11101 = vunpack.c.l.s4 1983009808
    %v11102 = vunpack.c.0.s8 %v11101
    %v11103 = vlaneseq
    %v11104 = vshrl.u32 %v11103, 7
    %v11105 = vsub.s32 %v11102, %v11104
    %v11106 = vrot.slane %v11099, %v11105
    %v11107 = vcombine.low %v10235, %v10299
    %v11109 = vunpack.c.l.s4 1983009808
    %v11110 = vunpack.c.0.s8 %v11109
    %v11111 = vlaneseq
    %v11112 = vshrl.u32 %v11111, 7
    %v11113 = vsub.s32 %v11110, %v11112
    %v11114 = vrot.slane %v11107, %v11113
    %v11115 = vcombine.low %v11090, %v11098
    %v11117 = vunpack.c.l.s4 1934713408
    %v11118 = vunpack.c.0.s8 %v11117
    %v11119 = vlaneseq
    %v11120 = vshrl.u32 %v11119, 7
    %v11121 = vsub.s32 %v11118, %v11120
    %v11122 = vrot.slane %v11115, %v11121
    %v11123 = vcombine.low %v11106, %v11114
    %v11125 = vunpack.c.l.s4 1934713408
    %v11126 = vunpack.c.0.s8 %v11125
    %v11127 = vlaneseq
    %v11128 = vshrl.u32 %v11127, 7
    %v11129 = vsub.s32 %v11126, %v11128
    %v11130 = vrot.slane %v11123, %v11129
    %v11131 = vcombine.low %v11122, %v11130
    %v11132 = vcombine.high %v11122, %v11130
    %v11133 = vcombine.low %v10331, %v10395
    %v11135 = vunpack.c.l.s4 1983009808
    %v11136 = vunpack.c.0.s8 %v11135
    %v11137 = vlaneseq
    %v11138 = vshrl.u32 %v11137, 7
    %v11139 = vsub.s32 %v11136, %v11138
    %v11140 = vrot.slane %v11133, %v11139
    %v11141 = vcombine.low %v10363, %v10427
    %v11143 = vunpack.c.l.s4 1983009808
    %v11144 = vunpack.c.0.s8 %v11143
    %v11145 = vlaneseq
    %v11146 = vshrl.u32 %v11145, 7
    %v11147 = vsub.s32 %v11144, %v11146
    %v11148 = vrot.slane %v11141, %v11147
    %v11149 = vcombine.low %v10459, %v10523
    %v11151 = vunpack.c.l.s4 1983009808
    %v11152 = vunpack.c.0.s8 %v11151
    %v11153 = vlaneseq
    %v11154 = vshrl.u32 %v11153, 7
    %v11155 = vsub.s32 %v11152, %v11154
    %v11156 = vrot.slane %v11149, %v11155
    %v11157 = vcombine.low %v10491, %v10555
    %v11159 = vunpack.c.l.s4 1983009808
    %v11160 = vunpack.c.0.s8 %v11159
    %v11161 = vlaneseq
    %v11162 = vshrl.u32 %v11161, 7
    %v11163 = vsub.s32 %v11160, %v11162
    %v11164 = vrot.slane %v11157, %v11163
    %v11165 = vcombine.low %v11140, %v11148
    %v11167 = vunpack.c.l.s4 1934713408
    %v11168 = vunpack.c.0.s8 %v11167
    %v11169 = vlaneseq
    %v11170 = vshrl.u32 %v11169, 7
    %v11171 = vsub.s32 %v11168, %v11170
    %v11172 = vrot.slane %v11165, %v11171
    %v11173 = vcombine.low %v11156, %v11164
    %v11175 = vunpack.c.l.s4 1934713408
    %v11176 = vunpack.c.0.s8 %v11175
    %v11177 = vlaneseq
    %v11178 = vshrl.u32 %v11177, 7
    %v11179 = vsub.s32 %v11176, %v11178
    %v11180 = vrot.slane %v11173, %v11179
    %v11181 = vcombine.low %v11172, %v11180
    %v11182 = vcombine.high %v11172, %v11180
    %v11183 = vcombine.low %v10587, %v10651
    %v11185 = vunpack.c.l.s4 1983009808
    %v11186 = vunpack.c.0.s8 %v11185
    %v11187 = vlaneseq
    %v11188 = vshrl.u32 %v11187, 7
    %v11189 = vsub.s32 %v11186, %v11188
    %v11190 = vrot.slane %v11183, %v11189
    %v11191 = vcombine.low %v10619, %v10683
    %v11193 = vunpack.c.l.s4 1983009808
    %v11194 = vunpack.c.0.s8 %v11193
    %v11195 = vlaneseq
    %v11196 = vshrl.u32 %v11195, 7
    %v11197 = vsub.s32 %v11194, %v11196
    %v11198 = vrot.slane %v11191, %v11197
    %v11199 = vcombine.low %v10715, %v10779
    %v11201 = vunpack.c.l.s4 1983009808
    %v11202 = vunpack.c.0.s8 %v11201
    %v11203 = vlaneseq
    %v11204 = vshrl.u32 %v11203, 7
    %v11205 = vsub.s32 %v11202, %v11204
    %v11206 = vrot.slane %v11199, %v11205
    %v11207 = vcombine.low %v10747, %v10811
    %v11209 = vunpack.c.l.s4 1983009808
    %v11210 = vunpack.c.0.s8 %v11209
    %v11211 = vlaneseq
    %v11212 = vshrl.u32 %v11211, 7
    %v11213 = vsub.s32 %v11210, %v11212
    %v11214 = vrot.slane %v11207, %v11213
    %v11215 = vcombine.low %v11190, %v11198
    %v11217 = vunpack.c.l.s4 1934713408
    %v11218 = vunpack.c.0.s8 %v11217
    %v11219 = vlaneseq
    %v11220 = vshrl.u32 %v11219, 7
    %v11221 = vsub.s32 %v11218, %v11220
    %v11222 = vrot.slane %v11215, %v11221
    %v11223 = vcombine.low %v11206, %v11214
    %v11225 = vunpack.c.l.s4 1934713408
    %v11226 = vunpack.c.0.s8 %v11225
    %v11227 = vlaneseq
    %v11228 = vshrl.u32 %v11227, 7
    %v11229 = vsub.s32 %v11226, %v11228
    %v11230 = vrot.slane %v11223, %v11229
    %v11231 = vcombine.low %v11222, %v11230
    %v11232 = vcombine.high %v11222, %v11230
    %v11233 = vcombine.low %v10843, %v10907
    %v11235 = vunpack.c.l.s4 1983009808
    %v11236 = vunpack.c.0.s8 %v11235
    %v11237 = vlaneseq
    %v11238 = vshrl.u32 %v11237, 7
    %v11239 = vsub.s32 %v11236, %v11238
    %v11240 = vrot.slane %v11233, %v11239
    %v11241 = vcombine.low %v10875, %v10939
    %v11243 = vunpack.c.l.s4 1983009808
    %v11244 = vunpack.c.0.s8 %v11243
    %v11245 = vlaneseq
    %v11246 = vshrl.u32 %v11245, 7
    %v11247 = vsub.s32 %v11244, %v11246
    %v11248 = vrot.slane %v11241, %v11247
    %v11249 = vcombine.low %v10971, %v11035
    %v11251 = vunpack.c.l.s4 1983009808
    %v11252 = vunpack.c.0.s8 %v11251
    %v11253 = vlaneseq
    %v11254 = vshrl.u32 %v11253, 7
    %v11255 = vsub.s32 %v11252, %v11254
    %v11256 = vrot.slane %v11249, %v11255
    %v11257 = vcombine.low %v11003, %v11067
    %v11259 = vunpack.c.l.s4 1983009808
    %v11260 = vunpack.c.0.s8 %v11259
    %v11261 = vlaneseq
    %v11262 = vshrl.u32 %v11261, 7
    %v11263 = vsub.s32 %v11260, %v11262
    %v11264 = vrot.slane %v11257, %v11263
    %v11265 = vcombine.low %v11240, %v11248
    %v11267 = vunpack.c.l.s4 1934713408
    %v11268 = vunpack.c.0.s8 %v11267
    %v11269 = vlaneseq
    %v11270 = vshrl.u32 %v11269, 7
    %v11271 = vsub.s32 %v11268, %v11270
    %v11272 = vrot.slane %v11265, %v11271
    %v11273 = vcombine.low %v11256, %v11264
    %v11275 = vunpack.c.l.s4 1934713408
    %v11276 = vunpack.c.0.s8 %v11275
    %v11277 = vlaneseq
    %v11278 = vshrl.u32 %v11277, 7
    %v11279 = vsub.s32 %v11276, %v11278
    %v11280 = vrot.slane %v11273, %v11279
    %v11281 = vcombine.low %v11272, %v11280
    %v11282 = vcombine.high %v11272, %v11280
    %v11283 = vsel %vm26, %v11131, 0.0
    %v11284 = vsel %vm26, %v11181, 0.0
    %v11285 = vadd.f32 %v11283, %v11284
    %v11286 = vsel %vm26, %v11231, 0.0
    %v11287 = vadd.f32 %v11285, %v11286
    %v11288 = vsel %vm26, %v11281, 0.0
    %v11289 = vadd.f32 %v11287, %v11288
    %v11290 = vsel %vm26, %v11132, 0.0
    %v11291 = vsel %vm26, %v11182, 0.0
    %v11292 = vadd.f32 %v11290, %v11291
    %v11293 = vsel %vm26, %v11232, 0.0
    %v11294 = vadd.f32 %v11292, %v11293
    %v11295 = vsel %vm26, %v11282, 0.0
    %v11296 = vadd.f32 %v11294, %v11295
    %v11297 = vsel %vm26, %v11289, 0.0
    %11298 = vadd.xlane.f32.xlu0 %v11297
    %v11299 = vpop.xlane.xlu0 %11298
    %v11300 = vsel %vm26, %v11296, 0.0
    %11301 = vadd.xlane.f32.xlu0 %v11300
    %v11302 = vpop.xlane.xlu0 %11301
    %v11303 = vmul.f32 %v11299, %v33
    %v11304 = vmul.f32 %v11302, %v33
    %v11305 = vsub.f32 %v11289, %v11303
    %v11306 = vsub.f32 %v11296, %v11304
    %v11307 = vmul.f32 %v11305, %v11305
    %v11308 = vmul.f32 %v11306, %v11306
    %v11309 = vsel %vm26, %v11307, 0.0
    %11310 = vadd.xlane.f32.xlu0 %v11309
    %v11311 = vpop.xlane.xlu0 %11310
    %v11312 = vsel %vm26, %v11308, 0.0
    %11313 = vadd.xlane.f32.xlu0 %v11312
    %v11314 = vpop.xlane.xlu0 %11313
    %v11315 = vmul.f32 %v11311, %v33
    %v11316 = vmul.f32 %v11314, %v33
    %v11317 = vadd.f32 %v11315, 1e-05
    %v11318 = vadd.f32 %v11316, 1e-05
    %v11319 = vrsqrt.pop %v11317
    %v11320 = vrsqrt.pop %v11318
    %v11321 = vmul.f32 %v11305, %v11319
    %v11322 = vmul.f32 %v11306, %v11320
    %v11323 = vld [vmem:[%s5] sm:$0x1]
    %v11325 = vlaneseq
    %v11326 = vshrl.u32 %v11325, 7
    %v11327 = vsub.s32 0, %v11326
    %v11328 = vrot.slane %v11323, %v11327
    %v11330 = vmul.f32 %v11321, %v11328
    %v11331 = vmul.f32 %v11322, %v11328
    %11332 = vst.msk [vmem:[#allocation2] sm:$0xff] %vm26, %v11330
    %11333 = vst.msk [vmem:[#allocation2 + $0x8] sm:$0xff] %vm26, %v11331
    // Predicated region
    $region26: #{tpu_custom_call.1} parent=1 // pred_check
      _
    $region27: #{tpu_custom_call.1} parent=1 // pred_check_branch
      %11335 = sbr.rel (0) target = $region29
    $region28: #{tpu_custom_call.1} parent=1 // pred_region
      %s11337 = ssub.s32 256, 256
      %11338 = vsyncadd [#allocation3], %s11337
      %s11339 = sshll.u32 [#allocation2], 4
      %s11340 = int_to_ptr.vmem [resolvable:$true] %s11339
      %11345 = dma.vmem_to_hbm [thread:$0]  %s11340, 256, %s6, [#allocation3], 128, 128, 8
    $region29: #{tpu_custom_call.1} parent=1 // pred_fallthru
      _
    // Predicated region
    $region30: #{tpu_custom_call.1} parent=1 // pred_check
      _
    $region31: #{tpu_custom_call.1} parent=1 // pred_check_branch
      %11347 = sbr.rel (0) target = $region33
    $region32: #{tpu_custom_call.1} parent=1 // pred_region
      %11348 = dma.done [#allocation3], 256
    $region33: #{tpu_custom_call.1} parent=1 // pred_fallthru
      _
    %11349 = vsyncpa [#allocation3], 1

</llo_original>
